<compile_context>
chip_gen: v7x
topology: tpu7x:2x2x1
jax: 0.10.0
libtpu: 0.0.40
codegen_flags: <defaults>
</compile_context>

<pallas_src>
import jax
import jax.numpy as jnp
from jax.experimental import pallas as pl
from jax.experimental.pallas import tpu as pltpu

EPS = 1e-5   # nn.BatchNorm1d default eps
LANE = 128   # TPU vreg lane width


def _round_up(n, m=LANE):
    return ((n + m - 1) // m) * m


# ------------------------------ in-kernel helpers -----------------------------

def _conv_bn(x, w_taps, gamma, beta, residual=None, relu=True):
    """'same' conv1d (odd K, no bias) as K per-tap matmuls + training-mode BN.

    x:      [B, T, C]        f32
    w_taps: [K, C, Cout]     bf16 (one [C, Cout] weight per tap)
    gamma/beta: [1, Cout]    f32
    BN statistics include padded time steps, exactly like the PyTorch module
    (BN is applied to the padded tensor before packing).
    """
    B, T, C = x.shape
    K = w_taps.shape[0]
    Cout = w_taps.shape[2]
    pad = K // 2

    xb = x.astype(jnp.bfloat16)                               # cast once
    zp = jnp.zeros((B, pad, C), jnp.bfloat16)
    xp = jnp.concatenate([zp, xb, zp], axis=1)                # [B, T+2p, C]

    y = jnp.zeros((B * T, Cout), jnp.float32)
    for k in range(K):                                        # accumulate taps
        y = y + jnp.dot(xp[:, k:k + T, :].reshape(B * T, C), w_taps[k],
                        preferred_element_type=jnp.float32)

    # training-mode batch stats (biased var), two-pass (center before squaring)
    mean = jnp.mean(y, axis=0, keepdims=True)
    d = y - mean
    var = jnp.mean(d * d, axis=0, keepdims=True)
    y = d * (gamma * jax.lax.rsqrt(var + EPS)) + beta
    y = y.reshape(B, T, Cout)
    if residual is not None:
        y = y + residual
    if relu:
        y = jnp.maximum(y, 0.0)
    return y


# --------------------------------- fused kernel -------------------------------

def fused_kernel(x_ref, lens_bt_ref, lens_tb_ref,
                 c0w_ref, bn0g_ref, bn0b_ref,
                 rw_ref, rg_ref, rb_ref,
                 wih_ref, bih_ref, whh_ref, bhh_ref,
                 awf_ref, awb_ref, ab_ref,
                 o_ref, hscr_ref):
    x = x_ref[...]                                  # [B, T, Cin_p] f32
    B, T, _ = x.shape
    n_layers = rw_ref.shape[0]
    H = whh_ref.shape[0] // 2                       # true hidden size
    GB = whh_ref.shape[1] // 2                      # packed gate block (>= 3H)
    HPAD = hscr_ref.shape[3]                        # lane-padded hidden width

    # -------------------- ResNet: stem + residual blocks ----------------------
    out = _conv_bn(x, c0w_ref[...], bn0g_ref[...], bn0b_ref[...])
    for i in range(n_layers):
        res = out
        h1 = _conv_bn(out, rw_ref[i, 0], rg_ref[i, 0], rb_ref[i, 0])
        out = _conv_bn(h1, rw_ref[i, 1], rg_ref[i, 1], rb_ref[i, 1],
                       residual=res)

    # -------------------- bidirectional GRU -----------------------------------
    Cp = out.shape[2]
    # hoisted input projection for BOTH directions (one MXU matmul up front)
    gi_all = (jnp.dot(out.reshape(B * T, Cp).astype(jnp.bfloat16), wih_ref[...],
                      preferred_element_type=jnp.float32)
              + bih_ref[...]).reshape(B, T, 2 * GB)

    whh = whh_ref[...]                              # [2H, 2*GB] block-diagonal
    bhh = bhh_ref[...]                              # [1, 2*GB]
    lens_bt = lens_bt_ref[...]                      # [B, 1] int32

    def cell(gi, gh, h):
        # gates packed contiguously: r at [0:H], z at [H:2H], n at [2H:3H]
        rz = jax.nn.sigmoid(gi[:, 0:2 * H] + gh[:, 0:2 * H])   # one EUP pass
        r, z = rz[:, 0:H], rz[:, H:2 * H]
        n = jnp.tanh(gi[:, 2 * H:3 * H] + r * gh[:, 2 * H:3 * H])
        return (1.0 - z) * n + z * h

    lane_pad = (jnp.zeros((B, HPAD - H), jnp.float32) if HPAD > H else None)

    def pad_row(v):                                 # [B, H] -> [B, HPAD]
        return v if lane_pad is None else jnp.concatenate([v, lane_pad], axis=-1)

    h_f = jnp.zeros((B, H), jnp.float32)
    h_b = jnp.zeros((B, H), jnp.float32)
    # Fully unrolled (T small & static); fwd (t=i) and bwd (t=T-1-i) share one
    # iteration and ONE block-diagonal recurrence matmul per step.
    for i in range(T):
        tf, tb = i, T - 1 - i
        mf = lens_bt > tf                           # [B, 1] packed-seq masks
        mb = lens_bt > tb
        h_cat = jnp.concatenate([h_f, h_b], axis=-1)            # [B, 2H]
        gh = jnp.dot(h_cat.astype(jnp.bfloat16), whh,
                     preferred_element_type=jnp.float32) + bhh   # [B, 2*GB]
        cand_f = cell(gi_all[:, tf, 0:GB], gh[:, 0:GB], h_f)
        cand_b = cell(gi_all[:, tb, GB:2 * GB], gh[:, GB:2 * GB], h_b)
        h_f = jnp.where(mf, cand_f, h_f)
        h_b = jnp.where(mb, cand_b, h_b)
        # packed outputs: 0 for t >= len; full 128-lane row stores into scratch
        hscr_ref[0, tf] = pad_row(jnp.where(mf, h_f, 0.0))
        hscr_ref[1, tb] = pad_row(jnp.where(mb, h_b, 0.0))

    h_f_all = hscr_ref[0]                           # [T, B, HPAD]
    h_b_all = hscr_ref[1]

    # -------------------- attention (VPU mul + reduce; no MXU) ----------------
    lens_tb = lens_tb_ref[...]                      # [1, B] int32
    mask_tb = jax.lax.broadcasted_iota(jnp.int32, (T, B), 0) < lens_tb
    e = (jnp.sum(h_f_all * awf_ref[...], axis=-1)
         + jnp.sum(h_b_all * awb_ref[...], axis=-1) + ab_ref[...])   # [T, B]
    e = jnp.where(mask_tb, e, -1e30)                # finite mask value (no NaN)
    m = jnp.max(e, axis=0, keepdims=True)
    p = jnp.where(mask_tb, jnp.exp(e - m), 0.0)
    denom = jnp.maximum(jnp.sum(p, axis=0, keepdims=True), 1e-30)
    alpha = p / denom                               # [T, B]
    o_ref[0] = jnp.sum(alpha[:, :, None] * h_f_all, axis=0)      # [B, HPAD]
    o_ref[1] = jnp.sum(alpha[:, :, None] * h_b_all, axis=0)


# ----------------------------------- wrapper ----------------------------------

def _vmem_specs(n):
    return [pl.BlockSpec(memory_space=pltpu.MemorySpace.VMEM) for _ in range(n)]


def prepare_params(p):
    """One-time weight prep: lane-pad channels, per-tap conv weights, pack GRU
    gates contiguously (r|z|n at true H) with ONE pad per direction block,
    build the block-diagonal fwd/bwd recurrent weight, cast MXU operands to
    bf16.  Zero padding is exact: padded lanes stay 0 through every stage."""
    K, Cin, Cout = p["conv0_w"].shape
    n_layers = p["res_conv_w"].shape[0]
    H = p["gru_whh_f"].shape[0]
    Cin_p, Cout_p = _round_up(Cin), _round_up(Cout)
    GB = _round_up(3 * H)          # packed (r|z|n) block per direction
    HPAD = _round_up(H)            # lane-padded per-direction hidden width

    conv0 = jnp.zeros((K, Cin_p, Cout_p), jnp.float32)
    conv0 = conv0.at[:, :Cin, :Cout].set(p["conv0_w"]).astype(jnp.bfloat16)

    resw = jnp.zeros((n_layers, 2, K, Cout_p, Cout_p), jnp.float32)
    resw = resw.at[:, :, :, :Cout, :Cout].set(p["res_conv_w"]).astype(jnp.bfloat16)

    def pad_last(a, real, padded):
        return jnp.pad(a, [(0, 0)] * (a.ndim - 1) + [(0, padded - real)])

    bn0_g = pad_last(p["bn0_g"], Cout, Cout_p)
    bn0_b = pad_last(p["bn0_b"], Cout, Cout_p)
    res_g = pad_last(p["res_bn_g"], Cout, Cout_p)
    res_b = pad_last(p["res_bn_b"], Cout, Cout_p)

    def pack_rows(w, rows_real, rows_pad):        # w: [rows_real, 3H], (r|z|n)
        out = jnp.zeros((rows_pad, GB), jnp.float32)
        return out.at[:rows_real, :3 * H].set(w)

    def pack_bias(b):                             # b: [1, 3H]
        out = jnp.zeros((1, GB), jnp.float32)
        return out.at[:, :3 * H].set(b)

    wih_cat = jnp.concatenate(
        [pack_rows(p["gru_wih_f"], Cout, Cout_p),
         pack_rows(p["gru_wih_b"], Cout, Cout_p)], axis=1).astype(jnp.bfloat16)
    bih_cat = jnp.concatenate(
        [pack_bias(p["gru_bih_f"]), pack_bias(p["gru_bih_b"])], axis=1)

    # block-diagonal recurrent weight: rows [0:H]=fwd h, [H:2H]=bwd h
    whh_cat = jnp.zeros((2 * H, 2 * GB), jnp.float32)
    whh_cat = whh_cat.at[0:H, 0:3 * H].set(p["gru_whh_f"])
    whh_cat = whh_cat.at[H:2 * H, GB:GB + 3 * H].set(p["gru_whh_b"])
    whh_cat = whh_cat.astype(jnp.bfloat16)
    bhh_cat = jnp.concatenate(
        [pack_bias(p["gru_bhh_f"]), pack_bias(p["gru_bhh_b"])], axis=1)

    attw_f = jnp.zeros((1, 1, HPAD), jnp.float32).at[0, 0, :H].set(p["att_w"][0, :H])
    attw_b = jnp.zeros((1, 1, HPAD), jnp.float32).at[0, 0, :H].set(p["att_w"][0, H:2 * H])
    att_b = p["att_b"]

    return dict(conv0_w=conv0, bn0_g=bn0_g, bn0_b=bn0_b,
                res_w=resw, res_g=res_g, res_b=res_b,
                wih_cat=wih_cat, bih_cat=bih_cat,
                whh_cat=whh_cat, bhh_cat=bhh_cat,
                attw_f=attw_f, attw_b=attw_b, att_b=att_b,
                dims=dict(Cin=Cin, Cout=Cout, H=H,
                          Cin_p=Cin_p, Cout_p=Cout_p, GB=GB, HPAD=HPAD))


def learning_module_forward(x, x_length, prep):
    B, T, Cin = x.shape
    d = prep["dims"]
    Cin_p, H, HPAD = d["Cin_p"], d["H"], d["HPAD"]

    x_p = jnp.pad(x, ((0, 0), (0, 0), (0, Cin_p - Cin)))  # lane-pad input chans
    lens = x_length.astype(jnp.int32)
    lens_bt = lens.reshape(B, 1)      # [B,1] for per-step GRU masks
    lens_tb = lens.reshape(1, B)      # [1,B] for the [T,B] attention mask

    out = pl.pallas_call(
        fused_kernel,
        out_shape=jax.ShapeDtypeStruct((2, B, HPAD), jnp.float32),
        in_specs=_vmem_specs(16),
        out_specs=pl.BlockSpec(memory_space=pltpu.MemorySpace.VMEM),
        scratch_shapes=[pltpu.VMEM((2, T, B, HPAD), jnp.float32)],
    )(x_p, lens_bt, lens_tb,
      prep["conv0_w"], prep["bn0_g"], prep["bn0_b"],
      prep["res_w"], prep["res_g"], prep["res_b"],
      prep["wih_cat"], prep["bih_cat"], prep["whh_cat"], prep["bhh_cat"],
      prep["attw_f"], prep["attw_b"], prep["att_b"])

    # drop lane padding: fwd hidden plane 0 lanes [0:H], bwd plane 1 lanes [0:H]
    return jnp.concatenate([out[0, :, :H], out[1, :, :H]], axis=-1)


# ----------------------------------- params -----------------------------------

def init_params(key, in_channels, out_channels, kernel_size, n_layers, n_hidden):
    keys = jax.random.split(key, 12)
    s = 0.1
    H = n_hidden
    conv0_w = s * jax.random.normal(keys[0], (kernel_size, in_channels, out_channels), jnp.float32)
    res_conv_w = s * jax.random.normal(
        keys[1], (n_layers, 2, kernel_size, out_channels, out_channels), jnp.float32)
    bn0_g = jnp.ones((1, out_channels), jnp.float32)
    bn0_b = jnp.zeros((1, out_channels), jnp.float32)
    res_bn_g = jnp.ones((n_layers, 2, 1, out_channels), jnp.float32)
    res_bn_b = jnp.zeros((n_layers, 2, 1, out_channels), jnp.float32)

    def gru_dir(k1, k2, k3, k4):
        return (s * jax.random.normal(k1, (out_channels, 3 * H), jnp.float32),  # W_ih^T (r,z,n)
                s * jax.random.normal(k2, (H, 3 * H), jnp.float32),             # W_hh^T (r,z,n)
                s * jax.random.normal(k3, (1, 3 * H), jnp.float32),             # b_ih
                s * jax.random.normal(k4, (1, 3 * H), jnp.float32))             # b_hh

    wih_f, whh_f, bih_f, bhh_f = gru_dir(keys[2], keys[3], keys[4], keys[5])
    wih_b, whh_b, bih_b, bhh_b = gru_dir(keys[6], keys[7], keys[8], keys[9])

    att_w = s * jax.random.normal(keys[10], (1, 2 * H), jnp.float32)
    att_b = s * jax.random.normal(keys[11], (1, 1), jnp.float32)

    return dict(conv0_w=conv0_w, bn0_g=bn0_g, bn0_b=bn0_b,
                res_conv_w=res_conv_w, res_bn_g=res_bn_g, res_bn_b=res_bn_b,
                gru_wih_f=wih_f, gru_whh_f=whh_f, gru_bih_f=bih_f, gru_bhh_f=bhh_f,
                gru_wih_b=wih_b, gru_whh_b=whh_b, gru_bih_b=bih_b, gru_bhh_b=bhh_b,
                att_w=att_w, att_b=att_b)


if __name__ == "__main__":
    # small shapes consistent with the module's forward
    B, T = 2, 12
    in_channels, out_channels, kernel_size, n_layers, n_hidden = 4, 8, 3, 2, 16

    key = jax.random.PRNGKey(0)
    kx, kp = jax.random.split(key)
    x = jax.random.normal(kx, (B, T, in_channels), jnp.float32)   # [batch, max_len, input_dim]
    x_length = jnp.array([12, 9], dtype=jnp.int32)                # sorted desc (pack_padded_sequence)

    params = init_params(kp, in_channels, out_channels, kernel_size, n_layers, n_hidden)
    prepared = prepare_params(params)

    r = learning_module_forward(x, x_length, prepared)
    r = jax.block_until_ready(r)
    assert r.shape == (B, 2 * n_hidden) and r.dtype == jnp.float32
    assert bool(jnp.all(jnp.isfinite(r)))
    print("KERNEL_OK")
</pallas_src>

<mosaic_0001>
module attributes {stable_mosaic.version = 11 : i64} {
  func.func @fused_kernel(%arg0: memref<2x12x128xf32, #tpu.memory_space<vmem>>, %arg1: memref<2x1xi32, #tpu.memory_space<vmem>>, %arg2: memref<1x2xi32, #tpu.memory_space<vmem>>, %arg3: memref<3x128x128xbf16, #tpu.memory_space<vmem>>, %arg4: memref<1x128xf32, #tpu.memory_space<vmem>>, %arg5: memref<1x128xf32, #tpu.memory_space<vmem>>, %arg6: memref<2x2x3x128x128xbf16, #tpu.memory_space<vmem>>, %arg7: memref<2x2x1x128xf32, #tpu.memory_space<vmem>>, %arg8: memref<2x2x1x128xf32, #tpu.memory_space<vmem>>, %arg9: memref<128x256xbf16, #tpu.memory_space<vmem>>, %arg10: memref<1x256xf32, #tpu.memory_space<vmem>>, %arg11: memref<32x256xbf16, #tpu.memory_space<vmem>>, %arg12: memref<1x256xf32, #tpu.memory_space<vmem>>, %arg13: memref<1x1x128xf32, #tpu.memory_space<vmem>>, %arg14: memref<1x1x128xf32, #tpu.memory_space<vmem>>, %arg15: memref<1x1xf32, #tpu.memory_space<vmem>>, %arg16: memref<2x2x128xf32, #tpu.memory_space<vmem>>, %arg17: memref<2x12x2x128xf32, #tpu.memory_space<vmem>>) attributes {dimension_semantics = [], scalar_prefetch = 0 : i64, scratch_operands = 1 : i64, tpu.core_type = #tpu.core_type<tc>} {
    %c0 = arith.constant 0 : index
    %c0_0 = arith.constant 0 : index
    %c0_1 = arith.constant 0 : index
    %0 = vector.load %arg0[%c0, %c0_0, %c0_1] : memref<2x12x128xf32, #tpu.memory_space<vmem>>, vector<2x12x128xf32>
    %c0_2 = arith.constant 0 : index
    %c0_3 = arith.constant 0 : index
    %c0_4 = arith.constant 0 : index
    %1 = vector.load %arg3[%c0_2, %c0_3, %c0_4] : memref<3x128x128xbf16, #tpu.memory_space<vmem>>, vector<3x128x128xbf16>
    %c0_5 = arith.constant 0 : index
    %c0_6 = arith.constant 0 : index
    %2 = vector.load %arg4[%c0_5, %c0_6] : memref<1x128xf32, #tpu.memory_space<vmem>>, vector<1x128xf32>
    %c0_7 = arith.constant 0 : index
    %c0_8 = arith.constant 0 : index
    %3 = vector.load %arg5[%c0_7, %c0_8] : memref<1x128xf32, #tpu.memory_space<vmem>>, vector<1x128xf32>
    %4 = arith.truncf %0 : vector<2x12x128xf32> to vector<2x12x128xbf16>
    %cst = arith.constant 0.000000e+00 : bf16
    %5 = vector.broadcast %cst : bf16 to vector<2x1x128xbf16>
    %6 = tpu.concatenate %5, %4, %5 in 1 : vector<2x1x128xbf16>, vector<2x12x128xbf16>, vector<2x1x128xbf16> -> vector<2x14x128xbf16>
    %cst_9 = arith.constant 0.000000e+00 : f32
    %7 = vector.broadcast %cst_9 : f32 to vector<24x128xf32>
    %8 = vector.extract_strided_slice %6 {offsets = [0, 0, 0], sizes = [2, 12, 128], strides = [1, 1, 1]} : vector<2x14x128xbf16> to vector<2x12x128xbf16>
    %9 = vector.shape_cast %8 : vector<2x12x128xbf16> to vector<24x128xbf16>
    %10 = vector.extract_strided_slice %1 {offsets = [0, 0, 0], sizes = [1, 128, 128], strides = [1, 1, 1]} : vector<3x128x128xbf16> to vector<1x128x128xbf16>
    %11 = vector.shape_cast %10 : vector<1x128x128xbf16> to vector<128x128xbf16>
    %cst_10 = arith.constant dense<0.000000e+00> : vector<24x128xf32>
    %12 = tpu.matmul %9, %11, %cst_10 {dimension_numbers = #tpu.dot_dimension_numbers<[1], [0], [0], [1], [0, 0, 1, 1], [], []>} : vector<24x128xbf16>, vector<128x128xbf16>, vector<24x128xf32> -> vector<24x128xf32>
    %13 = arith.addf %7, %12 : vector<24x128xf32>
    %14 = vector.extract_strided_slice %6 {offsets = [0, 1, 0], sizes = [2, 12, 128], strides = [1, 1, 1]} : vector<2x14x128xbf16> to vector<2x12x128xbf16>
    %15 = vector.shape_cast %14 : vector<2x12x128xbf16> to vector<24x128xbf16>
    %16 = vector.extract_strided_slice %1 {offsets = [1, 0, 0], sizes = [1, 128, 128], strides = [1, 1, 1]} : vector<3x128x128xbf16> to vector<1x128x128xbf16>
    %17 = vector.shape_cast %16 : vector<1x128x128xbf16> to vector<128x128xbf16>
    %cst_11 = arith.constant dense<0.000000e+00> : vector<24x128xf32>
    %18 = tpu.matmul %15, %17, %cst_11 {dimension_numbers = #tpu.dot_dimension_numbers<[1], [0], [0], [1], [0, 0, 1, 1], [], []>} : vector<24x128xbf16>, vector<128x128xbf16>, vector<24x128xf32> -> vector<24x128xf32>
    %19 = arith.addf %13, %18 : vector<24x128xf32>
    %20 = vector.extract_strided_slice %6 {offsets = [0, 2, 0], sizes = [2, 12, 128], strides = [1, 1, 1]} : vector<2x14x128xbf16> to vector<2x12x128xbf16>
    %21 = vector.shape_cast %20 : vector<2x12x128xbf16> to vector<24x128xbf16>
    %22 = vector.extract_strided_slice %1 {offsets = [2, 0, 0], sizes = [1, 128, 128], strides = [1, 1, 1]} : vector<3x128x128xbf16> to vector<1x128x128xbf16>
    %23 = vector.shape_cast %22 : vector<1x128x128xbf16> to vector<128x128xbf16>
    %cst_12 = arith.constant dense<0.000000e+00> : vector<24x128xf32>
    %24 = tpu.matmul %21, %23, %cst_12 {dimension_numbers = #tpu.dot_dimension_numbers<[1], [0], [0], [1], [0, 0, 1, 1], [], []>} : vector<24x128xbf16>, vector<128x128xbf16>, vector<24x128xf32> -> vector<24x128xf32>
    %25 = arith.addf %19, %24 : vector<24x128xf32>
    %cst_13 = arith.constant dense<0.000000e+00> : vector<128xf32>
    %26 = vector.multi_reduction <add>, %25, %cst_13 [0] : vector<24x128xf32> to vector<128xf32>
    %27 = vector.shape_cast %26 : vector<128xf32> to vector<1x128xf32>
    %cst_14 = arith.constant 2.400000e+01 : f32
    %28 = vector.broadcast %cst_14 : f32 to vector<1x128xf32>
    %29 = arith.divf %27, %28 : vector<1x128xf32>
    %30 = vector.broadcast %29 : vector<1x128xf32> to vector<24x128xf32>
    %31 = arith.subf %25, %30 : vector<24x128xf32>
    %32 = arith.mulf %31, %31 : vector<24x128xf32>
    %cst_15 = arith.constant dense<0.000000e+00> : vector<128xf32>
    %33 = vector.multi_reduction <add>, %32, %cst_15 [0] : vector<24x128xf32> to vector<128xf32>
    %34 = vector.shape_cast %33 : vector<128xf32> to vector<1x128xf32>
    %cst_16 = arith.constant 2.400000e+01 : f32
    %35 = vector.broadcast %cst_16 : f32 to vector<1x128xf32>
    %36 = arith.divf %34, %35 : vector<1x128xf32>
    %cst_17 = arith.constant 9.99999974E-6 : f32
    %37 = vector.broadcast %cst_17 : f32 to vector<1x128xf32>
    %38 = arith.addf %36, %37 : vector<1x128xf32>
    %39 = math.rsqrt %38 : vector<1x128xf32>
    %40 = arith.mulf %2, %39 : vector<1x128xf32>
    %41 = vector.broadcast %40 : vector<1x128xf32> to vector<24x128xf32>
    %42 = arith.mulf %31, %41 : vector<24x128xf32>
    %43 = vector.broadcast %3 : vector<1x128xf32> to vector<24x128xf32>
    %44 = arith.addf %42, %43 : vector<24x128xf32>
    %45 = vector.shape_cast %44 : vector<24x128xf32> to vector<2x12x128xf32>
    %cst_18 = arith.constant 0.000000e+00 : f32
    %46 = vector.broadcast %cst_18 : f32 to vector<2x12x128xf32>
    %47 = arith.maximumf %45, %46 : vector<2x12x128xf32>
    %c0_19 = arith.constant 0 : index
    %c0_20 = arith.constant 0 : index
    %c0_21 = arith.constant 0 : index
    %c0_22 = arith.constant 0 : index
    %c0_23 = arith.constant 0 : index
    %48 = vector.load %arg6[%c0_19, %c0_20, %c0_21, %c0_22, %c0_23] : memref<2x2x3x128x128xbf16, #tpu.memory_space<vmem>>, vector<1x1x3x128x128xbf16>
    %49 = vector.shape_cast %48 : vector<1x1x3x128x128xbf16> to vector<3x128x128xbf16>
    %c0_24 = arith.constant 0 : index
    %c0_25 = arith.constant 0 : index
    %c0_26 = arith.constant 0 : index
    %c0_27 = arith.constant 0 : index
    %50 = vector.load %arg7[%c0_24, %c0_25, %c0_26, %c0_27] : memref<2x2x1x128xf32, #tpu.memory_space<vmem>>, vector<1x1x1x128xf32>
    %51 = vector.shape_cast %50 : vector<1x1x1x128xf32> to vector<1x128xf32>
    %c0_28 = arith.constant 0 : index
    %c0_29 = arith.constant 0 : index
    %c0_30 = arith.constant 0 : index
    %c0_31 = arith.constant 0 : index
    %52 = vector.load %arg8[%c0_28, %c0_29, %c0_30, %c0_31] : memref<2x2x1x128xf32, #tpu.memory_space<vmem>>, vector<1x1x1x128xf32>
    %53 = vector.shape_cast %52 : vector<1x1x1x128xf32> to vector<1x128xf32>
    %54 = arith.truncf %47 : vector<2x12x128xf32> to vector<2x12x128xbf16>
    %cst_32 = arith.constant 0.000000e+00 : bf16
    %55 = vector.broadcast %cst_32 : bf16 to vector<2x1x128xbf16>
    %56 = tpu.concatenate %55, %54, %55 in 1 : vector<2x1x128xbf16>, vector<2x12x128xbf16>, vector<2x1x128xbf16> -> vector<2x14x128xbf16>
    %cst_33 = arith.constant 0.000000e+00 : f32
    %57 = vector.broadcast %cst_33 : f32 to vector<24x128xf32>
    %58 = vector.extract_strided_slice %56 {offsets = [0, 0, 0], sizes = [2, 12, 128], strides = [1, 1, 1]} : vector<2x14x128xbf16> to vector<2x12x128xbf16>
    %59 = vector.shape_cast %58 : vector<2x12x128xbf16> to vector<24x128xbf16>
    %60 = vector.extract_strided_slice %49 {offsets = [0, 0, 0], sizes = [1, 128, 128], strides = [1, 1, 1]} : vector<3x128x128xbf16> to vector<1x128x128xbf16>
    %61 = vector.shape_cast %60 : vector<1x128x128xbf16> to vector<128x128xbf16>
    %cst_34 = arith.constant dense<0.000000e+00> : vector<24x128xf32>
    %62 = tpu.matmul %59, %61, %cst_34 {dimension_numbers = #tpu.dot_dimension_numbers<[1], [0], [0], [1], [0, 0, 1, 1], [], []>} : vector<24x128xbf16>, vector<128x128xbf16>, vector<24x128xf32> -> vector<24x128xf32>
    %63 = arith.addf %57, %62 : vector<24x128xf32>
    %64 = vector.extract_strided_slice %56 {offsets = [0, 1, 0], sizes = [2, 12, 128], strides = [1, 1, 1]} : vector<2x14x128xbf16> to vector<2x12x128xbf16>
    %65 = vector.shape_cast %64 : vector<2x12x128xbf16> to vector<24x128xbf16>
    %66 = vector.extract_strided_slice %49 {offsets = [1, 0, 0], sizes = [1, 128, 128], strides = [1, 1, 1]} : vector<3x128x128xbf16> to vector<1x128x128xbf16>
    %67 = vector.shape_cast %66 : vector<1x128x128xbf16> to vector<128x128xbf16>
    %cst_35 = arith.constant dense<0.000000e+00> : vector<24x128xf32>
    %68 = tpu.matmul %65, %67, %cst_35 {dimension_numbers = #tpu.dot_dimension_numbers<[1], [0], [0], [1], [0, 0, 1, 1], [], []>} : vector<24x128xbf16>, vector<128x128xbf16>, vector<24x128xf32> -> vector<24x128xf32>
    %69 = arith.addf %63, %68 : vector<24x128xf32>
    %70 = vector.extract_strided_slice %56 {offsets = [0, 2, 0], sizes = [2, 12, 128], strides = [1, 1, 1]} : vector<2x14x128xbf16> to vector<2x12x128xbf16>
    %71 = vector.shape_cast %70 : vector<2x12x128xbf16> to vector<24x128xbf16>
    %72 = vector.extract_strided_slice %49 {offsets = [2, 0, 0], sizes = [1, 128, 128], strides = [1, 1, 1]} : vector<3x128x128xbf16> to vector<1x128x128xbf16>
    %73 = vector.shape_cast %72 : vector<1x128x128xbf16> to vector<128x128xbf16>
    %cst_36 = arith.constant dense<0.000000e+00> : vector<24x128xf32>
    %74 = tpu.matmul %71, %73, %cst_36 {dimension_numbers = #tpu.dot_dimension_numbers<[1], [0], [0], [1], [0, 0, 1, 1], [], []>} : vector<24x128xbf16>, vector<128x128xbf16>, vector<24x128xf32> -> vector<24x128xf32>
    %75 = arith.addf %69, %74 : vector<24x128xf32>
    %cst_37 = arith.constant dense<0.000000e+00> : vector<128xf32>
    %76 = vector.multi_reduction <add>, %75, %cst_37 [0] : vector<24x128xf32> to vector<128xf32>
    %77 = vector.shape_cast %76 : vector<128xf32> to vector<1x128xf32>
    %cst_38 = arith.constant 2.400000e+01 : f32
    %78 = vector.broadcast %cst_38 : f32 to vector<1x128xf32>
    %79 = arith.divf %77, %78 : vector<1x128xf32>
    %80 = vector.broadcast %79 : vector<1x128xf32> to vector<24x128xf32>
    %81 = arith.subf %75, %80 : vector<24x128xf32>
    %82 = arith.mulf %81, %81 : vector<24x128xf32>
    %cst_39 = arith.constant dense<0.000000e+00> : vector<128xf32>
    %83 = vector.multi_reduction <add>, %82, %cst_39 [0] : vector<24x128xf32> to vector<128xf32>
    %84 = vector.shape_cast %83 : vector<128xf32> to vector<1x128xf32>
    %cst_40 = arith.constant 2.400000e+01 : f32
    %85 = vector.broadcast %cst_40 : f32 to vector<1x128xf32>
    %86 = arith.divf %84, %85 : vector<1x128xf32>
    %cst_41 = arith.constant 9.99999974E-6 : f32
    %87 = vector.broadcast %cst_41 : f32 to vector<1x128xf32>
    %88 = arith.addf %86, %87 : vector<1x128xf32>
    %89 = math.rsqrt %88 : vector<1x128xf32>
    %90 = arith.mulf %51, %89 : vector<1x128xf32>
    %91 = vector.broadcast %90 : vector<1x128xf32> to vector<24x128xf32>
    %92 = arith.mulf %81, %91 : vector<24x128xf32>
    %93 = vector.broadcast %53 : vector<1x128xf32> to vector<24x128xf32>
    %94 = arith.addf %92, %93 : vector<24x128xf32>
    %95 = vector.shape_cast %94 : vector<24x128xf32> to vector<2x12x128xf32>
    %cst_42 = arith.constant 0.000000e+00 : f32
    %96 = vector.broadcast %cst_42 : f32 to vector<2x12x128xf32>
    %97 = arith.maximumf %95, %96 : vector<2x12x128xf32>
    %c0_43 = arith.constant 0 : index
    %c1 = arith.constant 1 : index
    %c0_44 = arith.constant 0 : index
    %c0_45 = arith.constant 0 : index
    %c0_46 = arith.constant 0 : index
    %98 = vector.load %arg6[%c0_43, %c1, %c0_44, %c0_45, %c0_46] : memref<2x2x3x128x128xbf16, #tpu.memory_space<vmem>>, vector<1x1x3x128x128xbf16>
    %99 = vector.shape_cast %98 : vector<1x1x3x128x128xbf16> to vector<3x128x128xbf16>
    %c0_47 = arith.constant 0 : index
    %c1_48 = arith.constant 1 : index
    %c0_49 = arith.constant 0 : index
    %c0_50 = arith.constant 0 : index
    %100 = vector.load %arg7[%c0_47, %c1_48, %c0_49, %c0_50] : memref<2x2x1x128xf32, #tpu.memory_space<vmem>>, vector<1x1x1x128xf32>
    %101 = vector.shape_cast %100 : vector<1x1x1x128xf32> to vector<1x128xf32>
    %c0_51 = arith.constant 0 : index
    %c1_52 = arith.constant 1 : index
    %c0_53 = arith.constant 0 : index
    %c0_54 = arith.constant 0 : index
    %102 = vector.load %arg8[%c0_51, %c1_52, %c0_53, %c0_54] : memref<2x2x1x128xf32, #tpu.memory_space<vmem>>, vector<1x1x1x128xf32>
    %103 = vector.shape_cast %102 : vector<1x1x1x128xf32> to vector<1x128xf32>
    %104 = arith.truncf %97 : vector<2x12x128xf32> to vector<2x12x128xbf16>
    %cst_55 = arith.constant 0.000000e+00 : bf16
    %105 = vector.broadcast %cst_55 : bf16 to vector<2x1x128xbf16>
    %106 = tpu.concatenate %105, %104, %105 in 1 : vector<2x1x128xbf16>, vector<2x12x128xbf16>, vector<2x1x128xbf16> -> vector<2x14x128xbf16>
    %cst_56 = arith.constant 0.000000e+00 : f32
    %107 = vector.broadcast %cst_56 : f32 to vector<24x128xf32>
    %108 = vector.extract_strided_slice %106 {offsets = [0, 0, 0], sizes = [2, 12, 128], strides = [1, 1, 1]} : vector<2x14x128xbf16> to vector<2x12x128xbf16>
    %109 = vector.shape_cast %108 : vector<2x12x128xbf16> to vector<24x128xbf16>
    %110 = vector.extract_strided_slice %99 {offsets = [0, 0, 0], sizes = [1, 128, 128], strides = [1, 1, 1]} : vector<3x128x128xbf16> to vector<1x128x128xbf16>
    %111 = vector.shape_cast %110 : vector<1x128x128xbf16> to vector<128x128xbf16>
    %cst_57 = arith.constant dense<0.000000e+00> : vector<24x128xf32>
    %112 = tpu.matmul %109, %111, %cst_57 {dimension_numbers = #tpu.dot_dimension_numbers<[1], [0], [0], [1], [0, 0, 1, 1], [], []>} : vector<24x128xbf16>, vector<128x128xbf16>, vector<24x128xf32> -> vector<24x128xf32>
    %113 = arith.addf %107, %112 : vector<24x128xf32>
    %114 = vector.extract_strided_slice %106 {offsets = [0, 1, 0], sizes = [2, 12, 128], strides = [1, 1, 1]} : vector<2x14x128xbf16> to vector<2x12x128xbf16>
    %115 = vector.shape_cast %114 : vector<2x12x128xbf16> to vector<24x128xbf16>
    %116 = vector.extract_strided_slice %99 {offsets = [1, 0, 0], sizes = [1, 128, 128], strides = [1, 1, 1]} : vector<3x128x128xbf16> to vector<1x128x128xbf16>
    %117 = vector.shape_cast %116 : vector<1x128x128xbf16> to vector<128x128xbf16>
    %cst_58 = arith.constant dense<0.000000e+00> : vector<24x128xf32>
    %118 = tpu.matmul %115, %117, %cst_58 {dimension_numbers = #tpu.dot_dimension_numbers<[1], [0], [0], [1], [0, 0, 1, 1], [], []>} : vector<24x128xbf16>, vector<128x128xbf16>, vector<24x128xf32> -> vector<24x128xf32>
    %119 = arith.addf %113, %118 : vector<24x128xf32>
    %120 = vector.extract_strided_slice %106 {offsets = [0, 2, 0], sizes = [2, 12, 128], strides = [1, 1, 1]} : vector<2x14x128xbf16> to vector<2x12x128xbf16>
    %121 = vector.shape_cast %120 : vector<2x12x128xbf16> to vector<24x128xbf16>
    %122 = vector.extract_strided_slice %99 {offsets = [2, 0, 0], sizes = [1, 128, 128], strides = [1, 1, 1]} : vector<3x128x128xbf16> to vector<1x128x128xbf16>
    %123 = vector.shape_cast %122 : vector<1x128x128xbf16> to vector<128x128xbf16>
    %cst_59 = arith.constant dense<0.000000e+00> : vector<24x128xf32>
    %124 = tpu.matmul %121, %123, %cst_59 {dimension_numbers = #tpu.dot_dimension_numbers<[1], [0], [0], [1], [0, 0, 1, 1], [], []>} : vector<24x128xbf16>, vector<128x128xbf16>, vector<24x128xf32> -> vector<24x128xf32>
    %125 = arith.addf %119, %124 : vector<24x128xf32>
    %cst_60 = arith.constant dense<0.000000e+00> : vector<128xf32>
    %126 = vector.multi_reduction <add>, %125, %cst_60 [0] : vector<24x128xf32> to vector<128xf32>
    %127 = vector.shape_cast %126 : vector<128xf32> to vector<1x128xf32>
    %cst_61 = arith.constant 2.400000e+01 : f32
    %128 = vector.broadcast %cst_61 : f32 to vector<1x128xf32>
    %129 = arith.divf %127, %128 : vector<1x128xf32>
    %130 = vector.broadcast %129 : vector<1x128xf32> to vector<24x128xf32>
    %131 = arith.subf %125, %130 : vector<24x128xf32>
    %132 = arith.mulf %131, %131 : vector<24x128xf32>
    %cst_62 = arith.constant dense<0.000000e+00> : vector<128xf32>
    %133 = vector.multi_reduction <add>, %132, %cst_62 [0] : vector<24x128xf32> to vector<128xf32>
    %134 = vector.shape_cast %133 : vector<128xf32> to vector<1x128xf32>
    %cst_63 = arith.constant 2.400000e+01 : f32
    %135 = vector.broadcast %cst_63 : f32 to vector<1x128xf32>
    %136 = arith.divf %134, %135 : vector<1x128xf32>
    %cst_64 = arith.constant 9.99999974E-6 : f32
    %137 = vector.broadcast %cst_64 : f32 to vector<1x128xf32>
    %138 = arith.addf %136, %137 : vector<1x128xf32>
    %139 = math.rsqrt %138 : vector<1x128xf32>
    %140 = arith.mulf %101, %139 : vector<1x128xf32>
    %141 = vector.broadcast %140 : vector<1x128xf32> to vector<24x128xf32>
    %142 = arith.mulf %131, %141 : vector<24x128xf32>
    %143 = vector.broadcast %103 : vector<1x128xf32> to vector<24x128xf32>
    %144 = arith.addf %142, %143 : vector<24x128xf32>
    %145 = vector.shape_cast %144 : vector<24x128xf32> to vector<2x12x128xf32>
    %146 = arith.addf %145, %47 : vector<2x12x128xf32>
    %cst_65 = arith.constant 0.000000e+00 : f32
    %147 = vector.broadcast %cst_65 : f32 to vector<2x12x128xf32>
    %148 = arith.maximumf %146, %147 : vector<2x12x128xf32>
    %c1_66 = arith.constant 1 : index
    %c0_67 = arith.constant 0 : index
    %c0_68 = arith.constant 0 : index
    %c0_69 = arith.constant 0 : index
    %c0_70 = arith.constant 0 : index
    %149 = vector.load %arg6[%c1_66, %c0_67, %c0_68, %c0_69, %c0_70] : memref<2x2x3x128x128xbf16, #tpu.memory_space<vmem>>, vector<1x1x3x128x128xbf16>
    %150 = vector.shape_cast %149 : vector<1x1x3x128x128xbf16> to vector<3x128x128xbf16>
    %c1_71 = arith.constant 1 : index
    %c0_72 = arith.constant 0 : index
    %c0_73 = arith.constant 0 : index
    %c0_74 = arith.constant 0 : index
    %151 = vector.load %arg7[%c1_71, %c0_72, %c0_73, %c0_74] : memref<2x2x1x128xf32, #tpu.memory_space<vmem>>, vector<1x1x1x128xf32>
    %152 = vector.shape_cast %151 : vector<1x1x1x128xf32> to vector<1x128xf32>
    %c1_75 = arith.constant 1 : index
    %c0_76 = arith.constant 0 : index
    %c0_77 = arith.constant 0 : index
    %c0_78 = arith.constant 0 : index
    %153 = vector.load %arg8[%c1_75, %c0_76, %c0_77, %c0_78] : memref<2x2x1x128xf32, #tpu.memory_space<vmem>>, vector<1x1x1x128xf32>
    %154 = vector.shape_cast %153 : vector<1x1x1x128xf32> to vector<1x128xf32>
    %155 = arith.truncf %148 : vector<2x12x128xf32> to vector<2x12x128xbf16>
    %cst_79 = arith.constant 0.000000e+00 : bf16
    %156 = vector.broadcast %cst_79 : bf16 to vector<2x1x128xbf16>
    %157 = tpu.concatenate %156, %155, %156 in 1 : vector<2x1x128xbf16>, vector<2x12x128xbf16>, vector<2x1x128xbf16> -> vector<2x14x128xbf16>
    %cst_80 = arith.constant 0.000000e+00 : f32
    %158 = vector.broadcast %cst_80 : f32 to vector<24x128xf32>
    %159 = vector.extract_strided_slice %157 {offsets = [0, 0, 0], sizes = [2, 12, 128], strides = [1, 1, 1]} : vector<2x14x128xbf16> to vector<2x12x128xbf16>
    %160 = vector.shape_cast %159 : vector<2x12x128xbf16> to vector<24x128xbf16>
    %161 = vector.extract_strided_slice %150 {offsets = [0, 0, 0], sizes = [1, 128, 128], strides = [1, 1, 1]} : vector<3x128x128xbf16> to vector<1x128x128xbf16>
    %162 = vector.shape_cast %161 : vector<1x128x128xbf16> to vector<128x128xbf16>
    %cst_81 = arith.constant dense<0.000000e+00> : vector<24x128xf32>
    %163 = tpu.matmul %160, %162, %cst_81 {dimension_numbers = #tpu.dot_dimension_numbers<[1], [0], [0], [1], [0, 0, 1, 1], [], []>} : vector<24x128xbf16>, vector<128x128xbf16>, vector<24x128xf32> -> vector<24x128xf32>
    %164 = arith.addf %158, %163 : vector<24x128xf32>
    %165 = vector.extract_strided_slice %157 {offsets = [0, 1, 0], sizes = [2, 12, 128], strides = [1, 1, 1]} : vector<2x14x128xbf16> to vector<2x12x128xbf16>
    %166 = vector.shape_cast %165 : vector<2x12x128xbf16> to vector<24x128xbf16>
    %167 = vector.extract_strided_slice %150 {offsets = [1, 0, 0], sizes = [1, 128, 128], strides = [1, 1, 1]} : vector<3x128x128xbf16> to vector<1x128x128xbf16>
    %168 = vector.shape_cast %167 : vector<1x128x128xbf16> to vector<128x128xbf16>
    %cst_82 = arith.constant dense<0.000000e+00> : vector<24x128xf32>
    %169 = tpu.matmul %166, %168, %cst_82 {dimension_numbers = #tpu.dot_dimension_numbers<[1], [0], [0], [1], [0, 0, 1, 1], [], []>} : vector<24x128xbf16>, vector<128x128xbf16>, vector<24x128xf32> -> vector<24x128xf32>
    %170 = arith.addf %164, %169 : vector<24x128xf32>
    %171 = vector.extract_strided_slice %157 {offsets = [0, 2, 0], sizes = [2, 12, 128], strides = [1, 1, 1]} : vector<2x14x128xbf16> to vector<2x12x128xbf16>
    %172 = vector.shape_cast %171 : vector<2x12x128xbf16> to vector<24x128xbf16>
    %173 = vector.extract_strided_slice %150 {offsets = [2, 0, 0], sizes = [1, 128, 128], strides = [1, 1, 1]} : vector<3x128x128xbf16> to vector<1x128x128xbf16>
    %174 = vector.shape_cast %173 : vector<1x128x128xbf16> to vector<128x128xbf16>
    %cst_83 = arith.constant dense<0.000000e+00> : vector<24x128xf32>
    %175 = tpu.matmul %172, %174, %cst_83 {dimension_numbers = #tpu.dot_dimension_numbers<[1], [0], [0], [1], [0, 0, 1, 1], [], []>} : vector<24x128xbf16>, vector<128x128xbf16>, vector<24x128xf32> -> vector<24x128xf32>
    %176 = arith.addf %170, %175 : vector<24x128xf32>
    %cst_84 = arith.constant dense<0.000000e+00> : vector<128xf32>
    %177 = vector.multi_reduction <add>, %176, %cst_84 [0] : vector<24x128xf32> to vector<128xf32>
    %178 = vector.shape_cast %177 : vector<128xf32> to vector<1x128xf32>
    %cst_85 = arith.constant 2.400000e+01 : f32
    %179 = vector.broadcast %cst_85 : f32 to vector<1x128xf32>
    %180 = arith.divf %178, %179 : vector<1x128xf32>
    %181 = vector.broadcast %180 : vector<1x128xf32> to vector<24x128xf32>
    %182 = arith.subf %176, %181 : vector<24x128xf32>
    %183 = arith.mulf %182, %182 : vector<24x128xf32>
    %cst_86 = arith.constant dense<0.000000e+00> : vector<128xf32>
    %184 = vector.multi_reduction <add>, %183, %cst_86 [0] : vector<24x128xf32> to vector<128xf32>
    %185 = vector.shape_cast %184 : vector<128xf32> to vector<1x128xf32>
    %cst_87 = arith.constant 2.400000e+01 : f32
    %186 = vector.broadcast %cst_87 : f32 to vector<1x128xf32>
    %187 = arith.divf %185, %186 : vector<1x128xf32>
    %cst_88 = arith.constant 9.99999974E-6 : f32
    %188 = vector.broadcast %cst_88 : f32 to vector<1x128xf32>
    %189 = arith.addf %187, %188 : vector<1x128xf32>
    %190 = math.rsqrt %189 : vector<1x128xf32>
    %191 = arith.mulf %152, %190 : vector<1x128xf32>
    %192 = vector.broadcast %191 : vector<1x128xf32> to vector<24x128xf32>
    %193 = arith.mulf %182, %192 : vector<24x128xf32>
    %194 = vector.broadcast %154 : vector<1x128xf32> to vector<24x128xf32>
    %195 = arith.addf %193, %194 : vector<24x128xf32>
    %196 = vector.shape_cast %195 : vector<24x128xf32> to vector<2x12x128xf32>
    %cst_89 = arith.constant 0.000000e+00 : f32
    %197 = vector.broadcast %cst_89 : f32 to vector<2x12x128xf32>
    %198 = arith.maximumf %196, %197 : vector<2x12x128xf32>
    %c1_90 = arith.constant 1 : index
    %c1_91 = arith.constant 1 : index
    %c0_92 = arith.constant 0 : index
    %c0_93 = arith.constant 0 : index
    %c0_94 = arith.constant 0 : index
    %199 = vector.load %arg6[%c1_90, %c1_91, %c0_92, %c0_93, %c0_94] : memref<2x2x3x128x128xbf16, #tpu.memory_space<vmem>>, vector<1x1x3x128x128xbf16>
    %200 = vector.shape_cast %199 : vector<1x1x3x128x128xbf16> to vector<3x128x128xbf16>
    %c1_95 = arith.constant 1 : index
    %c1_96 = arith.constant 1 : index
    %c0_97 = arith.constant 0 : index
    %c0_98 = arith.constant 0 : index
    %201 = vector.load %arg7[%c1_95, %c1_96, %c0_97, %c0_98] : memref<2x2x1x128xf32, #tpu.memory_space<vmem>>, vector<1x1x1x128xf32>
    %202 = vector.shape_cast %201 : vector<1x1x1x128xf32> to vector<1x128xf32>
    %c1_99 = arith.constant 1 : index
    %c1_100 = arith.constant 1 : index
    %c0_101 = arith.constant 0 : index
    %c0_102 = arith.constant 0 : index
    %203 = vector.load %arg8[%c1_99, %c1_100, %c0_101, %c0_102] : memref<2x2x1x128xf32, #tpu.memory_space<vmem>>, vector<1x1x1x128xf32>
    %204 = vector.shape_cast %203 : vector<1x1x1x128xf32> to vector<1x128xf32>
    %205 = arith.truncf %198 : vector<2x12x128xf32> to vector<2x12x128xbf16>
    %cst_103 = arith.constant 0.000000e+00 : bf16
    %206 = vector.broadcast %cst_103 : bf16 to vector<2x1x128xbf16>
    %207 = tpu.concatenate %206, %205, %206 in 1 : vector<2x1x128xbf16>, vector<2x12x128xbf16>, vector<2x1x128xbf16> -> vector<2x14x128xbf16>
    %cst_104 = arith.constant 0.000000e+00 : f32
    %208 = vector.broadcast %cst_104 : f32 to vector<24x128xf32>
    %209 = vector.extract_strided_slice %207 {offsets = [0, 0, 0], sizes = [2, 12, 128], strides = [1, 1, 1]} : vector<2x14x128xbf16> to vector<2x12x128xbf16>
    %210 = vector.shape_cast %209 : vector<2x12x128xbf16> to vector<24x128xbf16>
    %211 = vector.extract_strided_slice %200 {offsets = [0, 0, 0], sizes = [1, 128, 128], strides = [1, 1, 1]} : vector<3x128x128xbf16> to vector<1x128x128xbf16>
    %212 = vector.shape_cast %211 : vector<1x128x128xbf16> to vector<128x128xbf16>
    %cst_105 = arith.constant dense<0.000000e+00> : vector<24x128xf32>
    %213 = tpu.matmul %210, %212, %cst_105 {dimension_numbers = #tpu.dot_dimension_numbers<[1], [0], [0], [1], [0, 0, 1, 1], [], []>} : vector<24x128xbf16>, vector<128x128xbf16>, vector<24x128xf32> -> vector<24x128xf32>
    %214 = arith.addf %208, %213 : vector<24x128xf32>
    %215 = vector.extract_strided_slice %207 {offsets = [0, 1, 0], sizes = [2, 12, 128], strides = [1, 1, 1]} : vector<2x14x128xbf16> to vector<2x12x128xbf16>
    %216 = vector.shape_cast %215 : vector<2x12x128xbf16> to vector<24x128xbf16>
    %217 = vector.extract_strided_slice %200 {offsets = [1, 0, 0], sizes = [1, 128, 128], strides = [1, 1, 1]} : vector<3x128x128xbf16> to vector<1x128x128xbf16>
    %218 = vector.shape_cast %217 : vector<1x128x128xbf16> to vector<128x128xbf16>
    %cst_106 = arith.constant dense<0.000000e+00> : vector<24x128xf32>
    %219 = tpu.matmul %216, %218, %cst_106 {dimension_numbers = #tpu.dot_dimension_numbers<[1], [0], [0], [1], [0, 0, 1, 1], [], []>} : vector<24x128xbf16>, vector<128x128xbf16>, vector<24x128xf32> -> vector<24x128xf32>
    %220 = arith.addf %214, %219 : vector<24x128xf32>
    %221 = vector.extract_strided_slice %207 {offsets = [0, 2, 0], sizes = [2, 12, 128], strides = [1, 1, 1]} : vector<2x14x128xbf16> to vector<2x12x128xbf16>
    %222 = vector.shape_cast %221 : vector<2x12x128xbf16> to vector<24x128xbf16>
    %223 = vector.extract_strided_slice %200 {offsets = [2, 0, 0], sizes = [1, 128, 128], strides = [1, 1, 1]} : vector<3x128x128xbf16> to vector<1x128x128xbf16>
    %224 = vector.shape_cast %223 : vector<1x128x128xbf16> to vector<128x128xbf16>
    %cst_107 = arith.constant dense<0.000000e+00> : vector<24x128xf32>
    %225 = tpu.matmul %222, %224, %cst_107 {dimension_numbers = #tpu.dot_dimension_numbers<[1], [0], [0], [1], [0, 0, 1, 1], [], []>} : vector<24x128xbf16>, vector<128x128xbf16>, vector<24x128xf32> -> vector<24x128xf32>
    %226 = arith.addf %220, %225 : vector<24x128xf32>
    %cst_108 = arith.constant dense<0.000000e+00> : vector<128xf32>
    %227 = vector.multi_reduction <add>, %226, %cst_108 [0] : vector<24x128xf32> to vector<128xf32>
    %228 = vector.shape_cast %227 : vector<128xf32> to vector<1x128xf32>
    %cst_109 = arith.constant 2.400000e+01 : f32
    %229 = vector.broadcast %cst_109 : f32 to vector<1x128xf32>
    %230 = arith.divf %228, %229 : vector<1x128xf32>
    %231 = vector.broadcast %230 : vector<1x128xf32> to vector<24x128xf32>
    %232 = arith.subf %226, %231 : vector<24x128xf32>
    %233 = arith.mulf %232, %232 : vector<24x128xf32>
    %cst_110 = arith.constant dense<0.000000e+00> : vector<128xf32>
    %234 = vector.multi_reduction <add>, %233, %cst_110 [0] : vector<24x128xf32> to vector<128xf32>
    %235 = vector.shape_cast %234 : vector<128xf32> to vector<1x128xf32>
    %cst_111 = arith.constant 2.400000e+01 : f32
    %236 = vector.broadcast %cst_111 : f32 to vector<1x128xf32>
    %237 = arith.divf %235, %236 : vector<1x128xf32>
    %cst_112 = arith.constant 9.99999974E-6 : f32
    %238 = vector.broadcast %cst_112 : f32 to vector<1x128xf32>
    %239 = arith.addf %237, %238 : vector<1x128xf32>
    %240 = math.rsqrt %239 : vector<1x128xf32>
    %241 = arith.mulf %202, %240 : vector<1x128xf32>
    %242 = vector.broadcast %241 : vector<1x128xf32> to vector<24x128xf32>
    %243 = arith.mulf %232, %242 : vector<24x128xf32>
    %244 = vector.broadcast %204 : vector<1x128xf32> to vector<24x128xf32>
    %245 = arith.addf %243, %244 : vector<24x128xf32>
    %246 = vector.shape_cast %245 : vector<24x128xf32> to vector<2x12x128xf32>
    %247 = arith.addf %246, %148 : vector<2x12x128xf32>
    %cst_113 = arith.constant 0.000000e+00 : f32
    %248 = vector.broadcast %cst_113 : f32 to vector<2x12x128xf32>
    %249 = arith.maximumf %247, %248 : vector<2x12x128xf32>
    %250 = vector.shape_cast %249 : vector<2x12x128xf32> to vector<24x128xf32>
    %251 = arith.truncf %250 : vector<24x128xf32> to vector<24x128xbf16>
    %c0_114 = arith.constant 0 : index
    %c0_115 = arith.constant 0 : index
    %252 = vector.load %arg9[%c0_114, %c0_115] : memref<128x256xbf16, #tpu.memory_space<vmem>>, vector<128x256xbf16>
    %cst_116 = arith.constant dense<0.000000e+00> : vector<24x256xf32>
    %253 = tpu.matmul %251, %252, %cst_116 {dimension_numbers = #tpu.dot_dimension_numbers<[1], [0], [0], [1], [0, 0, 1, 1], [], []>} : vector<24x128xbf16>, vector<128x256xbf16>, vector<24x256xf32> -> vector<24x256xf32>
    %c0_117 = arith.constant 0 : index
    %c0_118 = arith.constant 0 : index
    %254 = vector.load %arg10[%c0_117, %c0_118] : memref<1x256xf32, #tpu.memory_space<vmem>>, vector<1x256xf32>
    %255 = vector.broadcast %254 : vector<1x256xf32> to vector<24x256xf32>
    %256 = arith.addf %253, %255 : vector<24x256xf32>
    %257 = vector.shape_cast %256 : vector<24x256xf32> to vector<2x12x256xf32>
    %c0_119 = arith.constant 0 : index
    %c0_120 = arith.constant 0 : index
    %258 = vector.load %arg11[%c0_119, %c0_120] : memref<32x256xbf16, #tpu.memory_space<vmem>>, vector<32x256xbf16>
    %c0_121 = arith.constant 0 : index
    %c0_122 = arith.constant 0 : index
    %259 = vector.load %arg12[%c0_121, %c0_122] : memref<1x256xf32, #tpu.memory_space<vmem>>, vector<1x256xf32>
    %c0_123 = arith.constant 0 : index
    %c0_124 = arith.constant 0 : index
    %260 = vector.load %arg1[%c0_123, %c0_124] : memref<2x1xi32, #tpu.memory_space<vmem>>, vector<2x1xi32>
    %cst_125 = arith.constant 0.000000e+00 : f32
    %261 = vector.broadcast %cst_125 : f32 to vector<2x112xf32>
    %cst_126 = arith.constant 0.000000e+00 : f32
    %262 = vector.broadcast %cst_126 : f32 to vector<2x16xf32>
    %cst_127 = arith.constant 0.000000e+00 : f32
    %263 = vector.broadcast %cst_127 : f32 to vector<2x16xf32>
    %c0_i32 = arith.constant 0 : i32
    %264 = vector.broadcast %c0_i32 : i32 to vector<2x1xi32>
    %265 = arith.cmpi sgt, %260, %264 : vector<2x1xi32>
    %c11_i32 = arith.constant 11 : i32
    %266 = vector.broadcast %c11_i32 : i32 to vector<2x1xi32>
    %267 = arith.cmpi sgt, %260, %266 : vector<2x1xi32>
    %268 = tpu.concatenate %262, %263 in 1 : vector<2x16xf32>, vector<2x16xf32> -> vector<2x32xf32>
    %269 = arith.truncf %268 : vector<2x32xf32> to vector<2x32xbf16>
    %cst_128 = arith.constant dense<0.000000e+00> : vector<2x256xf32>
    %270 = tpu.matmul %269, %258, %cst_128 {dimension_numbers = #tpu.dot_dimension_numbers<[1], [0], [0], [1], [0, 0, 1, 1], [], []>} : vector<2x32xbf16>, vector<32x256xbf16>, vector<2x256xf32> -> vector<2x256xf32>
    %271 = vector.broadcast %259 : vector<1x256xf32> to vector<2x256xf32>
    %272 = arith.addf %270, %271 : vector<2x256xf32>
    %273 = vector.extract_strided_slice %257 {offsets = [0, 0, 0], sizes = [2, 1, 128], strides = [1, 1, 1]} : vector<2x12x256xf32> to vector<2x1x128xf32>
    %274 = vector.shape_cast %273 : vector<2x1x128xf32> to vector<2x128xf32>
    %275 = vector.extract_strided_slice %272 {offsets = [0, 0], sizes = [2, 128], strides = [1, 1]} : vector<2x256xf32> to vector<2x128xf32>
    %276 = vector.extract_strided_slice %274 {offsets = [0, 0], sizes = [2, 32], strides = [1, 1]} : vector<2x128xf32> to vector<2x32xf32>
    %277 = vector.extract_strided_slice %275 {offsets = [0, 0], sizes = [2, 32], strides = [1, 1]} : vector<2x128xf32> to vector<2x32xf32>
    %278 = arith.addf %276, %277 : vector<2x32xf32>
    %279 = arith.negf %278 : vector<2x32xf32>
    %280 = math.exp %279 : vector<2x32xf32>
    %cst_129 = arith.constant 1.000000e+00 : f32
    %281 = vector.broadcast %cst_129 : f32 to vector<2x32xf32>
    %282 = arith.addf %281, %280 : vector<2x32xf32>
    %283 = arith.divf %281, %282 : vector<2x32xf32>
    %284 = vector.extract_strided_slice %283 {offsets = [0, 0], sizes = [2, 16], strides = [1, 1]} : vector<2x32xf32> to vector<2x16xf32>
    %285 = vector.extract_strided_slice %283 {offsets = [0, 16], sizes = [2, 16], strides = [1, 1]} : vector<2x32xf32> to vector<2x16xf32>
    %286 = vector.extract_strided_slice %274 {offsets = [0, 32], sizes = [2, 16], strides = [1, 1]} : vector<2x128xf32> to vector<2x16xf32>
    %287 = vector.extract_strided_slice %275 {offsets = [0, 32], sizes = [2, 16], strides = [1, 1]} : vector<2x128xf32> to vector<2x16xf32>
    %288 = arith.mulf %284, %287 : vector<2x16xf32>
    %289 = arith.addf %286, %288 : vector<2x16xf32>
    %290 = math.tanh %289 : vector<2x16xf32>
    %cst_130 = arith.constant 1.000000e+00 : f32
    %291 = vector.broadcast %cst_130 : f32 to vector<2x16xf32>
    %292 = arith.subf %291, %285 : vector<2x16xf32>
    %293 = arith.mulf %292, %290 : vector<2x16xf32>
    %294 = arith.mulf %285, %262 : vector<2x16xf32>
    %295 = arith.addf %293, %294 : vector<2x16xf32>
    %296 = vector.extract_strided_slice %257 {offsets = [0, 11, 128], sizes = [2, 1, 128], strides = [1, 1, 1]} : vector<2x12x256xf32> to vector<2x1x128xf32>
    %297 = vector.shape_cast %296 : vector<2x1x128xf32> to vector<2x128xf32>
    %298 = vector.extract_strided_slice %272 {offsets = [0, 128], sizes = [2, 128], strides = [1, 1]} : vector<2x256xf32> to vector<2x128xf32>
    %299 = vector.extract_strided_slice %297 {offsets = [0, 0], sizes = [2, 32], strides = [1, 1]} : vector<2x128xf32> to vector<2x32xf32>
    %300 = vector.extract_strided_slice %298 {offsets = [0, 0], sizes = [2, 32], strides = [1, 1]} : vector<2x128xf32> to vector<2x32xf32>
    %301 = arith.addf %299, %300 : vector<2x32xf32>
    %302 = arith.negf %301 : vector<2x32xf32>
    %303 = math.exp %302 : vector<2x32xf32>
    %cst_131 = arith.constant 1.000000e+00 : f32
    %304 = vector.broadcast %cst_131 : f32 to vector<2x32xf32>
    %305 = arith.addf %304, %303 : vector<2x32xf32>
    %306 = arith.divf %304, %305 : vector<2x32xf32>
    %307 = vector.extract_strided_slice %306 {offsets = [0, 0], sizes = [2, 16], strides = [1, 1]} : vector<2x32xf32> to vector<2x16xf32>
    %308 = vector.extract_strided_slice %306 {offsets = [0, 16], sizes = [2, 16], strides = [1, 1]} : vector<2x32xf32> to vector<2x16xf32>
    %309 = vector.extract_strided_slice %297 {offsets = [0, 32], sizes = [2, 16], strides = [1, 1]} : vector<2x128xf32> to vector<2x16xf32>
    %310 = vector.extract_strided_slice %298 {offsets = [0, 32], sizes = [2, 16], strides = [1, 1]} : vector<2x128xf32> to vector<2x16xf32>
    %311 = arith.mulf %307, %310 : vector<2x16xf32>
    %312 = arith.addf %309, %311 : vector<2x16xf32>
    %313 = math.tanh %312 : vector<2x16xf32>
    %cst_132 = arith.constant 1.000000e+00 : f32
    %314 = vector.broadcast %cst_132 : f32 to vector<2x16xf32>
    %315 = arith.subf %314, %308 : vector<2x16xf32>
    %316 = arith.mulf %315, %313 : vector<2x16xf32>
    %317 = arith.mulf %308, %263 : vector<2x16xf32>
    %318 = arith.addf %316, %317 : vector<2x16xf32>
    %319 = vector.shape_cast %265 : vector<2x1xi1> to vector<2x1xi1>
    %320 = vector.broadcast %319 : vector<2x1xi1> to vector<2x16xi1>
    %321 = arith.select %320, %295, %262 : vector<2x16xi1>, vector<2x16xf32>
    %322 = vector.shape_cast %267 : vector<2x1xi1> to vector<2x1xi1>
    %323 = vector.broadcast %322 : vector<2x1xi1> to vector<2x16xi1>
    %324 = arith.select %323, %318, %263 : vector<2x16xi1>, vector<2x16xf32>
    %cst_133 = arith.constant 0.000000e+00 : f32
    %325 = vector.shape_cast %265 : vector<2x1xi1> to vector<2x1xi1>
    %326 = vector.broadcast %325 : vector<2x1xi1> to vector<2x16xi1>
    %327 = vector.broadcast %cst_133 : f32 to vector<2x16xf32>
    %328 = arith.select %326, %321, %327 : vector<2x16xi1>, vector<2x16xf32>
    %329 = tpu.concatenate %328, %261 in 1 : vector<2x16xf32>, vector<2x112xf32> -> vector<2x128xf32>
    %c0_134 = arith.constant 0 : index
    %c0_135 = arith.constant 0 : index
    %c0_136 = arith.constant 0 : index
    %c0_137 = arith.constant 0 : index
    %330 = vector.load %arg17[%c0_134, %c0_135, %c0_136, %c0_137] : memref<2x12x2x128xf32, #tpu.memory_space<vmem>>, vector<1x1x2x128xf32>
    %331 = vector.shape_cast %330 : vector<1x1x2x128xf32> to vector<2x128xf32>
    %332 = vector.shape_cast %329 : vector<2x128xf32> to vector<1x1x2x128xf32>
    tpu.vector_store %arg17[%c0_134, %c0_135, %c0_136, %c0_137], %332 {strides = array<i32>} : memref<2x12x2x128xf32, #tpu.memory_space<vmem>>, vector<1x1x2x128xf32>,
    %cst_138 = arith.constant 0.000000e+00 : f32
    %333 = vector.shape_cast %267 : vector<2x1xi1> to vector<2x1xi1>
    %334 = vector.broadcast %333 : vector<2x1xi1> to vector<2x16xi1>
    %335 = vector.broadcast %cst_138 : f32 to vector<2x16xf32>
    %336 = arith.select %334, %324, %335 : vector<2x16xi1>, vector<2x16xf32>
    %337 = tpu.concatenate %336, %261 in 1 : vector<2x16xf32>, vector<2x112xf32> -> vector<2x128xf32>
    %c1_139 = arith.constant 1 : index
    %c11 = arith.constant 11 : index
    %c0_140 = arith.constant 0 : index
    %c0_141 = arith.constant 0 : index
    %338 = vector.load %arg17[%c1_139, %c11, %c0_140, %c0_141] : memref<2x12x2x128xf32, #tpu.memory_space<vmem>>, vector<1x1x2x128xf32>
    %339 = vector.shape_cast %338 : vector<1x1x2x128xf32> to vector<2x128xf32>
    %340 = vector.shape_cast %337 : vector<2x128xf32> to vector<1x1x2x128xf32>
    tpu.vector_store %arg17[%c1_139, %c11, %c0_140, %c0_141], %340 {strides = array<i32>} : memref<2x12x2x128xf32, #tpu.memory_space<vmem>>, vector<1x1x2x128xf32>,
    %c1_i32 = arith.constant 1 : i32
    %341 = vector.broadcast %c1_i32 : i32 to vector<2x1xi32>
    %342 = arith.cmpi sgt, %260, %341 : vector<2x1xi32>
    %c10_i32 = arith.constant 10 : i32
    %343 = vector.broadcast %c10_i32 : i32 to vector<2x1xi32>
    %344 = arith.cmpi sgt, %260, %343 : vector<2x1xi32>
    %345 = tpu.concatenate %321, %324 in 1 : vector<2x16xf32>, vector<2x16xf32> -> vector<2x32xf32>
    %346 = arith.truncf %345 : vector<2x32xf32> to vector<2x32xbf16>
    %cst_142 = arith.constant dense<0.000000e+00> : vector<2x256xf32>
    %347 = tpu.matmul %346, %258, %cst_142 {dimension_numbers = #tpu.dot_dimension_numbers<[1], [0], [0], [1], [0, 0, 1, 1], [], []>} : vector<2x32xbf16>, vector<32x256xbf16>, vector<2x256xf32> -> vector<2x256xf32>
    %348 = vector.broadcast %259 : vector<1x256xf32> to vector<2x256xf32>
    %349 = arith.addf %347, %348 : vector<2x256xf32>
    %350 = vector.extract_strided_slice %257 {offsets = [0, 1, 0], sizes = [2, 1, 128], strides = [1, 1, 1]} : vector<2x12x256xf32> to vector<2x1x128xf32>
    %351 = vector.shape_cast %350 : vector<2x1x128xf32> to vector<2x128xf32>
    %352 = vector.extract_strided_slice %349 {offsets = [0, 0], sizes = [2, 128], strides = [1, 1]} : vector<2x256xf32> to vector<2x128xf32>
    %353 = vector.extract_strided_slice %351 {offsets = [0, 0], sizes = [2, 32], strides = [1, 1]} : vector<2x128xf32> to vector<2x32xf32>
    %354 = vector.extract_strided_slice %352 {offsets = [0, 0], sizes = [2, 32], strides = [1, 1]} : vector<2x128xf32> to vector<2x32xf32>
    %355 = arith.addf %353, %354 : vector<2x32xf32>
    %356 = arith.negf %355 : vector<2x32xf32>
    %357 = math.exp %356 : vector<2x32xf32>
    %cst_143 = arith.constant 1.000000e+00 : f32
    %358 = vector.broadcast %cst_143 : f32 to vector<2x32xf32>
    %359 = arith.addf %358, %357 : vector<2x32xf32>
    %360 = arith.divf %358, %359 : vector<2x32xf32>
    %361 = vector.extract_strided_slice %360 {offsets = [0, 0], sizes = [2, 16], strides = [1, 1]} : vector<2x32xf32> to vector<2x16xf32>
    %362 = vector.extract_strided_slice %360 {offsets = [0, 16], sizes = [2, 16], strides = [1, 1]} : vector<2x32xf32> to vector<2x16xf32>
    %363 = vector.extract_strided_slice %351 {offsets = [0, 32], sizes = [2, 16], strides = [1, 1]} : vector<2x128xf32> to vector<2x16xf32>
    %364 = vector.extract_strided_slice %352 {offsets = [0, 32], sizes = [2, 16], strides = [1, 1]} : vector<2x128xf32> to vector<2x16xf32>
    %365 = arith.mulf %361, %364 : vector<2x16xf32>
    %366 = arith.addf %363, %365 : vector<2x16xf32>
    %367 = math.tanh %366 : vector<2x16xf32>
    %cst_144 = arith.constant 1.000000e+00 : f32
    %368 = vector.broadcast %cst_144 : f32 to vector<2x16xf32>
    %369 = arith.subf %368, %362 : vector<2x16xf32>
    %370 = arith.mulf %369, %367 : vector<2x16xf32>
    %371 = arith.mulf %362, %321 : vector<2x16xf32>
    %372 = arith.addf %370, %371 : vector<2x16xf32>
    %373 = vector.extract_strided_slice %257 {offsets = [0, 10, 128], sizes = [2, 1, 128], strides = [1, 1, 1]} : vector<2x12x256xf32> to vector<2x1x128xf32>
    %374 = vector.shape_cast %373 : vector<2x1x128xf32> to vector<2x128xf32>
    %375 = vector.extract_strided_slice %349 {offsets = [0, 128], sizes = [2, 128], strides = [1, 1]} : vector<2x256xf32> to vector<2x128xf32>
    %376 = vector.extract_strided_slice %374 {offsets = [0, 0], sizes = [2, 32], strides = [1, 1]} : vector<2x128xf32> to vector<2x32xf32>
    %377 = vector.extract_strided_slice %375 {offsets = [0, 0], sizes = [2, 32], strides = [1, 1]} : vector<2x128xf32> to vector<2x32xf32>
    %378 = arith.addf %376, %377 : vector<2x32xf32>
    %379 = arith.negf %378 : vector<2x32xf32>
    %380 = math.exp %379 : vector<2x32xf32>
    %cst_145 = arith.constant 1.000000e+00 : f32
    %381 = vector.broadcast %cst_145 : f32 to vector<2x32xf32>
    %382 = arith.addf %381, %380 : vector<2x32xf32>
    %383 = arith.divf %381, %382 : vector<2x32xf32>
    %384 = vector.extract_strided_slice %383 {offsets = [0, 0], sizes = [2, 16], strides = [1, 1]} : vector<2x32xf32> to vector<2x16xf32>
    %385 = vector.extract_strided_slice %383 {offsets = [0, 16], sizes = [2, 16], strides = [1, 1]} : vector<2x32xf32> to vector<2x16xf32>
    %386 = vector.extract_strided_slice %374 {offsets = [0, 32], sizes = [2, 16], strides = [1, 1]} : vector<2x128xf32> to vector<2x16xf32>
    %387 = vector.extract_strided_slice %375 {offsets = [0, 32], sizes = [2, 16], strides = [1, 1]} : vector<2x128xf32> to vector<2x16xf32>
    %388 = arith.mulf %384, %387 : vector<2x16xf32>
    %389 = arith.addf %386, %388 : vector<2x16xf32>
    %390 = math.tanh %389 : vector<2x16xf32>
    %cst_146 = arith.constant 1.000000e+00 : f32
    %391 = vector.broadcast %cst_146 : f32 to vector<2x16xf32>
    %392 = arith.subf %391, %385 : vector<2x16xf32>
    %393 = arith.mulf %392, %390 : vector<2x16xf32>
    %394 = arith.mulf %385, %324 : vector<2x16xf32>
    %395 = arith.addf %393, %394 : vector<2x16xf32>
    %396 = vector.shape_cast %342 : vector<2x1xi1> to vector<2x1xi1>
    %397 = vector.broadcast %396 : vector<2x1xi1> to vector<2x16xi1>
    %398 = arith.select %397, %372, %321 : vector<2x16xi1>, vector<2x16xf32>
    %399 = vector.shape_cast %344 : vector<2x1xi1> to vector<2x1xi1>
    %400 = vector.broadcast %399 : vector<2x1xi1> to vector<2x16xi1>
    %401 = arith.select %400, %395, %324 : vector<2x16xi1>, vector<2x16xf32>
    %cst_147 = arith.constant 0.000000e+00 : f32
    %402 = vector.shape_cast %342 : vector<2x1xi1> to vector<2x1xi1>
    %403 = vector.broadcast %402 : vector<2x1xi1> to vector<2x16xi1>
    %404 = vector.broadcast %cst_147 : f32 to vector<2x16xf32>
    %405 = arith.select %403, %398, %404 : vector<2x16xi1>, vector<2x16xf32>
    %406 = tpu.concatenate %405, %261 in 1 : vector<2x16xf32>, vector<2x112xf32> -> vector<2x128xf32>
    %c0_148 = arith.constant 0 : index
    %c1_149 = arith.constant 1 : index
    %c0_150 = arith.constant 0 : index
    %c0_151 = arith.constant 0 : index
    %407 = vector.load %arg17[%c0_148, %c1_149, %c0_150, %c0_151] : memref<2x12x2x128xf32, #tpu.memory_space<vmem>>, vector<1x1x2x128xf32>
    %408 = vector.shape_cast %407 : vector<1x1x2x128xf32> to vector<2x128xf32>
    %409 = vector.shape_cast %406 : vector<2x128xf32> to vector<1x1x2x128xf32>
    tpu.vector_store %arg17[%c0_148, %c1_149, %c0_150, %c0_151], %409 {strides = array<i32>} : memref<2x12x2x128xf32, #tpu.memory_space<vmem>>, vector<1x1x2x128xf32>,
    %cst_152 = arith.constant 0.000000e+00 : f32
    %410 = vector.shape_cast %344 : vector<2x1xi1> to vector<2x1xi1>
    %411 = vector.broadcast %410 : vector<2x1xi1> to vector<2x16xi1>
    %412 = vector.broadcast %cst_152 : f32 to vector<2x16xf32>
    %413 = arith.select %411, %401, %412 : vector<2x16xi1>, vector<2x16xf32>
    %414 = tpu.concatenate %413, %261 in 1 : vector<2x16xf32>, vector<2x112xf32> -> vector<2x128xf32>
    %c1_153 = arith.constant 1 : index
    %c10 = arith.constant 10 : index
    %c0_154 = arith.constant 0 : index
    %c0_155 = arith.constant 0 : index
    %415 = vector.load %arg17[%c1_153, %c10, %c0_154, %c0_155] : memref<2x12x2x128xf32, #tpu.memory_space<vmem>>, vector<1x1x2x128xf32>
    %416 = vector.shape_cast %415 : vector<1x1x2x128xf32> to vector<2x128xf32>
    %417 = vector.shape_cast %414 : vector<2x128xf32> to vector<1x1x2x128xf32>
    tpu.vector_store %arg17[%c1_153, %c10, %c0_154, %c0_155], %417 {strides = array<i32>} : memref<2x12x2x128xf32, #tpu.memory_space<vmem>>, vector<1x1x2x128xf32>,
    %c2_i32 = arith.constant 2 : i32
    %418 = vector.broadcast %c2_i32 : i32 to vector<2x1xi32>
    %419 = arith.cmpi sgt, %260, %418 : vector<2x1xi32>
    %c9_i32 = arith.constant 9 : i32
    %420 = vector.broadcast %c9_i32 : i32 to vector<2x1xi32>
    %421 = arith.cmpi sgt, %260, %420 : vector<2x1xi32>
    %422 = tpu.concatenate %398, %401 in 1 : vector<2x16xf32>, vector<2x16xf32> -> vector<2x32xf32>
    %423 = arith.truncf %422 : vector<2x32xf32> to vector<2x32xbf16>
    %cst_156 = arith.constant dense<0.000000e+00> : vector<2x256xf32>
    %424 = tpu.matmul %423, %258, %cst_156 {dimension_numbers = #tpu.dot_dimension_numbers<[1], [0], [0], [1], [0, 0, 1, 1], [], []>} : vector<2x32xbf16>, vector<32x256xbf16>, vector<2x256xf32> -> vector<2x256xf32>
    %425 = vector.broadcast %259 : vector<1x256xf32> to vector<2x256xf32>
    %426 = arith.addf %424, %425 : vector<2x256xf32>
    %427 = vector.extract_strided_slice %257 {offsets = [0, 2, 0], sizes = [2, 1, 128], strides = [1, 1, 1]} : vector<2x12x256xf32> to vector<2x1x128xf32>
    %428 = vector.shape_cast %427 : vector<2x1x128xf32> to vector<2x128xf32>
    %429 = vector.extract_strided_slice %426 {offsets = [0, 0], sizes = [2, 128], strides = [1, 1]} : vector<2x256xf32> to vector<2x128xf32>
    %430 = vector.extract_strided_slice %428 {offsets = [0, 0], sizes = [2, 32], strides = [1, 1]} : vector<2x128xf32> to vector<2x32xf32>
    %431 = vector.extract_strided_slice %429 {offsets = [0, 0], sizes = [2, 32], strides = [1, 1]} : vector<2x128xf32> to vector<2x32xf32>
    %432 = arith.addf %430, %431 : vector<2x32xf32>
    %433 = arith.negf %432 : vector<2x32xf32>
    %434 = math.exp %433 : vector<2x32xf32>
    %cst_157 = arith.constant 1.000000e+00 : f32
    %435 = vector.broadcast %cst_157 : f32 to vector<2x32xf32>
    %436 = arith.addf %435, %434 : vector<2x32xf32>
    %437 = arith.divf %435, %436 : vector<2x32xf32>
    %438 = vector.extract_strided_slice %437 {offsets = [0, 0], sizes = [2, 16], strides = [1, 1]} : vector<2x32xf32> to vector<2x16xf32>
    %439 = vector.extract_strided_slice %437 {offsets = [0, 16], sizes = [2, 16], strides = [1, 1]} : vector<2x32xf32> to vector<2x16xf32>
    %440 = vector.extract_strided_slice %428 {offsets = [0, 32], sizes = [2, 16], strides = [1, 1]} : vector<2x128xf32> to vector<2x16xf32>
    %441 = vector.extract_strided_slice %429 {offsets = [0, 32], sizes = [2, 16], strides = [1, 1]} : vector<2x128xf32> to vector<2x16xf32>
    %442 = arith.mulf %438, %441 : vector<2x16xf32>
    %443 = arith.addf %440, %442 : vector<2x16xf32>
    %444 = math.tanh %443 : vector<2x16xf32>
    %cst_158 = arith.constant 1.000000e+00 : f32
    %445 = vector.broadcast %cst_158 : f32 to vector<2x16xf32>
    %446 = arith.subf %445, %439 : vector<2x16xf32>
    %447 = arith.mulf %446, %444 : vector<2x16xf32>
    %448 = arith.mulf %439, %398 : vector<2x16xf32>
    %449 = arith.addf %447, %448 : vector<2x16xf32>
    %450 = vector.extract_strided_slice %257 {offsets = [0, 9, 128], sizes = [2, 1, 128], strides = [1, 1, 1]} : vector<2x12x256xf32> to vector<2x1x128xf32>
    %451 = vector.shape_cast %450 : vector<2x1x128xf32> to vector<2x128xf32>
    %452 = vector.extract_strided_slice %426 {offsets = [0, 128], sizes = [2, 128], strides = [1, 1]} : vector<2x256xf32> to vector<2x128xf32>
    %453 = vector.extract_strided_slice %451 {offsets = [0, 0], sizes = [2, 32], strides = [1, 1]} : vector<2x128xf32> to vector<2x32xf32>
    %454 = vector.extract_strided_slice %452 {offsets = [0, 0], sizes = [2, 32], strides = [1, 1]} : vector<2x128xf32> to vector<2x32xf32>
    %455 = arith.addf %453, %454 : vector<2x32xf32>
    %456 = arith.negf %455 : vector<2x32xf32>
    %457 = math.exp %456 : vector<2x32xf32>
    %cst_159 = arith.constant 1.000000e+00 : f32
    %458 = vector.broadcast %cst_159 : f32 to vector<2x32xf32>
    %459 = arith.addf %458, %457 : vector<2x32xf32>
    %460 = arith.divf %458, %459 : vector<2x32xf32>
    %461 = vector.extract_strided_slice %460 {offsets = [0, 0], sizes = [2, 16], strides = [1, 1]} : vector<2x32xf32> to vector<2x16xf32>
    %462 = vector.extract_strided_slice %460 {offsets = [0, 16], sizes = [2, 16], strides = [1, 1]} : vector<2x32xf32> to vector<2x16xf32>
    %463 = vector.extract_strided_slice %451 {offsets = [0, 32], sizes = [2, 16], strides = [1, 1]} : vector<2x128xf32> to vector<2x16xf32>
    %464 = vector.extract_strided_slice %452 {offsets = [0, 32], sizes = [2, 16], strides = [1, 1]} : vector<2x128xf32> to vector<2x16xf32>
    %465 = arith.mulf %461, %464 : vector<2x16xf32>
    %466 = arith.addf %463, %465 : vector<2x16xf32>
    %467 = math.tanh %466 : vector<2x16xf32>
    %cst_160 = arith.constant 1.000000e+00 : f32
    %468 = vector.broadcast %cst_160 : f32 to vector<2x16xf32>
    %469 = arith.subf %468, %462 : vector<2x16xf32>
    %470 = arith.mulf %469, %467 : vector<2x16xf32>
    %471 = arith.mulf %462, %401 : vector<2x16xf32>
    %472 = arith.addf %470, %471 : vector<2x16xf32>
    %473 = vector.shape_cast %419 : vector<2x1xi1> to vector<2x1xi1>
    %474 = vector.broadcast %473 : vector<2x1xi1> to vector<2x16xi1>
    %475 = arith.select %474, %449, %398 : vector<2x16xi1>, vector<2x16xf32>
    %476 = vector.shape_cast %421 : vector<2x1xi1> to vector<2x1xi1>
    %477 = vector.broadcast %476 : vector<2x1xi1> to vector<2x16xi1>
    %478 = arith.select %477, %472, %401 : vector<2x16xi1>, vector<2x16xf32>
    %cst_161 = arith.constant 0.000000e+00 : f32
    %479 = vector.shape_cast %419 : vector<2x1xi1> to vector<2x1xi1>
    %480 = vector.broadcast %479 : vector<2x1xi1> to vector<2x16xi1>
    %481 = vector.broadcast %cst_161 : f32 to vector<2x16xf32>
    %482 = arith.select %480, %475, %481 : vector<2x16xi1>, vector<2x16xf32>
    %483 = tpu.concatenate %482, %261 in 1 : vector<2x16xf32>, vector<2x112xf32> -> vector<2x128xf32>
    %c0_162 = arith.constant 0 : index
    %c2 = arith.constant 2 : index
    %c0_163 = arith.constant 0 : index
    %c0_164 = arith.constant 0 : index
    %484 = vector.load %arg17[%c0_162, %c2, %c0_163, %c0_164] : memref<2x12x2x128xf32, #tpu.memory_space<vmem>>, vector<1x1x2x128xf32>
    %485 = vector.shape_cast %484 : vector<1x1x2x128xf32> to vector<2x128xf32>
    %486 = vector.shape_cast %483 : vector<2x128xf32> to vector<1x1x2x128xf32>
    tpu.vector_store %arg17[%c0_162, %c2, %c0_163, %c0_164], %486 {strides = array<i32>} : memref<2x12x2x128xf32, #tpu.memory_space<vmem>>, vector<1x1x2x128xf32>,
    %cst_165 = arith.constant 0.000000e+00 : f32
    %487 = vector.shape_cast %421 : vector<2x1xi1> to vector<2x1xi1>
    %488 = vector.broadcast %487 : vector<2x1xi1> to vector<2x16xi1>
    %489 = vector.broadcast %cst_165 : f32 to vector<2x16xf32>
    %490 = arith.select %488, %478, %489 : vector<2x16xi1>, vector<2x16xf32>
    %491 = tpu.concatenate %490, %261 in 1 : vector<2x16xf32>, vector<2x112xf32> -> vector<2x128xf32>
    %c1_166 = arith.constant 1 : index
    %c9 = arith.constant 9 : index
    %c0_167 = arith.constant 0 : index
    %c0_168 = arith.constant 0 : index
    %492 = vector.load %arg17[%c1_166, %c9, %c0_167, %c0_168] : memref<2x12x2x128xf32, #tpu.memory_space<vmem>>, vector<1x1x2x128xf32>
    %493 = vector.shape_cast %492 : vector<1x1x2x128xf32> to vector<2x128xf32>
    %494 = vector.shape_cast %491 : vector<2x128xf32> to vector<1x1x2x128xf32>
    tpu.vector_store %arg17[%c1_166, %c9, %c0_167, %c0_168], %494 {strides = array<i32>} : memref<2x12x2x128xf32, #tpu.memory_space<vmem>>, vector<1x1x2x128xf32>,
    %c3_i32 = arith.constant 3 : i32
    %495 = vector.broadcast %c3_i32 : i32 to vector<2x1xi32>
    %496 = arith.cmpi sgt, %260, %495 : vector<2x1xi32>
    %c8_i32 = arith.constant 8 : i32
    %497 = vector.broadcast %c8_i32 : i32 to vector<2x1xi32>
    %498 = arith.cmpi sgt, %260, %497 : vector<2x1xi32>
    %499 = tpu.concatenate %475, %478 in 1 : vector<2x16xf32>, vector<2x16xf32> -> vector<2x32xf32>
    %500 = arith.truncf %499 : vector<2x32xf32> to vector<2x32xbf16>
    %cst_169 = arith.constant dense<0.000000e+00> : vector<2x256xf32>
    %501 = tpu.matmul %500, %258, %cst_169 {dimension_numbers = #tpu.dot_dimension_numbers<[1], [0], [0], [1], [0, 0, 1, 1], [], []>} : vector<2x32xbf16>, vector<32x256xbf16>, vector<2x256xf32> -> vector<2x256xf32>
    %502 = vector.broadcast %259 : vector<1x256xf32> to vector<2x256xf32>
    %503 = arith.addf %501, %502 : vector<2x256xf32>
    %504 = vector.extract_strided_slice %257 {offsets = [0, 3, 0], sizes = [2, 1, 128], strides = [1, 1, 1]} : vector<2x12x256xf32> to vector<2x1x128xf32>
    %505 = vector.shape_cast %504 : vector<2x1x128xf32> to vector<2x128xf32>
    %506 = vector.extract_strided_slice %503 {offsets = [0, 0], sizes = [2, 128], strides = [1, 1]} : vector<2x256xf32> to vector<2x128xf32>
    %507 = vector.extract_strided_slice %505 {offsets = [0, 0], sizes = [2, 32], strides = [1, 1]} : vector<2x128xf32> to vector<2x32xf32>
    %508 = vector.extract_strided_slice %506 {offsets = [0, 0], sizes = [2, 32], strides = [1, 1]} : vector<2x128xf32> to vector<2x32xf32>
    %509 = arith.addf %507, %508 : vector<2x32xf32>
    %510 = arith.negf %509 : vector<2x32xf32>
    %511 = math.exp %510 : vector<2x32xf32>
    %cst_170 = arith.constant 1.000000e+00 : f32
    %512 = vector.broadcast %cst_170 : f32 to vector<2x32xf32>
    %513 = arith.addf %512, %511 : vector<2x32xf32>
    %514 = arith.divf %512, %513 : vector<2x32xf32>
    %515 = vector.extract_strided_slice %514 {offsets = [0, 0], sizes = [2, 16], strides = [1, 1]} : vector<2x32xf32> to vector<2x16xf32>
    %516 = vector.extract_strided_slice %514 {offsets = [0, 16], sizes = [2, 16], strides = [1, 1]} : vector<2x32xf32> to vector<2x16xf32>
    %517 = vector.extract_strided_slice %505 {offsets = [0, 32], sizes = [2, 16], strides = [1, 1]} : vector<2x128xf32> to vector<2x16xf32>
    %518 = vector.extract_strided_slice %506 {offsets = [0, 32], sizes = [2, 16], strides = [1, 1]} : vector<2x128xf32> to vector<2x16xf32>
    %519 = arith.mulf %515, %518 : vector<2x16xf32>
    %520 = arith.addf %517, %519 : vector<2x16xf32>
    %521 = math.tanh %520 : vector<2x16xf32>
    %cst_171 = arith.constant 1.000000e+00 : f32
    %522 = vector.broadcast %cst_171 : f32 to vector<2x16xf32>
    %523 = arith.subf %522, %516 : vector<2x16xf32>
    %524 = arith.mulf %523, %521 : vector<2x16xf32>
    %525 = arith.mulf %516, %475 : vector<2x16xf32>
    %526 = arith.addf %524, %525 : vector<2x16xf32>
    %527 = vector.extract_strided_slice %257 {offsets = [0, 8, 128], sizes = [2, 1, 128], strides = [1, 1, 1]} : vector<2x12x256xf32> to vector<2x1x128xf32>
    %528 = vector.shape_cast %527 : vector<2x1x128xf32> to vector<2x128xf32>
    %529 = vector.extract_strided_slice %503 {offsets = [0, 128], sizes = [2, 128], strides = [1, 1]} : vector<2x256xf32> to vector<2x128xf32>
    %530 = vector.extract_strided_slice %528 {offsets = [0, 0], sizes = [2, 32], strides = [1, 1]} : vector<2x128xf32> to vector<2x32xf32>
    %531 = vector.extract_strided_slice %529 {offsets = [0, 0], sizes = [2, 32], strides = [1, 1]} : vector<2x128xf32> to vector<2x32xf32>
    %532 = arith.addf %530, %531 : vector<2x32xf32>
    %533 = arith.negf %532 : vector<2x32xf32>
    %534 = math.exp %533 : vector<2x32xf32>
    %cst_172 = arith.constant 1.000000e+00 : f32
    %535 = vector.broadcast %cst_172 : f32 to vector<2x32xf32>
    %536 = arith.addf %535, %534 : vector<2x32xf32>
    %537 = arith.divf %535, %536 : vector<2x32xf32>
    %538 = vector.extract_strided_slice %537 {offsets = [0, 0], sizes = [2, 16], strides = [1, 1]} : vector<2x32xf32> to vector<2x16xf32>
    %539 = vector.extract_strided_slice %537 {offsets = [0, 16], sizes = [2, 16], strides = [1, 1]} : vector<2x32xf32> to vector<2x16xf32>
    %540 = vector.extract_strided_slice %528 {offsets = [0, 32], sizes = [2, 16], strides = [1, 1]} : vector<2x128xf32> to vector<2x16xf32>
    %541 = vector.extract_strided_slice %529 {offsets = [0, 32], sizes = [2, 16], strides = [1, 1]} : vector<2x128xf32> to vector<2x16xf32>
    %542 = arith.mulf %538, %541 : vector<2x16xf32>
    %543 = arith.addf %540, %542 : vector<2x16xf32>
    %544 = math.tanh %543 : vector<2x16xf32>
    %cst_173 = arith.constant 1.000000e+00 : f32
    %545 = vector.broadcast %cst_173 : f32 to vector<2x16xf32>
    %546 = arith.subf %545, %539 : vector<2x16xf32>
    %547 = arith.mulf %546, %544 : vector<2x16xf32>
    %548 = arith.mulf %539, %478 : vector<2x16xf32>
    %549 = arith.addf %547, %548 : vector<2x16xf32>
    %550 = vector.shape_cast %496 : vector<2x1xi1> to vector<2x1xi1>
    %551 = vector.broadcast %550 : vector<2x1xi1> to vector<2x16xi1>
    %552 = arith.select %551, %526, %475 : vector<2x16xi1>, vector<2x16xf32>
    %553 = vector.shape_cast %498 : vector<2x1xi1> to vector<2x1xi1>
    %554 = vector.broadcast %553 : vector<2x1xi1> to vector<2x16xi1>
    %555 = arith.select %554, %549, %478 : vector<2x16xi1>, vector<2x16xf32>
    %cst_174 = arith.constant 0.000000e+00 : f32
    %556 = vector.shape_cast %496 : vector<2x1xi1> to vector<2x1xi1>
    %557 = vector.broadcast %556 : vector<2x1xi1> to vector<2x16xi1>
    %558 = vector.broadcast %cst_174 : f32 to vector<2x16xf32>
    %559 = arith.select %557, %552, %558 : vector<2x16xi1>, vector<2x16xf32>
    %560 = tpu.concatenate %559, %261 in 1 : vector<2x16xf32>, vector<2x112xf32> -> vector<2x128xf32>
    %c0_175 = arith.constant 0 : index
    %c3 = arith.constant 3 : index
    %c0_176 = arith.constant 0 : index
    %c0_177 = arith.constant 0 : index
    %561 = vector.load %arg17[%c0_175, %c3, %c0_176, %c0_177] : memref<2x12x2x128xf32, #tpu.memory_space<vmem>>, vector<1x1x2x128xf32>
    %562 = vector.shape_cast %561 : vector<1x1x2x128xf32> to vector<2x128xf32>
    %563 = vector.shape_cast %560 : vector<2x128xf32> to vector<1x1x2x128xf32>
    tpu.vector_store %arg17[%c0_175, %c3, %c0_176, %c0_177], %563 {strides = array<i32>} : memref<2x12x2x128xf32, #tpu.memory_space<vmem>>, vector<1x1x2x128xf32>,
    %cst_178 = arith.constant 0.000000e+00 : f32
    %564 = vector.shape_cast %498 : vector<2x1xi1> to vector<2x1xi1>
    %565 = vector.broadcast %564 : vector<2x1xi1> to vector<2x16xi1>
    %566 = vector.broadcast %cst_178 : f32 to vector<2x16xf32>
    %567 = arith.select %565, %555, %566 : vector<2x16xi1>, vector<2x16xf32>
    %568 = tpu.concatenate %567, %261 in 1 : vector<2x16xf32>, vector<2x112xf32> -> vector<2x128xf32>
    %c1_179 = arith.constant 1 : index
    %c8 = arith.constant 8 : index
    %c0_180 = arith.constant 0 : index
    %c0_181 = arith.constant 0 : index
    %569 = vector.load %arg17[%c1_179, %c8, %c0_180, %c0_181] : memref<2x12x2x128xf32, #tpu.memory_space<vmem>>, vector<1x1x2x128xf32>
    %570 = vector.shape_cast %569 : vector<1x1x2x128xf32> to vector<2x128xf32>
    %571 = vector.shape_cast %568 : vector<2x128xf32> to vector<1x1x2x128xf32>
    tpu.vector_store %arg17[%c1_179, %c8, %c0_180, %c0_181], %571 {strides = array<i32>} : memref<2x12x2x128xf32, #tpu.memory_space<vmem>>, vector<1x1x2x128xf32>,
    %c4_i32 = arith.constant 4 : i32
    %572 = vector.broadcast %c4_i32 : i32 to vector<2x1xi32>
    %573 = arith.cmpi sgt, %260, %572 : vector<2x1xi32>
    %c7_i32 = arith.constant 7 : i32
    %574 = vector.broadcast %c7_i32 : i32 to vector<2x1xi32>
    %575 = arith.cmpi sgt, %260, %574 : vector<2x1xi32>
    %576 = tpu.concatenate %552, %555 in 1 : vector<2x16xf32>, vector<2x16xf32> -> vector<2x32xf32>
    %577 = arith.truncf %576 : vector<2x32xf32> to vector<2x32xbf16>
    %cst_182 = arith.constant dense<0.000000e+00> : vector<2x256xf32>
    %578 = tpu.matmul %577, %258, %cst_182 {dimension_numbers = #tpu.dot_dimension_numbers<[1], [0], [0], [1], [0, 0, 1, 1], [], []>} : vector<2x32xbf16>, vector<32x256xbf16>, vector<2x256xf32> -> vector<2x256xf32>
    %579 = vector.broadcast %259 : vector<1x256xf32> to vector<2x256xf32>
    %580 = arith.addf %578, %579 : vector<2x256xf32>
    %581 = vector.extract_strided_slice %257 {offsets = [0, 4, 0], sizes = [2, 1, 128], strides = [1, 1, 1]} : vector<2x12x256xf32> to vector<2x1x128xf32>
    %582 = vector.shape_cast %581 : vector<2x1x128xf32> to vector<2x128xf32>
    %583 = vector.extract_strided_slice %580 {offsets = [0, 0], sizes = [2, 128], strides = [1, 1]} : vector<2x256xf32> to vector<2x128xf32>
    %584 = vector.extract_strided_slice %582 {offsets = [0, 0], sizes = [2, 32], strides = [1, 1]} : vector<2x128xf32> to vector<2x32xf32>
    %585 = vector.extract_strided_slice %583 {offsets = [0, 0], sizes = [2, 32], strides = [1, 1]} : vector<2x128xf32> to vector<2x32xf32>
    %586 = arith.addf %584, %585 : vector<2x32xf32>
    %587 = arith.negf %586 : vector<2x32xf32>
    %588 = math.exp %587 : vector<2x32xf32>
    %cst_183 = arith.constant 1.000000e+00 : f32
    %589 = vector.broadcast %cst_183 : f32 to vector<2x32xf32>
    %590 = arith.addf %589, %588 : vector<2x32xf32>
    %591 = arith.divf %589, %590 : vector<2x32xf32>
    %592 = vector.extract_strided_slice %591 {offsets = [0, 0], sizes = [2, 16], strides = [1, 1]} : vector<2x32xf32> to vector<2x16xf32>
    %593 = vector.extract_strided_slice %591 {offsets = [0, 16], sizes = [2, 16], strides = [1, 1]} : vector<2x32xf32> to vector<2x16xf32>
    %594 = vector.extract_strided_slice %582 {offsets = [0, 32], sizes = [2, 16], strides = [1, 1]} : vector<2x128xf32> to vector<2x16xf32>
    %595 = vector.extract_strided_slice %583 {offsets = [0, 32], sizes = [2, 16], strides = [1, 1]} : vector<2x128xf32> to vector<2x16xf32>
    %596 = arith.mulf %592, %595 : vector<2x16xf32>
    %597 = arith.addf %594, %596 : vector<2x16xf32>
    %598 = math.tanh %597 : vector<2x16xf32>
    %cst_184 = arith.constant 1.000000e+00 : f32
    %599 = vector.broadcast %cst_184 : f32 to vector<2x16xf32>
    %600 = arith.subf %599, %593 : vector<2x16xf32>
    %601 = arith.mulf %600, %598 : vector<2x16xf32>
    %602 = arith.mulf %593, %552 : vector<2x16xf32>
    %603 = arith.addf %601, %602 : vector<2x16xf32>
    %604 = vector.extract_strided_slice %257 {offsets = [0, 7, 128], sizes = [2, 1, 128], strides = [1, 1, 1]} : vector<2x12x256xf32> to vector<2x1x128xf32>
    %605 = vector.shape_cast %604 : vector<2x1x128xf32> to vector<2x128xf32>
    %606 = vector.extract_strided_slice %580 {offsets = [0, 128], sizes = [2, 128], strides = [1, 1]} : vector<2x256xf32> to vector<2x128xf32>
    %607 = vector.extract_strided_slice %605 {offsets = [0, 0], sizes = [2, 32], strides = [1, 1]} : vector<2x128xf32> to vector<2x32xf32>
    %608 = vector.extract_strided_slice %606 {offsets = [0, 0], sizes = [2, 32], strides = [1, 1]} : vector<2x128xf32> to vector<2x32xf32>
    %609 = arith.addf %607, %608 : vector<2x32xf32>
    %610 = arith.negf %609 : vector<2x32xf32>
    %611 = math.exp %610 : vector<2x32xf32>
    %cst_185 = arith.constant 1.000000e+00 : f32
    %612 = vector.broadcast %cst_185 : f32 to vector<2x32xf32>
    %613 = arith.addf %612, %611 : vector<2x32xf32>
    %614 = arith.divf %612, %613 : vector<2x32xf32>
    %615 = vector.extract_strided_slice %614 {offsets = [0, 0], sizes = [2, 16], strides = [1, 1]} : vector<2x32xf32> to vector<2x16xf32>
    %616 = vector.extract_strided_slice %614 {offsets = [0, 16], sizes = [2, 16], strides = [1, 1]} : vector<2x32xf32> to vector<2x16xf32>
    %617 = vector.extract_strided_slice %605 {offsets = [0, 32], sizes = [2, 16], strides = [1, 1]} : vector<2x128xf32> to vector<2x16xf32>
    %618 = vector.extract_strided_slice %606 {offsets = [0, 32], sizes = [2, 16], strides = [1, 1]} : vector<2x128xf32> to vector<2x16xf32>
    %619 = arith.mulf %615, %618 : vector<2x16xf32>
    %620 = arith.addf %617, %619 : vector<2x16xf32>
    %621 = math.tanh %620 : vector<2x16xf32>
    %cst_186 = arith.constant 1.000000e+00 : f32
    %622 = vector.broadcast %cst_186 : f32 to vector<2x16xf32>
    %623 = arith.subf %622, %616 : vector<2x16xf32>
    %624 = arith.mulf %623, %621 : vector<2x16xf32>
    %625 = arith.mulf %616, %555 : vector<2x16xf32>
    %626 = arith.addf %624, %625 : vector<2x16xf32>
    %627 = vector.shape_cast %573 : vector<2x1xi1> to vector<2x1xi1>
    %628 = vector.broadcast %627 : vector<2x1xi1> to vector<2x16xi1>
    %629 = arith.select %628, %603, %552 : vector<2x16xi1>, vector<2x16xf32>
    %630 = vector.shape_cast %575 : vector<2x1xi1> to vector<2x1xi1>
    %631 = vector.broadcast %630 : vector<2x1xi1> to vector<2x16xi1>
    %632 = arith.select %631, %626, %555 : vector<2x16xi1>, vector<2x16xf32>
    %cst_187 = arith.constant 0.000000e+00 : f32
    %633 = vector.shape_cast %573 : vector<2x1xi1> to vector<2x1xi1>
    %634 = vector.broadcast %633 : vector<2x1xi1> to vector<2x16xi1>
    %635 = vector.broadcast %cst_187 : f32 to vector<2x16xf32>
    %636 = arith.select %634, %629, %635 : vector<2x16xi1>, vector<2x16xf32>
    %637 = tpu.concatenate %636, %261 in 1 : vector<2x16xf32>, vector<2x112xf32> -> vector<2x128xf32>
    %c0_188 = arith.constant 0 : index
    %c4 = arith.constant 4 : index
    %c0_189 = arith.constant 0 : index
    %c0_190 = arith.constant 0 : index
    %638 = vector.load %arg17[%c0_188, %c4, %c0_189, %c0_190] : memref<2x12x2x128xf32, #tpu.memory_space<vmem>>, vector<1x1x2x128xf32>
    %639 = vector.shape_cast %638 : vector<1x1x2x128xf32> to vector<2x128xf32>
    %640 = vector.shape_cast %637 : vector<2x128xf32> to vector<1x1x2x128xf32>
    tpu.vector_store %arg17[%c0_188, %c4, %c0_189, %c0_190], %640 {strides = array<i32>} : memref<2x12x2x128xf32, #tpu.memory_space<vmem>>, vector<1x1x2x128xf32>,
    %cst_191 = arith.constant 0.000000e+00 : f32
    %641 = vector.shape_cast %575 : vector<2x1xi1> to vector<2x1xi1>
    %642 = vector.broadcast %641 : vector<2x1xi1> to vector<2x16xi1>
    %643 = vector.broadcast %cst_191 : f32 to vector<2x16xf32>
    %644 = arith.select %642, %632, %643 : vector<2x16xi1>, vector<2x16xf32>
    %645 = tpu.concatenate %644, %261 in 1 : vector<2x16xf32>, vector<2x112xf32> -> vector<2x128xf32>
    %c1_192 = arith.constant 1 : index
    %c7 = arith.constant 7 : index
    %c0_193 = arith.constant 0 : index
    %c0_194 = arith.constant 0 : index
    %646 = vector.load %arg17[%c1_192, %c7, %c0_193, %c0_194] : memref<2x12x2x128xf32, #tpu.memory_space<vmem>>, vector<1x1x2x128xf32>
    %647 = vector.shape_cast %646 : vector<1x1x2x128xf32> to vector<2x128xf32>
    %648 = vector.shape_cast %645 : vector<2x128xf32> to vector<1x1x2x128xf32>
    tpu.vector_store %arg17[%c1_192, %c7, %c0_193, %c0_194], %648 {strides = array<i32>} : memref<2x12x2x128xf32, #tpu.memory_space<vmem>>, vector<1x1x2x128xf32>,
    %c5_i32 = arith.constant 5 : i32
    %649 = vector.broadcast %c5_i32 : i32 to vector<2x1xi32>
    %650 = arith.cmpi sgt, %260, %649 : vector<2x1xi32>
    %c6_i32 = arith.constant 6 : i32
    %651 = vector.broadcast %c6_i32 : i32 to vector<2x1xi32>
    %652 = arith.cmpi sgt, %260, %651 : vector<2x1xi32>
    %653 = tpu.concatenate %629, %632 in 1 : vector<2x16xf32>, vector<2x16xf32> -> vector<2x32xf32>
    %654 = arith.truncf %653 : vector<2x32xf32> to vector<2x32xbf16>
    %cst_195 = arith.constant dense<0.000000e+00> : vector<2x256xf32>
    %655 = tpu.matmul %654, %258, %cst_195 {dimension_numbers = #tpu.dot_dimension_numbers<[1], [0], [0], [1], [0, 0, 1, 1], [], []>} : vector<2x32xbf16>, vector<32x256xbf16>, vector<2x256xf32> -> vector<2x256xf32>
    %656 = vector.broadcast %259 : vector<1x256xf32> to vector<2x256xf32>
    %657 = arith.addf %655, %656 : vector<2x256xf32>
    %658 = vector.extract_strided_slice %257 {offsets = [0, 5, 0], sizes = [2, 1, 128], strides = [1, 1, 1]} : vector<2x12x256xf32> to vector<2x1x128xf32>
    %659 = vector.shape_cast %658 : vector<2x1x128xf32> to vector<2x128xf32>
    %660 = vector.extract_strided_slice %657 {offsets = [0, 0], sizes = [2, 128], strides = [1, 1]} : vector<2x256xf32> to vector<2x128xf32>
    %661 = vector.extract_strided_slice %659 {offsets = [0, 0], sizes = [2, 32], strides = [1, 1]} : vector<2x128xf32> to vector<2x32xf32>
    %662 = vector.extract_strided_slice %660 {offsets = [0, 0], sizes = [2, 32], strides = [1, 1]} : vector<2x128xf32> to vector<2x32xf32>
    %663 = arith.addf %661, %662 : vector<2x32xf32>
    %664 = arith.negf %663 : vector<2x32xf32>
    %665 = math.exp %664 : vector<2x32xf32>
    %cst_196 = arith.constant 1.000000e+00 : f32
    %666 = vector.broadcast %cst_196 : f32 to vector<2x32xf32>
    %667 = arith.addf %666, %665 : vector<2x32xf32>
    %668 = arith.divf %666, %667 : vector<2x32xf32>
    %669 = vector.extract_strided_slice %668 {offsets = [0, 0], sizes = [2, 16], strides = [1, 1]} : vector<2x32xf32> to vector<2x16xf32>
    %670 = vector.extract_strided_slice %668 {offsets = [0, 16], sizes = [2, 16], strides = [1, 1]} : vector<2x32xf32> to vector<2x16xf32>
    %671 = vector.extract_strided_slice %659 {offsets = [0, 32], sizes = [2, 16], strides = [1, 1]} : vector<2x128xf32> to vector<2x16xf32>
    %672 = vector.extract_strided_slice %660 {offsets = [0, 32], sizes = [2, 16], strides = [1, 1]} : vector<2x128xf32> to vector<2x16xf32>
    %673 = arith.mulf %669, %672 : vector<2x16xf32>
    %674 = arith.addf %671, %673 : vector<2x16xf32>
    %675 = math.tanh %674 : vector<2x16xf32>
    %cst_197 = arith.constant 1.000000e+00 : f32
    %676 = vector.broadcast %cst_197 : f32 to vector<2x16xf32>
    %677 = arith.subf %676, %670 : vector<2x16xf32>
    %678 = arith.mulf %677, %675 : vector<2x16xf32>
    %679 = arith.mulf %670, %629 : vector<2x16xf32>
    %680 = arith.addf %678, %679 : vector<2x16xf32>
    %681 = vector.extract_strided_slice %257 {offsets = [0, 6, 128], sizes = [2, 1, 128], strides = [1, 1, 1]} : vector<2x12x256xf32> to vector<2x1x128xf32>
    %682 = vector.shape_cast %681 : vector<2x1x128xf32> to vector<2x128xf32>
    %683 = vector.extract_strided_slice %657 {offsets = [0, 128], sizes = [2, 128], strides = [1, 1]} : vector<2x256xf32> to vector<2x128xf32>
    %684 = vector.extract_strided_slice %682 {offsets = [0, 0], sizes = [2, 32], strides = [1, 1]} : vector<2x128xf32> to vector<2x32xf32>
    %685 = vector.extract_strided_slice %683 {offsets = [0, 0], sizes = [2, 32], strides = [1, 1]} : vector<2x128xf32> to vector<2x32xf32>
    %686 = arith.addf %684, %685 : vector<2x32xf32>
    %687 = arith.negf %686 : vector<2x32xf32>
    %688 = math.exp %687 : vector<2x32xf32>
    %cst_198 = arith.constant 1.000000e+00 : f32
    %689 = vector.broadcast %cst_198 : f32 to vector<2x32xf32>
    %690 = arith.addf %689, %688 : vector<2x32xf32>
    %691 = arith.divf %689, %690 : vector<2x32xf32>
    %692 = vector.extract_strided_slice %691 {offsets = [0, 0], sizes = [2, 16], strides = [1, 1]} : vector<2x32xf32> to vector<2x16xf32>
    %693 = vector.extract_strided_slice %691 {offsets = [0, 16], sizes = [2, 16], strides = [1, 1]} : vector<2x32xf32> to vector<2x16xf32>
    %694 = vector.extract_strided_slice %682 {offsets = [0, 32], sizes = [2, 16], strides = [1, 1]} : vector<2x128xf32> to vector<2x16xf32>
    %695 = vector.extract_strided_slice %683 {offsets = [0, 32], sizes = [2, 16], strides = [1, 1]} : vector<2x128xf32> to vector<2x16xf32>
    %696 = arith.mulf %692, %695 : vector<2x16xf32>
    %697 = arith.addf %694, %696 : vector<2x16xf32>
    %698 = math.tanh %697 : vector<2x16xf32>
    %cst_199 = arith.constant 1.000000e+00 : f32
    %699 = vector.broadcast %cst_199 : f32 to vector<2x16xf32>
    %700 = arith.subf %699, %693 : vector<2x16xf32>
    %701 = arith.mulf %700, %698 : vector<2x16xf32>
    %702 = arith.mulf %693, %632 : vector<2x16xf32>
    %703 = arith.addf %701, %702 : vector<2x16xf32>
    %704 = vector.shape_cast %650 : vector<2x1xi1> to vector<2x1xi1>
    %705 = vector.broadcast %704 : vector<2x1xi1> to vector<2x16xi1>
    %706 = arith.select %705, %680, %629 : vector<2x16xi1>, vector<2x16xf32>
    %707 = vector.shape_cast %652 : vector<2x1xi1> to vector<2x1xi1>
    %708 = vector.broadcast %707 : vector<2x1xi1> to vector<2x16xi1>
    %709 = arith.select %708, %703, %632 : vector<2x16xi1>, vector<2x16xf32>
    %cst_200 = arith.constant 0.000000e+00 : f32
    %710 = vector.shape_cast %650 : vector<2x1xi1> to vector<2x1xi1>
    %711 = vector.broadcast %710 : vector<2x1xi1> to vector<2x16xi1>
    %712 = vector.broadcast %cst_200 : f32 to vector<2x16xf32>
    %713 = arith.select %711, %706, %712 : vector<2x16xi1>, vector<2x16xf32>
    %714 = tpu.concatenate %713, %261 in 1 : vector<2x16xf32>, vector<2x112xf32> -> vector<2x128xf32>
    %c0_201 = arith.constant 0 : index
    %c5 = arith.constant 5 : index
    %c0_202 = arith.constant 0 : index
    %c0_203 = arith.constant 0 : index
    %715 = vector.load %arg17[%c0_201, %c5, %c0_202, %c0_203] : memref<2x12x2x128xf32, #tpu.memory_space<vmem>>, vector<1x1x2x128xf32>
    %716 = vector.shape_cast %715 : vector<1x1x2x128xf32> to vector<2x128xf32>
    %717 = vector.shape_cast %714 : vector<2x128xf32> to vector<1x1x2x128xf32>
    tpu.vector_store %arg17[%c0_201, %c5, %c0_202, %c0_203], %717 {strides = array<i32>} : memref<2x12x2x128xf32, #tpu.memory_space<vmem>>, vector<1x1x2x128xf32>,
    %cst_204 = arith.constant 0.000000e+00 : f32
    %718 = vector.shape_cast %652 : vector<2x1xi1> to vector<2x1xi1>
    %719 = vector.broadcast %718 : vector<2x1xi1> to vector<2x16xi1>
    %720 = vector.broadcast %cst_204 : f32 to vector<2x16xf32>
    %721 = arith.select %719, %709, %720 : vector<2x16xi1>, vector<2x16xf32>
    %722 = tpu.concatenate %721, %261 in 1 : vector<2x16xf32>, vector<2x112xf32> -> vector<2x128xf32>
    %c1_205 = arith.constant 1 : index
    %c6 = arith.constant 6 : index
    %c0_206 = arith.constant 0 : index
    %c0_207 = arith.constant 0 : index
    %723 = vector.load %arg17[%c1_205, %c6, %c0_206, %c0_207] : memref<2x12x2x128xf32, #tpu.memory_space<vmem>>, vector<1x1x2x128xf32>
    %724 = vector.shape_cast %723 : vector<1x1x2x128xf32> to vector<2x128xf32>
    %725 = vector.shape_cast %722 : vector<2x128xf32> to vector<1x1x2x128xf32>
    tpu.vector_store %arg17[%c1_205, %c6, %c0_206, %c0_207], %725 {strides = array<i32>} : memref<2x12x2x128xf32, #tpu.memory_space<vmem>>, vector<1x1x2x128xf32>,
    %c6_i32_208 = arith.constant 6 : i32
    %726 = vector.broadcast %c6_i32_208 : i32 to vector<2x1xi32>
    %727 = arith.cmpi sgt, %260, %726 : vector<2x1xi32>
    %c5_i32_209 = arith.constant 5 : i32
    %728 = vector.broadcast %c5_i32_209 : i32 to vector<2x1xi32>
    %729 = arith.cmpi sgt, %260, %728 : vector<2x1xi32>
    %730 = tpu.concatenate %706, %709 in 1 : vector<2x16xf32>, vector<2x16xf32> -> vector<2x32xf32>
    %731 = arith.truncf %730 : vector<2x32xf32> to vector<2x32xbf16>
    %cst_210 = arith.constant dense<0.000000e+00> : vector<2x256xf32>
    %732 = tpu.matmul %731, %258, %cst_210 {dimension_numbers = #tpu.dot_dimension_numbers<[1], [0], [0], [1], [0, 0, 1, 1], [], []>} : vector<2x32xbf16>, vector<32x256xbf16>, vector<2x256xf32> -> vector<2x256xf32>
    %733 = vector.broadcast %259 : vector<1x256xf32> to vector<2x256xf32>
    %734 = arith.addf %732, %733 : vector<2x256xf32>
    %735 = vector.extract_strided_slice %257 {offsets = [0, 6, 0], sizes = [2, 1, 128], strides = [1, 1, 1]} : vector<2x12x256xf32> to vector<2x1x128xf32>
    %736 = vector.shape_cast %735 : vector<2x1x128xf32> to vector<2x128xf32>
    %737 = vector.extract_strided_slice %734 {offsets = [0, 0], sizes = [2, 128], strides = [1, 1]} : vector<2x256xf32> to vector<2x128xf32>
    %738 = vector.extract_strided_slice %736 {offsets = [0, 0], sizes = [2, 32], strides = [1, 1]} : vector<2x128xf32> to vector<2x32xf32>
    %739 = vector.extract_strided_slice %737 {offsets = [0, 0], sizes = [2, 32], strides = [1, 1]} : vector<2x128xf32> to vector<2x32xf32>
    %740 = arith.addf %738, %739 : vector<2x32xf32>
    %741 = arith.negf %740 : vector<2x32xf32>
    %742 = math.exp %741 : vector<2x32xf32>
    %cst_211 = arith.constant 1.000000e+00 : f32
    %743 = vector.broadcast %cst_211 : f32 to vector<2x32xf32>
    %744 = arith.addf %743, %742 : vector<2x32xf32>
    %745 = arith.divf %743, %744 : vector<2x32xf32>
    %746 = vector.extract_strided_slice %745 {offsets = [0, 0], sizes = [2, 16], strides = [1, 1]} : vector<2x32xf32> to vector<2x16xf32>
    %747 = vector.extract_strided_slice %745 {offsets = [0, 16], sizes = [2, 16], strides = [1, 1]} : vector<2x32xf32> to vector<2x16xf32>
    %748 = vector.extract_strided_slice %736 {offsets = [0, 32], sizes = [2, 16], strides = [1, 1]} : vector<2x128xf32> to vector<2x16xf32>
    %749 = vector.extract_strided_slice %737 {offsets = [0, 32], sizes = [2, 16], strides = [1, 1]} : vector<2x128xf32> to vector<2x16xf32>
    %750 = arith.mulf %746, %749 : vector<2x16xf32>
    %751 = arith.addf %748, %750 : vector<2x16xf32>
    %752 = math.tanh %751 : vector<2x16xf32>
    %cst_212 = arith.constant 1.000000e+00 : f32
    %753 = vector.broadcast %cst_212 : f32 to vector<2x16xf32>
    %754 = arith.subf %753, %747 : vector<2x16xf32>
    %755 = arith.mulf %754, %752 : vector<2x16xf32>
    %756 = arith.mulf %747, %706 : vector<2x16xf32>
    %757 = arith.addf %755, %756 : vector<2x16xf32>
    %758 = vector.extract_strided_slice %257 {offsets = [0, 5, 128], sizes = [2, 1, 128], strides = [1, 1, 1]} : vector<2x12x256xf32> to vector<2x1x128xf32>
    %759 = vector.shape_cast %758 : vector<2x1x128xf32> to vector<2x128xf32>
    %760 = vector.extract_strided_slice %734 {offsets = [0, 128], sizes = [2, 128], strides = [1, 1]} : vector<2x256xf32> to vector<2x128xf32>
    %761 = vector.extract_strided_slice %759 {offsets = [0, 0], sizes = [2, 32], strides = [1, 1]} : vector<2x128xf32> to vector<2x32xf32>
    %762 = vector.extract_strided_slice %760 {offsets = [0, 0], sizes = [2, 32], strides = [1, 1]} : vector<2x128xf32> to vector<2x32xf32>
    %763 = arith.addf %761, %762 : vector<2x32xf32>
    %764 = arith.negf %763 : vector<2x32xf32>
    %765 = math.exp %764 : vector<2x32xf32>
    %cst_213 = arith.constant 1.000000e+00 : f32
    %766 = vector.broadcast %cst_213 : f32 to vector<2x32xf32>
    %767 = arith.addf %766, %765 : vector<2x32xf32>
    %768 = arith.divf %766, %767 : vector<2x32xf32>
    %769 = vector.extract_strided_slice %768 {offsets = [0, 0], sizes = [2, 16], strides = [1, 1]} : vector<2x32xf32> to vector<2x16xf32>
    %770 = vector.extract_strided_slice %768 {offsets = [0, 16], sizes = [2, 16], strides = [1, 1]} : vector<2x32xf32> to vector<2x16xf32>
    %771 = vector.extract_strided_slice %759 {offsets = [0, 32], sizes = [2, 16], strides = [1, 1]} : vector<2x128xf32> to vector<2x16xf32>
    %772 = vector.extract_strided_slice %760 {offsets = [0, 32], sizes = [2, 16], strides = [1, 1]} : vector<2x128xf32> to vector<2x16xf32>
    %773 = arith.mulf %769, %772 : vector<2x16xf32>
    %774 = arith.addf %771, %773 : vector<2x16xf32>
    %775 = math.tanh %774 : vector<2x16xf32>
    %cst_214 = arith.constant 1.000000e+00 : f32
    %776 = vector.broadcast %cst_214 : f32 to vector<2x16xf32>
    %777 = arith.subf %776, %770 : vector<2x16xf32>
    %778 = arith.mulf %777, %775 : vector<2x16xf32>
    %779 = arith.mulf %770, %709 : vector<2x16xf32>
    %780 = arith.addf %778, %779 : vector<2x16xf32>
    %781 = vector.shape_cast %727 : vector<2x1xi1> to vector<2x1xi1>
    %782 = vector.broadcast %781 : vector<2x1xi1> to vector<2x16xi1>
    %783 = arith.select %782, %757, %706 : vector<2x16xi1>, vector<2x16xf32>
    %784 = vector.shape_cast %729 : vector<2x1xi1> to vector<2x1xi1>
    %785 = vector.broadcast %784 : vector<2x1xi1> to vector<2x16xi1>
    %786 = arith.select %785, %780, %709 : vector<2x16xi1>, vector<2x16xf32>
    %cst_215 = arith.constant 0.000000e+00 : f32
    %787 = vector.shape_cast %727 : vector<2x1xi1> to vector<2x1xi1>
    %788 = vector.broadcast %787 : vector<2x1xi1> to vector<2x16xi1>
    %789 = vector.broadcast %cst_215 : f32 to vector<2x16xf32>
    %790 = arith.select %788, %783, %789 : vector<2x16xi1>, vector<2x16xf32>
    %791 = tpu.concatenate %790, %261 in 1 : vector<2x16xf32>, vector<2x112xf32> -> vector<2x128xf32>
    %c0_216 = arith.constant 0 : index
    %c6_217 = arith.constant 6 : index
    %c0_218 = arith.constant 0 : index
    %c0_219 = arith.constant 0 : index
    %792 = vector.load %arg17[%c0_216, %c6_217, %c0_218, %c0_219] : memref<2x12x2x128xf32, #tpu.memory_space<vmem>>, vector<1x1x2x128xf32>
    %793 = vector.shape_cast %792 : vector<1x1x2x128xf32> to vector<2x128xf32>
    %794 = vector.shape_cast %791 : vector<2x128xf32> to vector<1x1x2x128xf32>
    tpu.vector_store %arg17[%c0_216, %c6_217, %c0_218, %c0_219], %794 {strides = array<i32>} : memref<2x12x2x128xf32, #tpu.memory_space<vmem>>, vector<1x1x2x128xf32>,
    %cst_220 = arith.constant 0.000000e+00 : f32
    %795 = vector.shape_cast %729 : vector<2x1xi1> to vector<2x1xi1>
    %796 = vector.broadcast %795 : vector<2x1xi1> to vector<2x16xi1>
    %797 = vector.broadcast %cst_220 : f32 to vector<2x16xf32>
    %798 = arith.select %796, %786, %797 : vector<2x16xi1>, vector<2x16xf32>
    %799 = tpu.concatenate %798, %261 in 1 : vector<2x16xf32>, vector<2x112xf32> -> vector<2x128xf32>
    %c1_221 = arith.constant 1 : index
    %c5_222 = arith.constant 5 : index
    %c0_223 = arith.constant 0 : index
    %c0_224 = arith.constant 0 : index
    %800 = vector.load %arg17[%c1_221, %c5_222, %c0_223, %c0_224] : memref<2x12x2x128xf32, #tpu.memory_space<vmem>>, vector<1x1x2x128xf32>
    %801 = vector.shape_cast %800 : vector<1x1x2x128xf32> to vector<2x128xf32>
    %802 = vector.shape_cast %799 : vector<2x128xf32> to vector<1x1x2x128xf32>
    tpu.vector_store %arg17[%c1_221, %c5_222, %c0_223, %c0_224], %802 {strides = array<i32>} : memref<2x12x2x128xf32, #tpu.memory_space<vmem>>, vector<1x1x2x128xf32>,
    %c7_i32_225 = arith.constant 7 : i32
    %803 = vector.broadcast %c7_i32_225 : i32 to vector<2x1xi32>
    %804 = arith.cmpi sgt, %260, %803 : vector<2x1xi32>
    %c4_i32_226 = arith.constant 4 : i32
    %805 = vector.broadcast %c4_i32_226 : i32 to vector<2x1xi32>
    %806 = arith.cmpi sgt, %260, %805 : vector<2x1xi32>
    %807 = tpu.concatenate %783, %786 in 1 : vector<2x16xf32>, vector<2x16xf32> -> vector<2x32xf32>
    %808 = arith.truncf %807 : vector<2x32xf32> to vector<2x32xbf16>
    %cst_227 = arith.constant dense<0.000000e+00> : vector<2x256xf32>
    %809 = tpu.matmul %808, %258, %cst_227 {dimension_numbers = #tpu.dot_dimension_numbers<[1], [0], [0], [1], [0, 0, 1, 1], [], []>} : vector<2x32xbf16>, vector<32x256xbf16>, vector<2x256xf32> -> vector<2x256xf32>
    %810 = vector.broadcast %259 : vector<1x256xf32> to vector<2x256xf32>
    %811 = arith.addf %809, %810 : vector<2x256xf32>
    %812 = vector.extract_strided_slice %257 {offsets = [0, 7, 0], sizes = [2, 1, 128], strides = [1, 1, 1]} : vector<2x12x256xf32> to vector<2x1x128xf32>
    %813 = vector.shape_cast %812 : vector<2x1x128xf32> to vector<2x128xf32>
    %814 = vector.extract_strided_slice %811 {offsets = [0, 0], sizes = [2, 128], strides = [1, 1]} : vector<2x256xf32> to vector<2x128xf32>
    %815 = vector.extract_strided_slice %813 {offsets = [0, 0], sizes = [2, 32], strides = [1, 1]} : vector<2x128xf32> to vector<2x32xf32>
    %816 = vector.extract_strided_slice %814 {offsets = [0, 0], sizes = [2, 32], strides = [1, 1]} : vector<2x128xf32> to vector<2x32xf32>
    %817 = arith.addf %815, %816 : vector<2x32xf32>
    %818 = arith.negf %817 : vector<2x32xf32>
    %819 = math.exp %818 : vector<2x32xf32>
    %cst_228 = arith.constant 1.000000e+00 : f32
    %820 = vector.broadcast %cst_228 : f32 to vector<2x32xf32>
    %821 = arith.addf %820, %819 : vector<2x32xf32>
    %822 = arith.divf %820, %821 : vector<2x32xf32>
    %823 = vector.extract_strided_slice %822 {offsets = [0, 0], sizes = [2, 16], strides = [1, 1]} : vector<2x32xf32> to vector<2x16xf32>
    %824 = vector.extract_strided_slice %822 {offsets = [0, 16], sizes = [2, 16], strides = [1, 1]} : vector<2x32xf32> to vector<2x16xf32>
    %825 = vector.extract_strided_slice %813 {offsets = [0, 32], sizes = [2, 16], strides = [1, 1]} : vector<2x128xf32> to vector<2x16xf32>
    %826 = vector.extract_strided_slice %814 {offsets = [0, 32], sizes = [2, 16], strides = [1, 1]} : vector<2x128xf32> to vector<2x16xf32>
    %827 = arith.mulf %823, %826 : vector<2x16xf32>
    %828 = arith.addf %825, %827 : vector<2x16xf32>
    %829 = math.tanh %828 : vector<2x16xf32>
    %cst_229 = arith.constant 1.000000e+00 : f32
    %830 = vector.broadcast %cst_229 : f32 to vector<2x16xf32>
    %831 = arith.subf %830, %824 : vector<2x16xf32>
    %832 = arith.mulf %831, %829 : vector<2x16xf32>
    %833 = arith.mulf %824, %783 : vector<2x16xf32>
    %834 = arith.addf %832, %833 : vector<2x16xf32>
    %835 = vector.extract_strided_slice %257 {offsets = [0, 4, 128], sizes = [2, 1, 128], strides = [1, 1, 1]} : vector<2x12x256xf32> to vector<2x1x128xf32>
    %836 = vector.shape_cast %835 : vector<2x1x128xf32> to vector<2x128xf32>
    %837 = vector.extract_strided_slice %811 {offsets = [0, 128], sizes = [2, 128], strides = [1, 1]} : vector<2x256xf32> to vector<2x128xf32>
    %838 = vector.extract_strided_slice %836 {offsets = [0, 0], sizes = [2, 32], strides = [1, 1]} : vector<2x128xf32> to vector<2x32xf32>
    %839 = vector.extract_strided_slice %837 {offsets = [0, 0], sizes = [2, 32], strides = [1, 1]} : vector<2x128xf32> to vector<2x32xf32>
    %840 = arith.addf %838, %839 : vector<2x32xf32>
    %841 = arith.negf %840 : vector<2x32xf32>
    %842 = math.exp %841 : vector<2x32xf32>
    %cst_230 = arith.constant 1.000000e+00 : f32
    %843 = vector.broadcast %cst_230 : f32 to vector<2x32xf32>
    %844 = arith.addf %843, %842 : vector<2x32xf32>
    %845 = arith.divf %843, %844 : vector<2x32xf32>
    %846 = vector.extract_strided_slice %845 {offsets = [0, 0], sizes = [2, 16], strides = [1, 1]} : vector<2x32xf32> to vector<2x16xf32>
    %847 = vector.extract_strided_slice %845 {offsets = [0, 16], sizes = [2, 16], strides = [1, 1]} : vector<2x32xf32> to vector<2x16xf32>
    %848 = vector.extract_strided_slice %836 {offsets = [0, 32], sizes = [2, 16], strides = [1, 1]} : vector<2x128xf32> to vector<2x16xf32>
    %849 = vector.extract_strided_slice %837 {offsets = [0, 32], sizes = [2, 16], strides = [1, 1]} : vector<2x128xf32> to vector<2x16xf32>
    %850 = arith.mulf %846, %849 : vector<2x16xf32>
    %851 = arith.addf %848, %850 : vector<2x16xf32>
    %852 = math.tanh %851 : vector<2x16xf32>
    %cst_231 = arith.constant 1.000000e+00 : f32
    %853 = vector.broadcast %cst_231 : f32 to vector<2x16xf32>
    %854 = arith.subf %853, %847 : vector<2x16xf32>
    %855 = arith.mulf %854, %852 : vector<2x16xf32>
    %856 = arith.mulf %847, %786 : vector<2x16xf32>
    %857 = arith.addf %855, %856 : vector<2x16xf32>
    %858 = vector.shape_cast %804 : vector<2x1xi1> to vector<2x1xi1>
    %859 = vector.broadcast %858 : vector<2x1xi1> to vector<2x16xi1>
    %860 = arith.select %859, %834, %783 : vector<2x16xi1>, vector<2x16xf32>
    %861 = vector.shape_cast %806 : vector<2x1xi1> to vector<2x1xi1>
    %862 = vector.broadcast %861 : vector<2x1xi1> to vector<2x16xi1>
    %863 = arith.select %862, %857, %786 : vector<2x16xi1>, vector<2x16xf32>
    %cst_232 = arith.constant 0.000000e+00 : f32
    %864 = vector.shape_cast %804 : vector<2x1xi1> to vector<2x1xi1>
    %865 = vector.broadcast %864 : vector<2x1xi1> to vector<2x16xi1>
    %866 = vector.broadcast %cst_232 : f32 to vector<2x16xf32>
    %867 = arith.select %865, %860, %866 : vector<2x16xi1>, vector<2x16xf32>
    %868 = tpu.concatenate %867, %261 in 1 : vector<2x16xf32>, vector<2x112xf32> -> vector<2x128xf32>
    %c0_233 = arith.constant 0 : index
    %c7_234 = arith.constant 7 : index
    %c0_235 = arith.constant 0 : index
    %c0_236 = arith.constant 0 : index
    %869 = vector.load %arg17[%c0_233, %c7_234, %c0_235, %c0_236] : memref<2x12x2x128xf32, #tpu.memory_space<vmem>>, vector<1x1x2x128xf32>
    %870 = vector.shape_cast %869 : vector<1x1x2x128xf32> to vector<2x128xf32>
    %871 = vector.shape_cast %868 : vector<2x128xf32> to vector<1x1x2x128xf32>
    tpu.vector_store %arg17[%c0_233, %c7_234, %c0_235, %c0_236], %871 {strides = array<i32>} : memref<2x12x2x128xf32, #tpu.memory_space<vmem>>, vector<1x1x2x128xf32>,
    %cst_237 = arith.constant 0.000000e+00 : f32
    %872 = vector.shape_cast %806 : vector<2x1xi1> to vector<2x1xi1>
    %873 = vector.broadcast %872 : vector<2x1xi1> to vector<2x16xi1>
    %874 = vector.broadcast %cst_237 : f32 to vector<2x16xf32>
    %875 = arith.select %873, %863, %874 : vector<2x16xi1>, vector<2x16xf32>
    %876 = tpu.concatenate %875, %261 in 1 : vector<2x16xf32>, vector<2x112xf32> -> vector<2x128xf32>
    %c1_238 = arith.constant 1 : index
    %c4_239 = arith.constant 4 : index
    %c0_240 = arith.constant 0 : index
    %c0_241 = arith.constant 0 : index
    %877 = vector.load %arg17[%c1_238, %c4_239, %c0_240, %c0_241] : memref<2x12x2x128xf32, #tpu.memory_space<vmem>>, vector<1x1x2x128xf32>
    %878 = vector.shape_cast %877 : vector<1x1x2x128xf32> to vector<2x128xf32>
    %879 = vector.shape_cast %876 : vector<2x128xf32> to vector<1x1x2x128xf32>
    tpu.vector_store %arg17[%c1_238, %c4_239, %c0_240, %c0_241], %879 {strides = array<i32>} : memref<2x12x2x128xf32, #tpu.memory_space<vmem>>, vector<1x1x2x128xf32>,
    %c8_i32_242 = arith.constant 8 : i32
    %880 = vector.broadcast %c8_i32_242 : i32 to vector<2x1xi32>
    %881 = arith.cmpi sgt, %260, %880 : vector<2x1xi32>
    %c3_i32_243 = arith.constant 3 : i32
    %882 = vector.broadcast %c3_i32_243 : i32 to vector<2x1xi32>
    %883 = arith.cmpi sgt, %260, %882 : vector<2x1xi32>
    %884 = tpu.concatenate %860, %863 in 1 : vector<2x16xf32>, vector<2x16xf32> -> vector<2x32xf32>
    %885 = arith.truncf %884 : vector<2x32xf32> to vector<2x32xbf16>
    %cst_244 = arith.constant dense<0.000000e+00> : vector<2x256xf32>
    %886 = tpu.matmul %885, %258, %cst_244 {dimension_numbers = #tpu.dot_dimension_numbers<[1], [0], [0], [1], [0, 0, 1, 1], [], []>} : vector<2x32xbf16>, vector<32x256xbf16>, vector<2x256xf32> -> vector<2x256xf32>
    %887 = vector.broadcast %259 : vector<1x256xf32> to vector<2x256xf32>
    %888 = arith.addf %886, %887 : vector<2x256xf32>
    %889 = vector.extract_strided_slice %257 {offsets = [0, 8, 0], sizes = [2, 1, 128], strides = [1, 1, 1]} : vector<2x12x256xf32> to vector<2x1x128xf32>
    %890 = vector.shape_cast %889 : vector<2x1x128xf32> to vector<2x128xf32>
    %891 = vector.extract_strided_slice %888 {offsets = [0, 0], sizes = [2, 128], strides = [1, 1]} : vector<2x256xf32> to vector<2x128xf32>
    %892 = vector.extract_strided_slice %890 {offsets = [0, 0], sizes = [2, 32], strides = [1, 1]} : vector<2x128xf32> to vector<2x32xf32>
    %893 = vector.extract_strided_slice %891 {offsets = [0, 0], sizes = [2, 32], strides = [1, 1]} : vector<2x128xf32> to vector<2x32xf32>
    %894 = arith.addf %892, %893 : vector<2x32xf32>
    %895 = arith.negf %894 : vector<2x32xf32>
    %896 = math.exp %895 : vector<2x32xf32>
    %cst_245 = arith.constant 1.000000e+00 : f32
    %897 = vector.broadcast %cst_245 : f32 to vector<2x32xf32>
    %898 = arith.addf %897, %896 : vector<2x32xf32>
    %899 = arith.divf %897, %898 : vector<2x32xf32>
    %900 = vector.extract_strided_slice %899 {offsets = [0, 0], sizes = [2, 16], strides = [1, 1]} : vector<2x32xf32> to vector<2x16xf32>
    %901 = vector.extract_strided_slice %899 {offsets = [0, 16], sizes = [2, 16], strides = [1, 1]} : vector<2x32xf32> to vector<2x16xf32>
    %902 = vector.extract_strided_slice %890 {offsets = [0, 32], sizes = [2, 16], strides = [1, 1]} : vector<2x128xf32> to vector<2x16xf32>
    %903 = vector.extract_strided_slice %891 {offsets = [0, 32], sizes = [2, 16], strides = [1, 1]} : vector<2x128xf32> to vector<2x16xf32>
    %904 = arith.mulf %900, %903 : vector<2x16xf32>
    %905 = arith.addf %902, %904 : vector<2x16xf32>
    %906 = math.tanh %905 : vector<2x16xf32>
    %cst_246 = arith.constant 1.000000e+00 : f32
    %907 = vector.broadcast %cst_246 : f32 to vector<2x16xf32>
    %908 = arith.subf %907, %901 : vector<2x16xf32>
    %909 = arith.mulf %908, %906 : vector<2x16xf32>
    %910 = arith.mulf %901, %860 : vector<2x16xf32>
    %911 = arith.addf %909, %910 : vector<2x16xf32>
    %912 = vector.extract_strided_slice %257 {offsets = [0, 3, 128], sizes = [2, 1, 128], strides = [1, 1, 1]} : vector<2x12x256xf32> to vector<2x1x128xf32>
    %913 = vector.shape_cast %912 : vector<2x1x128xf32> to vector<2x128xf32>
    %914 = vector.extract_strided_slice %888 {offsets = [0, 128], sizes = [2, 128], strides = [1, 1]} : vector<2x256xf32> to vector<2x128xf32>
    %915 = vector.extract_strided_slice %913 {offsets = [0, 0], sizes = [2, 32], strides = [1, 1]} : vector<2x128xf32> to vector<2x32xf32>
    %916 = vector.extract_strided_slice %914 {offsets = [0, 0], sizes = [2, 32], strides = [1, 1]} : vector<2x128xf32> to vector<2x32xf32>
    %917 = arith.addf %915, %916 : vector<2x32xf32>
    %918 = arith.negf %917 : vector<2x32xf32>
    %919 = math.exp %918 : vector<2x32xf32>
    %cst_247 = arith.constant 1.000000e+00 : f32
    %920 = vector.broadcast %cst_247 : f32 to vector<2x32xf32>
    %921 = arith.addf %920, %919 : vector<2x32xf32>
    %922 = arith.divf %920, %921 : vector<2x32xf32>
    %923 = vector.extract_strided_slice %922 {offsets = [0, 0], sizes = [2, 16], strides = [1, 1]} : vector<2x32xf32> to vector<2x16xf32>
    %924 = vector.extract_strided_slice %922 {offsets = [0, 16], sizes = [2, 16], strides = [1, 1]} : vector<2x32xf32> to vector<2x16xf32>
    %925 = vector.extract_strided_slice %913 {offsets = [0, 32], sizes = [2, 16], strides = [1, 1]} : vector<2x128xf32> to vector<2x16xf32>
    %926 = vector.extract_strided_slice %914 {offsets = [0, 32], sizes = [2, 16], strides = [1, 1]} : vector<2x128xf32> to vector<2x16xf32>
    %927 = arith.mulf %923, %926 : vector<2x16xf32>
    %928 = arith.addf %925, %927 : vector<2x16xf32>
    %929 = math.tanh %928 : vector<2x16xf32>
    %cst_248 = arith.constant 1.000000e+00 : f32
    %930 = vector.broadcast %cst_248 : f32 to vector<2x16xf32>
    %931 = arith.subf %930, %924 : vector<2x16xf32>
    %932 = arith.mulf %931, %929 : vector<2x16xf32>
    %933 = arith.mulf %924, %863 : vector<2x16xf32>
    %934 = arith.addf %932, %933 : vector<2x16xf32>
    %935 = vector.shape_cast %881 : vector<2x1xi1> to vector<2x1xi1>
    %936 = vector.broadcast %935 : vector<2x1xi1> to vector<2x16xi1>
    %937 = arith.select %936, %911, %860 : vector<2x16xi1>, vector<2x16xf32>
    %938 = vector.shape_cast %883 : vector<2x1xi1> to vector<2x1xi1>
    %939 = vector.broadcast %938 : vector<2x1xi1> to vector<2x16xi1>
    %940 = arith.select %939, %934, %863 : vector<2x16xi1>, vector<2x16xf32>
    %cst_249 = arith.constant 0.000000e+00 : f32
    %941 = vector.shape_cast %881 : vector<2x1xi1> to vector<2x1xi1>
    %942 = vector.broadcast %941 : vector<2x1xi1> to vector<2x16xi1>
    %943 = vector.broadcast %cst_249 : f32 to vector<2x16xf32>
    %944 = arith.select %942, %937, %943 : vector<2x16xi1>, vector<2x16xf32>
    %945 = tpu.concatenate %944, %261 in 1 : vector<2x16xf32>, vector<2x112xf32> -> vector<2x128xf32>
    %c0_250 = arith.constant 0 : index
    %c8_251 = arith.constant 8 : index
    %c0_252 = arith.constant 0 : index
    %c0_253 = arith.constant 0 : index
    %946 = vector.load %arg17[%c0_250, %c8_251, %c0_252, %c0_253] : memref<2x12x2x128xf32, #tpu.memory_space<vmem>>, vector<1x1x2x128xf32>
    %947 = vector.shape_cast %946 : vector<1x1x2x128xf32> to vector<2x128xf32>
    %948 = vector.shape_cast %945 : vector<2x128xf32> to vector<1x1x2x128xf32>
    tpu.vector_store %arg17[%c0_250, %c8_251, %c0_252, %c0_253], %948 {strides = array<i32>} : memref<2x12x2x128xf32, #tpu.memory_space<vmem>>, vector<1x1x2x128xf32>,
    %cst_254 = arith.constant 0.000000e+00 : f32
    %949 = vector.shape_cast %883 : vector<2x1xi1> to vector<2x1xi1>
    %950 = vector.broadcast %949 : vector<2x1xi1> to vector<2x16xi1>
    %951 = vector.broadcast %cst_254 : f32 to vector<2x16xf32>
    %952 = arith.select %950, %940, %951 : vector<2x16xi1>, vector<2x16xf32>
    %953 = tpu.concatenate %952, %261 in 1 : vector<2x16xf32>, vector<2x112xf32> -> vector<2x128xf32>
    %c1_255 = arith.constant 1 : index
    %c3_256 = arith.constant 3 : index
    %c0_257 = arith.constant 0 : index
    %c0_258 = arith.constant 0 : index
    %954 = vector.load %arg17[%c1_255, %c3_256, %c0_257, %c0_258] : memref<2x12x2x128xf32, #tpu.memory_space<vmem>>, vector<1x1x2x128xf32>
    %955 = vector.shape_cast %954 : vector<1x1x2x128xf32> to vector<2x128xf32>
    %956 = vector.shape_cast %953 : vector<2x128xf32> to vector<1x1x2x128xf32>
    tpu.vector_store %arg17[%c1_255, %c3_256, %c0_257, %c0_258], %956 {strides = array<i32>} : memref<2x12x2x128xf32, #tpu.memory_space<vmem>>, vector<1x1x2x128xf32>,
    %c9_i32_259 = arith.constant 9 : i32
    %957 = vector.broadcast %c9_i32_259 : i32 to vector<2x1xi32>
    %958 = arith.cmpi sgt, %260, %957 : vector<2x1xi32>
    %c2_i32_260 = arith.constant 2 : i32
    %959 = vector.broadcast %c2_i32_260 : i32 to vector<2x1xi32>
    %960 = arith.cmpi sgt, %260, %959 : vector<2x1xi32>
    %961 = tpu.concatenate %937, %940 in 1 : vector<2x16xf32>, vector<2x16xf32> -> vector<2x32xf32>
    %962 = arith.truncf %961 : vector<2x32xf32> to vector<2x32xbf16>
    %cst_261 = arith.constant dense<0.000000e+00> : vector<2x256xf32>
    %963 = tpu.matmul %962, %258, %cst_261 {dimension_numbers = #tpu.dot_dimension_numbers<[1], [0], [0], [1], [0, 0, 1, 1], [], []>} : vector<2x32xbf16>, vector<32x256xbf16>, vector<2x256xf32> -> vector<2x256xf32>
    %964 = vector.broadcast %259 : vector<1x256xf32> to vector<2x256xf32>
    %965 = arith.addf %963, %964 : vector<2x256xf32>
    %966 = vector.extract_strided_slice %257 {offsets = [0, 9, 0], sizes = [2, 1, 128], strides = [1, 1, 1]} : vector<2x12x256xf32> to vector<2x1x128xf32>
    %967 = vector.shape_cast %966 : vector<2x1x128xf32> to vector<2x128xf32>
    %968 = vector.extract_strided_slice %965 {offsets = [0, 0], sizes = [2, 128], strides = [1, 1]} : vector<2x256xf32> to vector<2x128xf32>
    %969 = vector.extract_strided_slice %967 {offsets = [0, 0], sizes = [2, 32], strides = [1, 1]} : vector<2x128xf32> to vector<2x32xf32>
    %970 = vector.extract_strided_slice %968 {offsets = [0, 0], sizes = [2, 32], strides = [1, 1]} : vector<2x128xf32> to vector<2x32xf32>
    %971 = arith.addf %969, %970 : vector<2x32xf32>
    %972 = arith.negf %971 : vector<2x32xf32>
    %973 = math.exp %972 : vector<2x32xf32>
    %cst_262 = arith.constant 1.000000e+00 : f32
    %974 = vector.broadcast %cst_262 : f32 to vector<2x32xf32>
    %975 = arith.addf %974, %973 : vector<2x32xf32>
    %976 = arith.divf %974, %975 : vector<2x32xf32>
    %977 = vector.extract_strided_slice %976 {offsets = [0, 0], sizes = [2, 16], strides = [1, 1]} : vector<2x32xf32> to vector<2x16xf32>
    %978 = vector.extract_strided_slice %976 {offsets = [0, 16], sizes = [2, 16], strides = [1, 1]} : vector<2x32xf32> to vector<2x16xf32>
    %979 = vector.extract_strided_slice %967 {offsets = [0, 32], sizes = [2, 16], strides = [1, 1]} : vector<2x128xf32> to vector<2x16xf32>
    %980 = vector.extract_strided_slice %968 {offsets = [0, 32], sizes = [2, 16], strides = [1, 1]} : vector<2x128xf32> to vector<2x16xf32>
    %981 = arith.mulf %977, %980 : vector<2x16xf32>
    %982 = arith.addf %979, %981 : vector<2x16xf32>
    %983 = math.tanh %982 : vector<2x16xf32>
    %cst_263 = arith.constant 1.000000e+00 : f32
    %984 = vector.broadcast %cst_263 : f32 to vector<2x16xf32>
    %985 = arith.subf %984, %978 : vector<2x16xf32>
    %986 = arith.mulf %985, %983 : vector<2x16xf32>
    %987 = arith.mulf %978, %937 : vector<2x16xf32>
    %988 = arith.addf %986, %987 : vector<2x16xf32>
    %989 = vector.extract_strided_slice %257 {offsets = [0, 2, 128], sizes = [2, 1, 128], strides = [1, 1, 1]} : vector<2x12x256xf32> to vector<2x1x128xf32>
    %990 = vector.shape_cast %989 : vector<2x1x128xf32> to vector<2x128xf32>
    %991 = vector.extract_strided_slice %965 {offsets = [0, 128], sizes = [2, 128], strides = [1, 1]} : vector<2x256xf32> to vector<2x128xf32>
    %992 = vector.extract_strided_slice %990 {offsets = [0, 0], sizes = [2, 32], strides = [1, 1]} : vector<2x128xf32> to vector<2x32xf32>
    %993 = vector.extract_strided_slice %991 {offsets = [0, 0], sizes = [2, 32], strides = [1, 1]} : vector<2x128xf32> to vector<2x32xf32>
    %994 = arith.addf %992, %993 : vector<2x32xf32>
    %995 = arith.negf %994 : vector<2x32xf32>
    %996 = math.exp %995 : vector<2x32xf32>
    %cst_264 = arith.constant 1.000000e+00 : f32
    %997 = vector.broadcast %cst_264 : f32 to vector<2x32xf32>
    %998 = arith.addf %997, %996 : vector<2x32xf32>
    %999 = arith.divf %997, %998 : vector<2x32xf32>
    %1000 = vector.extract_strided_slice %999 {offsets = [0, 0], sizes = [2, 16], strides = [1, 1]} : vector<2x32xf32> to vector<2x16xf32>
    %1001 = vector.extract_strided_slice %999 {offsets = [0, 16], sizes = [2, 16], strides = [1, 1]} : vector<2x32xf32> to vector<2x16xf32>
    %1002 = vector.extract_strided_slice %990 {offsets = [0, 32], sizes = [2, 16], strides = [1, 1]} : vector<2x128xf32> to vector<2x16xf32>
    %1003 = vector.extract_strided_slice %991 {offsets = [0, 32], sizes = [2, 16], strides = [1, 1]} : vector<2x128xf32> to vector<2x16xf32>
    %1004 = arith.mulf %1000, %1003 : vector<2x16xf32>
    %1005 = arith.addf %1002, %1004 : vector<2x16xf32>
    %1006 = math.tanh %1005 : vector<2x16xf32>
    %cst_265 = arith.constant 1.000000e+00 : f32
    %1007 = vector.broadcast %cst_265 : f32 to vector<2x16xf32>
    %1008 = arith.subf %1007, %1001 : vector<2x16xf32>
    %1009 = arith.mulf %1008, %1006 : vector<2x16xf32>
    %1010 = arith.mulf %1001, %940 : vector<2x16xf32>
    %1011 = arith.addf %1009, %1010 : vector<2x16xf32>
    %1012 = vector.shape_cast %958 : vector<2x1xi1> to vector<2x1xi1>
    %1013 = vector.broadcast %1012 : vector<2x1xi1> to vector<2x16xi1>
    %1014 = arith.select %1013, %988, %937 : vector<2x16xi1>, vector<2x16xf32>
    %1015 = vector.shape_cast %960 : vector<2x1xi1> to vector<2x1xi1>
    %1016 = vector.broadcast %1015 : vector<2x1xi1> to vector<2x16xi1>
    %1017 = arith.select %1016, %1011, %940 : vector<2x16xi1>, vector<2x16xf32>
    %cst_266 = arith.constant 0.000000e+00 : f32
    %1018 = vector.shape_cast %958 : vector<2x1xi1> to vector<2x1xi1>
    %1019 = vector.broadcast %1018 : vector<2x1xi1> to vector<2x16xi1>
    %1020 = vector.broadcast %cst_266 : f32 to vector<2x16xf32>
    %1021 = arith.select %1019, %1014, %1020 : vector<2x16xi1>, vector<2x16xf32>
    %1022 = tpu.concatenate %1021, %261 in 1 : vector<2x16xf32>, vector<2x112xf32> -> vector<2x128xf32>
    %c0_267 = arith.constant 0 : index
    %c9_268 = arith.constant 9 : index
    %c0_269 = arith.constant 0 : index
    %c0_270 = arith.constant 0 : index
    %1023 = vector.load %arg17[%c0_267, %c9_268, %c0_269, %c0_270] : memref<2x12x2x128xf32, #tpu.memory_space<vmem>>, vector<1x1x2x128xf32>
    %1024 = vector.shape_cast %1023 : vector<1x1x2x128xf32> to vector<2x128xf32>
    %1025 = vector.shape_cast %1022 : vector<2x128xf32> to vector<1x1x2x128xf32>
    tpu.vector_store %arg17[%c0_267, %c9_268, %c0_269, %c0_270], %1025 {strides = array<i32>} : memref<2x12x2x128xf32, #tpu.memory_space<vmem>>, vector<1x1x2x128xf32>,
    %cst_271 = arith.constant 0.000000e+00 : f32
    %1026 = vector.shape_cast %960 : vector<2x1xi1> to vector<2x1xi1>
    %1027 = vector.broadcast %1026 : vector<2x1xi1> to vector<2x16xi1>
    %1028 = vector.broadcast %cst_271 : f32 to vector<2x16xf32>
    %1029 = arith.select %1027, %1017, %1028 : vector<2x16xi1>, vector<2x16xf32>
    %1030 = tpu.concatenate %1029, %261 in 1 : vector<2x16xf32>, vector<2x112xf32> -> vector<2x128xf32>
    %c1_272 = arith.constant 1 : index
    %c2_273 = arith.constant 2 : index
    %c0_274 = arith.constant 0 : index
    %c0_275 = arith.constant 0 : index
    %1031 = vector.load %arg17[%c1_272, %c2_273, %c0_274, %c0_275] : memref<2x12x2x128xf32, #tpu.memory_space<vmem>>, vector<1x1x2x128xf32>
    %1032 = vector.shape_cast %1031 : vector<1x1x2x128xf32> to vector<2x128xf32>
    %1033 = vector.shape_cast %1030 : vector<2x128xf32> to vector<1x1x2x128xf32>
    tpu.vector_store %arg17[%c1_272, %c2_273, %c0_274, %c0_275], %1033 {strides = array<i32>} : memref<2x12x2x128xf32, #tpu.memory_space<vmem>>, vector<1x1x2x128xf32>,
    %c10_i32_276 = arith.constant 10 : i32
    %1034 = vector.broadcast %c10_i32_276 : i32 to vector<2x1xi32>
    %1035 = arith.cmpi sgt, %260, %1034 : vector<2x1xi32>
    %c1_i32_277 = arith.constant 1 : i32
    %1036 = vector.broadcast %c1_i32_277 : i32 to vector<2x1xi32>
    %1037 = arith.cmpi sgt, %260, %1036 : vector<2x1xi32>
    %1038 = tpu.concatenate %1014, %1017 in 1 : vector<2x16xf32>, vector<2x16xf32> -> vector<2x32xf32>
    %1039 = arith.truncf %1038 : vector<2x32xf32> to vector<2x32xbf16>
    %cst_278 = arith.constant dense<0.000000e+00> : vector<2x256xf32>
    %1040 = tpu.matmul %1039, %258, %cst_278 {dimension_numbers = #tpu.dot_dimension_numbers<[1], [0], [0], [1], [0, 0, 1, 1], [], []>} : vector<2x32xbf16>, vector<32x256xbf16>, vector<2x256xf32> -> vector<2x256xf32>
    %1041 = vector.broadcast %259 : vector<1x256xf32> to vector<2x256xf32>
    %1042 = arith.addf %1040, %1041 : vector<2x256xf32>
    %1043 = vector.extract_strided_slice %257 {offsets = [0, 10, 0], sizes = [2, 1, 128], strides = [1, 1, 1]} : vector<2x12x256xf32> to vector<2x1x128xf32>
    %1044 = vector.shape_cast %1043 : vector<2x1x128xf32> to vector<2x128xf32>
    %1045 = vector.extract_strided_slice %1042 {offsets = [0, 0], sizes = [2, 128], strides = [1, 1]} : vector<2x256xf32> to vector<2x128xf32>
    %1046 = vector.extract_strided_slice %1044 {offsets = [0, 0], sizes = [2, 32], strides = [1, 1]} : vector<2x128xf32> to vector<2x32xf32>
    %1047 = vector.extract_strided_slice %1045 {offsets = [0, 0], sizes = [2, 32], strides = [1, 1]} : vector<2x128xf32> to vector<2x32xf32>
    %1048 = arith.addf %1046, %1047 : vector<2x32xf32>
    %1049 = arith.negf %1048 : vector<2x32xf32>
    %1050 = math.exp %1049 : vector<2x32xf32>
    %cst_279 = arith.constant 1.000000e+00 : f32
    %1051 = vector.broadcast %cst_279 : f32 to vector<2x32xf32>
    %1052 = arith.addf %1051, %1050 : vector<2x32xf32>
    %1053 = arith.divf %1051, %1052 : vector<2x32xf32>
    %1054 = vector.extract_strided_slice %1053 {offsets = [0, 0], sizes = [2, 16], strides = [1, 1]} : vector<2x32xf32> to vector<2x16xf32>
    %1055 = vector.extract_strided_slice %1053 {offsets = [0, 16], sizes = [2, 16], strides = [1, 1]} : vector<2x32xf32> to vector<2x16xf32>
    %1056 = vector.extract_strided_slice %1044 {offsets = [0, 32], sizes = [2, 16], strides = [1, 1]} : vector<2x128xf32> to vector<2x16xf32>
    %1057 = vector.extract_strided_slice %1045 {offsets = [0, 32], sizes = [2, 16], strides = [1, 1]} : vector<2x128xf32> to vector<2x16xf32>
    %1058 = arith.mulf %1054, %1057 : vector<2x16xf32>
    %1059 = arith.addf %1056, %1058 : vector<2x16xf32>
    %1060 = math.tanh %1059 : vector<2x16xf32>
    %cst_280 = arith.constant 1.000000e+00 : f32
    %1061 = vector.broadcast %cst_280 : f32 to vector<2x16xf32>
    %1062 = arith.subf %1061, %1055 : vector<2x16xf32>
    %1063 = arith.mulf %1062, %1060 : vector<2x16xf32>
    %1064 = arith.mulf %1055, %1014 : vector<2x16xf32>
    %1065 = arith.addf %1063, %1064 : vector<2x16xf32>
    %1066 = vector.extract_strided_slice %257 {offsets = [0, 1, 128], sizes = [2, 1, 128], strides = [1, 1, 1]} : vector<2x12x256xf32> to vector<2x1x128xf32>
    %1067 = vector.shape_cast %1066 : vector<2x1x128xf32> to vector<2x128xf32>
    %1068 = vector.extract_strided_slice %1042 {offsets = [0, 128], sizes = [2, 128], strides = [1, 1]} : vector<2x256xf32> to vector<2x128xf32>
    %1069 = vector.extract_strided_slice %1067 {offsets = [0, 0], sizes = [2, 32], strides = [1, 1]} : vector<2x128xf32> to vector<2x32xf32>
    %1070 = vector.extract_strided_slice %1068 {offsets = [0, 0], sizes = [2, 32], strides = [1, 1]} : vector<2x128xf32> to vector<2x32xf32>
    %1071 = arith.addf %1069, %1070 : vector<2x32xf32>
    %1072 = arith.negf %1071 : vector<2x32xf32>
    %1073 = math.exp %1072 : vector<2x32xf32>
    %cst_281 = arith.constant 1.000000e+00 : f32
    %1074 = vector.broadcast %cst_281 : f32 to vector<2x32xf32>
    %1075 = arith.addf %1074, %1073 : vector<2x32xf32>
    %1076 = arith.divf %1074, %1075 : vector<2x32xf32>
    %1077 = vector.extract_strided_slice %1076 {offsets = [0, 0], sizes = [2, 16], strides = [1, 1]} : vector<2x32xf32> to vector<2x16xf32>
    %1078 = vector.extract_strided_slice %1076 {offsets = [0, 16], sizes = [2, 16], strides = [1, 1]} : vector<2x32xf32> to vector<2x16xf32>
    %1079 = vector.extract_strided_slice %1067 {offsets = [0, 32], sizes = [2, 16], strides = [1, 1]} : vector<2x128xf32> to vector<2x16xf32>
    %1080 = vector.extract_strided_slice %1068 {offsets = [0, 32], sizes = [2, 16], strides = [1, 1]} : vector<2x128xf32> to vector<2x16xf32>
    %1081 = arith.mulf %1077, %1080 : vector<2x16xf32>
    %1082 = arith.addf %1079, %1081 : vector<2x16xf32>
    %1083 = math.tanh %1082 : vector<2x16xf32>
    %cst_282 = arith.constant 1.000000e+00 : f32
    %1084 = vector.broadcast %cst_282 : f32 to vector<2x16xf32>
    %1085 = arith.subf %1084, %1078 : vector<2x16xf32>
    %1086 = arith.mulf %1085, %1083 : vector<2x16xf32>
    %1087 = arith.mulf %1078, %1017 : vector<2x16xf32>
    %1088 = arith.addf %1086, %1087 : vector<2x16xf32>
    %1089 = vector.shape_cast %1035 : vector<2x1xi1> to vector<2x1xi1>
    %1090 = vector.broadcast %1089 : vector<2x1xi1> to vector<2x16xi1>
    %1091 = arith.select %1090, %1065, %1014 : vector<2x16xi1>, vector<2x16xf32>
    %1092 = vector.shape_cast %1037 : vector<2x1xi1> to vector<2x1xi1>
    %1093 = vector.broadcast %1092 : vector<2x1xi1> to vector<2x16xi1>
    %1094 = arith.select %1093, %1088, %1017 : vector<2x16xi1>, vector<2x16xf32>
    %cst_283 = arith.constant 0.000000e+00 : f32
    %1095 = vector.shape_cast %1035 : vector<2x1xi1> to vector<2x1xi1>
    %1096 = vector.broadcast %1095 : vector<2x1xi1> to vector<2x16xi1>
    %1097 = vector.broadcast %cst_283 : f32 to vector<2x16xf32>
    %1098 = arith.select %1096, %1091, %1097 : vector<2x16xi1>, vector<2x16xf32>
    %1099 = tpu.concatenate %1098, %261 in 1 : vector<2x16xf32>, vector<2x112xf32> -> vector<2x128xf32>
    %c0_284 = arith.constant 0 : index
    %c10_285 = arith.constant 10 : index
    %c0_286 = arith.constant 0 : index
    %c0_287 = arith.constant 0 : index
    %1100 = vector.load %arg17[%c0_284, %c10_285, %c0_286, %c0_287] : memref<2x12x2x128xf32, #tpu.memory_space<vmem>>, vector<1x1x2x128xf32>
    %1101 = vector.shape_cast %1100 : vector<1x1x2x128xf32> to vector<2x128xf32>
    %1102 = vector.shape_cast %1099 : vector<2x128xf32> to vector<1x1x2x128xf32>
    tpu.vector_store %arg17[%c0_284, %c10_285, %c0_286, %c0_287], %1102 {strides = array<i32>} : memref<2x12x2x128xf32, #tpu.memory_space<vmem>>, vector<1x1x2x128xf32>,
    %cst_288 = arith.constant 0.000000e+00 : f32
    %1103 = vector.shape_cast %1037 : vector<2x1xi1> to vector<2x1xi1>
    %1104 = vector.broadcast %1103 : vector<2x1xi1> to vector<2x16xi1>
    %1105 = vector.broadcast %cst_288 : f32 to vector<2x16xf32>
    %1106 = arith.select %1104, %1094, %1105 : vector<2x16xi1>, vector<2x16xf32>
    %1107 = tpu.concatenate %1106, %261 in 1 : vector<2x16xf32>, vector<2x112xf32> -> vector<2x128xf32>
    %c1_289 = arith.constant 1 : index
    %c1_290 = arith.constant 1 : index
    %c0_291 = arith.constant 0 : index
    %c0_292 = arith.constant 0 : index
    %1108 = vector.load %arg17[%c1_289, %c1_290, %c0_291, %c0_292] : memref<2x12x2x128xf32, #tpu.memory_space<vmem>>, vector<1x1x2x128xf32>
    %1109 = vector.shape_cast %1108 : vector<1x1x2x128xf32> to vector<2x128xf32>
    %1110 = vector.shape_cast %1107 : vector<2x128xf32> to vector<1x1x2x128xf32>
    tpu.vector_store %arg17[%c1_289, %c1_290, %c0_291, %c0_292], %1110 {strides = array<i32>} : memref<2x12x2x128xf32, #tpu.memory_space<vmem>>, vector<1x1x2x128xf32>,
    %c11_i32_293 = arith.constant 11 : i32
    %1111 = vector.broadcast %c11_i32_293 : i32 to vector<2x1xi32>
    %1112 = arith.cmpi sgt, %260, %1111 : vector<2x1xi32>
    %c0_i32_294 = arith.constant 0 : i32
    %1113 = vector.broadcast %c0_i32_294 : i32 to vector<2x1xi32>
    %1114 = arith.cmpi sgt, %260, %1113 : vector<2x1xi32>
    %1115 = tpu.concatenate %1091, %1094 in 1 : vector<2x16xf32>, vector<2x16xf32> -> vector<2x32xf32>
    %1116 = arith.truncf %1115 : vector<2x32xf32> to vector<2x32xbf16>
    %cst_295 = arith.constant dense<0.000000e+00> : vector<2x256xf32>
    %1117 = tpu.matmul %1116, %258, %cst_295 {dimension_numbers = #tpu.dot_dimension_numbers<[1], [0], [0], [1], [0, 0, 1, 1], [], []>} : vector<2x32xbf16>, vector<32x256xbf16>, vector<2x256xf32> -> vector<2x256xf32>
    %1118 = vector.broadcast %259 : vector<1x256xf32> to vector<2x256xf32>
    %1119 = arith.addf %1117, %1118 : vector<2x256xf32>
    %1120 = vector.extract_strided_slice %257 {offsets = [0, 11, 0], sizes = [2, 1, 128], strides = [1, 1, 1]} : vector<2x12x256xf32> to vector<2x1x128xf32>
    %1121 = vector.shape_cast %1120 : vector<2x1x128xf32> to vector<2x128xf32>
    %1122 = vector.extract_strided_slice %1119 {offsets = [0, 0], sizes = [2, 128], strides = [1, 1]} : vector<2x256xf32> to vector<2x128xf32>
    %1123 = vector.extract_strided_slice %1121 {offsets = [0, 0], sizes = [2, 32], strides = [1, 1]} : vector<2x128xf32> to vector<2x32xf32>
    %1124 = vector.extract_strided_slice %1122 {offsets = [0, 0], sizes = [2, 32], strides = [1, 1]} : vector<2x128xf32> to vector<2x32xf32>
    %1125 = arith.addf %1123, %1124 : vector<2x32xf32>
    %1126 = arith.negf %1125 : vector<2x32xf32>
    %1127 = math.exp %1126 : vector<2x32xf32>
    %cst_296 = arith.constant 1.000000e+00 : f32
    %1128 = vector.broadcast %cst_296 : f32 to vector<2x32xf32>
    %1129 = arith.addf %1128, %1127 : vector<2x32xf32>
    %1130 = arith.divf %1128, %1129 : vector<2x32xf32>
    %1131 = vector.extract_strided_slice %1130 {offsets = [0, 0], sizes = [2, 16], strides = [1, 1]} : vector<2x32xf32> to vector<2x16xf32>
    %1132 = vector.extract_strided_slice %1130 {offsets = [0, 16], sizes = [2, 16], strides = [1, 1]} : vector<2x32xf32> to vector<2x16xf32>
    %1133 = vector.extract_strided_slice %1121 {offsets = [0, 32], sizes = [2, 16], strides = [1, 1]} : vector<2x128xf32> to vector<2x16xf32>
    %1134 = vector.extract_strided_slice %1122 {offsets = [0, 32], sizes = [2, 16], strides = [1, 1]} : vector<2x128xf32> to vector<2x16xf32>
    %1135 = arith.mulf %1131, %1134 : vector<2x16xf32>
    %1136 = arith.addf %1133, %1135 : vector<2x16xf32>
    %1137 = math.tanh %1136 : vector<2x16xf32>
    %cst_297 = arith.constant 1.000000e+00 : f32
    %1138 = vector.broadcast %cst_297 : f32 to vector<2x16xf32>
    %1139 = arith.subf %1138, %1132 : vector<2x16xf32>
    %1140 = arith.mulf %1139, %1137 : vector<2x16xf32>
    %1141 = arith.mulf %1132, %1091 : vector<2x16xf32>
    %1142 = arith.addf %1140, %1141 : vector<2x16xf32>
    %1143 = vector.extract_strided_slice %257 {offsets = [0, 0, 128], sizes = [2, 1, 128], strides = [1, 1, 1]} : vector<2x12x256xf32> to vector<2x1x128xf32>
    %1144 = vector.shape_cast %1143 : vector<2x1x128xf32> to vector<2x128xf32>
    %1145 = vector.extract_strided_slice %1119 {offsets = [0, 128], sizes = [2, 128], strides = [1, 1]} : vector<2x256xf32> to vector<2x128xf32>
    %1146 = vector.extract_strided_slice %1144 {offsets = [0, 0], sizes = [2, 32], strides = [1, 1]} : vector<2x128xf32> to vector<2x32xf32>
    %1147 = vector.extract_strided_slice %1145 {offsets = [0, 0], sizes = [2, 32], strides = [1, 1]} : vector<2x128xf32> to vector<2x32xf32>
    %1148 = arith.addf %1146, %1147 : vector<2x32xf32>
    %1149 = arith.negf %1148 : vector<2x32xf32>
    %1150 = math.exp %1149 : vector<2x32xf32>
    %cst_298 = arith.constant 1.000000e+00 : f32
    %1151 = vector.broadcast %cst_298 : f32 to vector<2x32xf32>
    %1152 = arith.addf %1151, %1150 : vector<2x32xf32>
    %1153 = arith.divf %1151, %1152 : vector<2x32xf32>
    %1154 = vector.extract_strided_slice %1153 {offsets = [0, 0], sizes = [2, 16], strides = [1, 1]} : vector<2x32xf32> to vector<2x16xf32>
    %1155 = vector.extract_strided_slice %1153 {offsets = [0, 16], sizes = [2, 16], strides = [1, 1]} : vector<2x32xf32> to vector<2x16xf32>
    %1156 = vector.extract_strided_slice %1144 {offsets = [0, 32], sizes = [2, 16], strides = [1, 1]} : vector<2x128xf32> to vector<2x16xf32>
    %1157 = vector.extract_strided_slice %1145 {offsets = [0, 32], sizes = [2, 16], strides = [1, 1]} : vector<2x128xf32> to vector<2x16xf32>
    %1158 = arith.mulf %1154, %1157 : vector<2x16xf32>
    %1159 = arith.addf %1156, %1158 : vector<2x16xf32>
    %1160 = math.tanh %1159 : vector<2x16xf32>
    %cst_299 = arith.constant 1.000000e+00 : f32
    %1161 = vector.broadcast %cst_299 : f32 to vector<2x16xf32>
    %1162 = arith.subf %1161, %1155 : vector<2x16xf32>
    %1163 = arith.mulf %1162, %1160 : vector<2x16xf32>
    %1164 = arith.mulf %1155, %1094 : vector<2x16xf32>
    %1165 = arith.addf %1163, %1164 : vector<2x16xf32>
    %1166 = vector.shape_cast %1112 : vector<2x1xi1> to vector<2x1xi1>
    %1167 = vector.broadcast %1166 : vector<2x1xi1> to vector<2x16xi1>
    %1168 = arith.select %1167, %1142, %1091 : vector<2x16xi1>, vector<2x16xf32>
    %1169 = vector.shape_cast %1114 : vector<2x1xi1> to vector<2x1xi1>
    %1170 = vector.broadcast %1169 : vector<2x1xi1> to vector<2x16xi1>
    %1171 = arith.select %1170, %1165, %1094 : vector<2x16xi1>, vector<2x16xf32>
    %cst_300 = arith.constant 0.000000e+00 : f32
    %1172 = vector.shape_cast %1112 : vector<2x1xi1> to vector<2x1xi1>
    %1173 = vector.broadcast %1172 : vector<2x1xi1> to vector<2x16xi1>
    %1174 = vector.broadcast %cst_300 : f32 to vector<2x16xf32>
    %1175 = arith.select %1173, %1168, %1174 : vector<2x16xi1>, vector<2x16xf32>
    %1176 = tpu.concatenate %1175, %261 in 1 : vector<2x16xf32>, vector<2x112xf32> -> vector<2x128xf32>
    %c0_301 = arith.constant 0 : index
    %c11_302 = arith.constant 11 : index
    %c0_303 = arith.constant 0 : index
    %c0_304 = arith.constant 0 : index
    %1177 = vector.load %arg17[%c0_301, %c11_302, %c0_303, %c0_304] : memref<2x12x2x128xf32, #tpu.memory_space<vmem>>, vector<1x1x2x128xf32>
    %1178 = vector.shape_cast %1177 : vector<1x1x2x128xf32> to vector<2x128xf32>
    %1179 = vector.shape_cast %1176 : vector<2x128xf32> to vector<1x1x2x128xf32>
    tpu.vector_store %arg17[%c0_301, %c11_302, %c0_303, %c0_304], %1179 {strides = array<i32>} : memref<2x12x2x128xf32, #tpu.memory_space<vmem>>, vector<1x1x2x128xf32>,
    %cst_305 = arith.constant 0.000000e+00 : f32
    %1180 = vector.shape_cast %1114 : vector<2x1xi1> to vector<2x1xi1>
    %1181 = vector.broadcast %1180 : vector<2x1xi1> to vector<2x16xi1>
    %1182 = vector.broadcast %cst_305 : f32 to vector<2x16xf32>
    %1183 = arith.select %1181, %1171, %1182 : vector<2x16xi1>, vector<2x16xf32>
    %1184 = tpu.concatenate %1183, %261 in 1 : vector<2x16xf32>, vector<2x112xf32> -> vector<2x128xf32>
    %c1_306 = arith.constant 1 : index
    %c0_307 = arith.constant 0 : index
    %c0_308 = arith.constant 0 : index
    %c0_309 = arith.constant 0 : index
    %1185 = vector.load %arg17[%c1_306, %c0_307, %c0_308, %c0_309] : memref<2x12x2x128xf32, #tpu.memory_space<vmem>>, vector<1x1x2x128xf32>
    %1186 = vector.shape_cast %1185 : vector<1x1x2x128xf32> to vector<2x128xf32>
    %1187 = vector.shape_cast %1184 : vector<2x128xf32> to vector<1x1x2x128xf32>
    tpu.vector_store %arg17[%c1_306, %c0_307, %c0_308, %c0_309], %1187 {strides = array<i32>} : memref<2x12x2x128xf32, #tpu.memory_space<vmem>>, vector<1x1x2x128xf32>,
    %c0_310 = arith.constant 0 : index
    %c0_311 = arith.constant 0 : index
    %c0_312 = arith.constant 0 : index
    %c0_313 = arith.constant 0 : index
    %1188 = vector.load %arg17[%c0_310, %c0_311, %c0_312, %c0_313] : memref<2x12x2x128xf32, #tpu.memory_space<vmem>>, vector<1x12x2x128xf32>
    %1189 = vector.shape_cast %1188 : vector<1x12x2x128xf32> to vector<12x2x128xf32>
    %c1_314 = arith.constant 1 : index
    %c0_315 = arith.constant 0 : index
    %c0_316 = arith.constant 0 : index
    %c0_317 = arith.constant 0 : index
    %1190 = vector.load %arg17[%c1_314, %c0_315, %c0_316, %c0_317] : memref<2x12x2x128xf32, #tpu.memory_space<vmem>>, vector<1x12x2x128xf32>
    %1191 = vector.shape_cast %1190 : vector<1x12x2x128xf32> to vector<12x2x128xf32>
    %c0_318 = arith.constant 0 : index
    %c0_319 = arith.constant 0 : index
    %1192 = vector.load %arg2[%c0_318, %c0_319] : memref<1x2xi32, #tpu.memory_space<vmem>>, vector<1x2xi32>
    %1193 = tpu.iota {dimensions = array<i32: 0>} : vector<12x2xi32>
    %1194 = vector.broadcast %1192 : vector<1x2xi32> to vector<12x2xi32>
    %1195 = arith.cmpi slt, %1193, %1194 : vector<12x2xi32>
    %c0_320 = arith.constant 0 : index
    %c0_321 = arith.constant 0 : index
    %c0_322 = arith.constant 0 : index
    %1196 = vector.load %arg13[%c0_320, %c0_321, %c0_322] : memref<1x1x128xf32, #tpu.memory_space<vmem>>, vector<1x1x128xf32>
    %1197 = vector.broadcast %1196 : vector<1x1x128xf32> to vector<12x2x128xf32>
    %1198 = arith.mulf %1189, %1197 : vector<12x2x128xf32>
    %cst_323 = arith.constant dense<0.000000e+00> : vector<12x2xf32>
    %1199 = vector.multi_reduction <add>, %1198, %cst_323 [2] : vector<12x2x128xf32> to vector<12x2xf32>
    %c0_324 = arith.constant 0 : index
    %c0_325 = arith.constant 0 : index
    %c0_326 = arith.constant 0 : index
    %1200 = vector.load %arg14[%c0_324, %c0_325, %c0_326] : memref<1x1x128xf32, #tpu.memory_space<vmem>>, vector<1x1x128xf32>
    %1201 = vector.broadcast %1200 : vector<1x1x128xf32> to vector<12x2x128xf32>
    %1202 = arith.mulf %1191, %1201 : vector<12x2x128xf32>
    %cst_327 = arith.constant dense<0.000000e+00> : vector<12x2xf32>
    %1203 = vector.multi_reduction <add>, %1202, %cst_327 [2] : vector<12x2x128xf32> to vector<12x2xf32>
    %1204 = arith.addf %1199, %1203 : vector<12x2xf32>
    %c0_328 = arith.constant 0 : index
    %c0_329 = arith.constant 0 : index
    %1205 = vector.load %arg15[%c0_328, %c0_329] : memref<1x1xf32, #tpu.memory_space<vmem>>, vector<1x1xf32>
    %1206 = vector.broadcast %1205 : vector<1x1xf32> to vector<12x2xf32>
    %1207 = arith.addf %1204, %1206 : vector<12x2xf32>
    %cst_330 = arith.constant -1.000000e+30 : f32
    %1208 = vector.broadcast %cst_330 : f32 to vector<12x2xf32>
    %1209 = arith.select %1195, %1207, %1208 : vector<12x2xi1>, vector<12x2xf32>
    %cst_331 = arith.constant dense<0xFF800000> : vector<2xf32>
    %1210 = vector.multi_reduction <maximumf>, %1209, %cst_331 [0] : vector<12x2xf32> to vector<2xf32>
    %1211 = vector.shape_cast %1210 : vector<2xf32> to vector<1x2xf32>
    %1212 = vector.broadcast %1211 : vector<1x2xf32> to vector<12x2xf32>
    %1213 = arith.subf %1209, %1212 : vector<12x2xf32>
    %1214 = math.exp %1213 : vector<12x2xf32>
    %cst_332 = arith.constant 0.000000e+00 : f32
    %1215 = vector.broadcast %cst_332 : f32 to vector<12x2xf32>
    %1216 = arith.select %1195, %1214, %1215 : vector<12x2xi1>, vector<12x2xf32>
    %cst_333 = arith.constant dense<0.000000e+00> : vector<2xf32>
    %1217 = vector.multi_reduction <add>, %1216, %cst_333 [0] : vector<12x2xf32> to vector<2xf32>
    %1218 = vector.shape_cast %1217 : vector<2xf32> to vector<1x2xf32>
    %cst_334 = arith.constant 1.000000e-30 : f32
    %1219 = vector.broadcast %cst_334 : f32 to vector<1x2xf32>
    %1220 = arith.maximumf %1218, %1219 : vector<1x2xf32>
    %1221 = vector.broadcast %1220 : vector<1x2xf32> to vector<12x2xf32>
    %1222 = arith.divf %1216, %1221 : vector<12x2xf32>
    %1223 = vector.shape_cast %1222 : vector<12x2xf32> to vector<12x2x1xf32>
    %1224 = vector.broadcast %1223 : vector<12x2x1xf32> to vector<12x2x128xf32>
    %1225 = arith.mulf %1224, %1189 : vector<12x2x128xf32>
    %cst_335 = arith.constant dense<0.000000e+00> : vector<2x128xf32>
    %1226 = vector.multi_reduction <add>, %1225, %cst_335 [0] : vector<12x2x128xf32> to vector<2x128xf32>
    %c0_336 = arith.constant 0 : index
    %c0_337 = arith.constant 0 : index
    %c0_338 = arith.constant 0 : index
    %1227 = vector.load %arg16[%c0_336, %c0_337, %c0_338] : memref<2x2x128xf32, #tpu.memory_space<vmem>>, vector<1x2x128xf32>
    %1228 = vector.shape_cast %1227 : vector<1x2x128xf32> to vector<2x128xf32>
    %1229 = vector.shape_cast %1226 : vector<2x128xf32> to vector<1x2x128xf32>
    tpu.vector_store %arg16[%c0_336, %c0_337, %c0_338], %1229 {strides = array<i32>} : memref<2x2x128xf32, #tpu.memory_space<vmem>>, vector<1x2x128xf32>,
    %1230 = vector.shape_cast %1222 : vector<12x2xf32> to vector<12x2x1xf32>
    %1231 = vector.broadcast %1230 : vector<12x2x1xf32> to vector<12x2x128xf32>
    %1232 = arith.mulf %1231, %1191 : vector<12x2x128xf32>
    %cst_339 = arith.constant dense<0.000000e+00> : vector<2x128xf32>
    %1233 = vector.multi_reduction <add>, %1232, %cst_339 [0] : vector<12x2x128xf32> to vector<2x128xf32>
    %c1_340 = arith.constant 1 : index
    %c0_341 = arith.constant 0 : index
    %c0_342 = arith.constant 0 : index
    %1234 = vector.load %arg16[%c1_340, %c0_341, %c0_342] : memref<2x2x128xf32, #tpu.memory_space<vmem>>, vector<1x2x128xf32>
    %1235 = vector.shape_cast %1234 : vector<1x2x128xf32> to vector<2x128xf32>
    %1236 = vector.shape_cast %1233 : vector<2x128xf32> to vector<1x2x128xf32>
    tpu.vector_store %arg16[%c1_340, %c0_341, %c0_342], %1236 {strides = array<i32>} : memref<2x2x128xf32, #tpu.memory_space<vmem>>, vector<1x2x128xf32>,
    return
  }
}

</mosaic_0001>

<llo_original>
// kernel: tpu_custom_call.1
$region0: #{tpu_custom_call.1}
  #allocation0 [shape = 'u32[]', space=smem, size = 0x4, offset = 0x4, fixed_abs, tag = 'smem constant byte address 0x4 - core index']
  #allocation1 [shape = 'u32[144,128]{1,0:T(1,128)}', space=vmem, size = 0x12000, scoped, tag = 'internal scratch']
  #allocation2 [shape = 'f32[2,12,2,128]{3,2,1,0:T(2,128)}', space=vmem, size = 0x6000, scoped, tag = 'scratch operand']
  #allocation3 [shape = 'f32[1,1]{1,0:T(1,128)S(1)}', space=vmem, size = 0x200, scoped, tag = 'scoped memory for tpu_custom_call.1']
  %s0 = inlined_call_operand.vmem [shape: f32[2,12,128], index: 0, kind: input, shape index: {}]
  %s1 = inlined_call_operand.vmem [shape: s32[2,1], index: 1, kind: input, shape index: {}]
  %s2 = inlined_call_operand.vmem [shape: s32[1,2], index: 2, kind: input, shape index: {}]
  %s3 = inlined_call_operand.hbm [shape: bf16[3,128,128], index: 3, kind: input, shape index: {}]
  %s4 = inlined_call_operand.vmem [shape: f32[1,128], index: 4, kind: input, shape index: {}]
  %s5 = inlined_call_operand.vmem [shape: f32[1,128], index: 5, kind: input, shape index: {}]
  %s6 = inlined_call_operand.hbm [shape: bf16[2,2,3,128,128], index: 6, kind: input, shape index: {}]
  %s7 = inlined_call_operand.vmem [shape: f32[2,2,1,128], index: 7, kind: input, shape index: {}]
  %s8 = inlined_call_operand.vmem [shape: f32[2,2,1,128], index: 8, kind: input, shape index: {}]
  %s9 = inlined_call_operand.hbm [shape: bf16[128,256], index: 9, kind: input, shape index: {}]
  %s10 = inlined_call_operand.vmem [shape: f32[1,256], index: 10, kind: input, shape index: {}]
  %s11 = inlined_call_operand.vmem [shape: bf16[32,256], index: 11, kind: input, shape index: {}]
  %s12 = inlined_call_operand.vmem [shape: f32[1,256], index: 12, kind: input, shape index: {}]
  %s13 = inlined_call_operand.vmem [shape: f32[1,1,128], index: 13, kind: input, shape index: {}]
  %s14 = inlined_call_operand.vmem [shape: f32[1,1,128], index: 14, kind: input, shape index: {}]
  %s15 = inlined_call_operand.<no memory space> [shape: f32[1,1], index: 15, kind: input, shape index: {}]
  %s16 = inlined_call_operand.hbm [shape: f32[2,2,128], index: 16, kind: output, shape index: {}]
  %s17 = sld [smem:[#allocation0]]
  $region86: #{tpu_custom_call.1} parent=0
    _
  %s19 = ssub.s32 1, %s17
  %s20 = scalar_select 0, %s19, %s17
  %v21 = vstv %s15
  %22 = vst [vmem:[#allocation3] sm:$0x1] %v21
  $region1: #{tpu_custom_call.1} parent=0
    #allocation4 [shape = 'u8[98304]{0}', space=vmem, size = 0x18000, scoped, tag = 'input window, operand 3, single buffered']
    #allocation5 [shape = 's32[1]{0}', space=sflag, size = 0x4, scoped, tag = 'scoped memory for tpu_custom_call.1']
    #allocation6 [shape = 's32[1]{0}', space=sflag, size = 0x4, scoped, tag = 'scoped memory for tpu_custom_call.1']
    #allocation7 [shape = 'u8[393216]{0}', space=vmem, size = 0x60000, scoped, tag = 'input window, operand 6, single buffered']
    #allocation8 [shape = 's32[1]{0}', space=sflag, size = 0x4, scoped, tag = 'scoped memory for tpu_custom_call.1']
    #allocation9 [shape = 'u8[65536]{0}', space=vmem, size = 0x10000, scoped, tag = 'input window, operand 9, single buffered']
    #allocation10 [shape = 'u8[2048]{0}', space=vmem, size = 0x800, scoped, tag = 'output window, operand 0, single buffered']
    %23 = vsyncpa [#allocation5], 0
    %24 = vsyncpa [#allocation8], 0
    %25 = vsyncpa [#allocation6], 0
    // Predicated region
    $region2: #{tpu_custom_call.1} parent=1 // pred_check
      _
    $region3: #{tpu_custom_call.1} parent=1 // pred_check_branch
      %27 = sbr.rel (0) target = $region5
    $region4: #{tpu_custom_call.1} parent=1 // pred_region
      _
    $region5: #{tpu_custom_call.1} parent=1 // pred_fallthru
      _
    // Predicated region
    $region6: #{tpu_custom_call.1} parent=1 // pred_check
      _
    $region7: #{tpu_custom_call.1} parent=1 // pred_check_branch
      %29 = sbr.rel (0) target = $region9
    $region8: #{tpu_custom_call.1} parent=1 // pred_region
      _
    $region9: #{tpu_custom_call.1} parent=1 // pred_fallthru
      _
    // Predicated region
    $region10: #{tpu_custom_call.1} parent=1 // pred_check
      _
    $region11: #{tpu_custom_call.1} parent=1 // pred_check_branch
      %31 = sbr.rel (0) target = $region13
    $region12: #{tpu_custom_call.1} parent=1 // pred_region
      _
    $region13: #{tpu_custom_call.1} parent=1 // pred_fallthru
      _
    // Predicated region
    $region14: #{tpu_custom_call.1} parent=1 // pred_check
      _
    $region15: #{tpu_custom_call.1} parent=1 // pred_check_branch
      %33 = sbr.rel (0) target = $region17
    $region16: #{tpu_custom_call.1} parent=1 // pred_region
      %s35 = ssub.s32 3072, 3072
      %36 = vsyncadd [#allocation5], %s35
      %s37 = sshll.u32 [#allocation4], 4
      %s38 = int_to_ptr.vmem [resolvable:$true] %s37
      %43 = dma.hbm_to_vmem [thread:$0]  %s3, 3072, %s38, [#allocation5], 64, 64, 4
    $region17: #{tpu_custom_call.1} parent=1 // pred_fallthru
      _
    // Predicated region
    $region18: #{tpu_custom_call.1} parent=1 // pred_check
      _
    $region19: #{tpu_custom_call.1} parent=1 // pred_check_branch
      %45 = sbr.rel (0) target = $region21
    $region20: #{tpu_custom_call.1} parent=1 // pred_region
      _
    $region21: #{tpu_custom_call.1} parent=1 // pred_fallthru
      _
    // Predicated region
    $region22: #{tpu_custom_call.1} parent=1 // pred_check
      _
    $region23: #{tpu_custom_call.1} parent=1 // pred_check_branch
      %47 = sbr.rel (0) target = $region25
    $region24: #{tpu_custom_call.1} parent=1 // pred_region
      _
    $region25: #{tpu_custom_call.1} parent=1 // pred_fallthru
      _
    // Predicated region
    $region26: #{tpu_custom_call.1} parent=1 // pred_check
      _
    $region27: #{tpu_custom_call.1} parent=1 // pred_check_branch
      %49 = sbr.rel (0) target = $region29
    $region28: #{tpu_custom_call.1} parent=1 // pred_region
      %s51 = ssub.s32 12288, 12288
      %52 = vsyncadd [#allocation8], %s51
      %s53 = sshll.u32 [#allocation7], 4
      %s54 = int_to_ptr.vmem [resolvable:$true] %s53
      %59 = dma.hbm_to_vmem [thread:$0]  %s6, 12288, %s54, [#allocation8], 64, 64, 4
    $region29: #{tpu_custom_call.1} parent=1 // pred_fallthru
      _
    // Predicated region
    $region30: #{tpu_custom_call.1} parent=1 // pred_check
      _
    $region31: #{tpu_custom_call.1} parent=1 // pred_check_branch
      %61 = sbr.rel (0) target = $region33
    $region32: #{tpu_custom_call.1} parent=1 // pred_region
      _
    $region33: #{tpu_custom_call.1} parent=1 // pred_fallthru
      _
    // Predicated region
    $region34: #{tpu_custom_call.1} parent=1 // pred_check
      _
    $region35: #{tpu_custom_call.1} parent=1 // pred_check_branch
      %63 = sbr.rel (0) target = $region37
    $region36: #{tpu_custom_call.1} parent=1 // pred_region
      _
    $region37: #{tpu_custom_call.1} parent=1 // pred_fallthru
      _
    // Predicated region
    $region38: #{tpu_custom_call.1} parent=1 // pred_check
      _
    $region39: #{tpu_custom_call.1} parent=1 // pred_check_branch
      %65 = sbr.rel (0) target = $region41
    $region40: #{tpu_custom_call.1} parent=1 // pred_region
      %s67 = ssub.s32 2048, 2048
      %68 = vsyncadd [#allocation8], %s67
      %s69 = sshll.u32 [#allocation9], 4
      %s70 = int_to_ptr.vmem [resolvable:$true] %s69
      %75 = dma.hbm_to_vmem [thread:$0]  %s9, 2048, %s70, [#allocation8], 128, 128, 8
    $region41: #{tpu_custom_call.1} parent=1 // pred_fallthru
      _
    // Predicated region
    $region42: #{tpu_custom_call.1} parent=1 // pred_check
      _
    $region43: #{tpu_custom_call.1} parent=1 // pred_check_branch
      %77 = sbr.rel (0) target = $region45
    $region44: #{tpu_custom_call.1} parent=1 // pred_region
      _
    $region45: #{tpu_custom_call.1} parent=1 // pred_fallthru
      _
    // Predicated region
    $region46: #{tpu_custom_call.1} parent=1 // pred_check
      _
    $region47: #{tpu_custom_call.1} parent=1 // pred_check_branch
      %79 = sbr.rel (0) target = $region49
    $region48: #{tpu_custom_call.1} parent=1 // pred_region
      _
    $region49: #{tpu_custom_call.1} parent=1 // pred_fallthru
      _
    // Predicated region
    $region50: #{tpu_custom_call.1} parent=1 // pred_check
      _
    $region51: #{tpu_custom_call.1} parent=1 // pred_check_branch
      %81 = sbr.rel (0) target = $region53
    $region52: #{tpu_custom_call.1} parent=1 // pred_region
      _
    $region53: #{tpu_custom_call.1} parent=1 // pred_fallthru
      _
    // Predicated region
    $region54: #{tpu_custom_call.1} parent=1 // pred_check
      _
    $region55: #{tpu_custom_call.1} parent=1 // pred_check_branch
      %83 = sbr.rel (0) target = $region57
    $region56: #{tpu_custom_call.1} parent=1 // pred_region
      _
    $region57: #{tpu_custom_call.1} parent=1 // pred_fallthru
      _
    // Predicated region
    $region58: #{tpu_custom_call.1} parent=1 // pred_check
      _
    $region59: #{tpu_custom_call.1} parent=1 // pred_check_branch
      %85 = sbr.rel (0) target = $region61
    $region60: #{tpu_custom_call.1} parent=1 // pred_region
      _
    $region61: #{tpu_custom_call.1} parent=1 // pred_fallthru
      _
    // Predicated region
    $region62: #{tpu_custom_call.1} parent=1 // pred_check
      _
    $region63: #{tpu_custom_call.1} parent=1 // pred_check_branch
      %87 = sbr.rel (0) target = $region65
    $region64: #{tpu_custom_call.1} parent=1 // pred_region
      _
    $region65: #{tpu_custom_call.1} parent=1 // pred_fallthru
      _
    // Predicated region
    $region66: #{tpu_custom_call.1} parent=1 // pred_check
      _
    $region67: #{tpu_custom_call.1} parent=1 // pred_check_branch
      %89 = sbr.rel (0) target = $region69
    $region68: #{tpu_custom_call.1} parent=1 // pred_region
      %90 = dma.done [#allocation5], 3072
    $region69: #{tpu_custom_call.1} parent=1 // pred_fallthru
      _
    // Predicated region
    $region70: #{tpu_custom_call.1} parent=1 // pred_check
      _
    $region71: #{tpu_custom_call.1} parent=1 // pred_check_branch
      %92 = sbr.rel (0) target = $region73
    $region72: #{tpu_custom_call.1} parent=1 // pred_region
      %93 = dma.done [#allocation8], 12288
    $region73: #{tpu_custom_call.1} parent=1 // pred_fallthru
      _
    // Predicated region
    $region74: #{tpu_custom_call.1} parent=1 // pred_check
      _
    $region75: #{tpu_custom_call.1} parent=1 // pred_check_branch
      %95 = sbr.rel (0) target = $region77
    $region76: #{tpu_custom_call.1} parent=1 // pred_region
      %96 = dma.done [#allocation8], 2048
    $region77: #{tpu_custom_call.1} parent=1 // pred_fallthru
      _
    %v98 = vld [vmem:[%s0] sm:$0xff]
    %v99 = vld [vmem:[%s0 + $0x8] sm:$0xf]
    %v100 = vld [vmem:[%s0 + $0x10] sm:$0xff]
    %v101 = vld [vmem:[%s0 + $0x18] sm:$0xf]
    %v102 = vld [vmem:[#allocation4] sm:$0xf]
    %v103 = vld [vmem:[#allocation4 + $0x4] sm:$0xf]
    %v104 = vld [vmem:[#allocation4 + $0x8] sm:$0xf]
    %v105 = vld [vmem:[#allocation4 + $0xc] sm:$0xf]
    %v106 = vld [vmem:[#allocation4 + $0x10] sm:$0xf]
    %v107 = vld [vmem:[#allocation4 + $0x14] sm:$0xf]
    %v108 = vld [vmem:[#allocation4 + $0x18] sm:$0xf]
    %v109 = vld [vmem:[#allocation4 + $0x1c] sm:$0xf]
    %v110 = vld [vmem:[#allocation4 + $0x20] sm:$0xf]
    %v111 = vld [vmem:[#allocation4 + $0x24] sm:$0xf]
    %v112 = vld [vmem:[#allocation4 + $0x28] sm:$0xf]
    %v113 = vld [vmem:[#allocation4 + $0x2c] sm:$0xf]
    %v114 = vld [vmem:[#allocation4 + $0x30] sm:$0xf]
    %v115 = vld [vmem:[#allocation4 + $0x34] sm:$0xf]
    %v116 = vld [vmem:[#allocation4 + $0x38] sm:$0xf]
    %v117 = vld [vmem:[#allocation4 + $0x3c] sm:$0xf]
    %v118 = vld [vmem:[#allocation4 + $0x40] sm:$0xf]
    %v119 = vld [vmem:[#allocation4 + $0x44] sm:$0xf]
    %v120 = vld [vmem:[#allocation4 + $0x48] sm:$0xf]
    %v121 = vld [vmem:[#allocation4 + $0x4c] sm:$0xf]
    %v122 = vld [vmem:[#allocation4 + $0x50] sm:$0xf]
    %v123 = vld [vmem:[#allocation4 + $0x54] sm:$0xf]
    %v124 = vld [vmem:[#allocation4 + $0x58] sm:$0xf]
    %v125 = vld [vmem:[#allocation4 + $0x5c] sm:$0xf]
    %v126 = vld [vmem:[#allocation4 + $0x60] sm:$0xf]
    %v127 = vld [vmem:[#allocation4 + $0x64] sm:$0xf]
    %v128 = vld [vmem:[#allocation4 + $0x68] sm:$0xf]
    %v129 = vld [vmem:[#allocation4 + $0x6c] sm:$0xf]
    %v130 = vld [vmem:[#allocation4 + $0x70] sm:$0xf]
    %v131 = vld [vmem:[#allocation4 + $0x74] sm:$0xf]
    %v132 = vld [vmem:[#allocation4 + $0x78] sm:$0xf]
    %v133 = vld [vmem:[#allocation4 + $0x7c] sm:$0xf]
    %v134 = vld [vmem:[#allocation4 + $0x80] sm:$0xf]
    %v135 = vld [vmem:[#allocation4 + $0x84] sm:$0xf]
    %v136 = vld [vmem:[#allocation4 + $0x88] sm:$0xf]
    %v137 = vld [vmem:[#allocation4 + $0x8c] sm:$0xf]
    %v138 = vld [vmem:[#allocation4 + $0x90] sm:$0xf]
    %v139 = vld [vmem:[#allocation4 + $0x94] sm:$0xf]
    %v140 = vld [vmem:[#allocation4 + $0x98] sm:$0xf]
    %v141 = vld [vmem:[#allocation4 + $0x9c] sm:$0xf]
    %v142 = vld [vmem:[#allocation4 + $0xa0] sm:$0xf]
    %v143 = vld [vmem:[#allocation4 + $0xa4] sm:$0xf]
    %v144 = vld [vmem:[#allocation4 + $0xa8] sm:$0xf]
    %v145 = vld [vmem:[#allocation4 + $0xac] sm:$0xf]
    %v146 = vld [vmem:[#allocation4 + $0xb0] sm:$0xf]
    %v147 = vld [vmem:[#allocation4 + $0xb4] sm:$0xf]
    %v148 = vld [vmem:[#allocation4 + $0xb8] sm:$0xf]
    %v149 = vld [vmem:[#allocation4 + $0xbc] sm:$0xf]
    %v150 = vld [vmem:[%s4] sm:$0x1]
    %v151 = vld [vmem:[%s5] sm:$0x1]
    %v152 = vpack.c.bf16 %v99, %v98
    %v153 = vpack.c.bf16 %v101, %v100
    %v155 = vshrl.u32 %v152, 16
    %v157 = vrot.slane %v155, 7
    %v158 = vshll.u32 %v152, 16
    %v160 = vor.u32 %v157, %v158
    %v162 = vshrl.u32 %v153, 16
    %v164 = vrot.slane %v162, 7
    %v165 = vshll.u32 %v153, 16
    %v167 = vor.u32 %v164, %v165
    %vm170 = vcmask 1040384
    %vm171 = vsmask.f32 256
    %vm172 = vmand %vm170, %vm171
    %v173 = vsel %vm172, 0, %v160
    %v174 = vsel %vm172, 0, %v167
    %vm175 = vcmask 1046528
    %vm176 = vsmask.f32 6400
    %vm177 = vmand %vm175, %vm176
    %v178 = vsel %vm177, %v173, 0
    %v179 = vsel %vm177, %v174, 0
    %v182 = vcombine.high %v178, %v178
    %v184 = vunpack.c.l.s4 1983009808
    %v185 = vunpack.c.0.s8 %v184
    %v186 = vlaneseq
    %v187 = vshrl.u32 %v186, 7
    %v188 = vsub.s32 %v185, %v187
    %v189 = vrot.slane %v178, %v188
    %v191 = vunpack.c.l.s4 1983009808
    %v192 = vunpack.c.0.s8 %v191
    %v193 = vlaneseq
    %v194 = vshrl.u32 %v193, 7
    %v195 = vsub.s32 %v192, %v194
    %v196 = vrot.slane %v182, %v195
    %v197 = vcombine.high %v189, %v189
    %v198 = vcombine.high %v179, %v179
    %v200 = vunpack.c.l.s4 1983009808
    %v201 = vunpack.c.0.s8 %v200
    %v202 = vlaneseq
    %v203 = vshrl.u32 %v202, 7
    %v204 = vsub.s32 %v201, %v203
    %v205 = vrot.slane %v179, %v204
    %v207 = vunpack.c.l.s4 1983009808
    %v208 = vunpack.c.0.s8 %v207
    %v209 = vlaneseq
    %v210 = vshrl.u32 %v209, 7
    %v211 = vsub.s32 %v208, %v210
    %v212 = vrot.slane %v198, %v211
    %v213 = vcombine.high %v205, %v205
    %v214 = vcombine.high %v196, %v196
    %v215 = vcombine.high %v212, %v212
    %vm216 = vsmask.f32 1280
    %vm217 = vsmask.f32 3336
    %vm218 = vmor %vm216, %vm217
    %vm219 = vsmask.f32 5392
    %vm220 = vmor %vm218, %vm219
    %vm221 = vsmask.f32 7448
    %vm222 = vmor %vm220, %vm221
    %v224 = vshrl.u32 %v189, 16
    %v226 = vrot.slane %v224, 6
    %v227 = vshll.u32 %v189, 16
    %v229 = vrot.slane %v227, 7
    %v230 = vor.u32 %v226, %v229
    %v231 = vrot.slane %v230, 2
    %v233 = vshll.u32 %v197, 16
    %v235 = vrot.slane %v233, 7
    %v236 = vsel %vm222, %v231, %v235
    %v237 = vshrl.u32 %v197, 16
    %v239 = vrot.slane %v237, 6
    %v240 = vor.u32 %v239, %v235
    %v241 = vrot.slane %v240, 2
    %v243 = vshll.u32 %v196, 16
    %v245 = vrot.slane %v243, 7
    %v246 = vsel %vm222, %v241, %v245
    %v247 = vshrl.u32 %v196, 16
    %v249 = vrot.slane %v247, 6
    %v250 = vor.u32 %v249, %v245
    %v251 = vrot.slane %v250, 2
    %v253 = vshll.u32 %v214, 16
    %v255 = vrot.slane %v253, 7
    %v256 = vsel %vm222, %v251, %v255
    %v258 = vshrl.u32 %v205, 16
    %v260 = vrot.slane %v258, 6
    %v261 = vshll.u32 %v205, 16
    %v263 = vrot.slane %v261, 7
    %v264 = vor.u32 %v260, %v263
    %v265 = vrot.slane %v264, 2
    %v267 = vshll.u32 %v213, 16
    %v269 = vrot.slane %v267, 7
    %v270 = vsel %vm222, %v265, %v269
    %v271 = vshrl.u32 %v213, 16
    %v273 = vrot.slane %v271, 6
    %v274 = vor.u32 %v273, %v269
    %v275 = vrot.slane %v274, 2
    %v277 = vshll.u32 %v212, 16
    %v279 = vrot.slane %v277, 7
    %v280 = vsel %vm222, %v275, %v279
    %v281 = vshrl.u32 %v212, 16
    %v283 = vrot.slane %v281, 6
    %v284 = vor.u32 %v283, %v279
    %v285 = vrot.slane %v284, 2
    %v287 = vshll.u32 %v215, 16
    %v289 = vrot.slane %v287, 7
    %v290 = vsel %vm222, %v285, %v289
    %v291 = vcombine.low %v236, %v246
    %v292 = vcombine.low %v256, %v270
    %v294 = vunpack.c.l.s4 1983009808
    %v295 = vunpack.c.0.s8 %v294
    %v296 = vlaneseq
    %v297 = vshrl.u32 %v296, 7
    %v298 = vsub.s32 %v295, %v297
    %v299 = vrot.slane %v291, %v298
    %v301 = vunpack.c.l.s4 1983009808
    %v302 = vunpack.c.0.s8 %v301
    %v303 = vlaneseq
    %v304 = vshrl.u32 %v303, 7
    %v305 = vsub.s32 %v302, %v304
    %v306 = vrot.slane %v292, %v305
    %v307 = vcombine.low %v299, %v306
    %v308 = vcombine.low %v280, %v290
    %v310 = vunpack.c.l.s4 1983009808
    %v311 = vunpack.c.0.s8 %v310
    %v312 = vlaneseq
    %v313 = vshrl.u32 %v312, 7
    %v314 = vsub.s32 %v311, %v313
    %v315 = vrot.slane %v308, %v314
    %v334 = vunpack.c.l.b16 %v118
    %v335 = vunpack.c.l.b16 %v119
    %v336 = vunpack.c.l.b16 %v120
    %v337 = vunpack.c.l.b16 %v121
    %v338 = vunpack.c.l.b16 %v122
    %v339 = vunpack.c.l.b16 %v123
    %v340 = vunpack.c.l.b16 %v124
    %v341 = vunpack.c.l.b16 %v125
    %v342 = vunpack.c.l.b16 %v126
    %v343 = vunpack.c.l.b16 %v127
    %v344 = vunpack.c.l.b16 %v128
    %v345 = vunpack.c.l.b16 %v129
    %v346 = vunpack.c.l.b16 %v130
    %v347 = vunpack.c.l.b16 %v131
    %v348 = vunpack.c.l.b16 %v132
    %v349 = vunpack.c.l.b16 %v133
    %v350 = vpack.c.b16 %v335, %v334
    %v351 = vpack.c.b16 %v337, %v336
    %v352 = vpack.c.b16 %v339, %v338
    %v353 = vpack.c.b16 %v341, %v340
    %v354 = vpack.c.b16 %v343, %v342
    %v355 = vpack.c.b16 %v345, %v344
    %v356 = vpack.c.b16 %v347, %v346
    %v357 = vpack.c.b16 %v349, %v348
    %366 = vmatprep.subr.bf16.mxu0 0
    %367 = vmatpush1.bf16.msra.mxu0 %v350
    %368 = vmatprep.subr.bf16.mxu0 0
    %369 = vmatpush1.bf16.msra.mxu0 %v351
    %370 = vmatprep.subr.bf16.mxu0 0
    %371 = vmatpush1.bf16.msra.mxu0 %v352
    %372 = vmatprep.subr.bf16.mxu0 0
    %373 = vmatpush1.bf16.msra.mxu0 %v353
    %374 = vmatprep.subr.bf16.mxu0 0
    %375 = vmatpush1.bf16.msra.mxu0 %v354
    %376 = vmatprep.subr.bf16.mxu0 0
    %377 = vmatpush1.bf16.msra.mxu0 %v355
    %378 = vmatprep.subr.bf16.mxu0 0
    %379 = vmatpush1.bf16.msra.mxu0 %v356
    %380 = vmatprep.subr.bf16.mxu0 0
    %381 = vmatpush1.bf16.msra.mxu0 %v357
    %382 = vmatprep.subr.bf16.mxu0 0
    %383 = vmatpush1.bf16.msra.mxu0 0
    %384 = vmatprep.subr.bf16.mxu0 0
    %385 = vmatpush1.bf16.msra.mxu0 0
    %386 = vmatprep.subr.bf16.mxu0 0
    %387 = vmatpush1.bf16.msra.mxu0 0
    %388 = vmatprep.subr.bf16.mxu0 0
    %389 = vmatpush1.bf16.msra.mxu0 0
    %390 = vmatprep.subr.bf16.mxu0 0
    %391 = vmatpush1.bf16.msra.mxu0 0
    %392 = vmatprep.subr.bf16.mxu0 0
    %393 = vmatpush1.bf16.msra.mxu0 0
    %394 = vmatprep.subr.bf16.mxu0 0
    %395 = vmatpush1.bf16.msra.mxu0 0
    %396 = vmatprep.subr.bf16.mxu0 0
    %397 = vmatpush1.bf16.msra.mxu0 0
    %398 = vmatprep.mubr.bf16.mxu0 0
    %399 = vmatmul.mubr.bf16.gmra.mrb[0].mxu0 %v307
    %v400 = vpop.f32.mrb[0].mxu0
    %v401 = vadd.f32 0.0, %v400
    %v402 = vpop.f32.mrb[0].mxu0
    %v403 = vpop.f32.mrb[0].mxu0
    %v404 = vadd.f32 0.0, %v403
    %v405 = vpop.f32.mrb[0].mxu0
    %406 = vmatprep.mubr.bf16.mxu0 0
    %407 = vmatmul.mubr.bf16.gmra.mrb[0].mxu0 %v315
    %v408 = vpop.f32.mrb[0].mxu0
    %v409 = vadd.f32 0.0, %v408
    %v410 = vpop.f32.mrb[0].mxu0
    %v411 = vpop.f32.mrb[0].mxu0
    %v412 = vpop.f32.mrb[0].mxu0
    %413 = vdwg.mxu0
    %v414 = vcombine.low %v189, %v197
    %v415 = vcombine.low %v196, %v205
    %v417 = vunpack.c.l.s4 1983009808
    %v418 = vunpack.c.0.s8 %v417
    %v419 = vlaneseq
    %v420 = vshrl.u32 %v419, 7
    %v421 = vsub.s32 %v418, %v420
    %v422 = vrot.slane %v414, %v421
    %v424 = vunpack.c.l.s4 1983009808
    %v425 = vunpack.c.0.s8 %v424
    %v426 = vlaneseq
    %v427 = vshrl.u32 %v426, 7
    %v428 = vsub.s32 %v425, %v427
    %v429 = vrot.slane %v415, %v428
    %v430 = vcombine.low %v422, %v429
    %v431 = vcombine.low %v213, %v212
    %v433 = vunpack.c.l.s4 1983009808
    %v434 = vunpack.c.0.s8 %v433
    %v435 = vlaneseq
    %v436 = vshrl.u32 %v435, 7
    %v437 = vsub.s32 %v434, %v436
    %v438 = vrot.slane %v431, %v437
    %v457 = vunpack.c.l.b16 %v102
    %v458 = vunpack.c.l.b16 %v103
    %v459 = vunpack.c.l.b16 %v104
    %v460 = vunpack.c.l.b16 %v105
    %v461 = vunpack.c.l.b16 %v106
    %v462 = vunpack.c.l.b16 %v107
    %v463 = vunpack.c.l.b16 %v108
    %v464 = vunpack.c.l.b16 %v109
    %v465 = vunpack.c.l.b16 %v110
    %v466 = vunpack.c.l.b16 %v111
    %v467 = vunpack.c.l.b16 %v112
    %v468 = vunpack.c.l.b16 %v113
    %v469 = vunpack.c.l.b16 %v114
    %v470 = vunpack.c.l.b16 %v115
    %v471 = vunpack.c.l.b16 %v116
    %v472 = vunpack.c.l.b16 %v117
    %v473 = vpack.c.b16 %v458, %v457
    %v474 = vpack.c.b16 %v460, %v459
    %v475 = vpack.c.b16 %v462, %v461
    %v476 = vpack.c.b16 %v464, %v463
    %v477 = vpack.c.b16 %v466, %v465
    %v478 = vpack.c.b16 %v468, %v467
    %v479 = vpack.c.b16 %v470, %v469
    %v480 = vpack.c.b16 %v472, %v471
    %489 = vmatprep.subr.bf16.mxu0 0
    %490 = vmatpush1.bf16.msra.mxu0 %v473
    %491 = vmatprep.subr.bf16.mxu0 0
    %492 = vmatpush1.bf16.msra.mxu0 %v474
    %493 = vmatprep.subr.bf16.mxu0 0
    %494 = vmatpush1.bf16.msra.mxu0 %v475
    %495 = vmatprep.subr.bf16.mxu0 0
    %496 = vmatpush1.bf16.msra.mxu0 %v476
    %497 = vmatprep.subr.bf16.mxu0 0
    %498 = vmatpush1.bf16.msra.mxu0 %v477
    %499 = vmatprep.subr.bf16.mxu0 0
    %500 = vmatpush1.bf16.msra.mxu0 %v478
    %501 = vmatprep.subr.bf16.mxu0 0
    %502 = vmatpush1.bf16.msra.mxu0 %v479
    %503 = vmatprep.subr.bf16.mxu0 0
    %504 = vmatpush1.bf16.msra.mxu0 %v480
    %505 = vmatprep.subr.bf16.mxu0 0
    %506 = vmatpush1.bf16.msra.mxu0 0
    %507 = vmatprep.subr.bf16.mxu0 0
    %508 = vmatpush1.bf16.msra.mxu0 0
    %509 = vmatprep.subr.bf16.mxu0 0
    %510 = vmatpush1.bf16.msra.mxu0 0
    %511 = vmatprep.subr.bf16.mxu0 0
    %512 = vmatpush1.bf16.msra.mxu0 0
    %513 = vmatprep.subr.bf16.mxu0 0
    %514 = vmatpush1.bf16.msra.mxu0 0
    %515 = vmatprep.subr.bf16.mxu0 0
    %516 = vmatpush1.bf16.msra.mxu0 0
    %517 = vmatprep.subr.bf16.mxu0 0
    %518 = vmatpush1.bf16.msra.mxu0 0
    %519 = vmatprep.subr.bf16.mxu0 0
    %520 = vmatpush1.bf16.msra.mxu0 0
    %521 = vmatprep.mubr.bf16.mxu0 0
    %522 = vmatmul.mubr.bf16.gmra.mrb[0].mxu0 %v430
    %v523 = vpop.f32.mrb[0].mxu0
    %v524 = vadd.f32 %v401, %v523
    %v525 = vpop.f32.mrb[0].mxu0
    %v526 = vpop.f32.mrb[0].mxu0
    %v527 = vadd.f32 %v404, %v526
    %v528 = vpop.f32.mrb[0].mxu0
    %529 = vmatprep.mubr.bf16.mxu0 0
    %530 = vmatmul.mubr.bf16.gmra.mrb[0].mxu0 %v438
    %v531 = vpop.f32.mrb[0].mxu0
    %v532 = vadd.f32 %v409, %v531
    %v533 = vpop.f32.mrb[0].mxu0
    %v534 = vpop.f32.mrb[0].mxu0
    %v535 = vpop.f32.mrb[0].mxu0
    %536 = vdwg.mxu0
    %vm537 = vcmask 1042434
    %vm538 = vmor %vm170, %vm537
    %vm539 = vcmask 1044484
    %vm540 = vmor %vm538, %vm539
    %vm541 = vcmask 1046534
    %vm542 = vmor %vm540, %vm541
    %v543 = vrot.slane %v189, 7
    %v544 = vrot.slane %v543, 2
    %v545 = vrot.slane %v197, 7
    %v546 = vsel %vm542, %v544, %v545
    %v547 = vrot.slane %v545, 2
    %v548 = vrot.slane %v196, 7
    %v549 = vsel %vm542, %v547, %v548
    %v550 = vrot.slane %v548, 2
    %v551 = vrot.slane %v214, 7
    %v552 = vsel %vm542, %v550, %v551
    %v553 = vrot.slane %v205, 7
    %v554 = vrot.slane %v553, 2
    %v555 = vrot.slane %v213, 7
    %v556 = vsel %vm542, %v554, %v555
    %v557 = vrot.slane %v555, 2
    %v558 = vrot.slane %v212, 7
    %v559 = vsel %vm542, %v557, %v558
    %v560 = vrot.slane %v558, 2
    %v561 = vrot.slane %v215, 7
    %v562 = vsel %vm542, %v560, %v561
    %v563 = vcombine.low %v546, %v549
    %v564 = vcombine.low %v552, %v556
    %v566 = vunpack.c.l.s4 1983009808
    %v567 = vunpack.c.0.s8 %v566
    %v568 = vlaneseq
    %v569 = vshrl.u32 %v568, 7
    %v570 = vsub.s32 %v567, %v569
    %v571 = vrot.slane %v563, %v570
    %v573 = vunpack.c.l.s4 1983009808
    %v574 = vunpack.c.0.s8 %v573
    %v575 = vlaneseq
    %v576 = vshrl.u32 %v575, 7
    %v577 = vsub.s32 %v574, %v576
    %v578 = vrot.slane %v564, %v577
    %v579 = vcombine.low %v571, %v578
    %v580 = vcombine.low %v559, %v562
    %v582 = vunpack.c.l.s4 1983009808
    %v583 = vunpack.c.0.s8 %v582
    %v584 = vlaneseq
    %v585 = vshrl.u32 %v584, 7
    %v586 = vsub.s32 %v583, %v585
    %v587 = vrot.slane %v580, %v586
    %v606 = vunpack.c.l.b16 %v134
    %v607 = vunpack.c.l.b16 %v135
    %v608 = vunpack.c.l.b16 %v136
    %v609 = vunpack.c.l.b16 %v137
    %v610 = vunpack.c.l.b16 %v138
    %v611 = vunpack.c.l.b16 %v139
    %v612 = vunpack.c.l.b16 %v140
    %v613 = vunpack.c.l.b16 %v141
    %v614 = vunpack.c.l.b16 %v142
    %v615 = vunpack.c.l.b16 %v143
    %v616 = vunpack.c.l.b16 %v144
    %v617 = vunpack.c.l.b16 %v145
    %v618 = vunpack.c.l.b16 %v146
    %v619 = vunpack.c.l.b16 %v147
    %v620 = vunpack.c.l.b16 %v148
    %v621 = vunpack.c.l.b16 %v149
    %v622 = vpack.c.b16 %v607, %v606
    %v623 = vpack.c.b16 %v609, %v608
    %v624 = vpack.c.b16 %v611, %v610
    %v625 = vpack.c.b16 %v613, %v612
    %v626 = vpack.c.b16 %v615, %v614
    %v627 = vpack.c.b16 %v617, %v616
    %v628 = vpack.c.b16 %v619, %v618
    %v629 = vpack.c.b16 %v621, %v620
    %638 = vmatprep.subr.bf16.mxu0 0
    %639 = vmatpush1.bf16.msra.mxu0 %v622
    %640 = vmatprep.subr.bf16.mxu0 0
    %641 = vmatpush1.bf16.msra.mxu0 %v623
    %642 = vmatprep.subr.bf16.mxu0 0
    %643 = vmatpush1.bf16.msra.mxu0 %v624
    %644 = vmatprep.subr.bf16.mxu0 0
    %645 = vmatpush1.bf16.msra.mxu0 %v625
    %646 = vmatprep.subr.bf16.mxu0 0
    %647 = vmatpush1.bf16.msra.mxu0 %v626
    %648 = vmatprep.subr.bf16.mxu0 0
    %649 = vmatpush1.bf16.msra.mxu0 %v627
    %650 = vmatprep.subr.bf16.mxu0 0
    %651 = vmatpush1.bf16.msra.mxu0 %v628
    %652 = vmatprep.subr.bf16.mxu0 0
    %653 = vmatpush1.bf16.msra.mxu0 %v629
    %654 = vmatprep.subr.bf16.mxu0 0
    %655 = vmatpush1.bf16.msra.mxu0 0
    %656 = vmatprep.subr.bf16.mxu0 0
    %657 = vmatpush1.bf16.msra.mxu0 0
    %658 = vmatprep.subr.bf16.mxu0 0
    %659 = vmatpush1.bf16.msra.mxu0 0
    %660 = vmatprep.subr.bf16.mxu0 0
    %661 = vmatpush1.bf16.msra.mxu0 0
    %662 = vmatprep.subr.bf16.mxu0 0
    %663 = vmatpush1.bf16.msra.mxu0 0
    %664 = vmatprep.subr.bf16.mxu0 0
    %665 = vmatpush1.bf16.msra.mxu0 0
    %666 = vmatprep.subr.bf16.mxu0 0
    %667 = vmatpush1.bf16.msra.mxu0 0
    %668 = vmatprep.subr.bf16.mxu0 0
    %669 = vmatpush1.bf16.msra.mxu0 0
    %670 = vmatprep.mubr.bf16.mxu0 0
    %671 = vmatmul.mubr.bf16.gmra.mrb[0].mxu0 %v579
    %v672 = vpop.f32.mrb[0].mxu0
    %v673 = vadd.f32 0.0, %v672
    %v674 = vpop.f32.mrb[0].mxu0
    %v675 = vpop.f32.mrb[0].mxu0
    %v676 = vadd.f32 0.0, %v675
    %v677 = vpop.f32.mrb[0].mxu0
    %678 = vmatprep.mubr.bf16.mxu0 0
    %679 = vmatmul.mubr.bf16.gmra.mrb[0].mxu0 %v587
    %v680 = vpop.f32.mrb[0].mxu0
    %v681 = vadd.f32 0.0, %v680
    %v682 = vpop.f32.mrb[0].mxu0
    %v683 = vpop.f32.mrb[0].mxu0
    %v684 = vpop.f32.mrb[0].mxu0
    %685 = vdwg.mxu0
    %v686 = vadd.f32 %v524, %v673
    %v687 = vadd.f32 %v527, %v676
    %v688 = vadd.f32 %v532, %v681
    %v689 = vadd.f32 %v686, %v687
    %v690 = vadd.f32 %v689, %v688
    %v691 = vrot.slane %v690, 4
    %v692 = vadd.f32 %v690, %v691
    %v693 = vrot.slane %v692, 2
    %v694 = vadd.f32 %v692, %v693
    %v695 = vrot.slane %v694, 1
    %v696 = vadd.f32 %v694, %v695
    %v697 = vrcp.pop 24.0
    %v698 = vmul.f32 %v696, %v697
    %v699 = vsub.f32 %v686, %v698
    %v700 = vsub.f32 %v687, %v698
    %v701 = vsub.f32 %v688, %v698
    %v702 = vmul.f32 %v699, %v699
    %v703 = vmul.f32 %v700, %v700
    %v704 = vmul.f32 %v701, %v701
    %v705 = vadd.f32 %v702, %v703
    %v706 = vadd.f32 %v705, %v704
    %v707 = vrot.slane %v706, 4
    %v708 = vadd.f32 %v706, %v707
    %v709 = vrot.slane %v708, 2
    %v710 = vadd.f32 %v708, %v709
    %v711 = vrot.slane %v710, 1
    %v712 = vadd.f32 %v710, %v711
    %v713 = vmul.f32 %v712, %v697
    %v714 = vadd.f32 %v713, 1e-05
    %v715 = vrsqrt.pop %v714
    %v716 = vmul.f32 %v150, %v715
    %v718 = vlaneseq
    %v719 = vshrl.u32 %v718, 7
    %v720 = vsub.s32 0, %v719
    %v721 = vrot.slane %v716, %v720
    %v723 = vmul.f32 %v699, %v721
    %v724 = vmul.f32 %v700, %v721
    %v725 = vmul.f32 %v701, %v721
    %v727 = vlaneseq
    %v728 = vshrl.u32 %v727, 7
    %v729 = vsub.s32 0, %v728
    %v730 = vrot.slane %v151, %v729
    %v732 = vadd.f32 %v723, %v730
    %v733 = vadd.f32 %v724, %v730
    %v734 = vadd.f32 %v725, %v730
    %v738 = vcombine.high %v732, %v732
    %v739 = vcombine.high %v733, %v733
    %v740 = vcombine.high %v734, %v734
    %v744 = vmax.f32 %v732, 0.0
    %v745 = vmax.f32 %v738, 0.0
    %v746 = vmax.f32 %v733, 0.0
    %v747 = vmax.f32 %v739, 0.0
    %v748 = vmax.f32 %v734, 0.0
    %v749 = vmax.f32 %v740, 0.0
    %v750 = vld [vmem:[#allocation7] sm:$0xf]
    %v751 = vld [vmem:[#allocation7 + $0x4] sm:$0xf]
    %v752 = vld [vmem:[#allocation7 + $0x8] sm:$0xf]
    %v753 = vld [vmem:[#allocation7 + $0xc] sm:$0xf]
    %v754 = vld [vmem:[#allocation7 + $0x10] sm:$0xf]
    %v755 = vld [vmem:[#allocation7 + $0x14] sm:$0xf]
    %v756 = vld [vmem:[#allocation7 + $0x18] sm:$0xf]
    %v757 = vld [vmem:[#allocation7 + $0x1c] sm:$0xf]
    %v758 = vld [vmem:[#allocation7 + $0x20] sm:$0xf]
    %v759 = vld [vmem:[#allocation7 + $0x24] sm:$0xf]
    %v760 = vld [vmem:[#allocation7 + $0x28] sm:$0xf]
    %v761 = vld [vmem:[#allocation7 + $0x2c] sm:$0xf]
    %v762 = vld [vmem:[#allocation7 + $0x30] sm:$0xf]
    %v763 = vld [vmem:[#allocation7 + $0x34] sm:$0xf]
    %v764 = vld [vmem:[#allocation7 + $0x38] sm:$0xf]
    %v765 = vld [vmem:[#allocation7 + $0x3c] sm:$0xf]
    %v766 = vld [vmem:[#allocation7 + $0x40] sm:$0xf]
    %v767 = vld [vmem:[#allocation7 + $0x44] sm:$0xf]
    %v768 = vld [vmem:[#allocation7 + $0x48] sm:$0xf]
    %v769 = vld [vmem:[#allocation7 + $0x4c] sm:$0xf]
    %v770 = vld [vmem:[#allocation7 + $0x50] sm:$0xf]
    %v771 = vld [vmem:[#allocation7 + $0x54] sm:$0xf]
    %v772 = vld [vmem:[#allocation7 + $0x58] sm:$0xf]
    %v773 = vld [vmem:[#allocation7 + $0x5c] sm:$0xf]
    %v774 = vld [vmem:[#allocation7 + $0x60] sm:$0xf]
    %v775 = vld [vmem:[#allocation7 + $0x64] sm:$0xf]
    %v776 = vld [vmem:[#allocation7 + $0x68] sm:$0xf]
    %v777 = vld [vmem:[#allocation7 + $0x6c] sm:$0xf]
    %v778 = vld [vmem:[#allocation7 + $0x70] sm:$0xf]
    %v779 = vld [vmem:[#allocation7 + $0x74] sm:$0xf]
    %v780 = vld [vmem:[#allocation7 + $0x78] sm:$0xf]
    %v781 = vld [vmem:[#allocation7 + $0x7c] sm:$0xf]
    %v782 = vld [vmem:[#allocation7 + $0x80] sm:$0xf]
    %v783 = vld [vmem:[#allocation7 + $0x84] sm:$0xf]
    %v784 = vld [vmem:[#allocation7 + $0x88] sm:$0xf]
    %v785 = vld [vmem:[#allocation7 + $0x8c] sm:$0xf]
    %v786 = vld [vmem:[#allocation7 + $0x90] sm:$0xf]
    %v787 = vld [vmem:[#allocation7 + $0x94] sm:$0xf]
    %v788 = vld [vmem:[#allocation7 + $0x98] sm:$0xf]
    %v789 = vld [vmem:[#allocation7 + $0x9c] sm:$0xf]
    %v790 = vld [vmem:[#allocation7 + $0xa0] sm:$0xf]
    %v791 = vld [vmem:[#allocation7 + $0xa4] sm:$0xf]
    %v792 = vld [vmem:[#allocation7 + $0xa8] sm:$0xf]
    %v793 = vld [vmem:[#allocation7 + $0xac] sm:$0xf]
    %v794 = vld [vmem:[#allocation7 + $0xb0] sm:$0xf]
    %v795 = vld [vmem:[#allocation7 + $0xb4] sm:$0xf]
    %v796 = vld [vmem:[#allocation7 + $0xb8] sm:$0xf]
    %v797 = vld [vmem:[#allocation7 + $0xbc] sm:$0xf]
    %v798 = vld [vmem:[%s7] sm:$0x1]
    %v799 = vld [vmem:[%s8] sm:$0x1]
    %v804 = vcombine.low %v744, %v745
    %v805 = vcombine.low %v747, %v748
    %v808 = vpack.c.bf16 %v746, %v804
    %v809 = vpack.c.bf16 %v749, %v805
    %v811 = vshrl.u32 %v808, 16
    %v813 = vrot.slane %v811, 7
    %v814 = vshll.u32 %v808, 16
    %v816 = vor.u32 %v813, %v814
    %v818 = vshrl.u32 %v809, 16
    %v820 = vrot.slane %v818, 7
    %v821 = vshll.u32 %v809, 16
    %v823 = vor.u32 %v820, %v821
    %v826 = vsel %vm172, 0, %v816
    %v827 = vsel %vm172, 0, %v823
    %v828 = vsel %vm177, %v826, 0
    %v829 = vsel %vm177, %v827, 0
    %v832 = vcombine.high %v828, %v828
    %v834 = vunpack.c.l.s4 1983009808
    %v835 = vunpack.c.0.s8 %v834
    %v836 = vlaneseq
    %v837 = vshrl.u32 %v836, 7
    %v838 = vsub.s32 %v835, %v837
    %v839 = vrot.slane %v828, %v838
    %v841 = vunpack.c.l.s4 1983009808
    %v842 = vunpack.c.0.s8 %v841
    %v843 = vlaneseq
    %v844 = vshrl.u32 %v843, 7
    %v845 = vsub.s32 %v842, %v844
    %v846 = vrot.slane %v832, %v845
    %v847 = vcombine.high %v839, %v839
    %v848 = vcombine.high %v829, %v829
    %v850 = vunpack.c.l.s4 1983009808
    %v851 = vunpack.c.0.s8 %v850
    %v852 = vlaneseq
    %v853 = vshrl.u32 %v852, 7
    %v854 = vsub.s32 %v851, %v853
    %v855 = vrot.slane %v829, %v854
    %v857 = vunpack.c.l.s4 1983009808
    %v858 = vunpack.c.0.s8 %v857
    %v859 = vlaneseq
    %v860 = vshrl.u32 %v859, 7
    %v861 = vsub.s32 %v858, %v860
    %v862 = vrot.slane %v848, %v861
    %v863 = vcombine.high %v855, %v855
    %v864 = vcombine.high %v846, %v846
    %v865 = vcombine.high %v862, %v862
    %v867 = vshrl.u32 %v839, 16
    %v869 = vrot.slane %v867, 6
    %v870 = vshll.u32 %v839, 16
    %v872 = vrot.slane %v870, 7
    %v873 = vor.u32 %v869, %v872
    %v874 = vrot.slane %v873, 2
    %v876 = vshll.u32 %v847, 16
    %v878 = vrot.slane %v876, 7
    %v879 = vsel %vm222, %v874, %v878
    %v880 = vshrl.u32 %v847, 16
    %v882 = vrot.slane %v880, 6
    %v883 = vor.u32 %v882, %v878
    %v884 = vrot.slane %v883, 2
    %v886 = vshll.u32 %v846, 16
    %v888 = vrot.slane %v886, 7
    %v889 = vsel %vm222, %v884, %v888
    %v890 = vshrl.u32 %v846, 16
    %v892 = vrot.slane %v890, 6
    %v893 = vor.u32 %v892, %v888
    %v894 = vrot.slane %v893, 2
    %v896 = vshll.u32 %v864, 16
    %v898 = vrot.slane %v896, 7
    %v899 = vsel %vm222, %v894, %v898
    %v901 = vshrl.u32 %v855, 16
    %v903 = vrot.slane %v901, 6
    %v904 = vshll.u32 %v855, 16
    %v906 = vrot.slane %v904, 7
    %v907 = vor.u32 %v903, %v906
    %v908 = vrot.slane %v907, 2
    %v910 = vshll.u32 %v863, 16
    %v912 = vrot.slane %v910, 7
    %v913 = vsel %vm222, %v908, %v912
    %v914 = vshrl.u32 %v863, 16
    %v916 = vrot.slane %v914, 6
    %v917 = vor.u32 %v916, %v912
    %v918 = vrot.slane %v917, 2
    %v920 = vshll.u32 %v862, 16
    %v922 = vrot.slane %v920, 7
    %v923 = vsel %vm222, %v918, %v922
    %v924 = vshrl.u32 %v862, 16
    %v926 = vrot.slane %v924, 6
    %v927 = vor.u32 %v926, %v922
    %v928 = vrot.slane %v927, 2
    %v930 = vshll.u32 %v865, 16
    %v932 = vrot.slane %v930, 7
    %v933 = vsel %vm222, %v928, %v932
    %v934 = vcombine.low %v879, %v889
    %v935 = vcombine.low %v899, %v913
    %v937 = vunpack.c.l.s4 1983009808
    %v938 = vunpack.c.0.s8 %v937
    %v939 = vlaneseq
    %v940 = vshrl.u32 %v939, 7
    %v941 = vsub.s32 %v938, %v940
    %v942 = vrot.slane %v934, %v941
    %v944 = vunpack.c.l.s4 1983009808
    %v945 = vunpack.c.0.s8 %v944
    %v946 = vlaneseq
    %v947 = vshrl.u32 %v946, 7
    %v948 = vsub.s32 %v945, %v947
    %v949 = vrot.slane %v935, %v948
    %v950 = vcombine.low %v942, %v949
    %v951 = vcombine.low %v923, %v933
    %v953 = vunpack.c.l.s4 1983009808
    %v954 = vunpack.c.0.s8 %v953
    %v955 = vlaneseq
    %v956 = vshrl.u32 %v955, 7
    %v957 = vsub.s32 %v954, %v956
    %v958 = vrot.slane %v951, %v957
    %v977 = vunpack.c.l.b16 %v766
    %v978 = vunpack.c.l.b16 %v767
    %v979 = vunpack.c.l.b16 %v768
    %v980 = vunpack.c.l.b16 %v769
    %v981 = vunpack.c.l.b16 %v770
    %v982 = vunpack.c.l.b16 %v771
    %v983 = vunpack.c.l.b16 %v772
    %v984 = vunpack.c.l.b16 %v773
    %v985 = vunpack.c.l.b16 %v774
    %v986 = vunpack.c.l.b16 %v775
    %v987 = vunpack.c.l.b16 %v776
    %v988 = vunpack.c.l.b16 %v777
    %v989 = vunpack.c.l.b16 %v778
    %v990 = vunpack.c.l.b16 %v779
    %v991 = vunpack.c.l.b16 %v780
    %v992 = vunpack.c.l.b16 %v781
    %v993 = vpack.c.b16 %v978, %v977
    %v994 = vpack.c.b16 %v980, %v979
    %v995 = vpack.c.b16 %v982, %v981
    %v996 = vpack.c.b16 %v984, %v983
    %v997 = vpack.c.b16 %v986, %v985
    %v998 = vpack.c.b16 %v988, %v987
    %v999 = vpack.c.b16 %v990, %v989
    %v1000 = vpack.c.b16 %v992, %v991
    %1009 = vmatprep.subr.bf16.mxu0 0
    %1010 = vmatpush1.bf16.msra.mxu0 %v993
    %1011 = vmatprep.subr.bf16.mxu0 0
    %1012 = vmatpush1.bf16.msra.mxu0 %v994
    %1013 = vmatprep.subr.bf16.mxu0 0
    %1014 = vmatpush1.bf16.msra.mxu0 %v995
    %1015 = vmatprep.subr.bf16.mxu0 0
    %1016 = vmatpush1.bf16.msra.mxu0 %v996
    %1017 = vmatprep.subr.bf16.mxu0 0
    %1018 = vmatpush1.bf16.msra.mxu0 %v997
    %1019 = vmatprep.subr.bf16.mxu0 0
    %1020 = vmatpush1.bf16.msra.mxu0 %v998
    %1021 = vmatprep.subr.bf16.mxu0 0
    %1022 = vmatpush1.bf16.msra.mxu0 %v999
    %1023 = vmatprep.subr.bf16.mxu0 0
    %1024 = vmatpush1.bf16.msra.mxu0 %v1000
    %1025 = vmatprep.subr.bf16.mxu0 0
    %1026 = vmatpush1.bf16.msra.mxu0 0
    %1027 = vmatprep.subr.bf16.mxu0 0
    %1028 = vmatpush1.bf16.msra.mxu0 0
    %1029 = vmatprep.subr.bf16.mxu0 0
    %1030 = vmatpush1.bf16.msra.mxu0 0
    %1031 = vmatprep.subr.bf16.mxu0 0
    %1032 = vmatpush1.bf16.msra.mxu0 0
    %1033 = vmatprep.subr.bf16.mxu0 0
    %1034 = vmatpush1.bf16.msra.mxu0 0
    %1035 = vmatprep.subr.bf16.mxu0 0
    %1036 = vmatpush1.bf16.msra.mxu0 0
    %1037 = vmatprep.subr.bf16.mxu0 0
    %1038 = vmatpush1.bf16.msra.mxu0 0
    %1039 = vmatprep.subr.bf16.mxu0 0
    %1040 = vmatpush1.bf16.msra.mxu0 0
    %1041 = vmatprep.mubr.bf16.mxu0 0
    %1042 = vmatmul.mubr.bf16.gmra.mrb[0].mxu0 %v950
    %v1043 = vpop.f32.mrb[0].mxu0
    %v1044 = vadd.f32 0.0, %v1043
    %v1045 = vpop.f32.mrb[0].mxu0
    %v1046 = vpop.f32.mrb[0].mxu0
    %v1047 = vadd.f32 0.0, %v1046
    %v1048 = vpop.f32.mrb[0].mxu0
    %1049 = vmatprep.mubr.bf16.mxu0 0
    %1050 = vmatmul.mubr.bf16.gmra.mrb[0].mxu0 %v958
    %v1051 = vpop.f32.mrb[0].mxu0
    %v1052 = vadd.f32 0.0, %v1051
    %v1053 = vpop.f32.mrb[0].mxu0
    %v1054 = vpop.f32.mrb[0].mxu0
    %v1055 = vpop.f32.mrb[0].mxu0
    %1056 = vdwg.mxu0
    %v1057 = vcombine.low %v839, %v847
    %v1058 = vcombine.low %v846, %v855
    %v1060 = vunpack.c.l.s4 1983009808
    %v1061 = vunpack.c.0.s8 %v1060
    %v1062 = vlaneseq
    %v1063 = vshrl.u32 %v1062, 7
    %v1064 = vsub.s32 %v1061, %v1063
    %v1065 = vrot.slane %v1057, %v1064
    %v1067 = vunpack.c.l.s4 1983009808
    %v1068 = vunpack.c.0.s8 %v1067
    %v1069 = vlaneseq
    %v1070 = vshrl.u32 %v1069, 7
    %v1071 = vsub.s32 %v1068, %v1070
    %v1072 = vrot.slane %v1058, %v1071
    %v1073 = vcombine.low %v1065, %v1072
    %v1074 = vcombine.low %v863, %v862
    %v1076 = vunpack.c.l.s4 1983009808
    %v1077 = vunpack.c.0.s8 %v1076
    %v1078 = vlaneseq
    %v1079 = vshrl.u32 %v1078, 7
    %v1080 = vsub.s32 %v1077, %v1079
    %v1081 = vrot.slane %v1074, %v1080
    %v1100 = vunpack.c.l.b16 %v750
    %v1101 = vunpack.c.l.b16 %v751
    %v1102 = vunpack.c.l.b16 %v752
    %v1103 = vunpack.c.l.b16 %v753
    %v1104 = vunpack.c.l.b16 %v754
    %v1105 = vunpack.c.l.b16 %v755
    %v1106 = vunpack.c.l.b16 %v756
    %v1107 = vunpack.c.l.b16 %v757
    %v1108 = vunpack.c.l.b16 %v758
    %v1109 = vunpack.c.l.b16 %v759
    %v1110 = vunpack.c.l.b16 %v760
    %v1111 = vunpack.c.l.b16 %v761
    %v1112 = vunpack.c.l.b16 %v762
    %v1113 = vunpack.c.l.b16 %v763
    %v1114 = vunpack.c.l.b16 %v764
    %v1115 = vunpack.c.l.b16 %v765
    %v1116 = vpack.c.b16 %v1101, %v1100
    %v1117 = vpack.c.b16 %v1103, %v1102
    %v1118 = vpack.c.b16 %v1105, %v1104
    %v1119 = vpack.c.b16 %v1107, %v1106
    %v1120 = vpack.c.b16 %v1109, %v1108
    %v1121 = vpack.c.b16 %v1111, %v1110
    %v1122 = vpack.c.b16 %v1113, %v1112
    %v1123 = vpack.c.b16 %v1115, %v1114
    %1132 = vmatprep.subr.bf16.mxu0 0
    %1133 = vmatpush1.bf16.msra.mxu0 %v1116
    %1134 = vmatprep.subr.bf16.mxu0 0
    %1135 = vmatpush1.bf16.msra.mxu0 %v1117
    %1136 = vmatprep.subr.bf16.mxu0 0
    %1137 = vmatpush1.bf16.msra.mxu0 %v1118
    %1138 = vmatprep.subr.bf16.mxu0 0
    %1139 = vmatpush1.bf16.msra.mxu0 %v1119
    %1140 = vmatprep.subr.bf16.mxu0 0
    %1141 = vmatpush1.bf16.msra.mxu0 %v1120
    %1142 = vmatprep.subr.bf16.mxu0 0
    %1143 = vmatpush1.bf16.msra.mxu0 %v1121
    %1144 = vmatprep.subr.bf16.mxu0 0
    %1145 = vmatpush1.bf16.msra.mxu0 %v1122
    %1146 = vmatprep.subr.bf16.mxu0 0
    %1147 = vmatpush1.bf16.msra.mxu0 %v1123
    %1148 = vmatprep.subr.bf16.mxu0 0
    %1149 = vmatpush1.bf16.msra.mxu0 0
    %1150 = vmatprep.subr.bf16.mxu0 0
    %1151 = vmatpush1.bf16.msra.mxu0 0
    %1152 = vmatprep.subr.bf16.mxu0 0
    %1153 = vmatpush1.bf16.msra.mxu0 0
    %1154 = vmatprep.subr.bf16.mxu0 0
    %1155 = vmatpush1.bf16.msra.mxu0 0
    %1156 = vmatprep.subr.bf16.mxu0 0
    %1157 = vmatpush1.bf16.msra.mxu0 0
    %1158 = vmatprep.subr.bf16.mxu0 0
    %1159 = vmatpush1.bf16.msra.mxu0 0
    %1160 = vmatprep.subr.bf16.mxu0 0
    %1161 = vmatpush1.bf16.msra.mxu0 0
    %1162 = vmatprep.subr.bf16.mxu0 0
    %1163 = vmatpush1.bf16.msra.mxu0 0
    %1164 = vmatprep.mubr.bf16.mxu0 0
    %1165 = vmatmul.mubr.bf16.gmra.mrb[0].mxu0 %v1073
    %v1166 = vpop.f32.mrb[0].mxu0
    %v1167 = vadd.f32 %v1044, %v1166
    %v1168 = vpop.f32.mrb[0].mxu0
    %v1169 = vpop.f32.mrb[0].mxu0
    %v1170 = vadd.f32 %v1047, %v1169
    %v1171 = vpop.f32.mrb[0].mxu0
    %1172 = vmatprep.mubr.bf16.mxu0 0
    %1173 = vmatmul.mubr.bf16.gmra.mrb[0].mxu0 %v1081
    %v1174 = vpop.f32.mrb[0].mxu0
    %v1175 = vadd.f32 %v1052, %v1174
    %v1176 = vpop.f32.mrb[0].mxu0
    %v1177 = vpop.f32.mrb[0].mxu0
    %v1178 = vpop.f32.mrb[0].mxu0
    %1179 = vdwg.mxu0
    %v1180 = vrot.slane %v839, 7
    %v1181 = vrot.slane %v1180, 2
    %v1182 = vrot.slane %v847, 7
    %v1183 = vsel %vm542, %v1181, %v1182
    %v1184 = vrot.slane %v1182, 2
    %v1185 = vrot.slane %v846, 7
    %v1186 = vsel %vm542, %v1184, %v1185
    %v1187 = vrot.slane %v1185, 2
    %v1188 = vrot.slane %v864, 7
    %v1189 = vsel %vm542, %v1187, %v1188
    %v1190 = vrot.slane %v855, 7
    %v1191 = vrot.slane %v1190, 2
    %v1192 = vrot.slane %v863, 7
    %v1193 = vsel %vm542, %v1191, %v1192
    %v1194 = vrot.slane %v1192, 2
    %v1195 = vrot.slane %v862, 7
    %v1196 = vsel %vm542, %v1194, %v1195
    %v1197 = vrot.slane %v1195, 2
    %v1198 = vrot.slane %v865, 7
    %v1199 = vsel %vm542, %v1197, %v1198
    %v1200 = vcombine.low %v1183, %v1186
    %v1201 = vcombine.low %v1189, %v1193
    %v1203 = vunpack.c.l.s4 1983009808
    %v1204 = vunpack.c.0.s8 %v1203
    %v1205 = vlaneseq
    %v1206 = vshrl.u32 %v1205, 7
    %v1207 = vsub.s32 %v1204, %v1206
    %v1208 = vrot.slane %v1200, %v1207
    %v1210 = vunpack.c.l.s4 1983009808
    %v1211 = vunpack.c.0.s8 %v1210
    %v1212 = vlaneseq
    %v1213 = vshrl.u32 %v1212, 7
    %v1214 = vsub.s32 %v1211, %v1213
    %v1215 = vrot.slane %v1201, %v1214
    %v1216 = vcombine.low %v1208, %v1215
    %v1217 = vcombine.low %v1196, %v1199
    %v1219 = vunpack.c.l.s4 1983009808
    %v1220 = vunpack.c.0.s8 %v1219
    %v1221 = vlaneseq
    %v1222 = vshrl.u32 %v1221, 7
    %v1223 = vsub.s32 %v1220, %v1222
    %v1224 = vrot.slane %v1217, %v1223
    %v1243 = vunpack.c.l.b16 %v782
    %v1244 = vunpack.c.l.b16 %v783
    %v1245 = vunpack.c.l.b16 %v784
    %v1246 = vunpack.c.l.b16 %v785
    %v1247 = vunpack.c.l.b16 %v786
    %v1248 = vunpack.c.l.b16 %v787
    %v1249 = vunpack.c.l.b16 %v788
    %v1250 = vunpack.c.l.b16 %v789
    %v1251 = vunpack.c.l.b16 %v790
    %v1252 = vunpack.c.l.b16 %v791
    %v1253 = vunpack.c.l.b16 %v792
    %v1254 = vunpack.c.l.b16 %v793
    %v1255 = vunpack.c.l.b16 %v794
    %v1256 = vunpack.c.l.b16 %v795
    %v1257 = vunpack.c.l.b16 %v796
    %v1258 = vunpack.c.l.b16 %v797
    %v1259 = vpack.c.b16 %v1244, %v1243
    %v1260 = vpack.c.b16 %v1246, %v1245
    %v1261 = vpack.c.b16 %v1248, %v1247
    %v1262 = vpack.c.b16 %v1250, %v1249
    %v1263 = vpack.c.b16 %v1252, %v1251
    %v1264 = vpack.c.b16 %v1254, %v1253
    %v1265 = vpack.c.b16 %v1256, %v1255
    %v1266 = vpack.c.b16 %v1258, %v1257
    %1275 = vmatprep.subr.bf16.mxu0 0
    %1276 = vmatpush1.bf16.msra.mxu0 %v1259
    %1277 = vmatprep.subr.bf16.mxu0 0
    %1278 = vmatpush1.bf16.msra.mxu0 %v1260
    %1279 = vmatprep.subr.bf16.mxu0 0
    %1280 = vmatpush1.bf16.msra.mxu0 %v1261
    %1281 = vmatprep.subr.bf16.mxu0 0
    %1282 = vmatpush1.bf16.msra.mxu0 %v1262
    %1283 = vmatprep.subr.bf16.mxu0 0
    %1284 = vmatpush1.bf16.msra.mxu0 %v1263
    %1285 = vmatprep.subr.bf16.mxu0 0
    %1286 = vmatpush1.bf16.msra.mxu0 %v1264
    %1287 = vmatprep.subr.bf16.mxu0 0
    %1288 = vmatpush1.bf16.msra.mxu0 %v1265
    %1289 = vmatprep.subr.bf16.mxu0 0
    %1290 = vmatpush1.bf16.msra.mxu0 %v1266
    %1291 = vmatprep.subr.bf16.mxu0 0
    %1292 = vmatpush1.bf16.msra.mxu0 0
    %1293 = vmatprep.subr.bf16.mxu0 0
    %1294 = vmatpush1.bf16.msra.mxu0 0
    %1295 = vmatprep.subr.bf16.mxu0 0
    %1296 = vmatpush1.bf16.msra.mxu0 0
    %1297 = vmatprep.subr.bf16.mxu0 0
    %1298 = vmatpush1.bf16.msra.mxu0 0
    %1299 = vmatprep.subr.bf16.mxu0 0
    %1300 = vmatpush1.bf16.msra.mxu0 0
    %1301 = vmatprep.subr.bf16.mxu0 0
    %1302 = vmatpush1.bf16.msra.mxu0 0
    %1303 = vmatprep.subr.bf16.mxu0 0
    %1304 = vmatpush1.bf16.msra.mxu0 0
    %1305 = vmatprep.subr.bf16.mxu0 0
    %1306 = vmatpush1.bf16.msra.mxu0 0
    %1307 = vmatprep.mubr.bf16.mxu0 0
    %1308 = vmatmul.mubr.bf16.gmra.mrb[0].mxu0 %v1216
    %v1309 = vpop.f32.mrb[0].mxu0
    %v1310 = vadd.f32 0.0, %v1309
    %v1311 = vpop.f32.mrb[0].mxu0
    %v1312 = vpop.f32.mrb[0].mxu0
    %v1313 = vadd.f32 0.0, %v1312
    %v1314 = vpop.f32.mrb[0].mxu0
    %1315 = vmatprep.mubr.bf16.mxu0 0
    %1316 = vmatmul.mubr.bf16.gmra.mrb[0].mxu0 %v1224
    %v1317 = vpop.f32.mrb[0].mxu0
    %v1318 = vadd.f32 0.0, %v1317
    %v1319 = vpop.f32.mrb[0].mxu0
    %v1320 = vpop.f32.mrb[0].mxu0
    %v1321 = vpop.f32.mrb[0].mxu0
    %1322 = vdwg.mxu0
    %v1323 = vadd.f32 %v1167, %v1310
    %v1324 = vadd.f32 %v1170, %v1313
    %v1325 = vadd.f32 %v1175, %v1318
    %v1326 = vadd.f32 %v1323, %v1324
    %v1327 = vadd.f32 %v1326, %v1325
    %v1328 = vrot.slane %v1327, 4
    %v1329 = vadd.f32 %v1327, %v1328
    %v1330 = vrot.slane %v1329, 2
    %v1331 = vadd.f32 %v1329, %v1330
    %v1332 = vrot.slane %v1331, 1
    %v1333 = vadd.f32 %v1331, %v1332
    %v1334 = vmul.f32 %v1333, %v697
    %v1335 = vsub.f32 %v1323, %v1334
    %v1336 = vsub.f32 %v1324, %v1334
    %v1337 = vsub.f32 %v1325, %v1334
    %v1338 = vmul.f32 %v1335, %v1335
    %v1339 = vmul.f32 %v1336, %v1336
    %v1340 = vmul.f32 %v1337, %v1337
    %v1341 = vadd.f32 %v1338, %v1339
    %v1342 = vadd.f32 %v1341, %v1340
    %v1343 = vrot.slane %v1342, 4
    %v1344 = vadd.f32 %v1342, %v1343
    %v1345 = vrot.slane %v1344, 2
    %v1346 = vadd.f32 %v1344, %v1345
    %v1347 = vrot.slane %v1346, 1
    %v1348 = vadd.f32 %v1346, %v1347
    %v1349 = vmul.f32 %v1348, %v697
    %v1350 = vadd.f32 %v1349, 1e-05
    %v1351 = vrsqrt.pop %v1350
    %v1352 = vmul.f32 %v798, %v1351
    %v1354 = vlaneseq
    %v1355 = vshrl.u32 %v1354, 7
    %v1356 = vsub.s32 0, %v1355
    %v1357 = vrot.slane %v1352, %v1356
    %v1359 = vmul.f32 %v1335, %v1357
    %v1360 = vmul.f32 %v1336, %v1357
    %v1361 = vmul.f32 %v1337, %v1357
    %v1363 = vlaneseq
    %v1364 = vshrl.u32 %v1363, 7
    %v1365 = vsub.s32 0, %v1364
    %v1366 = vrot.slane %v799, %v1365
    %v1368 = vadd.f32 %v1359, %v1366
    %v1369 = vadd.f32 %v1360, %v1366
    %v1370 = vadd.f32 %v1361, %v1366
    %v1374 = vcombine.high %v1368, %v1368
    %v1375 = vcombine.high %v1369, %v1369
    %v1376 = vcombine.high %v1370, %v1370
    %v1380 = vmax.f32 %v1368, 0.0
    %v1381 = vmax.f32 %v1374, 0.0
    %v1382 = vmax.f32 %v1369, 0.0
    %v1383 = vmax.f32 %v1375, 0.0
    %v1384 = vmax.f32 %v1370, 0.0
    %v1385 = vmax.f32 %v1376, 0.0
    %s1386 = scalar_lea.vmem [#allocation7], 192
    %v1387 = vld [vmem:[%s1386] sm:$0xf]
    %v1388 = vld [vmem:[%s1386 + $0x4] sm:$0xf]
    %v1389 = vld [vmem:[%s1386 + $0x8] sm:$0xf]
    %v1390 = vld [vmem:[%s1386 + $0xc] sm:$0xf]
    %v1391 = vld [vmem:[%s1386 + $0x10] sm:$0xf]
    %v1392 = vld [vmem:[%s1386 + $0x14] sm:$0xf]
    %v1393 = vld [vmem:[%s1386 + $0x18] sm:$0xf]
    %v1394 = vld [vmem:[%s1386 + $0x1c] sm:$0xf]
    %v1395 = vld [vmem:[%s1386 + $0x20] sm:$0xf]
    %v1396 = vld [vmem:[%s1386 + $0x24] sm:$0xf]
    %v1397 = vld [vmem:[%s1386 + $0x28] sm:$0xf]
    %v1398 = vld [vmem:[%s1386 + $0x2c] sm:$0xf]
    %v1399 = vld [vmem:[%s1386 + $0x30] sm:$0xf]
    %v1400 = vld [vmem:[%s1386 + $0x34] sm:$0xf]
    %v1401 = vld [vmem:[%s1386 + $0x38] sm:$0xf]
    %v1402 = vld [vmem:[%s1386 + $0x3c] sm:$0xf]
    %v1403 = vld [vmem:[%s1386 + $0x40] sm:$0xf]
    %v1404 = vld [vmem:[%s1386 + $0x44] sm:$0xf]
    %v1405 = vld [vmem:[%s1386 + $0x48] sm:$0xf]
    %v1406 = vld [vmem:[%s1386 + $0x4c] sm:$0xf]
    %v1407 = vld [vmem:[%s1386 + $0x50] sm:$0xf]
    %v1408 = vld [vmem:[%s1386 + $0x54] sm:$0xf]
    %v1409 = vld [vmem:[%s1386 + $0x58] sm:$0xf]
    %v1410 = vld [vmem:[%s1386 + $0x5c] sm:$0xf]
    %v1411 = vld [vmem:[%s1386 + $0x60] sm:$0xf]
    %v1412 = vld [vmem:[%s1386 + $0x64] sm:$0xf]
    %v1413 = vld [vmem:[%s1386 + $0x68] sm:$0xf]
    %v1414 = vld [vmem:[%s1386 + $0x6c] sm:$0xf]
    %v1415 = vld [vmem:[%s1386 + $0x70] sm:$0xf]
    %v1416 = vld [vmem:[%s1386 + $0x74] sm:$0xf]
    %v1417 = vld [vmem:[%s1386 + $0x78] sm:$0xf]
    %v1418 = vld [vmem:[%s1386 + $0x7c] sm:$0xf]
    %v1419 = vld [vmem:[%s1386 + $0x80] sm:$0xf]
    %v1420 = vld [vmem:[%s1386 + $0x84] sm:$0xf]
    %v1421 = vld [vmem:[%s1386 + $0x88] sm:$0xf]
    %v1422 = vld [vmem:[%s1386 + $0x8c] sm:$0xf]
    %v1423 = vld [vmem:[%s1386 + $0x90] sm:$0xf]
    %v1424 = vld [vmem:[%s1386 + $0x94] sm:$0xf]
    %v1425 = vld [vmem:[%s1386 + $0x98] sm:$0xf]
    %v1426 = vld [vmem:[%s1386 + $0x9c] sm:$0xf]
    %v1427 = vld [vmem:[%s1386 + $0xa0] sm:$0xf]
    %v1428 = vld [vmem:[%s1386 + $0xa4] sm:$0xf]
    %v1429 = vld [vmem:[%s1386 + $0xa8] sm:$0xf]
    %v1430 = vld [vmem:[%s1386 + $0xac] sm:$0xf]
    %v1431 = vld [vmem:[%s1386 + $0xb0] sm:$0xf]
    %v1432 = vld [vmem:[%s1386 + $0xb4] sm:$0xf]
    %v1433 = vld [vmem:[%s1386 + $0xb8] sm:$0xf]
    %v1434 = vld [vmem:[%s1386 + $0xbc] sm:$0xf]
    %s1435 = scalar_lea.vmem %s7, 1
    %v1436 = vld [vmem:[%s1435] sm:$0x1]
    %s1437 = scalar_lea.vmem %s8, 1
    %v1438 = vld [vmem:[%s1437] sm:$0x1]
    %v1443 = vcombine.low %v1380, %v1381
    %v1444 = vcombine.low %v1383, %v1384
    %v1447 = vpack.c.bf16 %v1382, %v1443
    %v1448 = vpack.c.bf16 %v1385, %v1444
    %v1450 = vshrl.u32 %v1447, 16
    %v1452 = vrot.slane %v1450, 7
    %v1453 = vshll.u32 %v1447, 16
    %v1455 = vor.u32 %v1452, %v1453
    %v1457 = vshrl.u32 %v1448, 16
    %v1459 = vrot.slane %v1457, 7
    %v1460 = vshll.u32 %v1448, 16
    %v1462 = vor.u32 %v1459, %v1460
    %v1465 = vsel %vm172, 0, %v1455
    %v1466 = vsel %vm172, 0, %v1462
    %v1467 = vsel %vm177, %v1465, 0
    %v1468 = vsel %vm177, %v1466, 0
    %v1471 = vcombine.high %v1467, %v1467
    %v1473 = vunpack.c.l.s4 1983009808
    %v1474 = vunpack.c.0.s8 %v1473
    %v1475 = vlaneseq
    %v1476 = vshrl.u32 %v1475, 7
    %v1477 = vsub.s32 %v1474, %v1476
    %v1478 = vrot.slane %v1467, %v1477
    %v1480 = vunpack.c.l.s4 1983009808
    %v1481 = vunpack.c.0.s8 %v1480
    %v1482 = vlaneseq
    %v1483 = vshrl.u32 %v1482, 7
    %v1484 = vsub.s32 %v1481, %v1483
    %v1485 = vrot.slane %v1471, %v1484
    %v1486 = vcombine.high %v1478, %v1478
    %v1487 = vcombine.high %v1468, %v1468
    %v1489 = vunpack.c.l.s4 1983009808
    %v1490 = vunpack.c.0.s8 %v1489
    %v1491 = vlaneseq
    %v1492 = vshrl.u32 %v1491, 7
    %v1493 = vsub.s32 %v1490, %v1492
    %v1494 = vrot.slane %v1468, %v1493
    %v1496 = vunpack.c.l.s4 1983009808
    %v1497 = vunpack.c.0.s8 %v1496
    %v1498 = vlaneseq
    %v1499 = vshrl.u32 %v1498, 7
    %v1500 = vsub.s32 %v1497, %v1499
    %v1501 = vrot.slane %v1487, %v1500
    %v1502 = vcombine.high %v1494, %v1494
    %v1503 = vcombine.high %v1485, %v1485
    %v1504 = vcombine.high %v1501, %v1501
    %v1506 = vshrl.u32 %v1478, 16
    %v1508 = vrot.slane %v1506, 6
    %v1509 = vshll.u32 %v1478, 16
    %v1511 = vrot.slane %v1509, 7
    %v1512 = vor.u32 %v1508, %v1511
    %v1513 = vrot.slane %v1512, 2
    %v1515 = vshll.u32 %v1486, 16
    %v1517 = vrot.slane %v1515, 7
    %v1518 = vsel %vm222, %v1513, %v1517
    %v1519 = vshrl.u32 %v1486, 16
    %v1521 = vrot.slane %v1519, 6
    %v1522 = vor.u32 %v1521, %v1517
    %v1523 = vrot.slane %v1522, 2
    %v1525 = vshll.u32 %v1485, 16
    %v1527 = vrot.slane %v1525, 7
    %v1528 = vsel %vm222, %v1523, %v1527
    %v1529 = vshrl.u32 %v1485, 16
    %v1531 = vrot.slane %v1529, 6
    %v1532 = vor.u32 %v1531, %v1527
    %v1533 = vrot.slane %v1532, 2
    %v1535 = vshll.u32 %v1503, 16
    %v1537 = vrot.slane %v1535, 7
    %v1538 = vsel %vm222, %v1533, %v1537
    %v1540 = vshrl.u32 %v1494, 16
    %v1542 = vrot.slane %v1540, 6
    %v1543 = vshll.u32 %v1494, 16
    %v1545 = vrot.slane %v1543, 7
    %v1546 = vor.u32 %v1542, %v1545
    %v1547 = vrot.slane %v1546, 2
    %v1549 = vshll.u32 %v1502, 16
    %v1551 = vrot.slane %v1549, 7
    %v1552 = vsel %vm222, %v1547, %v1551
    %v1553 = vshrl.u32 %v1502, 16
    %v1555 = vrot.slane %v1553, 6
    %v1556 = vor.u32 %v1555, %v1551
    %v1557 = vrot.slane %v1556, 2
    %v1559 = vshll.u32 %v1501, 16
    %v1561 = vrot.slane %v1559, 7
    %v1562 = vsel %vm222, %v1557, %v1561
    %v1563 = vshrl.u32 %v1501, 16
    %v1565 = vrot.slane %v1563, 6
    %v1566 = vor.u32 %v1565, %v1561
    %v1567 = vrot.slane %v1566, 2
    %v1569 = vshll.u32 %v1504, 16
    %v1571 = vrot.slane %v1569, 7
    %v1572 = vsel %vm222, %v1567, %v1571
    %v1573 = vcombine.low %v1518, %v1528
    %v1574 = vcombine.low %v1538, %v1552
    %v1576 = vunpack.c.l.s4 1983009808
    %v1577 = vunpack.c.0.s8 %v1576
    %v1578 = vlaneseq
    %v1579 = vshrl.u32 %v1578, 7
    %v1580 = vsub.s32 %v1577, %v1579
    %v1581 = vrot.slane %v1573, %v1580
    %v1583 = vunpack.c.l.s4 1983009808
    %v1584 = vunpack.c.0.s8 %v1583
    %v1585 = vlaneseq
    %v1586 = vshrl.u32 %v1585, 7
    %v1587 = vsub.s32 %v1584, %v1586
    %v1588 = vrot.slane %v1574, %v1587
    %v1589 = vcombine.low %v1581, %v1588
    %v1590 = vcombine.low %v1562, %v1572
    %v1592 = vunpack.c.l.s4 1983009808
    %v1593 = vunpack.c.0.s8 %v1592
    %v1594 = vlaneseq
    %v1595 = vshrl.u32 %v1594, 7
    %v1596 = vsub.s32 %v1593, %v1595
    %v1597 = vrot.slane %v1590, %v1596
    %v1616 = vunpack.c.l.b16 %v1403
    %v1617 = vunpack.c.l.b16 %v1404
    %v1618 = vunpack.c.l.b16 %v1405
    %v1619 = vunpack.c.l.b16 %v1406
    %v1620 = vunpack.c.l.b16 %v1407
    %v1621 = vunpack.c.l.b16 %v1408
    %v1622 = vunpack.c.l.b16 %v1409
    %v1623 = vunpack.c.l.b16 %v1410
    %v1624 = vunpack.c.l.b16 %v1411
    %v1625 = vunpack.c.l.b16 %v1412
    %v1626 = vunpack.c.l.b16 %v1413
    %v1627 = vunpack.c.l.b16 %v1414
    %v1628 = vunpack.c.l.b16 %v1415
    %v1629 = vunpack.c.l.b16 %v1416
    %v1630 = vunpack.c.l.b16 %v1417
    %v1631 = vunpack.c.l.b16 %v1418
    %v1632 = vpack.c.b16 %v1617, %v1616
    %v1633 = vpack.c.b16 %v1619, %v1618
    %v1634 = vpack.c.b16 %v1621, %v1620
    %v1635 = vpack.c.b16 %v1623, %v1622
    %v1636 = vpack.c.b16 %v1625, %v1624
    %v1637 = vpack.c.b16 %v1627, %v1626
    %v1638 = vpack.c.b16 %v1629, %v1628
    %v1639 = vpack.c.b16 %v1631, %v1630
    %1648 = vmatprep.subr.bf16.mxu0 0
    %1649 = vmatpush1.bf16.msra.mxu0 %v1632
    %1650 = vmatprep.subr.bf16.mxu0 0
    %1651 = vmatpush1.bf16.msra.mxu0 %v1633
    %1652 = vmatprep.subr.bf16.mxu0 0
    %1653 = vmatpush1.bf16.msra.mxu0 %v1634
    %1654 = vmatprep.subr.bf16.mxu0 0
    %1655 = vmatpush1.bf16.msra.mxu0 %v1635
    %1656 = vmatprep.subr.bf16.mxu0 0
    %1657 = vmatpush1.bf16.msra.mxu0 %v1636
    %1658 = vmatprep.subr.bf16.mxu0 0
    %1659 = vmatpush1.bf16.msra.mxu0 %v1637
    %1660 = vmatprep.subr.bf16.mxu0 0
    %1661 = vmatpush1.bf16.msra.mxu0 %v1638
    %1662 = vmatprep.subr.bf16.mxu0 0
    %1663 = vmatpush1.bf16.msra.mxu0 %v1639
    %1664 = vmatprep.subr.bf16.mxu0 0
    %1665 = vmatpush1.bf16.msra.mxu0 0
    %1666 = vmatprep.subr.bf16.mxu0 0
    %1667 = vmatpush1.bf16.msra.mxu0 0
    %1668 = vmatprep.subr.bf16.mxu0 0
    %1669 = vmatpush1.bf16.msra.mxu0 0
    %1670 = vmatprep.subr.bf16.mxu0 0
    %1671 = vmatpush1.bf16.msra.mxu0 0
    %1672 = vmatprep.subr.bf16.mxu0 0
    %1673 = vmatpush1.bf16.msra.mxu0 0
    %1674 = vmatprep.subr.bf16.mxu0 0
    %1675 = vmatpush1.bf16.msra.mxu0 0
    %1676 = vmatprep.subr.bf16.mxu0 0
    %1677 = vmatpush1.bf16.msra.mxu0 0
    %1678 = vmatprep.subr.bf16.mxu0 0
    %1679 = vmatpush1.bf16.msra.mxu0 0
    %1680 = vmatprep.mubr.bf16.mxu0 0
    %1681 = vmatmul.mubr.bf16.gmra.mrb[0].mxu0 %v1589
    %v1682 = vpop.f32.mrb[0].mxu0
    %v1683 = vadd.f32 0.0, %v1682
    %v1684 = vpop.f32.mrb[0].mxu0
    %v1685 = vpop.f32.mrb[0].mxu0
    %v1686 = vadd.f32 0.0, %v1685
    %v1687 = vpop.f32.mrb[0].mxu0
    %1688 = vmatprep.mubr.bf16.mxu0 0
    %1689 = vmatmul.mubr.bf16.gmra.mrb[0].mxu0 %v1597
    %v1690 = vpop.f32.mrb[0].mxu0
    %v1691 = vadd.f32 0.0, %v1690
    %v1692 = vpop.f32.mrb[0].mxu0
    %v1693 = vpop.f32.mrb[0].mxu0
    %v1694 = vpop.f32.mrb[0].mxu0
    %1695 = vdwg.mxu0
    %v1696 = vcombine.low %v1478, %v1486
    %v1697 = vcombine.low %v1485, %v1494
    %v1699 = vunpack.c.l.s4 1983009808
    %v1700 = vunpack.c.0.s8 %v1699
    %v1701 = vlaneseq
    %v1702 = vshrl.u32 %v1701, 7
    %v1703 = vsub.s32 %v1700, %v1702
    %v1704 = vrot.slane %v1696, %v1703
    %v1706 = vunpack.c.l.s4 1983009808
    %v1707 = vunpack.c.0.s8 %v1706
    %v1708 = vlaneseq
    %v1709 = vshrl.u32 %v1708, 7
    %v1710 = vsub.s32 %v1707, %v1709
    %v1711 = vrot.slane %v1697, %v1710
    %v1712 = vcombine.low %v1704, %v1711
    %v1713 = vcombine.low %v1502, %v1501
    %v1715 = vunpack.c.l.s4 1983009808
    %v1716 = vunpack.c.0.s8 %v1715
    %v1717 = vlaneseq
    %v1718 = vshrl.u32 %v1717, 7
    %v1719 = vsub.s32 %v1716, %v1718
    %v1720 = vrot.slane %v1713, %v1719
    %v1739 = vunpack.c.l.b16 %v1387
    %v1740 = vunpack.c.l.b16 %v1388
    %v1741 = vunpack.c.l.b16 %v1389
    %v1742 = vunpack.c.l.b16 %v1390
    %v1743 = vunpack.c.l.b16 %v1391
    %v1744 = vunpack.c.l.b16 %v1392
    %v1745 = vunpack.c.l.b16 %v1393
    %v1746 = vunpack.c.l.b16 %v1394
    %v1747 = vunpack.c.l.b16 %v1395
    %v1748 = vunpack.c.l.b16 %v1396
    %v1749 = vunpack.c.l.b16 %v1397
    %v1750 = vunpack.c.l.b16 %v1398
    %v1751 = vunpack.c.l.b16 %v1399
    %v1752 = vunpack.c.l.b16 %v1400
    %v1753 = vunpack.c.l.b16 %v1401
    %v1754 = vunpack.c.l.b16 %v1402
    %v1755 = vpack.c.b16 %v1740, %v1739
    %v1756 = vpack.c.b16 %v1742, %v1741
    %v1757 = vpack.c.b16 %v1744, %v1743
    %v1758 = vpack.c.b16 %v1746, %v1745
    %v1759 = vpack.c.b16 %v1748, %v1747
    %v1760 = vpack.c.b16 %v1750, %v1749
    %v1761 = vpack.c.b16 %v1752, %v1751
    %v1762 = vpack.c.b16 %v1754, %v1753
    %1771 = vmatprep.subr.bf16.mxu0 0
    %1772 = vmatpush1.bf16.msra.mxu0 %v1755
    %1773 = vmatprep.subr.bf16.mxu0 0
    %1774 = vmatpush1.bf16.msra.mxu0 %v1756
    %1775 = vmatprep.subr.bf16.mxu0 0
    %1776 = vmatpush1.bf16.msra.mxu0 %v1757
    %1777 = vmatprep.subr.bf16.mxu0 0
    %1778 = vmatpush1.bf16.msra.mxu0 %v1758
    %1779 = vmatprep.subr.bf16.mxu0 0
    %1780 = vmatpush1.bf16.msra.mxu0 %v1759
    %1781 = vmatprep.subr.bf16.mxu0 0
    %1782 = vmatpush1.bf16.msra.mxu0 %v1760
    %1783 = vmatprep.subr.bf16.mxu0 0
    %1784 = vmatpush1.bf16.msra.mxu0 %v1761
    %1785 = vmatprep.subr.bf16.mxu0 0
    %1786 = vmatpush1.bf16.msra.mxu0 %v1762
    %1787 = vmatprep.subr.bf16.mxu0 0
    %1788 = vmatpush1.bf16.msra.mxu0 0
    %1789 = vmatprep.subr.bf16.mxu0 0
    %1790 = vmatpush1.bf16.msra.mxu0 0
    %1791 = vmatprep.subr.bf16.mxu0 0
    %1792 = vmatpush1.bf16.msra.mxu0 0
    %1793 = vmatprep.subr.bf16.mxu0 0
    %1794 = vmatpush1.bf16.msra.mxu0 0
    %1795 = vmatprep.subr.bf16.mxu0 0
    %1796 = vmatpush1.bf16.msra.mxu0 0
    %1797 = vmatprep.subr.bf16.mxu0 0
    %1798 = vmatpush1.bf16.msra.mxu0 0
    %1799 = vmatprep.subr.bf16.mxu0 0
    %1800 = vmatpush1.bf16.msra.mxu0 0
    %1801 = vmatprep.subr.bf16.mxu0 0
    %1802 = vmatpush1.bf16.msra.mxu0 0
    %1803 = vmatprep.mubr.bf16.mxu0 0
    %1804 = vmatmul.mubr.bf16.gmra.mrb[0].mxu0 %v1712
    %v1805 = vpop.f32.mrb[0].mxu0
    %v1806 = vadd.f32 %v1683, %v1805
    %v1807 = vpop.f32.mrb[0].mxu0
    %v1808 = vpop.f32.mrb[0].mxu0
    %v1809 = vadd.f32 %v1686, %v1808
    %v1810 = vpop.f32.mrb[0].mxu0
    %1811 = vmatprep.mubr.bf16.mxu0 0
    %1812 = vmatmul.mubr.bf16.gmra.mrb[0].mxu0 %v1720
    %v1813 = vpop.f32.mrb[0].mxu0
    %v1814 = vadd.f32 %v1691, %v1813
    %v1815 = vpop.f32.mrb[0].mxu0
    %v1816 = vpop.f32.mrb[0].mxu0
    %v1817 = vpop.f32.mrb[0].mxu0
    %1818 = vdwg.mxu0
    %v1819 = vrot.slane %v1478, 7
    %v1820 = vrot.slane %v1819, 2
    %v1821 = vrot.slane %v1486, 7
    %v1822 = vsel %vm542, %v1820, %v1821
    %v1823 = vrot.slane %v1821, 2
    %v1824 = vrot.slane %v1485, 7
    %v1825 = vsel %vm542, %v1823, %v1824
    %v1826 = vrot.slane %v1824, 2
    %v1827 = vrot.slane %v1503, 7
    %v1828 = vsel %vm542, %v1826, %v1827
    %v1829 = vrot.slane %v1494, 7
    %v1830 = vrot.slane %v1829, 2
    %v1831 = vrot.slane %v1502, 7
    %v1832 = vsel %vm542, %v1830, %v1831
    %v1833 = vrot.slane %v1831, 2
    %v1834 = vrot.slane %v1501, 7
    %v1835 = vsel %vm542, %v1833, %v1834
    %v1836 = vrot.slane %v1834, 2
    %v1837 = vrot.slane %v1504, 7
    %v1838 = vsel %vm542, %v1836, %v1837
    %v1839 = vcombine.low %v1822, %v1825
    %v1840 = vcombine.low %v1828, %v1832
    %v1842 = vunpack.c.l.s4 1983009808
    %v1843 = vunpack.c.0.s8 %v1842
    %v1844 = vlaneseq
    %v1845 = vshrl.u32 %v1844, 7
    %v1846 = vsub.s32 %v1843, %v1845
    %v1847 = vrot.slane %v1839, %v1846
    %v1849 = vunpack.c.l.s4 1983009808
    %v1850 = vunpack.c.0.s8 %v1849
    %v1851 = vlaneseq
    %v1852 = vshrl.u32 %v1851, 7
    %v1853 = vsub.s32 %v1850, %v1852
    %v1854 = vrot.slane %v1840, %v1853
    %v1855 = vcombine.low %v1847, %v1854
    %v1856 = vcombine.low %v1835, %v1838
    %v1858 = vunpack.c.l.s4 1983009808
    %v1859 = vunpack.c.0.s8 %v1858
    %v1860 = vlaneseq
    %v1861 = vshrl.u32 %v1860, 7
    %v1862 = vsub.s32 %v1859, %v1861
    %v1863 = vrot.slane %v1856, %v1862
    %v1882 = vunpack.c.l.b16 %v1419
    %v1883 = vunpack.c.l.b16 %v1420
    %v1884 = vunpack.c.l.b16 %v1421
    %v1885 = vunpack.c.l.b16 %v1422
    %v1886 = vunpack.c.l.b16 %v1423
    %v1887 = vunpack.c.l.b16 %v1424
    %v1888 = vunpack.c.l.b16 %v1425
    %v1889 = vunpack.c.l.b16 %v1426
    %v1890 = vunpack.c.l.b16 %v1427
    %v1891 = vunpack.c.l.b16 %v1428
    %v1892 = vunpack.c.l.b16 %v1429
    %v1893 = vunpack.c.l.b16 %v1430
    %v1894 = vunpack.c.l.b16 %v1431
    %v1895 = vunpack.c.l.b16 %v1432
    %v1896 = vunpack.c.l.b16 %v1433
    %v1897 = vunpack.c.l.b16 %v1434
    %v1898 = vpack.c.b16 %v1883, %v1882
    %v1899 = vpack.c.b16 %v1885, %v1884
    %v1900 = vpack.c.b16 %v1887, %v1886
    %v1901 = vpack.c.b16 %v1889, %v1888
    %v1902 = vpack.c.b16 %v1891, %v1890
    %v1903 = vpack.c.b16 %v1893, %v1892
    %v1904 = vpack.c.b16 %v1895, %v1894
    %v1905 = vpack.c.b16 %v1897, %v1896
    %1914 = vmatprep.subr.bf16.mxu0 0
    %1915 = vmatpush1.bf16.msra.mxu0 %v1898
    %1916 = vmatprep.subr.bf16.mxu0 0
    %1917 = vmatpush1.bf16.msra.mxu0 %v1899
    %1918 = vmatprep.subr.bf16.mxu0 0
    %1919 = vmatpush1.bf16.msra.mxu0 %v1900
    %1920 = vmatprep.subr.bf16.mxu0 0
    %1921 = vmatpush1.bf16.msra.mxu0 %v1901
    %1922 = vmatprep.subr.bf16.mxu0 0
    %1923 = vmatpush1.bf16.msra.mxu0 %v1902
    %1924 = vmatprep.subr.bf16.mxu0 0
    %1925 = vmatpush1.bf16.msra.mxu0 %v1903
    %1926 = vmatprep.subr.bf16.mxu0 0
    %1927 = vmatpush1.bf16.msra.mxu0 %v1904
    %1928 = vmatprep.subr.bf16.mxu0 0
    %1929 = vmatpush1.bf16.msra.mxu0 %v1905
    %1930 = vmatprep.subr.bf16.mxu0 0
    %1931 = vmatpush1.bf16.msra.mxu0 0
    %1932 = vmatprep.subr.bf16.mxu0 0
    %1933 = vmatpush1.bf16.msra.mxu0 0
    %1934 = vmatprep.subr.bf16.mxu0 0
    %1935 = vmatpush1.bf16.msra.mxu0 0
    %1936 = vmatprep.subr.bf16.mxu0 0
    %1937 = vmatpush1.bf16.msra.mxu0 0
    %1938 = vmatprep.subr.bf16.mxu0 0
    %1939 = vmatpush1.bf16.msra.mxu0 0
    %1940 = vmatprep.subr.bf16.mxu0 0
    %1941 = vmatpush1.bf16.msra.mxu0 0
    %1942 = vmatprep.subr.bf16.mxu0 0
    %1943 = vmatpush1.bf16.msra.mxu0 0
    %1944 = vmatprep.subr.bf16.mxu0 0
    %1945 = vmatpush1.bf16.msra.mxu0 0
    %1946 = vmatprep.mubr.bf16.mxu0 0
    %1947 = vmatmul.mubr.bf16.gmra.mrb[0].mxu0 %v1855
    %v1948 = vpop.f32.mrb[0].mxu0
    %v1949 = vadd.f32 0.0, %v1948
    %v1950 = vpop.f32.mrb[0].mxu0
    %v1951 = vpop.f32.mrb[0].mxu0
    %v1952 = vadd.f32 0.0, %v1951
    %v1953 = vpop.f32.mrb[0].mxu0
    %1954 = vmatprep.mubr.bf16.mxu0 0
    %1955 = vmatmul.mubr.bf16.gmra.mrb[0].mxu0 %v1863
    %v1956 = vpop.f32.mrb[0].mxu0
    %v1957 = vadd.f32 0.0, %v1956
    %v1958 = vpop.f32.mrb[0].mxu0
    %v1959 = vpop.f32.mrb[0].mxu0
    %v1960 = vpop.f32.mrb[0].mxu0
    %1961 = vdwg.mxu0
    %v1962 = vadd.f32 %v1806, %v1949
    %v1963 = vadd.f32 %v1809, %v1952
    %v1964 = vadd.f32 %v1814, %v1957
    %v1965 = vadd.f32 %v1962, %v1963
    %v1966 = vadd.f32 %v1965, %v1964
    %v1967 = vrot.slane %v1966, 4
    %v1968 = vadd.f32 %v1966, %v1967
    %v1969 = vrot.slane %v1968, 2
    %v1970 = vadd.f32 %v1968, %v1969
    %v1971 = vrot.slane %v1970, 1
    %v1972 = vadd.f32 %v1970, %v1971
    %v1973 = vmul.f32 %v1972, %v697
    %v1974 = vsub.f32 %v1962, %v1973
    %v1975 = vsub.f32 %v1963, %v1973
    %v1976 = vsub.f32 %v1964, %v1973
    %v1977 = vmul.f32 %v1974, %v1974
    %v1978 = vmul.f32 %v1975, %v1975
    %v1979 = vmul.f32 %v1976, %v1976
    %v1980 = vadd.f32 %v1977, %v1978
    %v1981 = vadd.f32 %v1980, %v1979
    %v1982 = vrot.slane %v1981, 4
    %v1983 = vadd.f32 %v1981, %v1982
    %v1984 = vrot.slane %v1983, 2
    %v1985 = vadd.f32 %v1983, %v1984
    %v1986 = vrot.slane %v1985, 1
    %v1987 = vadd.f32 %v1985, %v1986
    %v1988 = vmul.f32 %v1987, %v697
    %v1989 = vadd.f32 %v1988, 1e-05
    %v1990 = vrsqrt.pop %v1989
    %v1991 = vmul.f32 %v1436, %v1990
    %v1993 = vlaneseq
    %v1994 = vshrl.u32 %v1993, 7
    %v1995 = vsub.s32 0, %v1994
    %v1996 = vrot.slane %v1991, %v1995
    %v1998 = vmul.f32 %v1974, %v1996
    %v1999 = vmul.f32 %v1975, %v1996
    %v2000 = vmul.f32 %v1976, %v1996
    %v2002 = vlaneseq
    %v2003 = vshrl.u32 %v2002, 7
    %v2004 = vsub.s32 0, %v2003
    %v2005 = vrot.slane %v1438, %v2004
    %v2007 = vadd.f32 %v1998, %v2005
    %v2008 = vadd.f32 %v1999, %v2005
    %v2009 = vadd.f32 %v2000, %v2005
    %v2013 = vcombine.high %v2007, %v2007
    %v2014 = vcombine.high %v2008, %v2008
    %v2015 = vcombine.high %v2009, %v2009
    %v2019 = vadd.f32 %v2007, %v744
    %v2020 = vadd.f32 %v2013, %v745
    %v2021 = vadd.f32 %v2008, %v746
    %v2022 = vadd.f32 %v2014, %v747
    %v2023 = vadd.f32 %v2009, %v748
    %v2024 = vadd.f32 %v2015, %v749
    %v2025 = vmax.f32 %v2019, 0.0
    %v2026 = vmax.f32 %v2020, 0.0
    %v2027 = vmax.f32 %v2021, 0.0
    %v2028 = vmax.f32 %v2022, 0.0
    %v2029 = vmax.f32 %v2023, 0.0
    %v2030 = vmax.f32 %v2024, 0.0
    %s2031 = scalar_lea.vmem [#allocation7], 384
    %v2032 = vld [vmem:[%s2031] sm:$0xf]
    %v2033 = vld [vmem:[%s2031 + $0x4] sm:$0xf]
    %v2034 = vld [vmem:[%s2031 + $0x8] sm:$0xf]
    %v2035 = vld [vmem:[%s2031 + $0xc] sm:$0xf]
    %v2036 = vld [vmem:[%s2031 + $0x10] sm:$0xf]
    %v2037 = vld [vmem:[%s2031 + $0x14] sm:$0xf]
    %v2038 = vld [vmem:[%s2031 + $0x18] sm:$0xf]
    %v2039 = vld [vmem:[%s2031 + $0x1c] sm:$0xf]
    %v2040 = vld [vmem:[%s2031 + $0x20] sm:$0xf]
    %v2041 = vld [vmem:[%s2031 + $0x24] sm:$0xf]
    %v2042 = vld [vmem:[%s2031 + $0x28] sm:$0xf]
    %v2043 = vld [vmem:[%s2031 + $0x2c] sm:$0xf]
    %v2044 = vld [vmem:[%s2031 + $0x30] sm:$0xf]
    %v2045 = vld [vmem:[%s2031 + $0x34] sm:$0xf]
    %v2046 = vld [vmem:[%s2031 + $0x38] sm:$0xf]
    %v2047 = vld [vmem:[%s2031 + $0x3c] sm:$0xf]
    %v2048 = vld [vmem:[%s2031 + $0x40] sm:$0xf]
    %v2049 = vld [vmem:[%s2031 + $0x44] sm:$0xf]
    %v2050 = vld [vmem:[%s2031 + $0x48] sm:$0xf]
    %v2051 = vld [vmem:[%s2031 + $0x4c] sm:$0xf]
    %v2052 = vld [vmem:[%s2031 + $0x50] sm:$0xf]
    %v2053 = vld [vmem:[%s2031 + $0x54] sm:$0xf]
    %v2054 = vld [vmem:[%s2031 + $0x58] sm:$0xf]
    %v2055 = vld [vmem:[%s2031 + $0x5c] sm:$0xf]
    %v2056 = vld [vmem:[%s2031 + $0x60] sm:$0xf]
    %v2057 = vld [vmem:[%s2031 + $0x64] sm:$0xf]
    %v2058 = vld [vmem:[%s2031 + $0x68] sm:$0xf]
    %v2059 = vld [vmem:[%s2031 + $0x6c] sm:$0xf]
    %v2060 = vld [vmem:[%s2031 + $0x70] sm:$0xf]
    %v2061 = vld [vmem:[%s2031 + $0x74] sm:$0xf]
    %v2062 = vld [vmem:[%s2031 + $0x78] sm:$0xf]
    %v2063 = vld [vmem:[%s2031 + $0x7c] sm:$0xf]
    %v2064 = vld [vmem:[%s2031 + $0x80] sm:$0xf]
    %v2065 = vld [vmem:[%s2031 + $0x84] sm:$0xf]
    %v2066 = vld [vmem:[%s2031 + $0x88] sm:$0xf]
    %v2067 = vld [vmem:[%s2031 + $0x8c] sm:$0xf]
    %v2068 = vld [vmem:[%s2031 + $0x90] sm:$0xf]
    %v2069 = vld [vmem:[%s2031 + $0x94] sm:$0xf]
    %v2070 = vld [vmem:[%s2031 + $0x98] sm:$0xf]
    %v2071 = vld [vmem:[%s2031 + $0x9c] sm:$0xf]
    %v2072 = vld [vmem:[%s2031 + $0xa0] sm:$0xf]
    %v2073 = vld [vmem:[%s2031 + $0xa4] sm:$0xf]
    %v2074 = vld [vmem:[%s2031 + $0xa8] sm:$0xf]
    %v2075 = vld [vmem:[%s2031 + $0xac] sm:$0xf]
    %v2076 = vld [vmem:[%s2031 + $0xb0] sm:$0xf]
    %v2077 = vld [vmem:[%s2031 + $0xb4] sm:$0xf]
    %v2078 = vld [vmem:[%s2031 + $0xb8] sm:$0xf]
    %v2079 = vld [vmem:[%s2031 + $0xbc] sm:$0xf]
    %s2080 = scalar_lea.vmem %s7, 2
    %v2081 = vld [vmem:[%s2080] sm:$0x1]
    %s2082 = scalar_lea.vmem %s8, 2
    %v2083 = vld [vmem:[%s2082] sm:$0x1]
    %v2088 = vcombine.low %v2025, %v2026
    %v2089 = vcombine.low %v2028, %v2029
    %v2092 = vpack.c.bf16 %v2027, %v2088
    %v2093 = vpack.c.bf16 %v2030, %v2089
    %v2095 = vshrl.u32 %v2092, 16
    %v2097 = vrot.slane %v2095, 7
    %v2098 = vshll.u32 %v2092, 16
    %v2100 = vor.u32 %v2097, %v2098
    %v2102 = vshrl.u32 %v2093, 16
    %v2104 = vrot.slane %v2102, 7
    %v2105 = vshll.u32 %v2093, 16
    %v2107 = vor.u32 %v2104, %v2105
    %v2110 = vsel %vm172, 0, %v2100
    %v2111 = vsel %vm172, 0, %v2107
    %v2112 = vsel %vm177, %v2110, 0
    %v2113 = vsel %vm177, %v2111, 0
    %v2116 = vcombine.high %v2112, %v2112
    %v2118 = vunpack.c.l.s4 1983009808
    %v2119 = vunpack.c.0.s8 %v2118
    %v2120 = vlaneseq
    %v2121 = vshrl.u32 %v2120, 7
    %v2122 = vsub.s32 %v2119, %v2121
    %v2123 = vrot.slane %v2112, %v2122
    %v2125 = vunpack.c.l.s4 1983009808
    %v2126 = vunpack.c.0.s8 %v2125
    %v2127 = vlaneseq
    %v2128 = vshrl.u32 %v2127, 7
    %v2129 = vsub.s32 %v2126, %v2128
    %v2130 = vrot.slane %v2116, %v2129
    %v2131 = vcombine.high %v2123, %v2123
    %v2132 = vcombine.high %v2113, %v2113
    %v2134 = vunpack.c.l.s4 1983009808
    %v2135 = vunpack.c.0.s8 %v2134
    %v2136 = vlaneseq
    %v2137 = vshrl.u32 %v2136, 7
    %v2138 = vsub.s32 %v2135, %v2137
    %v2139 = vrot.slane %v2113, %v2138
    %v2141 = vunpack.c.l.s4 1983009808
    %v2142 = vunpack.c.0.s8 %v2141
    %v2143 = vlaneseq
    %v2144 = vshrl.u32 %v2143, 7
    %v2145 = vsub.s32 %v2142, %v2144
    %v2146 = vrot.slane %v2132, %v2145
    %v2147 = vcombine.high %v2139, %v2139
    %v2148 = vcombine.high %v2130, %v2130
    %v2149 = vcombine.high %v2146, %v2146
    %v2151 = vshrl.u32 %v2123, 16
    %v2153 = vrot.slane %v2151, 6
    %v2154 = vshll.u32 %v2123, 16
    %v2156 = vrot.slane %v2154, 7
    %v2157 = vor.u32 %v2153, %v2156
    %v2158 = vrot.slane %v2157, 2
    %v2160 = vshll.u32 %v2131, 16
    %v2162 = vrot.slane %v2160, 7
    %v2163 = vsel %vm222, %v2158, %v2162
    %v2164 = vshrl.u32 %v2131, 16
    %v2166 = vrot.slane %v2164, 6
    %v2167 = vor.u32 %v2166, %v2162
    %v2168 = vrot.slane %v2167, 2
    %v2170 = vshll.u32 %v2130, 16
    %v2172 = vrot.slane %v2170, 7
    %v2173 = vsel %vm222, %v2168, %v2172
    %v2174 = vshrl.u32 %v2130, 16
    %v2176 = vrot.slane %v2174, 6
    %v2177 = vor.u32 %v2176, %v2172
    %v2178 = vrot.slane %v2177, 2
    %v2180 = vshll.u32 %v2148, 16
    %v2182 = vrot.slane %v2180, 7
    %v2183 = vsel %vm222, %v2178, %v2182
    %v2185 = vshrl.u32 %v2139, 16
    %v2187 = vrot.slane %v2185, 6
    %v2188 = vshll.u32 %v2139, 16
    %v2190 = vrot.slane %v2188, 7
    %v2191 = vor.u32 %v2187, %v2190
    %v2192 = vrot.slane %v2191, 2
    %v2194 = vshll.u32 %v2147, 16
    %v2196 = vrot.slane %v2194, 7
    %v2197 = vsel %vm222, %v2192, %v2196
    %v2198 = vshrl.u32 %v2147, 16
    %v2200 = vrot.slane %v2198, 6
    %v2201 = vor.u32 %v2200, %v2196
    %v2202 = vrot.slane %v2201, 2
    %v2204 = vshll.u32 %v2146, 16
    %v2206 = vrot.slane %v2204, 7
    %v2207 = vsel %vm222, %v2202, %v2206
    %v2208 = vshrl.u32 %v2146, 16
    %v2210 = vrot.slane %v2208, 6
    %v2211 = vor.u32 %v2210, %v2206
    %v2212 = vrot.slane %v2211, 2
    %v2214 = vshll.u32 %v2149, 16
    %v2216 = vrot.slane %v2214, 7
    %v2217 = vsel %vm222, %v2212, %v2216
    %v2218 = vcombine.low %v2163, %v2173
    %v2219 = vcombine.low %v2183, %v2197
    %v2221 = vunpack.c.l.s4 1983009808
    %v2222 = vunpack.c.0.s8 %v2221
    %v2223 = vlaneseq
    %v2224 = vshrl.u32 %v2223, 7
    %v2225 = vsub.s32 %v2222, %v2224
    %v2226 = vrot.slane %v2218, %v2225
    %v2228 = vunpack.c.l.s4 1983009808
    %v2229 = vunpack.c.0.s8 %v2228
    %v2230 = vlaneseq
    %v2231 = vshrl.u32 %v2230, 7
    %v2232 = vsub.s32 %v2229, %v2231
    %v2233 = vrot.slane %v2219, %v2232
    %v2234 = vcombine.low %v2226, %v2233
    %v2235 = vcombine.low %v2207, %v2217
    %v2237 = vunpack.c.l.s4 1983009808
    %v2238 = vunpack.c.0.s8 %v2237
    %v2239 = vlaneseq
    %v2240 = vshrl.u32 %v2239, 7
    %v2241 = vsub.s32 %v2238, %v2240
    %v2242 = vrot.slane %v2235, %v2241
    %v2261 = vunpack.c.l.b16 %v2048
    %v2262 = vunpack.c.l.b16 %v2049
    %v2263 = vunpack.c.l.b16 %v2050
    %v2264 = vunpack.c.l.b16 %v2051
    %v2265 = vunpack.c.l.b16 %v2052
    %v2266 = vunpack.c.l.b16 %v2053
    %v2267 = vunpack.c.l.b16 %v2054
    %v2268 = vunpack.c.l.b16 %v2055
    %v2269 = vunpack.c.l.b16 %v2056
    %v2270 = vunpack.c.l.b16 %v2057
    %v2271 = vunpack.c.l.b16 %v2058
    %v2272 = vunpack.c.l.b16 %v2059
    %v2273 = vunpack.c.l.b16 %v2060
    %v2274 = vunpack.c.l.b16 %v2061
    %v2275 = vunpack.c.l.b16 %v2062
    %v2276 = vunpack.c.l.b16 %v2063
    %v2277 = vpack.c.b16 %v2262, %v2261
    %v2278 = vpack.c.b16 %v2264, %v2263
    %v2279 = vpack.c.b16 %v2266, %v2265
    %v2280 = vpack.c.b16 %v2268, %v2267
    %v2281 = vpack.c.b16 %v2270, %v2269
    %v2282 = vpack.c.b16 %v2272, %v2271
    %v2283 = vpack.c.b16 %v2274, %v2273
    %v2284 = vpack.c.b16 %v2276, %v2275
    %2293 = vmatprep.subr.bf16.mxu0 0
    %2294 = vmatpush1.bf16.msra.mxu0 %v2277
    %2295 = vmatprep.subr.bf16.mxu0 0
    %2296 = vmatpush1.bf16.msra.mxu0 %v2278
    %2297 = vmatprep.subr.bf16.mxu0 0
    %2298 = vmatpush1.bf16.msra.mxu0 %v2279
    %2299 = vmatprep.subr.bf16.mxu0 0
    %2300 = vmatpush1.bf16.msra.mxu0 %v2280
    %2301 = vmatprep.subr.bf16.mxu0 0
    %2302 = vmatpush1.bf16.msra.mxu0 %v2281
    %2303 = vmatprep.subr.bf16.mxu0 0
    %2304 = vmatpush1.bf16.msra.mxu0 %v2282
    %2305 = vmatprep.subr.bf16.mxu0 0
    %2306 = vmatpush1.bf16.msra.mxu0 %v2283
    %2307 = vmatprep.subr.bf16.mxu0 0
    %2308 = vmatpush1.bf16.msra.mxu0 %v2284
    %2309 = vmatprep.subr.bf16.mxu0 0
    %2310 = vmatpush1.bf16.msra.mxu0 0
    %2311 = vmatprep.subr.bf16.mxu0 0
    %2312 = vmatpush1.bf16.msra.mxu0 0
    %2313 = vmatprep.subr.bf16.mxu0 0
    %2314 = vmatpush1.bf16.msra.mxu0 0
    %2315 = vmatprep.subr.bf16.mxu0 0
    %2316 = vmatpush1.bf16.msra.mxu0 0
    %2317 = vmatprep.subr.bf16.mxu0 0
    %2318 = vmatpush1.bf16.msra.mxu0 0
    %2319 = vmatprep.subr.bf16.mxu0 0
    %2320 = vmatpush1.bf16.msra.mxu0 0
    %2321 = vmatprep.subr.bf16.mxu0 0
    %2322 = vmatpush1.bf16.msra.mxu0 0
    %2323 = vmatprep.subr.bf16.mxu0 0
    %2324 = vmatpush1.bf16.msra.mxu0 0
    %2325 = vmatprep.mubr.bf16.mxu0 0
    %2326 = vmatmul.mubr.bf16.gmra.mrb[0].mxu0 %v2234
    %v2327 = vpop.f32.mrb[0].mxu0
    %v2328 = vadd.f32 0.0, %v2327
    %v2329 = vpop.f32.mrb[0].mxu0
    %v2330 = vpop.f32.mrb[0].mxu0
    %v2331 = vadd.f32 0.0, %v2330
    %v2332 = vpop.f32.mrb[0].mxu0
    %2333 = vmatprep.mubr.bf16.mxu0 0
    %2334 = vmatmul.mubr.bf16.gmra.mrb[0].mxu0 %v2242
    %v2335 = vpop.f32.mrb[0].mxu0
    %v2336 = vadd.f32 0.0, %v2335
    %v2337 = vpop.f32.mrb[0].mxu0
    %v2338 = vpop.f32.mrb[0].mxu0
    %v2339 = vpop.f32.mrb[0].mxu0
    %2340 = vdwg.mxu0
    %v2341 = vcombine.low %v2123, %v2131
    %v2342 = vcombine.low %v2130, %v2139
    %v2344 = vunpack.c.l.s4 1983009808
    %v2345 = vunpack.c.0.s8 %v2344
    %v2346 = vlaneseq
    %v2347 = vshrl.u32 %v2346, 7
    %v2348 = vsub.s32 %v2345, %v2347
    %v2349 = vrot.slane %v2341, %v2348
    %v2351 = vunpack.c.l.s4 1983009808
    %v2352 = vunpack.c.0.s8 %v2351
    %v2353 = vlaneseq
    %v2354 = vshrl.u32 %v2353, 7
    %v2355 = vsub.s32 %v2352, %v2354
    %v2356 = vrot.slane %v2342, %v2355
    %v2357 = vcombine.low %v2349, %v2356
    %v2358 = vcombine.low %v2147, %v2146
    %v2360 = vunpack.c.l.s4 1983009808
    %v2361 = vunpack.c.0.s8 %v2360
    %v2362 = vlaneseq
    %v2363 = vshrl.u32 %v2362, 7
    %v2364 = vsub.s32 %v2361, %v2363
    %v2365 = vrot.slane %v2358, %v2364
    %v2384 = vunpack.c.l.b16 %v2032
    %v2385 = vunpack.c.l.b16 %v2033
    %v2386 = vunpack.c.l.b16 %v2034
    %v2387 = vunpack.c.l.b16 %v2035
    %v2388 = vunpack.c.l.b16 %v2036
    %v2389 = vunpack.c.l.b16 %v2037
    %v2390 = vunpack.c.l.b16 %v2038
    %v2391 = vunpack.c.l.b16 %v2039
    %v2392 = vunpack.c.l.b16 %v2040
    %v2393 = vunpack.c.l.b16 %v2041
    %v2394 = vunpack.c.l.b16 %v2042
    %v2395 = vunpack.c.l.b16 %v2043
    %v2396 = vunpack.c.l.b16 %v2044
    %v2397 = vunpack.c.l.b16 %v2045
    %v2398 = vunpack.c.l.b16 %v2046
    %v2399 = vunpack.c.l.b16 %v2047
    %v2400 = vpack.c.b16 %v2385, %v2384
    %v2401 = vpack.c.b16 %v2387, %v2386
    %v2402 = vpack.c.b16 %v2389, %v2388
    %v2403 = vpack.c.b16 %v2391, %v2390
    %v2404 = vpack.c.b16 %v2393, %v2392
    %v2405 = vpack.c.b16 %v2395, %v2394
    %v2406 = vpack.c.b16 %v2397, %v2396
    %v2407 = vpack.c.b16 %v2399, %v2398
    %2416 = vmatprep.subr.bf16.mxu0 0
    %2417 = vmatpush1.bf16.msra.mxu0 %v2400
    %2418 = vmatprep.subr.bf16.mxu0 0
    %2419 = vmatpush1.bf16.msra.mxu0 %v2401
    %2420 = vmatprep.subr.bf16.mxu0 0
    %2421 = vmatpush1.bf16.msra.mxu0 %v2402
    %2422 = vmatprep.subr.bf16.mxu0 0
    %2423 = vmatpush1.bf16.msra.mxu0 %v2403
    %2424 = vmatprep.subr.bf16.mxu0 0
    %2425 = vmatpush1.bf16.msra.mxu0 %v2404
    %2426 = vmatprep.subr.bf16.mxu0 0
    %2427 = vmatpush1.bf16.msra.mxu0 %v2405
    %2428 = vmatprep.subr.bf16.mxu0 0
    %2429 = vmatpush1.bf16.msra.mxu0 %v2406
    %2430 = vmatprep.subr.bf16.mxu0 0
    %2431 = vmatpush1.bf16.msra.mxu0 %v2407
    %2432 = vmatprep.subr.bf16.mxu0 0
    %2433 = vmatpush1.bf16.msra.mxu0 0
    %2434 = vmatprep.subr.bf16.mxu0 0
    %2435 = vmatpush1.bf16.msra.mxu0 0
    %2436 = vmatprep.subr.bf16.mxu0 0
    %2437 = vmatpush1.bf16.msra.mxu0 0
    %2438 = vmatprep.subr.bf16.mxu0 0
    %2439 = vmatpush1.bf16.msra.mxu0 0
    %2440 = vmatprep.subr.bf16.mxu0 0
    %2441 = vmatpush1.bf16.msra.mxu0 0
    %2442 = vmatprep.subr.bf16.mxu0 0
    %2443 = vmatpush1.bf16.msra.mxu0 0
    %2444 = vmatprep.subr.bf16.mxu0 0
    %2445 = vmatpush1.bf16.msra.mxu0 0
    %2446 = vmatprep.subr.bf16.mxu0 0
    %2447 = vmatpush1.bf16.msra.mxu0 0
    %2448 = vmatprep.mubr.bf16.mxu0 0
    %2449 = vmatmul.mubr.bf16.gmra.mrb[0].mxu0 %v2357
    %v2450 = vpop.f32.mrb[0].mxu0
    %v2451 = vadd.f32 %v2328, %v2450
    %v2452 = vpop.f32.mrb[0].mxu0
    %v2453 = vpop.f32.mrb[0].mxu0
    %v2454 = vadd.f32 %v2331, %v2453
    %v2455 = vpop.f32.mrb[0].mxu0
    %2456 = vmatprep.mubr.bf16.mxu0 0
    %2457 = vmatmul.mubr.bf16.gmra.mrb[0].mxu0 %v2365
    %v2458 = vpop.f32.mrb[0].mxu0
    %v2459 = vadd.f32 %v2336, %v2458
    %v2460 = vpop.f32.mrb[0].mxu0
    %v2461 = vpop.f32.mrb[0].mxu0
    %v2462 = vpop.f32.mrb[0].mxu0
    %2463 = vdwg.mxu0
    %v2464 = vrot.slane %v2123, 7
    %v2465 = vrot.slane %v2464, 2
    %v2466 = vrot.slane %v2131, 7
    %v2467 = vsel %vm542, %v2465, %v2466
    %v2468 = vrot.slane %v2466, 2
    %v2469 = vrot.slane %v2130, 7
    %v2470 = vsel %vm542, %v2468, %v2469
    %v2471 = vrot.slane %v2469, 2
    %v2472 = vrot.slane %v2148, 7
    %v2473 = vsel %vm542, %v2471, %v2472
    %v2474 = vrot.slane %v2139, 7
    %v2475 = vrot.slane %v2474, 2
    %v2476 = vrot.slane %v2147, 7
    %v2477 = vsel %vm542, %v2475, %v2476
    %v2478 = vrot.slane %v2476, 2
    %v2479 = vrot.slane %v2146, 7
    %v2480 = vsel %vm542, %v2478, %v2479
    %v2481 = vrot.slane %v2479, 2
    %v2482 = vrot.slane %v2149, 7
    %v2483 = vsel %vm542, %v2481, %v2482
    %v2484 = vcombine.low %v2467, %v2470
    %v2485 = vcombine.low %v2473, %v2477
    %v2487 = vunpack.c.l.s4 1983009808
    %v2488 = vunpack.c.0.s8 %v2487
    %v2489 = vlaneseq
    %v2490 = vshrl.u32 %v2489, 7
    %v2491 = vsub.s32 %v2488, %v2490
    %v2492 = vrot.slane %v2484, %v2491
    %v2494 = vunpack.c.l.s4 1983009808
    %v2495 = vunpack.c.0.s8 %v2494
    %v2496 = vlaneseq
    %v2497 = vshrl.u32 %v2496, 7
    %v2498 = vsub.s32 %v2495, %v2497
    %v2499 = vrot.slane %v2485, %v2498
    %v2500 = vcombine.low %v2492, %v2499
    %v2501 = vcombine.low %v2480, %v2483
    %v2503 = vunpack.c.l.s4 1983009808
    %v2504 = vunpack.c.0.s8 %v2503
    %v2505 = vlaneseq
    %v2506 = vshrl.u32 %v2505, 7
    %v2507 = vsub.s32 %v2504, %v2506
    %v2508 = vrot.slane %v2501, %v2507
    %v2527 = vunpack.c.l.b16 %v2064
    %v2528 = vunpack.c.l.b16 %v2065
    %v2529 = vunpack.c.l.b16 %v2066
    %v2530 = vunpack.c.l.b16 %v2067
    %v2531 = vunpack.c.l.b16 %v2068
    %v2532 = vunpack.c.l.b16 %v2069
    %v2533 = vunpack.c.l.b16 %v2070
    %v2534 = vunpack.c.l.b16 %v2071
    %v2535 = vunpack.c.l.b16 %v2072
    %v2536 = vunpack.c.l.b16 %v2073
    %v2537 = vunpack.c.l.b16 %v2074
    %v2538 = vunpack.c.l.b16 %v2075
    %v2539 = vunpack.c.l.b16 %v2076
    %v2540 = vunpack.c.l.b16 %v2077
    %v2541 = vunpack.c.l.b16 %v2078
    %v2542 = vunpack.c.l.b16 %v2079
    %v2543 = vpack.c.b16 %v2528, %v2527
    %v2544 = vpack.c.b16 %v2530, %v2529
    %v2545 = vpack.c.b16 %v2532, %v2531
    %v2546 = vpack.c.b16 %v2534, %v2533
    %v2547 = vpack.c.b16 %v2536, %v2535
    %v2548 = vpack.c.b16 %v2538, %v2537
    %v2549 = vpack.c.b16 %v2540, %v2539
    %v2550 = vpack.c.b16 %v2542, %v2541
    %2559 = vmatprep.subr.bf16.mxu0 0
    %2560 = vmatpush1.bf16.msra.mxu0 %v2543
    %2561 = vmatprep.subr.bf16.mxu0 0
    %2562 = vmatpush1.bf16.msra.mxu0 %v2544
    %2563 = vmatprep.subr.bf16.mxu0 0
    %2564 = vmatpush1.bf16.msra.mxu0 %v2545
    %2565 = vmatprep.subr.bf16.mxu0 0
    %2566 = vmatpush1.bf16.msra.mxu0 %v2546
    %2567 = vmatprep.subr.bf16.mxu0 0
    %2568 = vmatpush1.bf16.msra.mxu0 %v2547
    %2569 = vmatprep.subr.bf16.mxu0 0
    %2570 = vmatpush1.bf16.msra.mxu0 %v2548
    %2571 = vmatprep.subr.bf16.mxu0 0
    %2572 = vmatpush1.bf16.msra.mxu0 %v2549
    %2573 = vmatprep.subr.bf16.mxu0 0
    %2574 = vmatpush1.bf16.msra.mxu0 %v2550
    %2575 = vmatprep.subr.bf16.mxu0 0
    %2576 = vmatpush1.bf16.msra.mxu0 0
    %2577 = vmatprep.subr.bf16.mxu0 0
    %2578 = vmatpush1.bf16.msra.mxu0 0
    %2579 = vmatprep.subr.bf16.mxu0 0
    %2580 = vmatpush1.bf16.msra.mxu0 0
    %2581 = vmatprep.subr.bf16.mxu0 0
    %2582 = vmatpush1.bf16.msra.mxu0 0
    %2583 = vmatprep.subr.bf16.mxu0 0
    %2584 = vmatpush1.bf16.msra.mxu0 0
    %2585 = vmatprep.subr.bf16.mxu0 0
    %2586 = vmatpush1.bf16.msra.mxu0 0
    %2587 = vmatprep.subr.bf16.mxu0 0
    %2588 = vmatpush1.bf16.msra.mxu0 0
    %2589 = vmatprep.subr.bf16.mxu0 0
    %2590 = vmatpush1.bf16.msra.mxu0 0
    %2591 = vmatprep.mubr.bf16.mxu0 0
    %2592 = vmatmul.mubr.bf16.gmra.mrb[0].mxu0 %v2500
    %v2593 = vpop.f32.mrb[0].mxu0
    %v2594 = vadd.f32 0.0, %v2593
    %v2595 = vpop.f32.mrb[0].mxu0
    %v2596 = vpop.f32.mrb[0].mxu0
    %v2597 = vadd.f32 0.0, %v2596
    %v2598 = vpop.f32.mrb[0].mxu0
    %2599 = vmatprep.mubr.bf16.mxu0 0
    %2600 = vmatmul.mubr.bf16.gmra.mrb[0].mxu0 %v2508
    %v2601 = vpop.f32.mrb[0].mxu0
    %v2602 = vadd.f32 0.0, %v2601
    %v2603 = vpop.f32.mrb[0].mxu0
    %v2604 = vpop.f32.mrb[0].mxu0
    %v2605 = vpop.f32.mrb[0].mxu0
    %2606 = vdwg.mxu0
    %v2607 = vadd.f32 %v2451, %v2594
    %v2608 = vadd.f32 %v2454, %v2597
    %v2609 = vadd.f32 %v2459, %v2602
    %v2610 = vadd.f32 %v2607, %v2608
    %v2611 = vadd.f32 %v2610, %v2609
    %v2612 = vrot.slane %v2611, 4
    %v2613 = vadd.f32 %v2611, %v2612
    %v2614 = vrot.slane %v2613, 2
    %v2615 = vadd.f32 %v2613, %v2614
    %v2616 = vrot.slane %v2615, 1
    %v2617 = vadd.f32 %v2615, %v2616
    %v2618 = vmul.f32 %v2617, %v697
    %v2619 = vsub.f32 %v2607, %v2618
    %v2620 = vsub.f32 %v2608, %v2618
    %v2621 = vsub.f32 %v2609, %v2618
    %v2622 = vmul.f32 %v2619, %v2619
    %v2623 = vmul.f32 %v2620, %v2620
    %v2624 = vmul.f32 %v2621, %v2621
    %v2625 = vadd.f32 %v2622, %v2623
    %v2626 = vadd.f32 %v2625, %v2624
    %v2627 = vrot.slane %v2626, 4
    %v2628 = vadd.f32 %v2626, %v2627
    %v2629 = vrot.slane %v2628, 2
    %v2630 = vadd.f32 %v2628, %v2629
    %v2631 = vrot.slane %v2630, 1
    %v2632 = vadd.f32 %v2630, %v2631
    %v2633 = vmul.f32 %v2632, %v697
    %v2634 = vadd.f32 %v2633, 1e-05
    %v2635 = vrsqrt.pop %v2634
    %v2636 = vmul.f32 %v2081, %v2635
    %v2638 = vlaneseq
    %v2639 = vshrl.u32 %v2638, 7
    %v2640 = vsub.s32 0, %v2639
    %v2641 = vrot.slane %v2636, %v2640
    %v2643 = vmul.f32 %v2619, %v2641
    %v2644 = vmul.f32 %v2620, %v2641
    %v2645 = vmul.f32 %v2621, %v2641
    %v2647 = vlaneseq
    %v2648 = vshrl.u32 %v2647, 7
    %v2649 = vsub.s32 0, %v2648
    %v2650 = vrot.slane %v2083, %v2649
    %v2652 = vadd.f32 %v2643, %v2650
    %v2653 = vadd.f32 %v2644, %v2650
    %v2654 = vadd.f32 %v2645, %v2650
    %v2658 = vcombine.high %v2652, %v2652
    %v2659 = vcombine.high %v2653, %v2653
    %v2660 = vcombine.high %v2654, %v2654
    %v2664 = vmax.f32 %v2652, 0.0
    %v2665 = vmax.f32 %v2658, 0.0
    %v2666 = vmax.f32 %v2653, 0.0
    %v2667 = vmax.f32 %v2659, 0.0
    %v2668 = vmax.f32 %v2654, 0.0
    %v2669 = vmax.f32 %v2660, 0.0
    %s2670 = scalar_lea.vmem [#allocation7], 576
    %v2671 = vld [vmem:[%s2670] sm:$0xf]
    %v2672 = vld [vmem:[%s2670 + $0x4] sm:$0xf]
    %v2673 = vld [vmem:[%s2670 + $0x8] sm:$0xf]
    %v2674 = vld [vmem:[%s2670 + $0xc] sm:$0xf]
    %v2675 = vld [vmem:[%s2670 + $0x10] sm:$0xf]
    %v2676 = vld [vmem:[%s2670 + $0x14] sm:$0xf]
    %v2677 = vld [vmem:[%s2670 + $0x18] sm:$0xf]
    %v2678 = vld [vmem:[%s2670 + $0x1c] sm:$0xf]
    %v2679 = vld [vmem:[%s2670 + $0x20] sm:$0xf]
    %v2680 = vld [vmem:[%s2670 + $0x24] sm:$0xf]
    %v2681 = vld [vmem:[%s2670 + $0x28] sm:$0xf]
    %v2682 = vld [vmem:[%s2670 + $0x2c] sm:$0xf]
    %v2683 = vld [vmem:[%s2670 + $0x30] sm:$0xf]
    %v2684 = vld [vmem:[%s2670 + $0x34] sm:$0xf]
    %v2685 = vld [vmem:[%s2670 + $0x38] sm:$0xf]
    %v2686 = vld [vmem:[%s2670 + $0x3c] sm:$0xf]
    %v2687 = vld [vmem:[%s2670 + $0x40] sm:$0xf]
    %v2688 = vld [vmem:[%s2670 + $0x44] sm:$0xf]
    %v2689 = vld [vmem:[%s2670 + $0x48] sm:$0xf]
    %v2690 = vld [vmem:[%s2670 + $0x4c] sm:$0xf]
    %v2691 = vld [vmem:[%s2670 + $0x50] sm:$0xf]
    %v2692 = vld [vmem:[%s2670 + $0x54] sm:$0xf]
    %v2693 = vld [vmem:[%s2670 + $0x58] sm:$0xf]
    %v2694 = vld [vmem:[%s2670 + $0x5c] sm:$0xf]
    %v2695 = vld [vmem:[%s2670 + $0x60] sm:$0xf]
    %v2696 = vld [vmem:[%s2670 + $0x64] sm:$0xf]
    %v2697 = vld [vmem:[%s2670 + $0x68] sm:$0xf]
    %v2698 = vld [vmem:[%s2670 + $0x6c] sm:$0xf]
    %v2699 = vld [vmem:[%s2670 + $0x70] sm:$0xf]
    %v2700 = vld [vmem:[%s2670 + $0x74] sm:$0xf]
    %v2701 = vld [vmem:[%s2670 + $0x78] sm:$0xf]
    %v2702 = vld [vmem:[%s2670 + $0x7c] sm:$0xf]
    %v2703 = vld [vmem:[%s2670 + $0x80] sm:$0xf]
    %v2704 = vld [vmem:[%s2670 + $0x84] sm:$0xf]
    %v2705 = vld [vmem:[%s2670 + $0x88] sm:$0xf]
    %v2706 = vld [vmem:[%s2670 + $0x8c] sm:$0xf]
    %v2707 = vld [vmem:[%s2670 + $0x90] sm:$0xf]
    %v2708 = vld [vmem:[%s2670 + $0x94] sm:$0xf]
    %v2709 = vld [vmem:[%s2670 + $0x98] sm:$0xf]
    %v2710 = vld [vmem:[%s2670 + $0x9c] sm:$0xf]
    %v2711 = vld [vmem:[%s2670 + $0xa0] sm:$0xf]
    %v2712 = vld [vmem:[%s2670 + $0xa4] sm:$0xf]
    %v2713 = vld [vmem:[%s2670 + $0xa8] sm:$0xf]
    %v2714 = vld [vmem:[%s2670 + $0xac] sm:$0xf]
    %v2715 = vld [vmem:[%s2670 + $0xb0] sm:$0xf]
    %v2716 = vld [vmem:[%s2670 + $0xb4] sm:$0xf]
    %v2717 = vld [vmem:[%s2670 + $0xb8] sm:$0xf]
    %v2718 = vld [vmem:[%s2670 + $0xbc] sm:$0xf]
    %s2719 = scalar_lea.vmem %s7, 3
    %v2720 = vld [vmem:[%s2719] sm:$0x1]
    %s2721 = scalar_lea.vmem %s8, 3
    %v2722 = vld [vmem:[%s2721] sm:$0x1]
    %v2727 = vcombine.low %v2664, %v2665
    %v2728 = vcombine.low %v2667, %v2668
    %v2731 = vpack.c.bf16 %v2666, %v2727
    %v2732 = vpack.c.bf16 %v2669, %v2728
    %v2734 = vshrl.u32 %v2731, 16
    %v2736 = vrot.slane %v2734, 7
    %v2737 = vshll.u32 %v2731, 16
    %v2739 = vor.u32 %v2736, %v2737
    %v2741 = vshrl.u32 %v2732, 16
    %v2743 = vrot.slane %v2741, 7
    %v2744 = vshll.u32 %v2732, 16
    %v2746 = vor.u32 %v2743, %v2744
    %v2749 = vsel %vm172, 0, %v2739
    %v2750 = vsel %vm172, 0, %v2746
    %v2751 = vsel %vm177, %v2749, 0
    %v2752 = vsel %vm177, %v2750, 0
    %v2755 = vcombine.high %v2751, %v2751
    %v2757 = vunpack.c.l.s4 1983009808
    %v2758 = vunpack.c.0.s8 %v2757
    %v2759 = vlaneseq
    %v2760 = vshrl.u32 %v2759, 7
    %v2761 = vsub.s32 %v2758, %v2760
    %v2762 = vrot.slane %v2751, %v2761
    %v2764 = vunpack.c.l.s4 1983009808
    %v2765 = vunpack.c.0.s8 %v2764
    %v2766 = vlaneseq
    %v2767 = vshrl.u32 %v2766, 7
    %v2768 = vsub.s32 %v2765, %v2767
    %v2769 = vrot.slane %v2755, %v2768
    %v2770 = vcombine.high %v2762, %v2762
    %v2771 = vcombine.high %v2752, %v2752
    %v2773 = vunpack.c.l.s4 1983009808
    %v2774 = vunpack.c.0.s8 %v2773
    %v2775 = vlaneseq
    %v2776 = vshrl.u32 %v2775, 7
    %v2777 = vsub.s32 %v2774, %v2776
    %v2778 = vrot.slane %v2752, %v2777
    %v2780 = vunpack.c.l.s4 1983009808
    %v2781 = vunpack.c.0.s8 %v2780
    %v2782 = vlaneseq
    %v2783 = vshrl.u32 %v2782, 7
    %v2784 = vsub.s32 %v2781, %v2783
    %v2785 = vrot.slane %v2771, %v2784
    %v2786 = vcombine.high %v2778, %v2778
    %v2787 = vcombine.high %v2769, %v2769
    %v2788 = vcombine.high %v2785, %v2785
    %v2790 = vshrl.u32 %v2762, 16
    %v2792 = vrot.slane %v2790, 6
    %v2793 = vshll.u32 %v2762, 16
    %v2795 = vrot.slane %v2793, 7
    %v2796 = vor.u32 %v2792, %v2795
    %v2797 = vrot.slane %v2796, 2
    %v2799 = vshll.u32 %v2770, 16
    %v2801 = vrot.slane %v2799, 7
    %v2802 = vsel %vm222, %v2797, %v2801
    %v2803 = vshrl.u32 %v2770, 16
    %v2805 = vrot.slane %v2803, 6
    %v2806 = vor.u32 %v2805, %v2801
    %v2807 = vrot.slane %v2806, 2
    %v2809 = vshll.u32 %v2769, 16
    %v2811 = vrot.slane %v2809, 7
    %v2812 = vsel %vm222, %v2807, %v2811
    %v2813 = vshrl.u32 %v2769, 16
    %v2815 = vrot.slane %v2813, 6
    %v2816 = vor.u32 %v2815, %v2811
    %v2817 = vrot.slane %v2816, 2
    %v2819 = vshll.u32 %v2787, 16
    %v2821 = vrot.slane %v2819, 7
    %v2822 = vsel %vm222, %v2817, %v2821
    %v2824 = vshrl.u32 %v2778, 16
    %v2826 = vrot.slane %v2824, 6
    %v2827 = vshll.u32 %v2778, 16
    %v2829 = vrot.slane %v2827, 7
    %v2830 = vor.u32 %v2826, %v2829
    %v2831 = vrot.slane %v2830, 2
    %v2833 = vshll.u32 %v2786, 16
    %v2835 = vrot.slane %v2833, 7
    %v2836 = vsel %vm222, %v2831, %v2835
    %v2837 = vshrl.u32 %v2786, 16
    %v2839 = vrot.slane %v2837, 6
    %v2840 = vor.u32 %v2839, %v2835
    %v2841 = vrot.slane %v2840, 2
    %v2843 = vshll.u32 %v2785, 16
    %v2845 = vrot.slane %v2843, 7
    %v2846 = vsel %vm222, %v2841, %v2845
    %v2847 = vshrl.u32 %v2785, 16
    %v2849 = vrot.slane %v2847, 6
    %v2850 = vor.u32 %v2849, %v2845
    %v2851 = vrot.slane %v2850, 2
    %v2853 = vshll.u32 %v2788, 16
    %v2855 = vrot.slane %v2853, 7
    %v2856 = vsel %vm222, %v2851, %v2855
    %v2857 = vcombine.low %v2802, %v2812
    %v2858 = vcombine.low %v2822, %v2836
    %v2860 = vunpack.c.l.s4 1983009808
    %v2861 = vunpack.c.0.s8 %v2860
    %v2862 = vlaneseq
    %v2863 = vshrl.u32 %v2862, 7
    %v2864 = vsub.s32 %v2861, %v2863
    %v2865 = vrot.slane %v2857, %v2864
    %v2867 = vunpack.c.l.s4 1983009808
    %v2868 = vunpack.c.0.s8 %v2867
    %v2869 = vlaneseq
    %v2870 = vshrl.u32 %v2869, 7
    %v2871 = vsub.s32 %v2868, %v2870
    %v2872 = vrot.slane %v2858, %v2871
    %v2873 = vcombine.low %v2865, %v2872
    %v2874 = vcombine.low %v2846, %v2856
    %v2876 = vunpack.c.l.s4 1983009808
    %v2877 = vunpack.c.0.s8 %v2876
    %v2878 = vlaneseq
    %v2879 = vshrl.u32 %v2878, 7
    %v2880 = vsub.s32 %v2877, %v2879
    %v2881 = vrot.slane %v2874, %v2880
    %v2900 = vunpack.c.l.b16 %v2687
    %v2901 = vunpack.c.l.b16 %v2688
    %v2902 = vunpack.c.l.b16 %v2689
    %v2903 = vunpack.c.l.b16 %v2690
    %v2904 = vunpack.c.l.b16 %v2691
    %v2905 = vunpack.c.l.b16 %v2692
    %v2906 = vunpack.c.l.b16 %v2693
    %v2907 = vunpack.c.l.b16 %v2694
    %v2908 = vunpack.c.l.b16 %v2695
    %v2909 = vunpack.c.l.b16 %v2696
    %v2910 = vunpack.c.l.b16 %v2697
    %v2911 = vunpack.c.l.b16 %v2698
    %v2912 = vunpack.c.l.b16 %v2699
    %v2913 = vunpack.c.l.b16 %v2700
    %v2914 = vunpack.c.l.b16 %v2701
    %v2915 = vunpack.c.l.b16 %v2702
    %v2916 = vpack.c.b16 %v2901, %v2900
    %v2917 = vpack.c.b16 %v2903, %v2902
    %v2918 = vpack.c.b16 %v2905, %v2904
    %v2919 = vpack.c.b16 %v2907, %v2906
    %v2920 = vpack.c.b16 %v2909, %v2908
    %v2921 = vpack.c.b16 %v2911, %v2910
    %v2922 = vpack.c.b16 %v2913, %v2912
    %v2923 = vpack.c.b16 %v2915, %v2914
    %2932 = vmatprep.subr.bf16.mxu0 0
    %2933 = vmatpush1.bf16.msra.mxu0 %v2916
    %2934 = vmatprep.subr.bf16.mxu0 0
    %2935 = vmatpush1.bf16.msra.mxu0 %v2917
    %2936 = vmatprep.subr.bf16.mxu0 0
    %2937 = vmatpush1.bf16.msra.mxu0 %v2918
    %2938 = vmatprep.subr.bf16.mxu0 0
    %2939 = vmatpush1.bf16.msra.mxu0 %v2919
    %2940 = vmatprep.subr.bf16.mxu0 0
    %2941 = vmatpush1.bf16.msra.mxu0 %v2920
    %2942 = vmatprep.subr.bf16.mxu0 0
    %2943 = vmatpush1.bf16.msra.mxu0 %v2921
    %2944 = vmatprep.subr.bf16.mxu0 0
    %2945 = vmatpush1.bf16.msra.mxu0 %v2922
    %2946 = vmatprep.subr.bf16.mxu0 0
    %2947 = vmatpush1.bf16.msra.mxu0 %v2923
    %2948 = vmatprep.subr.bf16.mxu0 0
    %2949 = vmatpush1.bf16.msra.mxu0 0
    %2950 = vmatprep.subr.bf16.mxu0 0
    %2951 = vmatpush1.bf16.msra.mxu0 0
    %2952 = vmatprep.subr.bf16.mxu0 0
    %2953 = vmatpush1.bf16.msra.mxu0 0
    %2954 = vmatprep.subr.bf16.mxu0 0
    %2955 = vmatpush1.bf16.msra.mxu0 0
    %2956 = vmatprep.subr.bf16.mxu0 0
    %2957 = vmatpush1.bf16.msra.mxu0 0
    %2958 = vmatprep.subr.bf16.mxu0 0
    %2959 = vmatpush1.bf16.msra.mxu0 0
    %2960 = vmatprep.subr.bf16.mxu0 0
    %2961 = vmatpush1.bf16.msra.mxu0 0
    %2962 = vmatprep.subr.bf16.mxu0 0
    %2963 = vmatpush1.bf16.msra.mxu0 0
    %2964 = vmatprep.mubr.bf16.mxu0 0
    %2965 = vmatmul.mubr.bf16.gmra.mrb[0].mxu0 %v2873
    %v2966 = vpop.f32.mrb[0].mxu0
    %v2967 = vadd.f32 0.0, %v2966
    %v2968 = vpop.f32.mrb[0].mxu0
    %v2969 = vpop.f32.mrb[0].mxu0
    %v2970 = vadd.f32 0.0, %v2969
    %v2971 = vpop.f32.mrb[0].mxu0
    %2972 = vmatprep.mubr.bf16.mxu0 0
    %2973 = vmatmul.mubr.bf16.gmra.mrb[0].mxu0 %v2881
    %v2974 = vpop.f32.mrb[0].mxu0
    %v2975 = vadd.f32 0.0, %v2974
    %v2976 = vpop.f32.mrb[0].mxu0
    %v2977 = vpop.f32.mrb[0].mxu0
    %v2978 = vpop.f32.mrb[0].mxu0
    %2979 = vdwg.mxu0
    %v2980 = vcombine.low %v2762, %v2770
    %v2981 = vcombine.low %v2769, %v2778
    %v2983 = vunpack.c.l.s4 1983009808
    %v2984 = vunpack.c.0.s8 %v2983
    %v2985 = vlaneseq
    %v2986 = vshrl.u32 %v2985, 7
    %v2987 = vsub.s32 %v2984, %v2986
    %v2988 = vrot.slane %v2980, %v2987
    %v2990 = vunpack.c.l.s4 1983009808
    %v2991 = vunpack.c.0.s8 %v2990
    %v2992 = vlaneseq
    %v2993 = vshrl.u32 %v2992, 7
    %v2994 = vsub.s32 %v2991, %v2993
    %v2995 = vrot.slane %v2981, %v2994
    %v2996 = vcombine.low %v2988, %v2995
    %v2997 = vcombine.low %v2786, %v2785
    %v2999 = vunpack.c.l.s4 1983009808
    %v3000 = vunpack.c.0.s8 %v2999
    %v3001 = vlaneseq
    %v3002 = vshrl.u32 %v3001, 7
    %v3003 = vsub.s32 %v3000, %v3002
    %v3004 = vrot.slane %v2997, %v3003
    %v3023 = vunpack.c.l.b16 %v2671
    %v3024 = vunpack.c.l.b16 %v2672
    %v3025 = vunpack.c.l.b16 %v2673
    %v3026 = vunpack.c.l.b16 %v2674
    %v3027 = vunpack.c.l.b16 %v2675
    %v3028 = vunpack.c.l.b16 %v2676
    %v3029 = vunpack.c.l.b16 %v2677
    %v3030 = vunpack.c.l.b16 %v2678
    %v3031 = vunpack.c.l.b16 %v2679
    %v3032 = vunpack.c.l.b16 %v2680
    %v3033 = vunpack.c.l.b16 %v2681
    %v3034 = vunpack.c.l.b16 %v2682
    %v3035 = vunpack.c.l.b16 %v2683
    %v3036 = vunpack.c.l.b16 %v2684
    %v3037 = vunpack.c.l.b16 %v2685
    %v3038 = vunpack.c.l.b16 %v2686
    %v3039 = vpack.c.b16 %v3024, %v3023
    %v3040 = vpack.c.b16 %v3026, %v3025
    %v3041 = vpack.c.b16 %v3028, %v3027
    %v3042 = vpack.c.b16 %v3030, %v3029
    %v3043 = vpack.c.b16 %v3032, %v3031
    %v3044 = vpack.c.b16 %v3034, %v3033
    %v3045 = vpack.c.b16 %v3036, %v3035
    %v3046 = vpack.c.b16 %v3038, %v3037
    %3055 = vmatprep.subr.bf16.mxu0 0
    %3056 = vmatpush1.bf16.msra.mxu0 %v3039
    %3057 = vmatprep.subr.bf16.mxu0 0
    %3058 = vmatpush1.bf16.msra.mxu0 %v3040
    %3059 = vmatprep.subr.bf16.mxu0 0
    %3060 = vmatpush1.bf16.msra.mxu0 %v3041
    %3061 = vmatprep.subr.bf16.mxu0 0
    %3062 = vmatpush1.bf16.msra.mxu0 %v3042
    %3063 = vmatprep.subr.bf16.mxu0 0
    %3064 = vmatpush1.bf16.msra.mxu0 %v3043
    %3065 = vmatprep.subr.bf16.mxu0 0
    %3066 = vmatpush1.bf16.msra.mxu0 %v3044
    %3067 = vmatprep.subr.bf16.mxu0 0
    %3068 = vmatpush1.bf16.msra.mxu0 %v3045
    %3069 = vmatprep.subr.bf16.mxu0 0
    %3070 = vmatpush1.bf16.msra.mxu0 %v3046
    %3071 = vmatprep.subr.bf16.mxu0 0
    %3072 = vmatpush1.bf16.msra.mxu0 0
    %3073 = vmatprep.subr.bf16.mxu0 0
    %3074 = vmatpush1.bf16.msra.mxu0 0
    %3075 = vmatprep.subr.bf16.mxu0 0
    %3076 = vmatpush1.bf16.msra.mxu0 0
    %3077 = vmatprep.subr.bf16.mxu0 0
    %3078 = vmatpush1.bf16.msra.mxu0 0
    %3079 = vmatprep.subr.bf16.mxu0 0
    %3080 = vmatpush1.bf16.msra.mxu0 0
    %3081 = vmatprep.subr.bf16.mxu0 0
    %3082 = vmatpush1.bf16.msra.mxu0 0
    %3083 = vmatprep.subr.bf16.mxu0 0
    %3084 = vmatpush1.bf16.msra.mxu0 0
    %3085 = vmatprep.subr.bf16.mxu0 0
    %3086 = vmatpush1.bf16.msra.mxu0 0
    %3087 = vmatprep.mubr.bf16.mxu0 0
    %3088 = vmatmul.mubr.bf16.gmra.mrb[0].mxu0 %v2996
    %v3089 = vpop.f32.mrb[0].mxu0
    %v3090 = vadd.f32 %v2967, %v3089
    %v3091 = vpop.f32.mrb[0].mxu0
    %v3092 = vpop.f32.mrb[0].mxu0
    %v3093 = vadd.f32 %v2970, %v3092
    %v3094 = vpop.f32.mrb[0].mxu0
    %3095 = vmatprep.mubr.bf16.mxu0 0
    %3096 = vmatmul.mubr.bf16.gmra.mrb[0].mxu0 %v3004
    %v3097 = vpop.f32.mrb[0].mxu0
    %v3098 = vadd.f32 %v2975, %v3097
    %v3099 = vpop.f32.mrb[0].mxu0
    %v3100 = vpop.f32.mrb[0].mxu0
    %v3101 = vpop.f32.mrb[0].mxu0
    %3102 = vdwg.mxu0
    %v3103 = vrot.slane %v2762, 7
    %v3104 = vrot.slane %v3103, 2
    %v3105 = vrot.slane %v2770, 7
    %v3106 = vsel %vm542, %v3104, %v3105
    %v3107 = vrot.slane %v3105, 2
    %v3108 = vrot.slane %v2769, 7
    %v3109 = vsel %vm542, %v3107, %v3108
    %v3110 = vrot.slane %v3108, 2
    %v3111 = vrot.slane %v2787, 7
    %v3112 = vsel %vm542, %v3110, %v3111
    %v3113 = vrot.slane %v2778, 7
    %v3114 = vrot.slane %v3113, 2
    %v3115 = vrot.slane %v2786, 7
    %v3116 = vsel %vm542, %v3114, %v3115
    %v3117 = vrot.slane %v3115, 2
    %v3118 = vrot.slane %v2785, 7
    %v3119 = vsel %vm542, %v3117, %v3118
    %v3120 = vrot.slane %v3118, 2
    %v3121 = vrot.slane %v2788, 7
    %v3122 = vsel %vm542, %v3120, %v3121
    %v3123 = vcombine.low %v3106, %v3109
    %v3124 = vcombine.low %v3112, %v3116
    %v3126 = vunpack.c.l.s4 1983009808
    %v3127 = vunpack.c.0.s8 %v3126
    %v3128 = vlaneseq
    %v3129 = vshrl.u32 %v3128, 7
    %v3130 = vsub.s32 %v3127, %v3129
    %v3131 = vrot.slane %v3123, %v3130
    %v3133 = vunpack.c.l.s4 1983009808
    %v3134 = vunpack.c.0.s8 %v3133
    %v3135 = vlaneseq
    %v3136 = vshrl.u32 %v3135, 7
    %v3137 = vsub.s32 %v3134, %v3136
    %v3138 = vrot.slane %v3124, %v3137
    %v3139 = vcombine.low %v3131, %v3138
    %v3140 = vcombine.low %v3119, %v3122
    %v3142 = vunpack.c.l.s4 1983009808
    %v3143 = vunpack.c.0.s8 %v3142
    %v3144 = vlaneseq
    %v3145 = vshrl.u32 %v3144, 7
    %v3146 = vsub.s32 %v3143, %v3145
    %v3147 = vrot.slane %v3140, %v3146
    %v3166 = vunpack.c.l.b16 %v2703
    %v3167 = vunpack.c.l.b16 %v2704
    %v3168 = vunpack.c.l.b16 %v2705
    %v3169 = vunpack.c.l.b16 %v2706
    %v3170 = vunpack.c.l.b16 %v2707
    %v3171 = vunpack.c.l.b16 %v2708
    %v3172 = vunpack.c.l.b16 %v2709
    %v3173 = vunpack.c.l.b16 %v2710
    %v3174 = vunpack.c.l.b16 %v2711
    %v3175 = vunpack.c.l.b16 %v2712
    %v3176 = vunpack.c.l.b16 %v2713
    %v3177 = vunpack.c.l.b16 %v2714
    %v3178 = vunpack.c.l.b16 %v2715
    %v3179 = vunpack.c.l.b16 %v2716
    %v3180 = vunpack.c.l.b16 %v2717
    %v3181 = vunpack.c.l.b16 %v2718
    %v3182 = vpack.c.b16 %v3167, %v3166
    %v3183 = vpack.c.b16 %v3169, %v3168
    %v3184 = vpack.c.b16 %v3171, %v3170
    %v3185 = vpack.c.b16 %v3173, %v3172
    %v3186 = vpack.c.b16 %v3175, %v3174
    %v3187 = vpack.c.b16 %v3177, %v3176
    %v3188 = vpack.c.b16 %v3179, %v3178
    %v3189 = vpack.c.b16 %v3181, %v3180
    %3198 = vmatprep.subr.bf16.mxu0 0
    %3199 = vmatpush1.bf16.msra.mxu0 %v3182
    %3200 = vmatprep.subr.bf16.mxu0 0
    %3201 = vmatpush1.bf16.msra.mxu0 %v3183
    %3202 = vmatprep.subr.bf16.mxu0 0
    %3203 = vmatpush1.bf16.msra.mxu0 %v3184
    %3204 = vmatprep.subr.bf16.mxu0 0
    %3205 = vmatpush1.bf16.msra.mxu0 %v3185
    %3206 = vmatprep.subr.bf16.mxu0 0
    %3207 = vmatpush1.bf16.msra.mxu0 %v3186
    %3208 = vmatprep.subr.bf16.mxu0 0
    %3209 = vmatpush1.bf16.msra.mxu0 %v3187
    %3210 = vmatprep.subr.bf16.mxu0 0
    %3211 = vmatpush1.bf16.msra.mxu0 %v3188
    %3212 = vmatprep.subr.bf16.mxu0 0
    %3213 = vmatpush1.bf16.msra.mxu0 %v3189
    %3214 = vmatprep.subr.bf16.mxu0 0
    %3215 = vmatpush1.bf16.msra.mxu0 0
    %3216 = vmatprep.subr.bf16.mxu0 0
    %3217 = vmatpush1.bf16.msra.mxu0 0
    %3218 = vmatprep.subr.bf16.mxu0 0
    %3219 = vmatpush1.bf16.msra.mxu0 0
    %3220 = vmatprep.subr.bf16.mxu0 0
    %3221 = vmatpush1.bf16.msra.mxu0 0
    %3222 = vmatprep.subr.bf16.mxu0 0
    %3223 = vmatpush1.bf16.msra.mxu0 0
    %3224 = vmatprep.subr.bf16.mxu0 0
    %3225 = vmatpush1.bf16.msra.mxu0 0
    %3226 = vmatprep.subr.bf16.mxu0 0
    %3227 = vmatpush1.bf16.msra.mxu0 0
    %3228 = vmatprep.subr.bf16.mxu0 0
    %3229 = vmatpush1.bf16.msra.mxu0 0
    %3230 = vmatprep.mubr.bf16.mxu0 0
    %3231 = vmatmul.mubr.bf16.gmra.mrb[0].mxu0 %v3139
    %v3232 = vpop.f32.mrb[0].mxu0
    %v3233 = vadd.f32 0.0, %v3232
    %v3234 = vpop.f32.mrb[0].mxu0
    %v3235 = vpop.f32.mrb[0].mxu0
    %v3236 = vadd.f32 0.0, %v3235
    %v3237 = vpop.f32.mrb[0].mxu0
    %3238 = vmatprep.mubr.bf16.mxu0 0
    %3239 = vmatmul.mubr.bf16.gmra.mrb[0].mxu0 %v3147
    %v3240 = vpop.f32.mrb[0].mxu0
    %v3241 = vadd.f32 0.0, %v3240
    %v3242 = vpop.f32.mrb[0].mxu0
    %v3243 = vpop.f32.mrb[0].mxu0
    %v3244 = vpop.f32.mrb[0].mxu0
    %3245 = vdwg.mxu0
    %v3246 = vadd.f32 %v3090, %v3233
    %v3247 = vadd.f32 %v3093, %v3236
    %v3248 = vadd.f32 %v3098, %v3241
    %v3249 = vadd.f32 %v3246, %v3247
    %v3250 = vadd.f32 %v3249, %v3248
    %v3251 = vrot.slane %v3250, 4
    %v3252 = vadd.f32 %v3250, %v3251
    %v3253 = vrot.slane %v3252, 2
    %v3254 = vadd.f32 %v3252, %v3253
    %v3255 = vrot.slane %v3254, 1
    %v3256 = vadd.f32 %v3254, %v3255
    %v3257 = vmul.f32 %v3256, %v697
    %v3258 = vsub.f32 %v3246, %v3257
    %v3259 = vsub.f32 %v3247, %v3257
    %v3260 = vsub.f32 %v3248, %v3257
    %v3261 = vmul.f32 %v3258, %v3258
    %v3262 = vmul.f32 %v3259, %v3259
    %v3263 = vmul.f32 %v3260, %v3260
    %v3264 = vadd.f32 %v3261, %v3262
    %v3265 = vadd.f32 %v3264, %v3263
    %v3266 = vrot.slane %v3265, 4
    %v3267 = vadd.f32 %v3265, %v3266
    %v3268 = vrot.slane %v3267, 2
    %v3269 = vadd.f32 %v3267, %v3268
    %v3270 = vrot.slane %v3269, 1
    %v3271 = vadd.f32 %v3269, %v3270
    %v3272 = vmul.f32 %v3271, %v697
    %v3273 = vadd.f32 %v3272, 1e-05
    %v3274 = vrsqrt.pop %v3273
    %v3275 = vmul.f32 %v2720, %v3274
    %v3277 = vlaneseq
    %v3278 = vshrl.u32 %v3277, 7
    %v3279 = vsub.s32 0, %v3278
    %v3280 = vrot.slane %v3275, %v3279
    %v3282 = vmul.f32 %v3258, %v3280
    %v3283 = vmul.f32 %v3259, %v3280
    %v3284 = vmul.f32 %v3260, %v3280
    %v3286 = vlaneseq
    %v3287 = vshrl.u32 %v3286, 7
    %v3288 = vsub.s32 0, %v3287
    %v3289 = vrot.slane %v2722, %v3288
    %v3291 = vadd.f32 %v3282, %v3289
    %v3292 = vadd.f32 %v3283, %v3289
    %v3293 = vadd.f32 %v3284, %v3289
    %v3297 = vcombine.high %v3291, %v3291
    %v3298 = vcombine.high %v3292, %v3292
    %v3299 = vcombine.high %v3293, %v3293
    %v3303 = vadd.f32 %v3291, %v2025
    %v3304 = vadd.f32 %v3297, %v2026
    %v3305 = vadd.f32 %v3292, %v2027
    %v3306 = vadd.f32 %v3298, %v2028
    %v3307 = vadd.f32 %v3293, %v2029
    %v3308 = vadd.f32 %v3299, %v2030
    %v3309 = vmax.f32 %v3303, 0.0
    %v3310 = vmax.f32 %v3304, 0.0
    %v3311 = vmax.f32 %v3305, 0.0
    %v3312 = vmax.f32 %v3306, 0.0
    %v3313 = vmax.f32 %v3307, 0.0
    %v3314 = vmax.f32 %v3308, 0.0
    %v3321 = vcombine.low %v3309, %v3310
    %v3322 = vcombine.low %v3311, %v3312
    %v3323 = vcombine.low %v3313, %v3314
    %v3327 = vpack.c.bf16 %v3322, %v3321
    %v3328 = vpack.c.bf16 %v3323, %v3323
    %v3329 = vld [vmem:[#allocation9] sm:$0xff]
    %v3330 = vld [vmem:[#allocation9 + $0x8] sm:$0xff]
    %v3331 = vld [vmem:[#allocation9 + $0x10] sm:$0xff]
    %v3332 = vld [vmem:[#allocation9 + $0x18] sm:$0xff]
    %v3333 = vld [vmem:[#allocation9 + $0x20] sm:$0xff]
    %v3334 = vld [vmem:[#allocation9 + $0x28] sm:$0xff]
    %v3335 = vld [vmem:[#allocation9 + $0x30] sm:$0xff]
    %v3336 = vld [vmem:[#allocation9 + $0x38] sm:$0xff]
    %v3337 = vld [vmem:[#allocation9 + $0x40] sm:$0xff]
    %v3338 = vld [vmem:[#allocation9 + $0x48] sm:$0xff]
    %v3339 = vld [vmem:[#allocation9 + $0x50] sm:$0xff]
    %v3340 = vld [vmem:[#allocation9 + $0x58] sm:$0xff]
    %v3341 = vld [vmem:[#allocation9 + $0x60] sm:$0xff]
    %v3342 = vld [vmem:[#allocation9 + $0x68] sm:$0xff]
    %v3343 = vld [vmem:[#allocation9 + $0x70] sm:$0xff]
    %v3344 = vld [vmem:[#allocation9 + $0x78] sm:$0xff]
    %v3345 = vld [vmem:[%s10] sm:$0x3]
    %v3347 = vlaneseq
    %v3348 = vshrl.u32 %v3347, 7
    %v3349 = vsub.s32 0, %v3348
    %v3350 = vrot.slane %v3345, %v3349
    %v3351 = vlaneseq
    %v3352 = vshrl.u32 %v3351, 7
    %v3353 = vsub.s32 1, %v3352
    %v3354 = vrot.slane %v3345, %v3353
    %v3373 = vunpack.c.l.b16 %v3329
    %v3374 = vunpack.c.h.b16 %v3329
    %v3375 = vunpack.c.l.b16 %v3330
    %v3376 = vunpack.c.h.b16 %v3330
    %v3377 = vunpack.c.l.b16 %v3331
    %v3378 = vunpack.c.h.b16 %v3331
    %v3379 = vunpack.c.l.b16 %v3332
    %v3380 = vunpack.c.h.b16 %v3332
    %v3381 = vunpack.c.l.b16 %v3333
    %v3382 = vunpack.c.h.b16 %v3333
    %v3383 = vunpack.c.l.b16 %v3334
    %v3384 = vunpack.c.h.b16 %v3334
    %v3385 = vunpack.c.l.b16 %v3335
    %v3386 = vunpack.c.h.b16 %v3335
    %v3387 = vunpack.c.l.b16 %v3336
    %v3388 = vunpack.c.h.b16 %v3336
    %v3389 = vunpack.c.l.b16 %v3337
    %v3390 = vunpack.c.h.b16 %v3337
    %v3391 = vunpack.c.l.b16 %v3338
    %v3392 = vunpack.c.h.b16 %v3338
    %v3393 = vunpack.c.l.b16 %v3339
    %v3394 = vunpack.c.h.b16 %v3339
    %v3395 = vunpack.c.l.b16 %v3340
    %v3396 = vunpack.c.h.b16 %v3340
    %v3397 = vunpack.c.l.b16 %v3341
    %v3398 = vunpack.c.h.b16 %v3341
    %v3399 = vunpack.c.l.b16 %v3342
    %v3400 = vunpack.c.h.b16 %v3342
    %v3401 = vunpack.c.l.b16 %v3343
    %v3402 = vunpack.c.h.b16 %v3343
    %v3403 = vunpack.c.l.b16 %v3344
    %v3404 = vunpack.c.h.b16 %v3344
    %v3405 = vpack.c.b16 %v3375, %v3373
    %v3406 = vpack.c.b16 %v3376, %v3374
    %v3407 = vpack.c.b16 %v3379, %v3377
    %v3408 = vpack.c.b16 %v3380, %v3378
    %v3409 = vpack.c.b16 %v3383, %v3381
    %v3410 = vpack.c.b16 %v3384, %v3382
    %v3411 = vpack.c.b16 %v3387, %v3385
    %v3412 = vpack.c.b16 %v3388, %v3386
    %v3413 = vpack.c.b16 %v3391, %v3389
    %v3414 = vpack.c.b16 %v3392, %v3390
    %v3415 = vpack.c.b16 %v3395, %v3393
    %v3416 = vpack.c.b16 %v3396, %v3394
    %v3417 = vpack.c.b16 %v3399, %v3397
    %v3418 = vpack.c.b16 %v3400, %v3398
    %v3419 = vpack.c.b16 %v3403, %v3401
    %v3420 = vpack.c.b16 %v3404, %v3402
    %3437 = vmatprep.subr.bf16.mxu0 %v3406
    %3438 = vmatpush1.bf16.msra.mxu0 %v3405
    %3439 = vmatprep.subr.bf16.mxu0 %v3408
    %3440 = vmatpush1.bf16.msra.mxu0 %v3407
    %3441 = vmatprep.subr.bf16.mxu0 %v3410
    %3442 = vmatpush1.bf16.msra.mxu0 %v3409
    %3443 = vmatprep.subr.bf16.mxu0 %v3412
    %3444 = vmatpush1.bf16.msra.mxu0 %v3411
    %3445 = vmatprep.subr.bf16.mxu0 %v3414
    %3446 = vmatpush1.bf16.msra.mxu0 %v3413
    %3447 = vmatprep.subr.bf16.mxu0 %v3416
    %3448 = vmatpush1.bf16.msra.mxu0 %v3415
    %3449 = vmatprep.subr.bf16.mxu0 %v3418
    %3450 = vmatpush1.bf16.msra.mxu0 %v3417
    %3451 = vmatprep.subr.bf16.mxu0 %v3420
    %3452 = vmatpush1.bf16.msra.mxu0 %v3419
    %3453 = vmatprep.subr.bf16.mxu0 0
    %3454 = vmatpush1.bf16.msra.mxu0 0
    %3455 = vmatprep.subr.bf16.mxu0 0
    %3456 = vmatpush1.bf16.msra.mxu0 0
    %3457 = vmatprep.subr.bf16.mxu0 0
    %3458 = vmatpush1.bf16.msra.mxu0 0
    %3459 = vmatprep.subr.bf16.mxu0 0
    %3460 = vmatpush1.bf16.msra.mxu0 0
    %3461 = vmatprep.subr.bf16.mxu0 0
    %3462 = vmatpush1.bf16.msra.mxu0 0
    %3463 = vmatprep.subr.bf16.mxu0 0
    %3464 = vmatpush1.bf16.msra.mxu0 0
    %3465 = vmatprep.subr.bf16.mxu0 0
    %3466 = vmatpush1.bf16.msra.mxu0 0
    %3467 = vmatprep.subr.bf16.mxu0 0
    %3468 = vmatpush1.bf16.msra.mxu0 0
    %3469 = vmatprep.mubr.bf16.mxu0 0
    %3470 = vmatmul.mubr.bf16.gmra.mrb[0].mxu0 %v3327
    %v3471 = vpop.f32.mrb[0].mxu0
    %v3472 = vadd.f32 %v3350, %v3471
    %v3473 = vpop.f32.mrb[0].mxu0
    %v3474 = vadd.f32 %v3354, %v3473
    %v3475 = vpop.f32.mrb[0].mxu0
    %v3476 = vadd.f32 %v3350, %v3475
    %v3477 = vpop.f32.mrb[0].mxu0
    %v3478 = vadd.f32 %v3354, %v3477
    %3479 = vmatprep.mubr.bf16.mxu0 0
    %3480 = vmatmul.mubr.bf16.gmra.mrb[0].mxu0 %v3328
    %v3481 = vpop.f32.mrb[0].mxu0
    %v3482 = vadd.f32 %v3350, %v3481
    %v3483 = vpop.f32.mrb[0].mxu0
    %v3484 = vadd.f32 %v3354, %v3483
    %v3485 = vpop.f32.mrb[0].mxu0
    %v3486 = vpop.f32.mrb[0].mxu0
    %3487 = vdwg.mxu0
    %v3494 = vcombine.low %v3472, %v3474
    %v3495 = vcombine.high %v3472, %v3474
    %v3496 = vcombine.low %v3476, %v3478
    %v3497 = vcombine.high %v3476, %v3478
    %v3498 = vcombine.low %v3482, %v3484
    %v3499 = vcombine.high %v3482, %v3484
    %v3506 = vld [vmem:[%s11] sm:$0xff]
    %v3507 = vld [vmem:[%s11 + $0x8] sm:$0xff]
    %v3508 = vld [vmem:[%s11 + $0x10] sm:$0xff]
    %v3509 = vld [vmem:[%s11 + $0x18] sm:$0xff]
    %v3510 = vld [vmem:[%s12] sm:$0x3]
    %v3511 = vld [vmem:[%s1] sm:$0x3]
    %vm3512 = vcmp.gt.s32.totalorder %v3511, 0
    %vm3513 = vcmp.gt.s32.totalorder %v3511, 11
    %v3514 = vpack.c.bf16 0.0, 0.0
    %v3516 = vlaneseq
    %v3517 = vshrl.u32 %v3516, 7
    %v3518 = vsub.s32 0, %v3517
    %v3519 = vrot.slane %v3510, %v3518
    %v3520 = vlaneseq
    %v3521 = vshrl.u32 %v3520, 7
    %v3522 = vsub.s32 1, %v3521
    %v3523 = vrot.slane %v3510, %v3522
    %v3530 = vunpack.c.l.b16 %v3506
    %v3531 = vunpack.c.h.b16 %v3506
    %v3532 = vunpack.c.l.b16 %v3507
    %v3533 = vunpack.c.h.b16 %v3507
    %v3534 = vunpack.c.l.b16 %v3508
    %v3535 = vunpack.c.h.b16 %v3508
    %v3536 = vunpack.c.l.b16 %v3509
    %v3537 = vunpack.c.h.b16 %v3509
    %v3538 = vpack.c.b16 %v3532, %v3530
    %v3539 = vpack.c.b16 %v3533, %v3531
    %v3540 = vpack.c.b16 %v3536, %v3534
    %v3541 = vpack.c.b16 %v3537, %v3535
    %vm3546 = vcmask 261120
    %v3548 = vsel %vm3546, %v3514, 0
    %3550 = vmatprep.subr.bf16.mxu0 %v3539
    %3551 = vmatpush1.bf16.msra.mxu0 %v3538
    %3552 = vmatprep.subr.bf16.mxu0 %v3541
    %3553 = vmatpush1.bf16.msra.mxu0 %v3540
    %3554 = vmatprep.subr.bf16.mxu0 0
    %3555 = vmatpush1.bf16.msra.mxu0 0
    %3556 = vmatprep.subr.bf16.mxu0 0
    %3557 = vmatpush1.bf16.msra.mxu0 0
    %3558 = vmatprep.subr.bf16.mxu0 0
    %3559 = vmatpush1.bf16.msra.mxu0 0
    %3560 = vmatprep.subr.bf16.mxu0 0
    %3561 = vmatpush1.bf16.msra.mxu0 0
    %3562 = vmatprep.subr.bf16.mxu0 0
    %3563 = vmatpush1.bf16.msra.mxu0 0
    %3564 = vmatprep.subr.bf16.mxu0 0
    %3565 = vmatpush1.bf16.msra.mxu0 0
    %3566 = vmatprep.subr.bf16.mxu0 0
    %3567 = vmatpush1.bf16.msra.mxu0 0
    %3568 = vmatprep.subr.bf16.mxu0 0
    %3569 = vmatpush1.bf16.msra.mxu0 0
    %3570 = vmatprep.subr.bf16.mxu0 0
    %3571 = vmatpush1.bf16.msra.mxu0 0
    %3572 = vmatprep.subr.bf16.mxu0 0
    %3573 = vmatpush1.bf16.msra.mxu0 0
    %3574 = vmatprep.subr.bf16.mxu0 0
    %3575 = vmatpush1.bf16.msra.mxu0 0
    %3576 = vmatprep.subr.bf16.mxu0 0
    %3577 = vmatpush1.bf16.msra.mxu0 0
    %3578 = vmatprep.subr.bf16.mxu0 0
    %3579 = vmatpush1.bf16.msra.mxu0 0
    %3580 = vmatprep.subr.bf16.mxu0 0
    %3581 = vmatpush1.bf16.msra.mxu0 0
    %3582 = vmatprep.mubr.bf16.mxu0 0
    %3583 = vmatmul.mubr.bf16.gmra.mrb[0].mxu0 %v3548
    %v3584 = vpop.f32.mrb[0].mxu0
    %v3585 = vadd.f32 %v3519, %v3584
    %v3586 = vpop.f32.mrb[0].mxu0
    %v3587 = vadd.f32 %v3523, %v3586
    %v3588 = vpop.f32.mrb[0].mxu0
    %v3589 = vpop.f32.mrb[0].mxu0
    %3590 = vdwg.mxu0
    %v3592 = vrot.slane %v3585, 1
    %v3595 = vadd.f32 %v3494, %v3585
    %v3596 = vadd.f32 %v3497, %v3592
    %v3597 = vxor.u32 %v3595, 2147483648
    %v3598 = vxor.u32 %v3596, 2147483648
    %v3599 = vmul.f32 %v3597, 1.442695
    %v3600 = vpow.pop %v3599
    %v3601 = vmul.f32 %v3598, 1.442695
    %v3602 = vpow.pop %v3601
    %v3603 = vadd.f32 %v3600, 1.0
    %v3604 = vadd.f32 %v3602, 1.0
    %v3605 = vrcp.pop %v3603
    %v3606 = vmul.f32 1.0, %v3605
    %v3607 = vrcp.pop %v3604
    %v3608 = vmul.f32 1.0, %v3607
    %3609 = vrot.lane.b32.xlu0 %v3585, 96
    %v3610 = vpop.permute.xlu0 %3609
    %3611 = vrot.lane.b32.xlu0 %v3592, 96
    %v3612 = vpop.permute.xlu0 %3611
    %v3615 = vmul.f32 %v3606, %v3610
    %v3616 = vmul.f32 %v3608, %v3612
    %3619 = vrot.lane.b32.xlu0 %v3615, 32
    %v3620 = vpop.permute.xlu0 %3619
    %3621 = vrot.lane.b32.xlu0 %v3616, 32
    %v3622 = vpop.permute.xlu0 %3621
    %v3625 = vadd.f32 %v3494, %v3620
    %v3626 = vadd.f32 %v3497, %v3622
    %v3627 = vtanh.pop %v3625
    %v3628 = vtanh.pop %v3626
    %v3629 = vsub.f32 1.0, %v3606
    %v3630 = vsub.f32 1.0, %v3608
    %3633 = vrot.lane.b32.xlu0 %v3627, 112
    %v3634 = vpop.permute.xlu0 %3633
    %3635 = vrot.lane.b32.xlu0 %v3628, 112
    %v3636 = vpop.permute.xlu0 %3635
    %v3639 = vmul.f32 %v3629, %v3634
    %v3640 = vmul.f32 %v3630, %v3636
    %v3641 = vmul.f32 %v3606, 0.0
    %v3642 = vmul.f32 %v3608, 0.0
    %v3643 = vadd.f32 %v3639, %v3641
    %v3644 = vadd.f32 %v3640, %v3642
    %v3645 = vrot.slane %v3496, 4
    %v3646 = vrot.slane %v3499, 4
    %v3650 = vrot.slane %v3587, 5
    %v3651 = vrot.slane %v3587, 6
    %v3654 = vadd.f32 %v3645, %v3650
    %v3655 = vadd.f32 %v3646, %v3651
    %v3656 = vxor.u32 %v3654, 2147483648
    %v3657 = vxor.u32 %v3655, 2147483648
    %v3658 = vmul.f32 %v3656, 1.442695
    %v3659 = vpow.pop %v3658
    %v3660 = vmul.f32 %v3657, 1.442695
    %v3661 = vpow.pop %v3660
    %v3662 = vadd.f32 %v3659, 1.0
    %v3663 = vadd.f32 %v3661, 1.0
    %v3664 = vrcp.pop %v3662
    %v3665 = vmul.f32 1.0, %v3664
    %v3666 = vrcp.pop %v3663
    %v3667 = vmul.f32 1.0, %v3666
    %3668 = vrot.lane.b32.xlu0 %v3650, 96
    %v3669 = vpop.permute.xlu0 %3668
    %3670 = vrot.lane.b32.xlu0 %v3651, 96
    %v3671 = vpop.permute.xlu0 %3670
    %v3674 = vmul.f32 %v3665, %v3669
    %v3675 = vmul.f32 %v3667, %v3671
    %3678 = vrot.lane.b32.xlu0 %v3674, 32
    %v3679 = vpop.permute.xlu0 %3678
    %3680 = vrot.lane.b32.xlu0 %v3675, 32
    %v3681 = vpop.permute.xlu0 %3680
    %v3684 = vadd.f32 %v3645, %v3679
    %v3685 = vadd.f32 %v3646, %v3681
    %v3686 = vtanh.pop %v3684
    %v3687 = vtanh.pop %v3685
    %v3688 = vsub.f32 1.0, %v3665
    %v3689 = vsub.f32 1.0, %v3667
    %3692 = vrot.lane.b32.xlu0 %v3686, 112
    %v3693 = vpop.permute.xlu0 %3692
    %3694 = vrot.lane.b32.xlu0 %v3687, 112
    %v3695 = vpop.permute.xlu0 %3694
    %v3698 = vmul.f32 %v3688, %v3693
    %v3699 = vmul.f32 %v3689, %v3695
    %v3700 = vmul.f32 %v3665, 0.0
    %v3701 = vmul.f32 %v3667, 0.0
    %v3702 = vadd.f32 %v3698, %v3700
    %v3703 = vadd.f32 %v3699, %v3701
    %v3704 = vsel %vm3512, 1, 0
    %3705 = vset.pattern.permute.xlu0 0
    %3706 = vperm.xlu0 %3705, %v3704
    %v3707 = vpop.permute.xlu0 %3706
    %vm3708 = vcmp.eq.s32.totalorder %v3707, 1
    %v3711 = vlaneseq
    %v3712 = vshrl.u32 %v3711, 7
    %v3713 = vsub.s32 0, %v3712
    %v3714 = vrot.slane %v3643, %v3713
    %v3715 = vlaneseq
    %v3716 = vshrl.u32 %v3715, 7
    %v3717 = vsub.s32 0, %v3716
    %v3718 = vrot.slane %v3644, %v3717
    %vm3719 = vcmask 1041409
    %v3720 = vsel %vm3719, %v3718, %v3714
    %3721 = vrot.lane.b32.xlu0 %v3720, 112
    %v3722 = vpop.permute.xlu0 %3721
    %v3724 = vsel %vm3708, %v3722, 0.0
    %v3725 = vsel %vm3513, 1, 0
    %3726 = vset.pattern.permute.xlu0 0
    %3727 = vperm.xlu0 %3726, %v3725
    %v3728 = vpop.permute.xlu0 %3727
    %vm3729 = vcmp.eq.s32.totalorder %v3728, 1
    %v3732 = vlaneseq
    %v3733 = vshrl.u32 %v3732, 7
    %v3734 = vsub.s32 3, %v3733
    %v3735 = vrot.slane %v3702, %v3734
    %v3736 = vlaneseq
    %v3737 = vshrl.u32 %v3736, 7
    %v3738 = vsub.s32 3, %v3737
    %v3739 = vrot.slane %v3703, %v3738
    %v3740 = vsel %vm3719, %v3739, %v3735
    %3741 = vrot.lane.b32.xlu0 %v3740, 112
    %v3742 = vpop.permute.xlu0 %3741
    %v3744 = vsel %vm3729, %v3742, 0.0
    %vm3745 = vcmask 130048
    %v3746 = vsel %vm3745, %v3724, 0.0
    %3747 = vst [vmem:[#allocation2] sm:$0x3] %v3746
    %v3748 = vsel %vm3745, %v3744, 0.0
    %s3749 = scalar_lea.vmem [#allocation2], 46
    %3750 = vst [vmem:[%s3749] sm:$0x3] %v3748
    %vm3751 = vcmp.gt.s32.totalorder %v3511, 1
    %vm3752 = vcmp.gt.s32.totalorder %v3511, 10
    %3754 = vrot.lane.b32.xlu0 %v3744, 16
    %v3755 = vpop.permute.xlu0 %3754
    %v3757 = vsel %vm3745, %v3724, %v3755
    %v3758 = vpack.c.bf16 %v3757, %v3757
    %v3760 = vsel %vm3546, %v3758, 0
    %3762 = vmatprep.subr.bf16.mxu0 %v3539
    %3763 = vmatpush1.bf16.msra.mxu0 %v3538
    %3764 = vmatprep.subr.bf16.mxu0 %v3541
    %3765 = vmatpush1.bf16.msra.mxu0 %v3540
    %3766 = vmatprep.subr.bf16.mxu0 0
    %3767 = vmatpush1.bf16.msra.mxu0 0
    %3768 = vmatprep.subr.bf16.mxu0 0
    %3769 = vmatpush1.bf16.msra.mxu0 0
    %3770 = vmatprep.subr.bf16.mxu0 0
    %3771 = vmatpush1.bf16.msra.mxu0 0
    %3772 = vmatprep.subr.bf16.mxu0 0
    %3773 = vmatpush1.bf16.msra.mxu0 0
    %3774 = vmatprep.subr.bf16.mxu0 0
    %3775 = vmatpush1.bf16.msra.mxu0 0
    %3776 = vmatprep.subr.bf16.mxu0 0
    %3777 = vmatpush1.bf16.msra.mxu0 0
    %3778 = vmatprep.subr.bf16.mxu0 0
    %3779 = vmatpush1.bf16.msra.mxu0 0
    %3780 = vmatprep.subr.bf16.mxu0 0
    %3781 = vmatpush1.bf16.msra.mxu0 0
    %3782 = vmatprep.subr.bf16.mxu0 0
    %3783 = vmatpush1.bf16.msra.mxu0 0
    %3784 = vmatprep.subr.bf16.mxu0 0
    %3785 = vmatpush1.bf16.msra.mxu0 0
    %3786 = vmatprep.subr.bf16.mxu0 0
    %3787 = vmatpush1.bf16.msra.mxu0 0
    %3788 = vmatprep.subr.bf16.mxu0 0
    %3789 = vmatpush1.bf16.msra.mxu0 0
    %3790 = vmatprep.subr.bf16.mxu0 0
    %3791 = vmatpush1.bf16.msra.mxu0 0
    %3792 = vmatprep.subr.bf16.mxu0 0
    %3793 = vmatpush1.bf16.msra.mxu0 0
    %3794 = vmatprep.mubr.bf16.mxu0 0
    %3795 = vmatmul.mubr.bf16.gmra.mrb[0].mxu0 %v3760
    %v3796 = vpop.f32.mrb[0].mxu0
    %v3797 = vadd.f32 %v3519, %v3796
    %v3798 = vpop.f32.mrb[0].mxu0
    %v3799 = vadd.f32 %v3523, %v3798
    %v3800 = vpop.f32.mrb[0].mxu0
    %v3801 = vpop.f32.mrb[0].mxu0
    %3802 = vdwg.mxu0
    %v3804 = vrot.slane %v3797, 7
    %v3807 = vadd.f32 %v3494, %v3804
    %v3808 = vadd.f32 %v3497, %v3797
    %v3809 = vxor.u32 %v3807, 2147483648
    %v3810 = vxor.u32 %v3808, 2147483648
    %v3811 = vmul.f32 %v3809, 1.442695
    %v3812 = vpow.pop %v3811
    %v3813 = vmul.f32 %v3810, 1.442695
    %v3814 = vpow.pop %v3813
    %v3815 = vadd.f32 %v3812, 1.0
    %v3816 = vadd.f32 %v3814, 1.0
    %v3817 = vrcp.pop %v3815
    %v3818 = vmul.f32 1.0, %v3817
    %v3819 = vrcp.pop %v3816
    %v3820 = vmul.f32 1.0, %v3819
    %3821 = vrot.lane.b32.xlu0 %v3804, 96
    %v3822 = vpop.permute.xlu0 %3821
    %3823 = vrot.lane.b32.xlu0 %v3797, 96
    %v3824 = vpop.permute.xlu0 %3823
    %v3827 = vmul.f32 %v3818, %v3822
    %v3828 = vmul.f32 %v3820, %v3824
    %3831 = vrot.lane.b32.xlu0 %v3827, 32
    %v3832 = vpop.permute.xlu0 %3831
    %3833 = vrot.lane.b32.xlu0 %v3828, 32
    %v3834 = vpop.permute.xlu0 %3833
    %v3837 = vadd.f32 %v3494, %v3832
    %v3838 = vadd.f32 %v3497, %v3834
    %v3839 = vtanh.pop %v3837
    %v3840 = vtanh.pop %v3838
    %v3841 = vsub.f32 1.0, %v3818
    %v3842 = vsub.f32 1.0, %v3820
    %3845 = vrot.lane.b32.xlu0 %v3839, 112
    %v3846 = vpop.permute.xlu0 %3845
    %3847 = vrot.lane.b32.xlu0 %v3840, 112
    %v3848 = vpop.permute.xlu0 %3847
    %v3851 = vmul.f32 %v3841, %v3846
    %v3852 = vmul.f32 %v3842, %v3848
    %v3854 = vrot.slane %v3724, 7
    %3855 = vrot.lane.b32.xlu0 %v3854, 16
    %v3856 = vpop.permute.xlu0 %3855
    %3857 = vrot.lane.b32.xlu0 %v3724, 16
    %v3858 = vpop.permute.xlu0 %3857
    %v3861 = vmul.f32 %v3818, %v3856
    %v3862 = vmul.f32 %v3820, %v3858
    %v3863 = vadd.f32 %v3851, %v3861
    %v3864 = vadd.f32 %v3852, %v3862
    %v3866 = vrot.slane %v3799, 6
    %v3867 = vrot.slane %v3799, 7
    %v3870 = vadd.f32 %v3645, %v3866
    %v3871 = vadd.f32 %v3646, %v3867
    %v3872 = vxor.u32 %v3870, 2147483648
    %v3873 = vxor.u32 %v3871, 2147483648
    %v3874 = vmul.f32 %v3872, 1.442695
    %v3875 = vpow.pop %v3874
    %v3876 = vmul.f32 %v3873, 1.442695
    %v3877 = vpow.pop %v3876
    %v3878 = vadd.f32 %v3875, 1.0
    %v3879 = vadd.f32 %v3877, 1.0
    %v3880 = vrcp.pop %v3878
    %v3881 = vmul.f32 1.0, %v3880
    %v3882 = vrcp.pop %v3879
    %v3883 = vmul.f32 1.0, %v3882
    %3884 = vrot.lane.b32.xlu0 %v3866, 96
    %v3885 = vpop.permute.xlu0 %3884
    %3886 = vrot.lane.b32.xlu0 %v3867, 96
    %v3887 = vpop.permute.xlu0 %3886
    %v3890 = vmul.f32 %v3881, %v3885
    %v3891 = vmul.f32 %v3883, %v3887
    %3894 = vrot.lane.b32.xlu0 %v3890, 32
    %v3895 = vpop.permute.xlu0 %3894
    %3896 = vrot.lane.b32.xlu0 %v3891, 32
    %v3897 = vpop.permute.xlu0 %3896
    %v3900 = vadd.f32 %v3645, %v3895
    %v3901 = vadd.f32 %v3646, %v3897
    %v3902 = vtanh.pop %v3900
    %v3903 = vtanh.pop %v3901
    %v3904 = vsub.f32 1.0, %v3881
    %v3905 = vsub.f32 1.0, %v3883
    %3908 = vrot.lane.b32.xlu0 %v3902, 112
    %v3909 = vpop.permute.xlu0 %3908
    %3910 = vrot.lane.b32.xlu0 %v3903, 112
    %v3911 = vpop.permute.xlu0 %3910
    %v3914 = vmul.f32 %v3904, %v3909
    %v3915 = vmul.f32 %v3905, %v3911
    %v3916 = vrot.slane %v3744, 6
    %v3917 = vrot.slane %v3744, 7
    %3918 = vrot.lane.b32.xlu0 %v3916, 16
    %v3919 = vpop.permute.xlu0 %3918
    %3920 = vrot.lane.b32.xlu0 %v3917, 16
    %v3921 = vpop.permute.xlu0 %3920
    %v3924 = vmul.f32 %v3881, %v3919
    %v3925 = vmul.f32 %v3883, %v3921
    %v3926 = vadd.f32 %v3914, %v3924
    %v3927 = vadd.f32 %v3915, %v3925
    %v3928 = vsel %vm3751, 1, 0
    %3929 = vset.pattern.permute.xlu0 0
    %3930 = vperm.xlu0 %3929, %v3928
    %v3931 = vpop.permute.xlu0 %3930
    %vm3932 = vcmp.eq.s32.totalorder %v3931, 1
    %v3935 = vlaneseq
    %v3936 = vshrl.u32 %v3935, 7
    %v3937 = vsub.s32 1, %v3936
    %v3938 = vrot.slane %v3863, %v3937
    %v3939 = vlaneseq
    %v3940 = vshrl.u32 %v3939, 7
    %v3941 = vsub.s32 1, %v3940
    %v3942 = vrot.slane %v3864, %v3941
    %v3943 = vsel %vm3719, %v3942, %v3938
    %3944 = vrot.lane.b32.xlu0 %v3943, 112
    %v3945 = vpop.permute.xlu0 %3944
    %v3947 = vsel %vm3932, %v3945, %v3724
    %v3948 = vsel %vm3752, 1, 0
    %3949 = vset.pattern.permute.xlu0 0
    %3950 = vperm.xlu0 %3949, %v3948
    %v3951 = vpop.permute.xlu0 %3950
    %vm3952 = vcmp.eq.s32.totalorder %v3951, 1
    %v3955 = vlaneseq
    %v3956 = vshrl.u32 %v3955, 7
    %v3957 = vsub.s32 2, %v3956
    %v3958 = vrot.slane %v3926, %v3957
    %v3959 = vlaneseq
    %v3960 = vshrl.u32 %v3959, 7
    %v3961 = vsub.s32 2, %v3960
    %v3962 = vrot.slane %v3927, %v3961
    %v3963 = vsel %vm3719, %v3962, %v3958
    %3964 = vrot.lane.b32.xlu0 %v3963, 112
    %v3965 = vpop.permute.xlu0 %3964
    %v3967 = vsel %vm3952, %v3965, %v3744
    %v3968 = vsel %vm3932, %v3945, 0.0
    %v3969 = vsel %vm3745, %v3968, 0.0
    %s3970 = scalar_lea.vmem [#allocation2], 2
    %3971 = vst [vmem:[%s3970] sm:$0x3] %v3969
    %v3972 = vsel %vm3952, %v3965, 0.0
    %v3973 = vsel %vm3745, %v3972, 0.0
    %s3974 = scalar_lea.vmem [#allocation2], 44
    %3975 = vst [vmem:[%s3974] sm:$0x3] %v3973
    %vm3976 = vcmp.gt.s32.totalorder %v3511, 2
    %vm3977 = vcmp.gt.s32.totalorder %v3511, 9
    %3979 = vrot.lane.b32.xlu0 %v3967, 16
    %v3980 = vpop.permute.xlu0 %3979
    %v3982 = vsel %vm3745, %v3947, %v3980
    %v3983 = vpack.c.bf16 %v3982, %v3982
    %v3985 = vsel %vm3546, %v3983, 0
    %3987 = vmatprep.subr.bf16.mxu0 %v3539
    %3988 = vmatpush1.bf16.msra.mxu0 %v3538
    %3989 = vmatprep.subr.bf16.mxu0 %v3541
    %3990 = vmatpush1.bf16.msra.mxu0 %v3540
    %3991 = vmatprep.subr.bf16.mxu0 0
    %3992 = vmatpush1.bf16.msra.mxu0 0
    %3993 = vmatprep.subr.bf16.mxu0 0
    %3994 = vmatpush1.bf16.msra.mxu0 0
    %3995 = vmatprep.subr.bf16.mxu0 0
    %3996 = vmatpush1.bf16.msra.mxu0 0
    %3997 = vmatprep.subr.bf16.mxu0 0
    %3998 = vmatpush1.bf16.msra.mxu0 0
    %3999 = vmatprep.subr.bf16.mxu0 0
    %4000 = vmatpush1.bf16.msra.mxu0 0
    %4001 = vmatprep.subr.bf16.mxu0 0
    %4002 = vmatpush1.bf16.msra.mxu0 0
    %4003 = vmatprep.subr.bf16.mxu0 0
    %4004 = vmatpush1.bf16.msra.mxu0 0
    %4005 = vmatprep.subr.bf16.mxu0 0
    %4006 = vmatpush1.bf16.msra.mxu0 0
    %4007 = vmatprep.subr.bf16.mxu0 0
    %4008 = vmatpush1.bf16.msra.mxu0 0
    %4009 = vmatprep.subr.bf16.mxu0 0
    %4010 = vmatpush1.bf16.msra.mxu0 0
    %4011 = vmatprep.subr.bf16.mxu0 0
    %4012 = vmatpush1.bf16.msra.mxu0 0
    %4013 = vmatprep.subr.bf16.mxu0 0
    %4014 = vmatpush1.bf16.msra.mxu0 0
    %4015 = vmatprep.subr.bf16.mxu0 0
    %4016 = vmatpush1.bf16.msra.mxu0 0
    %4017 = vmatprep.subr.bf16.mxu0 0
    %4018 = vmatpush1.bf16.msra.mxu0 0
    %4019 = vmatprep.mubr.bf16.mxu0 0
    %4020 = vmatmul.mubr.bf16.gmra.mrb[0].mxu0 %v3985
    %v4021 = vpop.f32.mrb[0].mxu0
    %v4022 = vadd.f32 %v3519, %v4021
    %v4023 = vpop.f32.mrb[0].mxu0
    %v4024 = vadd.f32 %v3523, %v4023
    %v4025 = vpop.f32.mrb[0].mxu0
    %v4026 = vpop.f32.mrb[0].mxu0
    %4027 = vdwg.mxu0
    %v4029 = vrot.slane %v4022, 6
    %v4030 = vrot.slane %v4022, 7
    %v4033 = vadd.f32 %v3494, %v4029
    %v4034 = vadd.f32 %v3497, %v4030
    %v4035 = vxor.u32 %v4033, 2147483648
    %v4036 = vxor.u32 %v4034, 2147483648
    %v4037 = vmul.f32 %v4035, 1.442695
    %v4038 = vpow.pop %v4037
    %v4039 = vmul.f32 %v4036, 1.442695
    %v4040 = vpow.pop %v4039
    %v4041 = vadd.f32 %v4038, 1.0
    %v4042 = vadd.f32 %v4040, 1.0
    %v4043 = vrcp.pop %v4041
    %v4044 = vmul.f32 1.0, %v4043
    %v4045 = vrcp.pop %v4042
    %v4046 = vmul.f32 1.0, %v4045
    %4047 = vrot.lane.b32.xlu0 %v4029, 96
    %v4048 = vpop.permute.xlu0 %4047
    %4049 = vrot.lane.b32.xlu0 %v4030, 96
    %v4050 = vpop.permute.xlu0 %4049
    %v4053 = vmul.f32 %v4044, %v4048
    %v4054 = vmul.f32 %v4046, %v4050
    %4057 = vrot.lane.b32.xlu0 %v4053, 32
    %v4058 = vpop.permute.xlu0 %4057
    %4059 = vrot.lane.b32.xlu0 %v4054, 32
    %v4060 = vpop.permute.xlu0 %4059
    %v4063 = vadd.f32 %v3494, %v4058
    %v4064 = vadd.f32 %v3497, %v4060
    %v4065 = vtanh.pop %v4063
    %v4066 = vtanh.pop %v4064
    %v4067 = vsub.f32 1.0, %v4044
    %v4068 = vsub.f32 1.0, %v4046
    %4071 = vrot.lane.b32.xlu0 %v4065, 112
    %v4072 = vpop.permute.xlu0 %4071
    %4073 = vrot.lane.b32.xlu0 %v4066, 112
    %v4074 = vpop.permute.xlu0 %4073
    %v4077 = vmul.f32 %v4067, %v4072
    %v4078 = vmul.f32 %v4068, %v4074
    %v4080 = vrot.slane %v3947, 6
    %v4081 = vrot.slane %v3947, 7
    %4082 = vrot.lane.b32.xlu0 %v4080, 16
    %v4083 = vpop.permute.xlu0 %4082
    %4084 = vrot.lane.b32.xlu0 %v4081, 16
    %v4085 = vpop.permute.xlu0 %4084
    %v4088 = vmul.f32 %v4044, %v4083
    %v4089 = vmul.f32 %v4046, %v4085
    %v4090 = vadd.f32 %v4077, %v4088
    %v4091 = vadd.f32 %v4078, %v4089
    %v4093 = vrot.slane %v4024, 7
    %v4096 = vadd.f32 %v3645, %v4093
    %v4097 = vadd.f32 %v3646, %v4024
    %v4098 = vxor.u32 %v4096, 2147483648
    %v4099 = vxor.u32 %v4097, 2147483648
    %v4100 = vmul.f32 %v4098, 1.442695
    %v4101 = vpow.pop %v4100
    %v4102 = vmul.f32 %v4099, 1.442695
    %v4103 = vpow.pop %v4102
    %v4104 = vadd.f32 %v4101, 1.0
    %v4105 = vadd.f32 %v4103, 1.0
    %v4106 = vrcp.pop %v4104
    %v4107 = vmul.f32 1.0, %v4106
    %v4108 = vrcp.pop %v4105
    %v4109 = vmul.f32 1.0, %v4108
    %4110 = vrot.lane.b32.xlu0 %v4093, 96
    %v4111 = vpop.permute.xlu0 %4110
    %4112 = vrot.lane.b32.xlu0 %v4024, 96
    %v4113 = vpop.permute.xlu0 %4112
    %v4116 = vmul.f32 %v4107, %v4111
    %v4117 = vmul.f32 %v4109, %v4113
    %4120 = vrot.lane.b32.xlu0 %v4116, 32
    %v4121 = vpop.permute.xlu0 %4120
    %4122 = vrot.lane.b32.xlu0 %v4117, 32
    %v4123 = vpop.permute.xlu0 %4122
    %v4126 = vadd.f32 %v3645, %v4121
    %v4127 = vadd.f32 %v3646, %v4123
    %v4128 = vtanh.pop %v4126
    %v4129 = vtanh.pop %v4127
    %v4130 = vsub.f32 1.0, %v4107
    %v4131 = vsub.f32 1.0, %v4109
    %4134 = vrot.lane.b32.xlu0 %v4128, 112
    %v4135 = vpop.permute.xlu0 %4134
    %4136 = vrot.lane.b32.xlu0 %v4129, 112
    %v4137 = vpop.permute.xlu0 %4136
    %v4140 = vmul.f32 %v4130, %v4135
    %v4141 = vmul.f32 %v4131, %v4137
    %v4142 = vrot.slane %v3967, 7
    %4143 = vrot.lane.b32.xlu0 %v4142, 16
    %v4144 = vpop.permute.xlu0 %4143
    %v4146 = vmul.f32 %v4107, %v4144
    %v4147 = vmul.f32 %v4109, %v3980
    %v4148 = vadd.f32 %v4140, %v4146
    %v4149 = vadd.f32 %v4141, %v4147
    %v4150 = vsel %vm3976, 1, 0
    %4151 = vset.pattern.permute.xlu0 0
    %4152 = vperm.xlu0 %4151, %v4150
    %v4153 = vpop.permute.xlu0 %4152
    %vm4154 = vcmp.eq.s32.totalorder %v4153, 1
    %v4157 = vlaneseq
    %v4158 = vshrl.u32 %v4157, 7
    %v4159 = vsub.s32 2, %v4158
    %v4160 = vrot.slane %v4090, %v4159
    %v4161 = vlaneseq
    %v4162 = vshrl.u32 %v4161, 7
    %v4163 = vsub.s32 2, %v4162
    %v4164 = vrot.slane %v4091, %v4163
    %v4165 = vsel %vm3719, %v4164, %v4160
    %4166 = vrot.lane.b32.xlu0 %v4165, 112
    %v4167 = vpop.permute.xlu0 %4166
    %v4169 = vsel %vm4154, %v4167, %v3947
    %v4170 = vsel %vm3977, 1, 0
    %4171 = vset.pattern.permute.xlu0 0
    %4172 = vperm.xlu0 %4171, %v4170
    %v4173 = vpop.permute.xlu0 %4172
    %vm4174 = vcmp.eq.s32.totalorder %v4173, 1
    %v4177 = vlaneseq
    %v4178 = vshrl.u32 %v4177, 7
    %v4179 = vsub.s32 1, %v4178
    %v4180 = vrot.slane %v4148, %v4179
    %v4181 = vlaneseq
    %v4182 = vshrl.u32 %v4181, 7
    %v4183 = vsub.s32 1, %v4182
    %v4184 = vrot.slane %v4149, %v4183
    %v4185 = vsel %vm3719, %v4184, %v4180
    %4186 = vrot.lane.b32.xlu0 %v4185, 112
    %v4187 = vpop.permute.xlu0 %4186
    %v4189 = vsel %vm4174, %v4187, %v3967
    %v4190 = vsel %vm4154, %v4167, 0.0
    %v4191 = vsel %vm3745, %v4190, 0.0
    %s4192 = scalar_lea.vmem [#allocation2], 4
    %4193 = vst [vmem:[%s4192] sm:$0x3] %v4191
    %v4194 = vsel %vm4174, %v4187, 0.0
    %v4195 = vsel %vm3745, %v4194, 0.0
    %s4196 = scalar_lea.vmem [#allocation2], 42
    %4197 = vst [vmem:[%s4196] sm:$0x3] %v4195
    %vm4198 = vcmp.gt.s32.totalorder %v3511, 3
    %vm4199 = vcmp.gt.s32.totalorder %v3511, 8
    %4201 = vrot.lane.b32.xlu0 %v4189, 16
    %v4202 = vpop.permute.xlu0 %4201
    %v4204 = vsel %vm3745, %v4169, %v4202
    %v4205 = vpack.c.bf16 %v4204, %v4204
    %v4207 = vsel %vm3546, %v4205, 0
    %4209 = vmatprep.subr.bf16.mxu0 %v3539
    %4210 = vmatpush1.bf16.msra.mxu0 %v3538
    %4211 = vmatprep.subr.bf16.mxu0 %v3541
    %4212 = vmatpush1.bf16.msra.mxu0 %v3540
    %4213 = vmatprep.subr.bf16.mxu0 0
    %4214 = vmatpush1.bf16.msra.mxu0 0
    %4215 = vmatprep.subr.bf16.mxu0 0
    %4216 = vmatpush1.bf16.msra.mxu0 0
    %4217 = vmatprep.subr.bf16.mxu0 0
    %4218 = vmatpush1.bf16.msra.mxu0 0
    %4219 = vmatprep.subr.bf16.mxu0 0
    %4220 = vmatpush1.bf16.msra.mxu0 0
    %4221 = vmatprep.subr.bf16.mxu0 0
    %4222 = vmatpush1.bf16.msra.mxu0 0
    %4223 = vmatprep.subr.bf16.mxu0 0
    %4224 = vmatpush1.bf16.msra.mxu0 0
    %4225 = vmatprep.subr.bf16.mxu0 0
    %4226 = vmatpush1.bf16.msra.mxu0 0
    %4227 = vmatprep.subr.bf16.mxu0 0
    %4228 = vmatpush1.bf16.msra.mxu0 0
    %4229 = vmatprep.subr.bf16.mxu0 0
    %4230 = vmatpush1.bf16.msra.mxu0 0
    %4231 = vmatprep.subr.bf16.mxu0 0
    %4232 = vmatpush1.bf16.msra.mxu0 0
    %4233 = vmatprep.subr.bf16.mxu0 0
    %4234 = vmatpush1.bf16.msra.mxu0 0
    %4235 = vmatprep.subr.bf16.mxu0 0
    %4236 = vmatpush1.bf16.msra.mxu0 0
    %4237 = vmatprep.subr.bf16.mxu0 0
    %4238 = vmatpush1.bf16.msra.mxu0 0
    %4239 = vmatprep.subr.bf16.mxu0 0
    %4240 = vmatpush1.bf16.msra.mxu0 0
    %4241 = vmatprep.mubr.bf16.mxu0 0
    %4242 = vmatmul.mubr.bf16.gmra.mrb[0].mxu0 %v4207
    %v4243 = vpop.f32.mrb[0].mxu0
    %v4244 = vadd.f32 %v3519, %v4243
    %v4245 = vpop.f32.mrb[0].mxu0
    %v4246 = vadd.f32 %v3523, %v4245
    %v4247 = vpop.f32.mrb[0].mxu0
    %v4248 = vpop.f32.mrb[0].mxu0
    %4249 = vdwg.mxu0
    %v4251 = vrot.slane %v4244, 5
    %v4252 = vrot.slane %v4244, 6
    %v4255 = vadd.f32 %v3494, %v4251
    %v4256 = vadd.f32 %v3497, %v4252
    %v4257 = vxor.u32 %v4255, 2147483648
    %v4258 = vxor.u32 %v4256, 2147483648
    %v4259 = vmul.f32 %v4257, 1.442695
    %v4260 = vpow.pop %v4259
    %v4261 = vmul.f32 %v4258, 1.442695
    %v4262 = vpow.pop %v4261
    %v4263 = vadd.f32 %v4260, 1.0
    %v4264 = vadd.f32 %v4262, 1.0
    %v4265 = vrcp.pop %v4263
    %v4266 = vmul.f32 1.0, %v4265
    %v4267 = vrcp.pop %v4264
    %v4268 = vmul.f32 1.0, %v4267
    %4269 = vrot.lane.b32.xlu0 %v4251, 96
    %v4270 = vpop.permute.xlu0 %4269
    %4271 = vrot.lane.b32.xlu0 %v4252, 96
    %v4272 = vpop.permute.xlu0 %4271
    %v4275 = vmul.f32 %v4266, %v4270
    %v4276 = vmul.f32 %v4268, %v4272
    %4279 = vrot.lane.b32.xlu0 %v4275, 32
    %v4280 = vpop.permute.xlu0 %4279
    %4281 = vrot.lane.b32.xlu0 %v4276, 32
    %v4282 = vpop.permute.xlu0 %4281
    %v4285 = vadd.f32 %v3494, %v4280
    %v4286 = vadd.f32 %v3497, %v4282
    %v4287 = vtanh.pop %v4285
    %v4288 = vtanh.pop %v4286
    %v4289 = vsub.f32 1.0, %v4266
    %v4290 = vsub.f32 1.0, %v4268
    %4293 = vrot.lane.b32.xlu0 %v4287, 112
    %v4294 = vpop.permute.xlu0 %4293
    %4295 = vrot.lane.b32.xlu0 %v4288, 112
    %v4296 = vpop.permute.xlu0 %4295
    %v4299 = vmul.f32 %v4289, %v4294
    %v4300 = vmul.f32 %v4290, %v4296
    %v4302 = vrot.slane %v4169, 5
    %v4303 = vrot.slane %v4169, 6
    %4304 = vrot.lane.b32.xlu0 %v4302, 16
    %v4305 = vpop.permute.xlu0 %4304
    %4306 = vrot.lane.b32.xlu0 %v4303, 16
    %v4307 = vpop.permute.xlu0 %4306
    %v4310 = vmul.f32 %v4266, %v4305
    %v4311 = vmul.f32 %v4268, %v4307
    %v4312 = vadd.f32 %v4299, %v4310
    %v4313 = vadd.f32 %v4300, %v4311
    %v4315 = vrot.slane %v4246, 1
    %v4318 = vadd.f32 %v3645, %v4246
    %v4319 = vadd.f32 %v3646, %v4315
    %v4320 = vxor.u32 %v4318, 2147483648
    %v4321 = vxor.u32 %v4319, 2147483648
    %v4322 = vmul.f32 %v4320, 1.442695
    %v4323 = vpow.pop %v4322
    %v4324 = vmul.f32 %v4321, 1.442695
    %v4325 = vpow.pop %v4324
    %v4326 = vadd.f32 %v4323, 1.0
    %v4327 = vadd.f32 %v4325, 1.0
    %v4328 = vrcp.pop %v4326
    %v4329 = vmul.f32 1.0, %v4328
    %v4330 = vrcp.pop %v4327
    %v4331 = vmul.f32 1.0, %v4330
    %4332 = vrot.lane.b32.xlu0 %v4246, 96
    %v4333 = vpop.permute.xlu0 %4332
    %4334 = vrot.lane.b32.xlu0 %v4315, 96
    %v4335 = vpop.permute.xlu0 %4334
    %v4338 = vmul.f32 %v4329, %v4333
    %v4339 = vmul.f32 %v4331, %v4335
    %4342 = vrot.lane.b32.xlu0 %v4338, 32
    %v4343 = vpop.permute.xlu0 %4342
    %4344 = vrot.lane.b32.xlu0 %v4339, 32
    %v4345 = vpop.permute.xlu0 %4344
    %v4348 = vadd.f32 %v3645, %v4343
    %v4349 = vadd.f32 %v3646, %v4345
    %v4350 = vtanh.pop %v4348
    %v4351 = vtanh.pop %v4349
    %v4352 = vsub.f32 1.0, %v4329
    %v4353 = vsub.f32 1.0, %v4331
    %4356 = vrot.lane.b32.xlu0 %v4350, 112
    %v4357 = vpop.permute.xlu0 %4356
    %4358 = vrot.lane.b32.xlu0 %v4351, 112
    %v4359 = vpop.permute.xlu0 %4358
    %v4362 = vmul.f32 %v4352, %v4357
    %v4363 = vmul.f32 %v4353, %v4359
    %v4364 = vrot.slane %v4189, 1
    %4365 = vrot.lane.b32.xlu0 %v4364, 16
    %v4366 = vpop.permute.xlu0 %4365
    %v4368 = vmul.f32 %v4329, %v4202
    %v4369 = vmul.f32 %v4331, %v4366
    %v4370 = vadd.f32 %v4362, %v4368
    %v4371 = vadd.f32 %v4363, %v4369
    %v4372 = vsel %vm4198, 1, 0
    %4373 = vset.pattern.permute.xlu0 0
    %4374 = vperm.xlu0 %4373, %v4372
    %v4375 = vpop.permute.xlu0 %4374
    %vm4376 = vcmp.eq.s32.totalorder %v4375, 1
    %v4379 = vlaneseq
    %v4380 = vshrl.u32 %v4379, 7
    %v4381 = vsub.s32 3, %v4380
    %v4382 = vrot.slane %v4312, %v4381
    %v4383 = vlaneseq
    %v4384 = vshrl.u32 %v4383, 7
    %v4385 = vsub.s32 3, %v4384
    %v4386 = vrot.slane %v4313, %v4385
    %v4387 = vsel %vm3719, %v4386, %v4382
    %4388 = vrot.lane.b32.xlu0 %v4387, 112
    %v4389 = vpop.permute.xlu0 %4388
    %v4391 = vsel %vm4376, %v4389, %v4169
    %v4392 = vsel %vm4199, 1, 0
    %4393 = vset.pattern.permute.xlu0 0
    %4394 = vperm.xlu0 %4393, %v4392
    %v4395 = vpop.permute.xlu0 %4394
    %vm4396 = vcmp.eq.s32.totalorder %v4395, 1
    %v4399 = vlaneseq
    %v4400 = vshrl.u32 %v4399, 7
    %v4401 = vsub.s32 0, %v4400
    %v4402 = vrot.slane %v4370, %v4401
    %v4403 = vlaneseq
    %v4404 = vshrl.u32 %v4403, 7
    %v4405 = vsub.s32 0, %v4404
    %v4406 = vrot.slane %v4371, %v4405
    %v4407 = vsel %vm3719, %v4406, %v4402
    %4408 = vrot.lane.b32.xlu0 %v4407, 112
    %v4409 = vpop.permute.xlu0 %4408
    %v4411 = vsel %vm4396, %v4409, %v4189
    %v4412 = vsel %vm4376, %v4389, 0.0
    %v4413 = vsel %vm3745, %v4412, 0.0
    %s4414 = scalar_lea.vmem [#allocation2], 6
    %4415 = vst [vmem:[%s4414] sm:$0x3] %v4413
    %v4416 = vsel %vm4396, %v4409, 0.0
    %v4417 = vsel %vm3745, %v4416, 0.0
    %s4418 = scalar_lea.vmem [#allocation2], 40
    %4419 = vst [vmem:[%s4418] sm:$0x3] %v4417
    %vm4420 = vcmp.gt.s32.totalorder %v3511, 4
    %vm4421 = vcmp.gt.s32.totalorder %v3511, 7
    %4423 = vrot.lane.b32.xlu0 %v4411, 16
    %v4424 = vpop.permute.xlu0 %4423
    %v4426 = vsel %vm3745, %v4391, %v4424
    %v4427 = vpack.c.bf16 %v4426, %v4426
    %v4429 = vsel %vm3546, %v4427, 0
    %4431 = vmatprep.subr.bf16.mxu0 %v3539
    %4432 = vmatpush1.bf16.msra.mxu0 %v3538
    %4433 = vmatprep.subr.bf16.mxu0 %v3541
    %4434 = vmatpush1.bf16.msra.mxu0 %v3540
    %4435 = vmatprep.subr.bf16.mxu0 0
    %4436 = vmatpush1.bf16.msra.mxu0 0
    %4437 = vmatprep.subr.bf16.mxu0 0
    %4438 = vmatpush1.bf16.msra.mxu0 0
    %4439 = vmatprep.subr.bf16.mxu0 0
    %4440 = vmatpush1.bf16.msra.mxu0 0
    %4441 = vmatprep.subr.bf16.mxu0 0
    %4442 = vmatpush1.bf16.msra.mxu0 0
    %4443 = vmatprep.subr.bf16.mxu0 0
    %4444 = vmatpush1.bf16.msra.mxu0 0
    %4445 = vmatprep.subr.bf16.mxu0 0
    %4446 = vmatpush1.bf16.msra.mxu0 0
    %4447 = vmatprep.subr.bf16.mxu0 0
    %4448 = vmatpush1.bf16.msra.mxu0 0
    %4449 = vmatprep.subr.bf16.mxu0 0
    %4450 = vmatpush1.bf16.msra.mxu0 0
    %4451 = vmatprep.subr.bf16.mxu0 0
    %4452 = vmatpush1.bf16.msra.mxu0 0
    %4453 = vmatprep.subr.bf16.mxu0 0
    %4454 = vmatpush1.bf16.msra.mxu0 0
    %4455 = vmatprep.subr.bf16.mxu0 0
    %4456 = vmatpush1.bf16.msra.mxu0 0
    %4457 = vmatprep.subr.bf16.mxu0 0
    %4458 = vmatpush1.bf16.msra.mxu0 0
    %4459 = vmatprep.subr.bf16.mxu0 0
    %4460 = vmatpush1.bf16.msra.mxu0 0
    %4461 = vmatprep.subr.bf16.mxu0 0
    %4462 = vmatpush1.bf16.msra.mxu0 0
    %4463 = vmatprep.mubr.bf16.mxu0 0
    %4464 = vmatmul.mubr.bf16.gmra.mrb[0].mxu0 %v4429
    %v4465 = vpop.f32.mrb[0].mxu0
    %v4466 = vadd.f32 %v3519, %v4465
    %v4467 = vpop.f32.mrb[0].mxu0
    %v4468 = vadd.f32 %v3523, %v4467
    %v4469 = vpop.f32.mrb[0].mxu0
    %v4470 = vpop.f32.mrb[0].mxu0
    %4471 = vdwg.mxu0
    %v4473 = vrot.slane %v4466, 1
    %v4476 = vadd.f32 %v3495, %v4466
    %v4477 = vadd.f32 %v3498, %v4473
    %v4478 = vxor.u32 %v4476, 2147483648
    %v4479 = vxor.u32 %v4477, 2147483648
    %v4480 = vmul.f32 %v4478, 1.442695
    %v4481 = vpow.pop %v4480
    %v4482 = vmul.f32 %v4479, 1.442695
    %v4483 = vpow.pop %v4482
    %v4484 = vadd.f32 %v4481, 1.0
    %v4485 = vadd.f32 %v4483, 1.0
    %v4486 = vrcp.pop %v4484
    %v4487 = vmul.f32 1.0, %v4486
    %v4488 = vrcp.pop %v4485
    %v4489 = vmul.f32 1.0, %v4488
    %4490 = vrot.lane.b32.xlu0 %v4466, 96
    %v4491 = vpop.permute.xlu0 %4490
    %4492 = vrot.lane.b32.xlu0 %v4473, 96
    %v4493 = vpop.permute.xlu0 %4492
    %v4496 = vmul.f32 %v4487, %v4491
    %v4497 = vmul.f32 %v4489, %v4493
    %4500 = vrot.lane.b32.xlu0 %v4496, 32
    %v4501 = vpop.permute.xlu0 %4500
    %4502 = vrot.lane.b32.xlu0 %v4497, 32
    %v4503 = vpop.permute.xlu0 %4502
    %v4506 = vadd.f32 %v3495, %v4501
    %v4507 = vadd.f32 %v3498, %v4503
    %v4508 = vtanh.pop %v4506
    %v4509 = vtanh.pop %v4507
    %v4510 = vsub.f32 1.0, %v4487
    %v4511 = vsub.f32 1.0, %v4489
    %4514 = vrot.lane.b32.xlu0 %v4508, 112
    %v4515 = vpop.permute.xlu0 %4514
    %4516 = vrot.lane.b32.xlu0 %v4509, 112
    %v4517 = vpop.permute.xlu0 %4516
    %v4520 = vmul.f32 %v4510, %v4515
    %v4521 = vmul.f32 %v4511, %v4517
    %v4523 = vrot.slane %v4391, 1
    %4524 = vrot.lane.b32.xlu0 %v4391, 16
    %v4525 = vpop.permute.xlu0 %4524
    %4526 = vrot.lane.b32.xlu0 %v4523, 16
    %v4527 = vpop.permute.xlu0 %4526
    %v4530 = vmul.f32 %v4487, %v4525
    %v4531 = vmul.f32 %v4489, %v4527
    %v4532 = vadd.f32 %v4520, %v4530
    %v4533 = vadd.f32 %v4521, %v4531
    %v4534 = vrot.slane %v3495, 4
    %v4535 = vrot.slane %v3498, 4
    %v4539 = vrot.slane %v4468, 5
    %v4540 = vrot.slane %v4468, 6
    %v4543 = vadd.f32 %v4534, %v4539
    %v4544 = vadd.f32 %v4535, %v4540
    %v4545 = vxor.u32 %v4543, 2147483648
    %v4546 = vxor.u32 %v4544, 2147483648
    %v4547 = vmul.f32 %v4545, 1.442695
    %v4548 = vpow.pop %v4547
    %v4549 = vmul.f32 %v4546, 1.442695
    %v4550 = vpow.pop %v4549
    %v4551 = vadd.f32 %v4548, 1.0
    %v4552 = vadd.f32 %v4550, 1.0
    %v4553 = vrcp.pop %v4551
    %v4554 = vmul.f32 1.0, %v4553
    %v4555 = vrcp.pop %v4552
    %v4556 = vmul.f32 1.0, %v4555
    %4557 = vrot.lane.b32.xlu0 %v4539, 96
    %v4558 = vpop.permute.xlu0 %4557
    %4559 = vrot.lane.b32.xlu0 %v4540, 96
    %v4560 = vpop.permute.xlu0 %4559
    %v4563 = vmul.f32 %v4554, %v4558
    %v4564 = vmul.f32 %v4556, %v4560
    %4567 = vrot.lane.b32.xlu0 %v4563, 32
    %v4568 = vpop.permute.xlu0 %4567
    %4569 = vrot.lane.b32.xlu0 %v4564, 32
    %v4570 = vpop.permute.xlu0 %4569
    %v4573 = vadd.f32 %v4534, %v4568
    %v4574 = vadd.f32 %v4535, %v4570
    %v4575 = vtanh.pop %v4573
    %v4576 = vtanh.pop %v4574
    %v4577 = vsub.f32 1.0, %v4554
    %v4578 = vsub.f32 1.0, %v4556
    %4581 = vrot.lane.b32.xlu0 %v4575, 112
    %v4582 = vpop.permute.xlu0 %4581
    %4583 = vrot.lane.b32.xlu0 %v4576, 112
    %v4584 = vpop.permute.xlu0 %4583
    %v4587 = vmul.f32 %v4577, %v4582
    %v4588 = vmul.f32 %v4578, %v4584
    %v4589 = vrot.slane %v4411, 5
    %v4590 = vrot.slane %v4411, 6
    %4591 = vrot.lane.b32.xlu0 %v4589, 16
    %v4592 = vpop.permute.xlu0 %4591
    %4593 = vrot.lane.b32.xlu0 %v4590, 16
    %v4594 = vpop.permute.xlu0 %4593
    %v4597 = vmul.f32 %v4554, %v4592
    %v4598 = vmul.f32 %v4556, %v4594
    %v4599 = vadd.f32 %v4587, %v4597
    %v4600 = vadd.f32 %v4588, %v4598
    %v4601 = vsel %vm4420, 1, 0
    %4602 = vset.pattern.permute.xlu0 0
    %4603 = vperm.xlu0 %4602, %v4601
    %v4604 = vpop.permute.xlu0 %4603
    %vm4605 = vcmp.eq.s32.totalorder %v4604, 1
    %v4608 = vlaneseq
    %v4609 = vshrl.u32 %v4608, 7
    %v4610 = vsub.s32 0, %v4609
    %v4611 = vrot.slane %v4532, %v4610
    %v4612 = vlaneseq
    %v4613 = vshrl.u32 %v4612, 7
    %v4614 = vsub.s32 0, %v4613
    %v4615 = vrot.slane %v4533, %v4614
    %v4616 = vsel %vm3719, %v4615, %v4611
    %4617 = vrot.lane.b32.xlu0 %v4616, 112
    %v4618 = vpop.permute.xlu0 %4617
    %v4620 = vsel %vm4605, %v4618, %v4391
    %v4621 = vsel %vm4421, 1, 0
    %4622 = vset.pattern.permute.xlu0 0
    %4623 = vperm.xlu0 %4622, %v4621
    %v4624 = vpop.permute.xlu0 %4623
    %vm4625 = vcmp.eq.s32.totalorder %v4624, 1
    %v4628 = vlaneseq
    %v4629 = vshrl.u32 %v4628, 7
    %v4630 = vsub.s32 3, %v4629
    %v4631 = vrot.slane %v4599, %v4630
    %v4632 = vlaneseq
    %v4633 = vshrl.u32 %v4632, 7
    %v4634 = vsub.s32 3, %v4633
    %v4635 = vrot.slane %v4600, %v4634
    %v4636 = vsel %vm3719, %v4635, %v4631
    %4637 = vrot.lane.b32.xlu0 %v4636, 112
    %v4638 = vpop.permute.xlu0 %4637
    %v4640 = vsel %vm4625, %v4638, %v4411
    %v4641 = vsel %vm4605, %v4618, 0.0
    %v4642 = vsel %vm3745, %v4641, 0.0
    %s4643 = scalar_lea.vmem [#allocation2], 8
    %4644 = vst [vmem:[%s4643] sm:$0x3] %v4642
    %v4645 = vsel %vm4625, %v4638, 0.0
    %v4646 = vsel %vm3745, %v4645, 0.0
    %s4647 = scalar_lea.vmem [#allocation2], 38
    %4648 = vst [vmem:[%s4647] sm:$0x3] %v4646
    %vm4649 = vcmp.gt.s32.totalorder %v3511, 5
    %vm4650 = vcmp.gt.s32.totalorder %v3511, 6
    %4652 = vrot.lane.b32.xlu0 %v4640, 16
    %v4653 = vpop.permute.xlu0 %4652
    %v4655 = vsel %vm3745, %v4620, %v4653
    %v4656 = vpack.c.bf16 %v4655, %v4655
    %v4658 = vsel %vm3546, %v4656, 0
    %4660 = vmatprep.subr.bf16.mxu0 %v3539
    %4661 = vmatpush1.bf16.msra.mxu0 %v3538
    %4662 = vmatprep.subr.bf16.mxu0 %v3541
    %4663 = vmatpush1.bf16.msra.mxu0 %v3540
    %4664 = vmatprep.subr.bf16.mxu0 0
    %4665 = vmatpush1.bf16.msra.mxu0 0
    %4666 = vmatprep.subr.bf16.mxu0 0
    %4667 = vmatpush1.bf16.msra.mxu0 0
    %4668 = vmatprep.subr.bf16.mxu0 0
    %4669 = vmatpush1.bf16.msra.mxu0 0
    %4670 = vmatprep.subr.bf16.mxu0 0
    %4671 = vmatpush1.bf16.msra.mxu0 0
    %4672 = vmatprep.subr.bf16.mxu0 0
    %4673 = vmatpush1.bf16.msra.mxu0 0
    %4674 = vmatprep.subr.bf16.mxu0 0
    %4675 = vmatpush1.bf16.msra.mxu0 0
    %4676 = vmatprep.subr.bf16.mxu0 0
    %4677 = vmatpush1.bf16.msra.mxu0 0
    %4678 = vmatprep.subr.bf16.mxu0 0
    %4679 = vmatpush1.bf16.msra.mxu0 0
    %4680 = vmatprep.subr.bf16.mxu0 0
    %4681 = vmatpush1.bf16.msra.mxu0 0
    %4682 = vmatprep.subr.bf16.mxu0 0
    %4683 = vmatpush1.bf16.msra.mxu0 0
    %4684 = vmatprep.subr.bf16.mxu0 0
    %4685 = vmatpush1.bf16.msra.mxu0 0
    %4686 = vmatprep.subr.bf16.mxu0 0
    %4687 = vmatpush1.bf16.msra.mxu0 0
    %4688 = vmatprep.subr.bf16.mxu0 0
    %4689 = vmatpush1.bf16.msra.mxu0 0
    %4690 = vmatprep.subr.bf16.mxu0 0
    %4691 = vmatpush1.bf16.msra.mxu0 0
    %4692 = vmatprep.mubr.bf16.mxu0 0
    %4693 = vmatmul.mubr.bf16.gmra.mrb[0].mxu0 %v4658
    %v4694 = vpop.f32.mrb[0].mxu0
    %v4695 = vadd.f32 %v3519, %v4694
    %v4696 = vpop.f32.mrb[0].mxu0
    %v4697 = vadd.f32 %v3523, %v4696
    %v4698 = vpop.f32.mrb[0].mxu0
    %v4699 = vpop.f32.mrb[0].mxu0
    %4700 = vdwg.mxu0
    %v4702 = vrot.slane %v4695, 7
    %v4705 = vadd.f32 %v3495, %v4702
    %v4706 = vadd.f32 %v3498, %v4695
    %v4707 = vxor.u32 %v4705, 2147483648
    %v4708 = vxor.u32 %v4706, 2147483648
    %v4709 = vmul.f32 %v4707, 1.442695
    %v4710 = vpow.pop %v4709
    %v4711 = vmul.f32 %v4708, 1.442695
    %v4712 = vpow.pop %v4711
    %v4713 = vadd.f32 %v4710, 1.0
    %v4714 = vadd.f32 %v4712, 1.0
    %v4715 = vrcp.pop %v4713
    %v4716 = vmul.f32 1.0, %v4715
    %v4717 = vrcp.pop %v4714
    %v4718 = vmul.f32 1.0, %v4717
    %4719 = vrot.lane.b32.xlu0 %v4702, 96
    %v4720 = vpop.permute.xlu0 %4719
    %4721 = vrot.lane.b32.xlu0 %v4695, 96
    %v4722 = vpop.permute.xlu0 %4721
    %v4725 = vmul.f32 %v4716, %v4720
    %v4726 = vmul.f32 %v4718, %v4722
    %4729 = vrot.lane.b32.xlu0 %v4725, 32
    %v4730 = vpop.permute.xlu0 %4729
    %4731 = vrot.lane.b32.xlu0 %v4726, 32
    %v4732 = vpop.permute.xlu0 %4731
    %v4735 = vadd.f32 %v3495, %v4730
    %v4736 = vadd.f32 %v3498, %v4732
    %v4737 = vtanh.pop %v4735
    %v4738 = vtanh.pop %v4736
    %v4739 = vsub.f32 1.0, %v4716
    %v4740 = vsub.f32 1.0, %v4718
    %4743 = vrot.lane.b32.xlu0 %v4737, 112
    %v4744 = vpop.permute.xlu0 %4743
    %4745 = vrot.lane.b32.xlu0 %v4738, 112
    %v4746 = vpop.permute.xlu0 %4745
    %v4749 = vmul.f32 %v4739, %v4744
    %v4750 = vmul.f32 %v4740, %v4746
    %v4752 = vrot.slane %v4620, 7
    %4753 = vrot.lane.b32.xlu0 %v4752, 16
    %v4754 = vpop.permute.xlu0 %4753
    %4755 = vrot.lane.b32.xlu0 %v4620, 16
    %v4756 = vpop.permute.xlu0 %4755
    %v4759 = vmul.f32 %v4716, %v4754
    %v4760 = vmul.f32 %v4718, %v4756
    %v4761 = vadd.f32 %v4749, %v4759
    %v4762 = vadd.f32 %v4750, %v4760
    %v4764 = vrot.slane %v4697, 6
    %v4765 = vrot.slane %v4697, 7
    %v4768 = vadd.f32 %v4534, %v4764
    %v4769 = vadd.f32 %v4535, %v4765
    %v4770 = vxor.u32 %v4768, 2147483648
    %v4771 = vxor.u32 %v4769, 2147483648
    %v4772 = vmul.f32 %v4770, 1.442695
    %v4773 = vpow.pop %v4772
    %v4774 = vmul.f32 %v4771, 1.442695
    %v4775 = vpow.pop %v4774
    %v4776 = vadd.f32 %v4773, 1.0
    %v4777 = vadd.f32 %v4775, 1.0
    %v4778 = vrcp.pop %v4776
    %v4779 = vmul.f32 1.0, %v4778
    %v4780 = vrcp.pop %v4777
    %v4781 = vmul.f32 1.0, %v4780
    %4782 = vrot.lane.b32.xlu0 %v4764, 96
    %v4783 = vpop.permute.xlu0 %4782
    %4784 = vrot.lane.b32.xlu0 %v4765, 96
    %v4785 = vpop.permute.xlu0 %4784
    %v4788 = vmul.f32 %v4779, %v4783
    %v4789 = vmul.f32 %v4781, %v4785
    %4792 = vrot.lane.b32.xlu0 %v4788, 32
    %v4793 = vpop.permute.xlu0 %4792
    %4794 = vrot.lane.b32.xlu0 %v4789, 32
    %v4795 = vpop.permute.xlu0 %4794
    %v4798 = vadd.f32 %v4534, %v4793
    %v4799 = vadd.f32 %v4535, %v4795
    %v4800 = vtanh.pop %v4798
    %v4801 = vtanh.pop %v4799
    %v4802 = vsub.f32 1.0, %v4779
    %v4803 = vsub.f32 1.0, %v4781
    %4806 = vrot.lane.b32.xlu0 %v4800, 112
    %v4807 = vpop.permute.xlu0 %4806
    %4808 = vrot.lane.b32.xlu0 %v4801, 112
    %v4809 = vpop.permute.xlu0 %4808
    %v4812 = vmul.f32 %v4802, %v4807
    %v4813 = vmul.f32 %v4803, %v4809
    %v4814 = vrot.slane %v4640, 6
    %v4815 = vrot.slane %v4640, 7
    %4816 = vrot.lane.b32.xlu0 %v4814, 16
    %v4817 = vpop.permute.xlu0 %4816
    %4818 = vrot.lane.b32.xlu0 %v4815, 16
    %v4819 = vpop.permute.xlu0 %4818
    %v4822 = vmul.f32 %v4779, %v4817
    %v4823 = vmul.f32 %v4781, %v4819
    %v4824 = vadd.f32 %v4812, %v4822
    %v4825 = vadd.f32 %v4813, %v4823
    %v4826 = vsel %vm4649, 1, 0
    %4827 = vset.pattern.permute.xlu0 0
    %4828 = vperm.xlu0 %4827, %v4826
    %v4829 = vpop.permute.xlu0 %4828
    %vm4830 = vcmp.eq.s32.totalorder %v4829, 1
    %v4833 = vlaneseq
    %v4834 = vshrl.u32 %v4833, 7
    %v4835 = vsub.s32 1, %v4834
    %v4836 = vrot.slane %v4761, %v4835
    %v4837 = vlaneseq
    %v4838 = vshrl.u32 %v4837, 7
    %v4839 = vsub.s32 1, %v4838
    %v4840 = vrot.slane %v4762, %v4839
    %v4841 = vsel %vm3719, %v4840, %v4836
    %4842 = vrot.lane.b32.xlu0 %v4841, 112
    %v4843 = vpop.permute.xlu0 %4842
    %v4845 = vsel %vm4830, %v4843, %v4620
    %v4846 = vsel %vm4650, 1, 0
    %4847 = vset.pattern.permute.xlu0 0
    %4848 = vperm.xlu0 %4847, %v4846
    %v4849 = vpop.permute.xlu0 %4848
    %vm4850 = vcmp.eq.s32.totalorder %v4849, 1
    %v4853 = vlaneseq
    %v4854 = vshrl.u32 %v4853, 7
    %v4855 = vsub.s32 2, %v4854
    %v4856 = vrot.slane %v4824, %v4855
    %v4857 = vlaneseq
    %v4858 = vshrl.u32 %v4857, 7
    %v4859 = vsub.s32 2, %v4858
    %v4860 = vrot.slane %v4825, %v4859
    %v4861 = vsel %vm3719, %v4860, %v4856
    %4862 = vrot.lane.b32.xlu0 %v4861, 112
    %v4863 = vpop.permute.xlu0 %4862
    %v4865 = vsel %vm4850, %v4863, %v4640
    %v4866 = vsel %vm4830, %v4843, 0.0
    %v4867 = vsel %vm3745, %v4866, 0.0
    %s4868 = scalar_lea.vmem [#allocation2], 10
    %4869 = vst [vmem:[%s4868] sm:$0x3] %v4867
    %v4870 = vsel %vm4850, %v4863, 0.0
    %v4871 = vsel %vm3745, %v4870, 0.0
    %s4872 = scalar_lea.vmem [#allocation2], 36
    %4873 = vst [vmem:[%s4872] sm:$0x3] %v4871
    %4875 = vrot.lane.b32.xlu0 %v4865, 16
    %v4876 = vpop.permute.xlu0 %4875
    %v4878 = vsel %vm3745, %v4845, %v4876
    %v4879 = vpack.c.bf16 %v4878, %v4878
    %v4881 = vsel %vm3546, %v4879, 0
    %4883 = vmatprep.subr.bf16.mxu0 %v3539
    %4884 = vmatpush1.bf16.msra.mxu0 %v3538
    %4885 = vmatprep.subr.bf16.mxu0 %v3541
    %4886 = vmatpush1.bf16.msra.mxu0 %v3540
    %4887 = vmatprep.subr.bf16.mxu0 0
    %4888 = vmatpush1.bf16.msra.mxu0 0
    %4889 = vmatprep.subr.bf16.mxu0 0
    %4890 = vmatpush1.bf16.msra.mxu0 0
    %4891 = vmatprep.subr.bf16.mxu0 0
    %4892 = vmatpush1.bf16.msra.mxu0 0
    %4893 = vmatprep.subr.bf16.mxu0 0
    %4894 = vmatpush1.bf16.msra.mxu0 0
    %4895 = vmatprep.subr.bf16.mxu0 0
    %4896 = vmatpush1.bf16.msra.mxu0 0
    %4897 = vmatprep.subr.bf16.mxu0 0
    %4898 = vmatpush1.bf16.msra.mxu0 0
    %4899 = vmatprep.subr.bf16.mxu0 0
    %4900 = vmatpush1.bf16.msra.mxu0 0
    %4901 = vmatprep.subr.bf16.mxu0 0
    %4902 = vmatpush1.bf16.msra.mxu0 0
    %4903 = vmatprep.subr.bf16.mxu0 0
    %4904 = vmatpush1.bf16.msra.mxu0 0
    %4905 = vmatprep.subr.bf16.mxu0 0
    %4906 = vmatpush1.bf16.msra.mxu0 0
    %4907 = vmatprep.subr.bf16.mxu0 0
    %4908 = vmatpush1.bf16.msra.mxu0 0
    %4909 = vmatprep.subr.bf16.mxu0 0
    %4910 = vmatpush1.bf16.msra.mxu0 0
    %4911 = vmatprep.subr.bf16.mxu0 0
    %4912 = vmatpush1.bf16.msra.mxu0 0
    %4913 = vmatprep.subr.bf16.mxu0 0
    %4914 = vmatpush1.bf16.msra.mxu0 0
    %4915 = vmatprep.mubr.bf16.mxu0 0
    %4916 = vmatmul.mubr.bf16.gmra.mrb[0].mxu0 %v4881
    %v4917 = vpop.f32.mrb[0].mxu0
    %v4918 = vadd.f32 %v3519, %v4917
    %v4919 = vpop.f32.mrb[0].mxu0
    %v4920 = vadd.f32 %v3523, %v4919
    %v4921 = vpop.f32.mrb[0].mxu0
    %v4922 = vpop.f32.mrb[0].mxu0
    %4923 = vdwg.mxu0
    %v4925 = vrot.slane %v4918, 6
    %v4926 = vrot.slane %v4918, 7
    %v4929 = vadd.f32 %v3495, %v4925
    %v4930 = vadd.f32 %v3498, %v4926
    %v4931 = vxor.u32 %v4929, 2147483648
    %v4932 = vxor.u32 %v4930, 2147483648
    %v4933 = vmul.f32 %v4931, 1.442695
    %v4934 = vpow.pop %v4933
    %v4935 = vmul.f32 %v4932, 1.442695
    %v4936 = vpow.pop %v4935
    %v4937 = vadd.f32 %v4934, 1.0
    %v4938 = vadd.f32 %v4936, 1.0
    %v4939 = vrcp.pop %v4937
    %v4940 = vmul.f32 1.0, %v4939
    %v4941 = vrcp.pop %v4938
    %v4942 = vmul.f32 1.0, %v4941
    %4943 = vrot.lane.b32.xlu0 %v4925, 96
    %v4944 = vpop.permute.xlu0 %4943
    %4945 = vrot.lane.b32.xlu0 %v4926, 96
    %v4946 = vpop.permute.xlu0 %4945
    %v4949 = vmul.f32 %v4940, %v4944
    %v4950 = vmul.f32 %v4942, %v4946
    %4953 = vrot.lane.b32.xlu0 %v4949, 32
    %v4954 = vpop.permute.xlu0 %4953
    %4955 = vrot.lane.b32.xlu0 %v4950, 32
    %v4956 = vpop.permute.xlu0 %4955
    %v4959 = vadd.f32 %v3495, %v4954
    %v4960 = vadd.f32 %v3498, %v4956
    %v4961 = vtanh.pop %v4959
    %v4962 = vtanh.pop %v4960
    %v4963 = vsub.f32 1.0, %v4940
    %v4964 = vsub.f32 1.0, %v4942
    %4967 = vrot.lane.b32.xlu0 %v4961, 112
    %v4968 = vpop.permute.xlu0 %4967
    %4969 = vrot.lane.b32.xlu0 %v4962, 112
    %v4970 = vpop.permute.xlu0 %4969
    %v4973 = vmul.f32 %v4963, %v4968
    %v4974 = vmul.f32 %v4964, %v4970
    %v4976 = vrot.slane %v4845, 6
    %v4977 = vrot.slane %v4845, 7
    %4978 = vrot.lane.b32.xlu0 %v4976, 16
    %v4979 = vpop.permute.xlu0 %4978
    %4980 = vrot.lane.b32.xlu0 %v4977, 16
    %v4981 = vpop.permute.xlu0 %4980
    %v4984 = vmul.f32 %v4940, %v4979
    %v4985 = vmul.f32 %v4942, %v4981
    %v4986 = vadd.f32 %v4973, %v4984
    %v4987 = vadd.f32 %v4974, %v4985
    %v4989 = vrot.slane %v4920, 7
    %v4992 = vadd.f32 %v4534, %v4989
    %v4993 = vadd.f32 %v4535, %v4920
    %v4994 = vxor.u32 %v4992, 2147483648
    %v4995 = vxor.u32 %v4993, 2147483648
    %v4996 = vmul.f32 %v4994, 1.442695
    %v4997 = vpow.pop %v4996
    %v4998 = vmul.f32 %v4995, 1.442695
    %v4999 = vpow.pop %v4998
    %v5000 = vadd.f32 %v4997, 1.0
    %v5001 = vadd.f32 %v4999, 1.0
    %v5002 = vrcp.pop %v5000
    %v5003 = vmul.f32 1.0, %v5002
    %v5004 = vrcp.pop %v5001
    %v5005 = vmul.f32 1.0, %v5004
    %5006 = vrot.lane.b32.xlu0 %v4989, 96
    %v5007 = vpop.permute.xlu0 %5006
    %5008 = vrot.lane.b32.xlu0 %v4920, 96
    %v5009 = vpop.permute.xlu0 %5008
    %v5012 = vmul.f32 %v5003, %v5007
    %v5013 = vmul.f32 %v5005, %v5009
    %5016 = vrot.lane.b32.xlu0 %v5012, 32
    %v5017 = vpop.permute.xlu0 %5016
    %5018 = vrot.lane.b32.xlu0 %v5013, 32
    %v5019 = vpop.permute.xlu0 %5018
    %v5022 = vadd.f32 %v4534, %v5017
    %v5023 = vadd.f32 %v4535, %v5019
    %v5024 = vtanh.pop %v5022
    %v5025 = vtanh.pop %v5023
    %v5026 = vsub.f32 1.0, %v5003
    %v5027 = vsub.f32 1.0, %v5005
    %5030 = vrot.lane.b32.xlu0 %v5024, 112
    %v5031 = vpop.permute.xlu0 %5030
    %5032 = vrot.lane.b32.xlu0 %v5025, 112
    %v5033 = vpop.permute.xlu0 %5032
    %v5036 = vmul.f32 %v5026, %v5031
    %v5037 = vmul.f32 %v5027, %v5033
    %v5038 = vrot.slane %v4865, 7
    %5039 = vrot.lane.b32.xlu0 %v5038, 16
    %v5040 = vpop.permute.xlu0 %5039
    %v5042 = vmul.f32 %v5003, %v5040
    %v5043 = vmul.f32 %v5005, %v4876
    %v5044 = vadd.f32 %v5036, %v5042
    %v5045 = vadd.f32 %v5037, %v5043
    %v5048 = vlaneseq
    %v5049 = vshrl.u32 %v5048, 7
    %v5050 = vsub.s32 2, %v5049
    %v5051 = vrot.slane %v4986, %v5050
    %v5052 = vlaneseq
    %v5053 = vshrl.u32 %v5052, 7
    %v5054 = vsub.s32 2, %v5053
    %v5055 = vrot.slane %v4987, %v5054
    %v5056 = vsel %vm3719, %v5055, %v5051
    %5057 = vrot.lane.b32.xlu0 %v5056, 112
    %v5058 = vpop.permute.xlu0 %5057
    %v5060 = vsel %vm4850, %v5058, %v4845
    %v5063 = vlaneseq
    %v5064 = vshrl.u32 %v5063, 7
    %v5065 = vsub.s32 1, %v5064
    %v5066 = vrot.slane %v5044, %v5065
    %v5067 = vlaneseq
    %v5068 = vshrl.u32 %v5067, 7
    %v5069 = vsub.s32 1, %v5068
    %v5070 = vrot.slane %v5045, %v5069
    %v5071 = vsel %vm3719, %v5070, %v5066
    %5072 = vrot.lane.b32.xlu0 %v5071, 112
    %v5073 = vpop.permute.xlu0 %5072
    %v5075 = vsel %vm4830, %v5073, %v4865
    %v5076 = vsel %vm4850, %v5058, 0.0
    %v5077 = vsel %vm3745, %v5076, 0.0
    %s5078 = scalar_lea.vmem [#allocation2], 12
    %5079 = vst [vmem:[%s5078] sm:$0x3] %v5077
    %v5080 = vsel %vm4830, %v5073, 0.0
    %v5081 = vsel %vm3745, %v5080, 0.0
    %s5082 = scalar_lea.vmem [#allocation2], 34
    %5083 = vst [vmem:[%s5082] sm:$0x3] %v5081
    %5085 = vrot.lane.b32.xlu0 %v5075, 16
    %v5086 = vpop.permute.xlu0 %5085
    %v5088 = vsel %vm3745, %v5060, %v5086
    %v5089 = vpack.c.bf16 %v5088, %v5088
    %v5091 = vsel %vm3546, %v5089, 0
    %5093 = vmatprep.subr.bf16.mxu0 %v3539
    %5094 = vmatpush1.bf16.msra.mxu0 %v3538
    %5095 = vmatprep.subr.bf16.mxu0 %v3541
    %5096 = vmatpush1.bf16.msra.mxu0 %v3540
    %5097 = vmatprep.subr.bf16.mxu0 0
    %5098 = vmatpush1.bf16.msra.mxu0 0
    %5099 = vmatprep.subr.bf16.mxu0 0
    %5100 = vmatpush1.bf16.msra.mxu0 0
    %5101 = vmatprep.subr.bf16.mxu0 0
    %5102 = vmatpush1.bf16.msra.mxu0 0
    %5103 = vmatprep.subr.bf16.mxu0 0
    %5104 = vmatpush1.bf16.msra.mxu0 0
    %5105 = vmatprep.subr.bf16.mxu0 0
    %5106 = vmatpush1.bf16.msra.mxu0 0
    %5107 = vmatprep.subr.bf16.mxu0 0
    %5108 = vmatpush1.bf16.msra.mxu0 0
    %5109 = vmatprep.subr.bf16.mxu0 0
    %5110 = vmatpush1.bf16.msra.mxu0 0
    %5111 = vmatprep.subr.bf16.mxu0 0
    %5112 = vmatpush1.bf16.msra.mxu0 0
    %5113 = vmatprep.subr.bf16.mxu0 0
    %5114 = vmatpush1.bf16.msra.mxu0 0
    %5115 = vmatprep.subr.bf16.mxu0 0
    %5116 = vmatpush1.bf16.msra.mxu0 0
    %5117 = vmatprep.subr.bf16.mxu0 0
    %5118 = vmatpush1.bf16.msra.mxu0 0
    %5119 = vmatprep.subr.bf16.mxu0 0
    %5120 = vmatpush1.bf16.msra.mxu0 0
    %5121 = vmatprep.subr.bf16.mxu0 0
    %5122 = vmatpush1.bf16.msra.mxu0 0
    %5123 = vmatprep.subr.bf16.mxu0 0
    %5124 = vmatpush1.bf16.msra.mxu0 0
    %5125 = vmatprep.mubr.bf16.mxu0 0
    %5126 = vmatmul.mubr.bf16.gmra.mrb[0].mxu0 %v5091
    %v5127 = vpop.f32.mrb[0].mxu0
    %v5128 = vadd.f32 %v3519, %v5127
    %v5129 = vpop.f32.mrb[0].mxu0
    %v5130 = vadd.f32 %v3523, %v5129
    %v5131 = vpop.f32.mrb[0].mxu0
    %v5132 = vpop.f32.mrb[0].mxu0
    %5133 = vdwg.mxu0
    %v5135 = vrot.slane %v5128, 5
    %v5136 = vrot.slane %v5128, 6
    %v5139 = vadd.f32 %v3495, %v5135
    %v5140 = vadd.f32 %v3498, %v5136
    %v5141 = vxor.u32 %v5139, 2147483648
    %v5142 = vxor.u32 %v5140, 2147483648
    %v5143 = vmul.f32 %v5141, 1.442695
    %v5144 = vpow.pop %v5143
    %v5145 = vmul.f32 %v5142, 1.442695
    %v5146 = vpow.pop %v5145
    %v5147 = vadd.f32 %v5144, 1.0
    %v5148 = vadd.f32 %v5146, 1.0
    %v5149 = vrcp.pop %v5147
    %v5150 = vmul.f32 1.0, %v5149
    %v5151 = vrcp.pop %v5148
    %v5152 = vmul.f32 1.0, %v5151
    %5153 = vrot.lane.b32.xlu0 %v5135, 96
    %v5154 = vpop.permute.xlu0 %5153
    %5155 = vrot.lane.b32.xlu0 %v5136, 96
    %v5156 = vpop.permute.xlu0 %5155
    %v5159 = vmul.f32 %v5150, %v5154
    %v5160 = vmul.f32 %v5152, %v5156
    %5163 = vrot.lane.b32.xlu0 %v5159, 32
    %v5164 = vpop.permute.xlu0 %5163
    %5165 = vrot.lane.b32.xlu0 %v5160, 32
    %v5166 = vpop.permute.xlu0 %5165
    %v5169 = vadd.f32 %v3495, %v5164
    %v5170 = vadd.f32 %v3498, %v5166
    %v5171 = vtanh.pop %v5169
    %v5172 = vtanh.pop %v5170
    %v5173 = vsub.f32 1.0, %v5150
    %v5174 = vsub.f32 1.0, %v5152
    %5177 = vrot.lane.b32.xlu0 %v5171, 112
    %v5178 = vpop.permute.xlu0 %5177
    %5179 = vrot.lane.b32.xlu0 %v5172, 112
    %v5180 = vpop.permute.xlu0 %5179
    %v5183 = vmul.f32 %v5173, %v5178
    %v5184 = vmul.f32 %v5174, %v5180
    %v5186 = vrot.slane %v5060, 5
    %v5187 = vrot.slane %v5060, 6
    %5188 = vrot.lane.b32.xlu0 %v5186, 16
    %v5189 = vpop.permute.xlu0 %5188
    %5190 = vrot.lane.b32.xlu0 %v5187, 16
    %v5191 = vpop.permute.xlu0 %5190
    %v5194 = vmul.f32 %v5150, %v5189
    %v5195 = vmul.f32 %v5152, %v5191
    %v5196 = vadd.f32 %v5183, %v5194
    %v5197 = vadd.f32 %v5184, %v5195
    %v5199 = vrot.slane %v5130, 1
    %v5202 = vadd.f32 %v4534, %v5130
    %v5203 = vadd.f32 %v4535, %v5199
    %v5204 = vxor.u32 %v5202, 2147483648
    %v5205 = vxor.u32 %v5203, 2147483648
    %v5206 = vmul.f32 %v5204, 1.442695
    %v5207 = vpow.pop %v5206
    %v5208 = vmul.f32 %v5205, 1.442695
    %v5209 = vpow.pop %v5208
    %v5210 = vadd.f32 %v5207, 1.0
    %v5211 = vadd.f32 %v5209, 1.0
    %v5212 = vrcp.pop %v5210
    %v5213 = vmul.f32 1.0, %v5212
    %v5214 = vrcp.pop %v5211
    %v5215 = vmul.f32 1.0, %v5214
    %5216 = vrot.lane.b32.xlu0 %v5130, 96
    %v5217 = vpop.permute.xlu0 %5216
    %5218 = vrot.lane.b32.xlu0 %v5199, 96
    %v5219 = vpop.permute.xlu0 %5218
    %v5222 = vmul.f32 %v5213, %v5217
    %v5223 = vmul.f32 %v5215, %v5219
    %5226 = vrot.lane.b32.xlu0 %v5222, 32
    %v5227 = vpop.permute.xlu0 %5226
    %5228 = vrot.lane.b32.xlu0 %v5223, 32
    %v5229 = vpop.permute.xlu0 %5228
    %v5232 = vadd.f32 %v4534, %v5227
    %v5233 = vadd.f32 %v4535, %v5229
    %v5234 = vtanh.pop %v5232
    %v5235 = vtanh.pop %v5233
    %v5236 = vsub.f32 1.0, %v5213
    %v5237 = vsub.f32 1.0, %v5215
    %5240 = vrot.lane.b32.xlu0 %v5234, 112
    %v5241 = vpop.permute.xlu0 %5240
    %5242 = vrot.lane.b32.xlu0 %v5235, 112
    %v5243 = vpop.permute.xlu0 %5242
    %v5246 = vmul.f32 %v5236, %v5241
    %v5247 = vmul.f32 %v5237, %v5243
    %v5248 = vrot.slane %v5075, 1
    %5249 = vrot.lane.b32.xlu0 %v5248, 16
    %v5250 = vpop.permute.xlu0 %5249
    %v5252 = vmul.f32 %v5213, %v5086
    %v5253 = vmul.f32 %v5215, %v5250
    %v5254 = vadd.f32 %v5246, %v5252
    %v5255 = vadd.f32 %v5247, %v5253
    %v5258 = vlaneseq
    %v5259 = vshrl.u32 %v5258, 7
    %v5260 = vsub.s32 3, %v5259
    %v5261 = vrot.slane %v5196, %v5260
    %v5262 = vlaneseq
    %v5263 = vshrl.u32 %v5262, 7
    %v5264 = vsub.s32 3, %v5263
    %v5265 = vrot.slane %v5197, %v5264
    %v5266 = vsel %vm3719, %v5265, %v5261
    %5267 = vrot.lane.b32.xlu0 %v5266, 112
    %v5268 = vpop.permute.xlu0 %5267
    %v5270 = vsel %vm4625, %v5268, %v5060
    %v5273 = vlaneseq
    %v5274 = vshrl.u32 %v5273, 7
    %v5275 = vsub.s32 0, %v5274
    %v5276 = vrot.slane %v5254, %v5275
    %v5277 = vlaneseq
    %v5278 = vshrl.u32 %v5277, 7
    %v5279 = vsub.s32 0, %v5278
    %v5280 = vrot.slane %v5255, %v5279
    %v5281 = vsel %vm3719, %v5280, %v5276
    %5282 = vrot.lane.b32.xlu0 %v5281, 112
    %v5283 = vpop.permute.xlu0 %5282
    %v5285 = vsel %vm4605, %v5283, %v5075
    %v5286 = vsel %vm4625, %v5268, 0.0
    %v5287 = vsel %vm3745, %v5286, 0.0
    %s5288 = scalar_lea.vmem [#allocation2], 14
    %5289 = vst [vmem:[%s5288] sm:$0x3] %v5287
    %v5290 = vsel %vm4605, %v5283, 0.0
    %v5291 = vsel %vm3745, %v5290, 0.0
    %s5292 = scalar_lea.vmem [#allocation2], 32
    %5293 = vst [vmem:[%s5292] sm:$0x3] %v5291
    %5295 = vrot.lane.b32.xlu0 %v5285, 16
    %v5296 = vpop.permute.xlu0 %5295
    %v5298 = vsel %vm3745, %v5270, %v5296
    %v5299 = vpack.c.bf16 %v5298, %v5298
    %v5301 = vsel %vm3546, %v5299, 0
    %5303 = vmatprep.subr.bf16.mxu0 %v3539
    %5304 = vmatpush1.bf16.msra.mxu0 %v3538
    %5305 = vmatprep.subr.bf16.mxu0 %v3541
    %5306 = vmatpush1.bf16.msra.mxu0 %v3540
    %5307 = vmatprep.subr.bf16.mxu0 0
    %5308 = vmatpush1.bf16.msra.mxu0 0
    %5309 = vmatprep.subr.bf16.mxu0 0
    %5310 = vmatpush1.bf16.msra.mxu0 0
    %5311 = vmatprep.subr.bf16.mxu0 0
    %5312 = vmatpush1.bf16.msra.mxu0 0
    %5313 = vmatprep.subr.bf16.mxu0 0
    %5314 = vmatpush1.bf16.msra.mxu0 0
    %5315 = vmatprep.subr.bf16.mxu0 0
    %5316 = vmatpush1.bf16.msra.mxu0 0
    %5317 = vmatprep.subr.bf16.mxu0 0
    %5318 = vmatpush1.bf16.msra.mxu0 0
    %5319 = vmatprep.subr.bf16.mxu0 0
    %5320 = vmatpush1.bf16.msra.mxu0 0
    %5321 = vmatprep.subr.bf16.mxu0 0
    %5322 = vmatpush1.bf16.msra.mxu0 0
    %5323 = vmatprep.subr.bf16.mxu0 0
    %5324 = vmatpush1.bf16.msra.mxu0 0
    %5325 = vmatprep.subr.bf16.mxu0 0
    %5326 = vmatpush1.bf16.msra.mxu0 0
    %5327 = vmatprep.subr.bf16.mxu0 0
    %5328 = vmatpush1.bf16.msra.mxu0 0
    %5329 = vmatprep.subr.bf16.mxu0 0
    %5330 = vmatpush1.bf16.msra.mxu0 0
    %5331 = vmatprep.subr.bf16.mxu0 0
    %5332 = vmatpush1.bf16.msra.mxu0 0
    %5333 = vmatprep.subr.bf16.mxu0 0
    %5334 = vmatpush1.bf16.msra.mxu0 0
    %5335 = vmatprep.mubr.bf16.mxu0 0
    %5336 = vmatmul.mubr.bf16.gmra.mrb[0].mxu0 %v5301
    %v5337 = vpop.f32.mrb[0].mxu0
    %v5338 = vadd.f32 %v3519, %v5337
    %v5339 = vpop.f32.mrb[0].mxu0
    %v5340 = vadd.f32 %v3523, %v5339
    %v5341 = vpop.f32.mrb[0].mxu0
    %v5342 = vpop.f32.mrb[0].mxu0
    %5343 = vdwg.mxu0
    %v5345 = vrot.slane %v5338, 1
    %v5348 = vadd.f32 %v3496, %v5338
    %v5349 = vadd.f32 %v3499, %v5345
    %v5350 = vxor.u32 %v5348, 2147483648
    %v5351 = vxor.u32 %v5349, 2147483648
    %v5352 = vmul.f32 %v5350, 1.442695
    %v5353 = vpow.pop %v5352
    %v5354 = vmul.f32 %v5351, 1.442695
    %v5355 = vpow.pop %v5354
    %v5356 = vadd.f32 %v5353, 1.0
    %v5357 = vadd.f32 %v5355, 1.0
    %v5358 = vrcp.pop %v5356
    %v5359 = vmul.f32 1.0, %v5358
    %v5360 = vrcp.pop %v5357
    %v5361 = vmul.f32 1.0, %v5360
    %5362 = vrot.lane.b32.xlu0 %v5338, 96
    %v5363 = vpop.permute.xlu0 %5362
    %5364 = vrot.lane.b32.xlu0 %v5345, 96
    %v5365 = vpop.permute.xlu0 %5364
    %v5368 = vmul.f32 %v5359, %v5363
    %v5369 = vmul.f32 %v5361, %v5365
    %5372 = vrot.lane.b32.xlu0 %v5368, 32
    %v5373 = vpop.permute.xlu0 %5372
    %5374 = vrot.lane.b32.xlu0 %v5369, 32
    %v5375 = vpop.permute.xlu0 %5374
    %v5378 = vadd.f32 %v3496, %v5373
    %v5379 = vadd.f32 %v3499, %v5375
    %v5380 = vtanh.pop %v5378
    %v5381 = vtanh.pop %v5379
    %v5382 = vsub.f32 1.0, %v5359
    %v5383 = vsub.f32 1.0, %v5361
    %5386 = vrot.lane.b32.xlu0 %v5380, 112
    %v5387 = vpop.permute.xlu0 %5386
    %5388 = vrot.lane.b32.xlu0 %v5381, 112
    %v5389 = vpop.permute.xlu0 %5388
    %v5392 = vmul.f32 %v5382, %v5387
    %v5393 = vmul.f32 %v5383, %v5389
    %v5395 = vrot.slane %v5270, 1
    %5396 = vrot.lane.b32.xlu0 %v5270, 16
    %v5397 = vpop.permute.xlu0 %5396
    %5398 = vrot.lane.b32.xlu0 %v5395, 16
    %v5399 = vpop.permute.xlu0 %5398
    %v5402 = vmul.f32 %v5359, %v5397
    %v5403 = vmul.f32 %v5361, %v5399
    %v5404 = vadd.f32 %v5392, %v5402
    %v5405 = vadd.f32 %v5393, %v5403
    %v5406 = vrot.slane %v3494, 4
    %v5407 = vrot.slane %v3497, 4
    %v5411 = vrot.slane %v5340, 5
    %v5412 = vrot.slane %v5340, 6
    %v5415 = vadd.f32 %v5406, %v5411
    %v5416 = vadd.f32 %v5407, %v5412
    %v5417 = vxor.u32 %v5415, 2147483648
    %v5418 = vxor.u32 %v5416, 2147483648
    %v5419 = vmul.f32 %v5417, 1.442695
    %v5420 = vpow.pop %v5419
    %v5421 = vmul.f32 %v5418, 1.442695
    %v5422 = vpow.pop %v5421
    %v5423 = vadd.f32 %v5420, 1.0
    %v5424 = vadd.f32 %v5422, 1.0
    %v5425 = vrcp.pop %v5423
    %v5426 = vmul.f32 1.0, %v5425
    %v5427 = vrcp.pop %v5424
    %v5428 = vmul.f32 1.0, %v5427
    %5429 = vrot.lane.b32.xlu0 %v5411, 96
    %v5430 = vpop.permute.xlu0 %5429
    %5431 = vrot.lane.b32.xlu0 %v5412, 96
    %v5432 = vpop.permute.xlu0 %5431
    %v5435 = vmul.f32 %v5426, %v5430
    %v5436 = vmul.f32 %v5428, %v5432
    %5439 = vrot.lane.b32.xlu0 %v5435, 32
    %v5440 = vpop.permute.xlu0 %5439
    %5441 = vrot.lane.b32.xlu0 %v5436, 32
    %v5442 = vpop.permute.xlu0 %5441
    %v5445 = vadd.f32 %v5406, %v5440
    %v5446 = vadd.f32 %v5407, %v5442
    %v5447 = vtanh.pop %v5445
    %v5448 = vtanh.pop %v5446
    %v5449 = vsub.f32 1.0, %v5426
    %v5450 = vsub.f32 1.0, %v5428
    %5453 = vrot.lane.b32.xlu0 %v5447, 112
    %v5454 = vpop.permute.xlu0 %5453
    %5455 = vrot.lane.b32.xlu0 %v5448, 112
    %v5456 = vpop.permute.xlu0 %5455
    %v5459 = vmul.f32 %v5449, %v5454
    %v5460 = vmul.f32 %v5450, %v5456
    %v5461 = vrot.slane %v5285, 5
    %v5462 = vrot.slane %v5285, 6
    %5463 = vrot.lane.b32.xlu0 %v5461, 16
    %v5464 = vpop.permute.xlu0 %5463
    %5465 = vrot.lane.b32.xlu0 %v5462, 16
    %v5466 = vpop.permute.xlu0 %5465
    %v5469 = vmul.f32 %v5426, %v5464
    %v5470 = vmul.f32 %v5428, %v5466
    %v5471 = vadd.f32 %v5459, %v5469
    %v5472 = vadd.f32 %v5460, %v5470
    %v5475 = vlaneseq
    %v5476 = vshrl.u32 %v5475, 7
    %v5477 = vsub.s32 0, %v5476
    %v5478 = vrot.slane %v5404, %v5477
    %v5479 = vlaneseq
    %v5480 = vshrl.u32 %v5479, 7
    %v5481 = vsub.s32 0, %v5480
    %v5482 = vrot.slane %v5405, %v5481
    %v5483 = vsel %vm3719, %v5482, %v5478
    %5484 = vrot.lane.b32.xlu0 %v5483, 112
    %v5485 = vpop.permute.xlu0 %5484
    %v5487 = vsel %vm4396, %v5485, %v5270
    %v5490 = vlaneseq
    %v5491 = vshrl.u32 %v5490, 7
    %v5492 = vsub.s32 3, %v5491
    %v5493 = vrot.slane %v5471, %v5492
    %v5494 = vlaneseq
    %v5495 = vshrl.u32 %v5494, 7
    %v5496 = vsub.s32 3, %v5495
    %v5497 = vrot.slane %v5472, %v5496
    %v5498 = vsel %vm3719, %v5497, %v5493
    %5499 = vrot.lane.b32.xlu0 %v5498, 112
    %v5500 = vpop.permute.xlu0 %5499
    %v5502 = vsel %vm4376, %v5500, %v5285
    %v5503 = vsel %vm4396, %v5485, 0.0
    %v5504 = vsel %vm3745, %v5503, 0.0
    %s5505 = scalar_lea.vmem [#allocation2], 16
    %5506 = vst [vmem:[%s5505] sm:$0x3] %v5504
    %v5507 = vsel %vm4376, %v5500, 0.0
    %v5508 = vsel %vm3745, %v5507, 0.0
    %s5509 = scalar_lea.vmem [#allocation2], 30
    %5510 = vst [vmem:[%s5509] sm:$0x3] %v5508
    %5512 = vrot.lane.b32.xlu0 %v5502, 16
    %v5513 = vpop.permute.xlu0 %5512
    %v5515 = vsel %vm3745, %v5487, %v5513
    %v5516 = vpack.c.bf16 %v5515, %v5515
    %v5518 = vsel %vm3546, %v5516, 0
    %5520 = vmatprep.subr.bf16.mxu0 %v3539
    %5521 = vmatpush1.bf16.msra.mxu0 %v3538
    %5522 = vmatprep.subr.bf16.mxu0 %v3541
    %5523 = vmatpush1.bf16.msra.mxu0 %v3540
    %5524 = vmatprep.subr.bf16.mxu0 0
    %5525 = vmatpush1.bf16.msra.mxu0 0
    %5526 = vmatprep.subr.bf16.mxu0 0
    %5527 = vmatpush1.bf16.msra.mxu0 0
    %5528 = vmatprep.subr.bf16.mxu0 0
    %5529 = vmatpush1.bf16.msra.mxu0 0
    %5530 = vmatprep.subr.bf16.mxu0 0
    %5531 = vmatpush1.bf16.msra.mxu0 0
    %5532 = vmatprep.subr.bf16.mxu0 0
    %5533 = vmatpush1.bf16.msra.mxu0 0
    %5534 = vmatprep.subr.bf16.mxu0 0
    %5535 = vmatpush1.bf16.msra.mxu0 0
    %5536 = vmatprep.subr.bf16.mxu0 0
    %5537 = vmatpush1.bf16.msra.mxu0 0
    %5538 = vmatprep.subr.bf16.mxu0 0
    %5539 = vmatpush1.bf16.msra.mxu0 0
    %5540 = vmatprep.subr.bf16.mxu0 0
    %5541 = vmatpush1.bf16.msra.mxu0 0
    %5542 = vmatprep.subr.bf16.mxu0 0
    %5543 = vmatpush1.bf16.msra.mxu0 0
    %5544 = vmatprep.subr.bf16.mxu0 0
    %5545 = vmatpush1.bf16.msra.mxu0 0
    %5546 = vmatprep.subr.bf16.mxu0 0
    %5547 = vmatpush1.bf16.msra.mxu0 0
    %5548 = vmatprep.subr.bf16.mxu0 0
    %5549 = vmatpush1.bf16.msra.mxu0 0
    %5550 = vmatprep.subr.bf16.mxu0 0
    %5551 = vmatpush1.bf16.msra.mxu0 0
    %5552 = vmatprep.mubr.bf16.mxu0 0
    %5553 = vmatmul.mubr.bf16.gmra.mrb[0].mxu0 %v5518
    %v5554 = vpop.f32.mrb[0].mxu0
    %v5555 = vadd.f32 %v3519, %v5554
    %v5556 = vpop.f32.mrb[0].mxu0
    %v5557 = vadd.f32 %v3523, %v5556
    %v5558 = vpop.f32.mrb[0].mxu0
    %v5559 = vpop.f32.mrb[0].mxu0
    %5560 = vdwg.mxu0
    %v5562 = vrot.slane %v5555, 7
    %v5565 = vadd.f32 %v3496, %v5562
    %v5566 = vadd.f32 %v3499, %v5555
    %v5567 = vxor.u32 %v5565, 2147483648
    %v5568 = vxor.u32 %v5566, 2147483648
    %v5569 = vmul.f32 %v5567, 1.442695
    %v5570 = vpow.pop %v5569
    %v5571 = vmul.f32 %v5568, 1.442695
    %v5572 = vpow.pop %v5571
    %v5573 = vadd.f32 %v5570, 1.0
    %v5574 = vadd.f32 %v5572, 1.0
    %v5575 = vrcp.pop %v5573
    %v5576 = vmul.f32 1.0, %v5575
    %v5577 = vrcp.pop %v5574
    %v5578 = vmul.f32 1.0, %v5577
    %5579 = vrot.lane.b32.xlu0 %v5562, 96
    %v5580 = vpop.permute.xlu0 %5579
    %5581 = vrot.lane.b32.xlu0 %v5555, 96
    %v5582 = vpop.permute.xlu0 %5581
    %v5585 = vmul.f32 %v5576, %v5580
    %v5586 = vmul.f32 %v5578, %v5582
    %5589 = vrot.lane.b32.xlu0 %v5585, 32
    %v5590 = vpop.permute.xlu0 %5589
    %5591 = vrot.lane.b32.xlu0 %v5586, 32
    %v5592 = vpop.permute.xlu0 %5591
    %v5595 = vadd.f32 %v3496, %v5590
    %v5596 = vadd.f32 %v3499, %v5592
    %v5597 = vtanh.pop %v5595
    %v5598 = vtanh.pop %v5596
    %v5599 = vsub.f32 1.0, %v5576
    %v5600 = vsub.f32 1.0, %v5578
    %5603 = vrot.lane.b32.xlu0 %v5597, 112
    %v5604 = vpop.permute.xlu0 %5603
    %5605 = vrot.lane.b32.xlu0 %v5598, 112
    %v5606 = vpop.permute.xlu0 %5605
    %v5609 = vmul.f32 %v5599, %v5604
    %v5610 = vmul.f32 %v5600, %v5606
    %v5612 = vrot.slane %v5487, 7
    %5613 = vrot.lane.b32.xlu0 %v5612, 16
    %v5614 = vpop.permute.xlu0 %5613
    %5615 = vrot.lane.b32.xlu0 %v5487, 16
    %v5616 = vpop.permute.xlu0 %5615
    %v5619 = vmul.f32 %v5576, %v5614
    %v5620 = vmul.f32 %v5578, %v5616
    %v5621 = vadd.f32 %v5609, %v5619
    %v5622 = vadd.f32 %v5610, %v5620
    %v5624 = vrot.slane %v5557, 6
    %v5625 = vrot.slane %v5557, 7
    %v5628 = vadd.f32 %v5406, %v5624
    %v5629 = vadd.f32 %v5407, %v5625
    %v5630 = vxor.u32 %v5628, 2147483648
    %v5631 = vxor.u32 %v5629, 2147483648
    %v5632 = vmul.f32 %v5630, 1.442695
    %v5633 = vpow.pop %v5632
    %v5634 = vmul.f32 %v5631, 1.442695
    %v5635 = vpow.pop %v5634
    %v5636 = vadd.f32 %v5633, 1.0
    %v5637 = vadd.f32 %v5635, 1.0
    %v5638 = vrcp.pop %v5636
    %v5639 = vmul.f32 1.0, %v5638
    %v5640 = vrcp.pop %v5637
    %v5641 = vmul.f32 1.0, %v5640
    %5642 = vrot.lane.b32.xlu0 %v5624, 96
    %v5643 = vpop.permute.xlu0 %5642
    %5644 = vrot.lane.b32.xlu0 %v5625, 96
    %v5645 = vpop.permute.xlu0 %5644
    %v5648 = vmul.f32 %v5639, %v5643
    %v5649 = vmul.f32 %v5641, %v5645
    %5652 = vrot.lane.b32.xlu0 %v5648, 32
    %v5653 = vpop.permute.xlu0 %5652
    %5654 = vrot.lane.b32.xlu0 %v5649, 32
    %v5655 = vpop.permute.xlu0 %5654
    %v5658 = vadd.f32 %v5406, %v5653
    %v5659 = vadd.f32 %v5407, %v5655
    %v5660 = vtanh.pop %v5658
    %v5661 = vtanh.pop %v5659
    %v5662 = vsub.f32 1.0, %v5639
    %v5663 = vsub.f32 1.0, %v5641
    %5666 = vrot.lane.b32.xlu0 %v5660, 112
    %v5667 = vpop.permute.xlu0 %5666
    %5668 = vrot.lane.b32.xlu0 %v5661, 112
    %v5669 = vpop.permute.xlu0 %5668
    %v5672 = vmul.f32 %v5662, %v5667
    %v5673 = vmul.f32 %v5663, %v5669
    %v5674 = vrot.slane %v5502, 6
    %v5675 = vrot.slane %v5502, 7
    %5676 = vrot.lane.b32.xlu0 %v5674, 16
    %v5677 = vpop.permute.xlu0 %5676
    %5678 = vrot.lane.b32.xlu0 %v5675, 16
    %v5679 = vpop.permute.xlu0 %5678
    %v5682 = vmul.f32 %v5639, %v5677
    %v5683 = vmul.f32 %v5641, %v5679
    %v5684 = vadd.f32 %v5672, %v5682
    %v5685 = vadd.f32 %v5673, %v5683
    %v5688 = vlaneseq
    %v5689 = vshrl.u32 %v5688, 7
    %v5690 = vsub.s32 1, %v5689
    %v5691 = vrot.slane %v5621, %v5690
    %v5692 = vlaneseq
    %v5693 = vshrl.u32 %v5692, 7
    %v5694 = vsub.s32 1, %v5693
    %v5695 = vrot.slane %v5622, %v5694
    %v5696 = vsel %vm3719, %v5695, %v5691
    %5697 = vrot.lane.b32.xlu0 %v5696, 112
    %v5698 = vpop.permute.xlu0 %5697
    %v5700 = vsel %vm4174, %v5698, %v5487
    %v5703 = vlaneseq
    %v5704 = vshrl.u32 %v5703, 7
    %v5705 = vsub.s32 2, %v5704
    %v5706 = vrot.slane %v5684, %v5705
    %v5707 = vlaneseq
    %v5708 = vshrl.u32 %v5707, 7
    %v5709 = vsub.s32 2, %v5708
    %v5710 = vrot.slane %v5685, %v5709
    %v5711 = vsel %vm3719, %v5710, %v5706
    %5712 = vrot.lane.b32.xlu0 %v5711, 112
    %v5713 = vpop.permute.xlu0 %5712
    %v5715 = vsel %vm4154, %v5713, %v5502
    %v5716 = vsel %vm4174, %v5698, 0.0
    %v5717 = vsel %vm3745, %v5716, 0.0
    %s5718 = scalar_lea.vmem [#allocation2], 18
    %5719 = vst [vmem:[%s5718] sm:$0x3] %v5717
    %v5720 = vsel %vm4154, %v5713, 0.0
    %v5721 = vsel %vm3745, %v5720, 0.0
    %s5722 = scalar_lea.vmem [#allocation2], 28
    %5723 = vst [vmem:[%s5722] sm:$0x3] %v5721
    %5725 = vrot.lane.b32.xlu0 %v5715, 16
    %v5726 = vpop.permute.xlu0 %5725
    %v5728 = vsel %vm3745, %v5700, %v5726
    %v5729 = vpack.c.bf16 %v5728, %v5728
    %v5731 = vsel %vm3546, %v5729, 0
    %5733 = vmatprep.subr.bf16.mxu0 %v3539
    %5734 = vmatpush1.bf16.msra.mxu0 %v3538
    %5735 = vmatprep.subr.bf16.mxu0 %v3541
    %5736 = vmatpush1.bf16.msra.mxu0 %v3540
    %5737 = vmatprep.subr.bf16.mxu0 0
    %5738 = vmatpush1.bf16.msra.mxu0 0
    %5739 = vmatprep.subr.bf16.mxu0 0
    %5740 = vmatpush1.bf16.msra.mxu0 0
    %5741 = vmatprep.subr.bf16.mxu0 0
    %5742 = vmatpush1.bf16.msra.mxu0 0
    %5743 = vmatprep.subr.bf16.mxu0 0
    %5744 = vmatpush1.bf16.msra.mxu0 0
    %5745 = vmatprep.subr.bf16.mxu0 0
    %5746 = vmatpush1.bf16.msra.mxu0 0
    %5747 = vmatprep.subr.bf16.mxu0 0
    %5748 = vmatpush1.bf16.msra.mxu0 0
    %5749 = vmatprep.subr.bf16.mxu0 0
    %5750 = vmatpush1.bf16.msra.mxu0 0
    %5751 = vmatprep.subr.bf16.mxu0 0
    %5752 = vmatpush1.bf16.msra.mxu0 0
    %5753 = vmatprep.subr.bf16.mxu0 0
    %5754 = vmatpush1.bf16.msra.mxu0 0
    %5755 = vmatprep.subr.bf16.mxu0 0
    %5756 = vmatpush1.bf16.msra.mxu0 0
    %5757 = vmatprep.subr.bf16.mxu0 0
    %5758 = vmatpush1.bf16.msra.mxu0 0
    %5759 = vmatprep.subr.bf16.mxu0 0
    %5760 = vmatpush1.bf16.msra.mxu0 0
    %5761 = vmatprep.subr.bf16.mxu0 0
    %5762 = vmatpush1.bf16.msra.mxu0 0
    %5763 = vmatprep.subr.bf16.mxu0 0
    %5764 = vmatpush1.bf16.msra.mxu0 0
    %5765 = vmatprep.mubr.bf16.mxu0 0
    %5766 = vmatmul.mubr.bf16.gmra.mrb[0].mxu0 %v5731
    %v5767 = vpop.f32.mrb[0].mxu0
    %v5768 = vadd.f32 %v3519, %v5767
    %v5769 = vpop.f32.mrb[0].mxu0
    %v5770 = vadd.f32 %v3523, %v5769
    %v5771 = vpop.f32.mrb[0].mxu0
    %v5772 = vpop.f32.mrb[0].mxu0
    %5773 = vdwg.mxu0
    %v5775 = vrot.slane %v5768, 6
    %v5776 = vrot.slane %v5768, 7
    %v5779 = vadd.f32 %v3496, %v5775
    %v5780 = vadd.f32 %v3499, %v5776
    %v5781 = vxor.u32 %v5779, 2147483648
    %v5782 = vxor.u32 %v5780, 2147483648
    %v5783 = vmul.f32 %v5781, 1.442695
    %v5784 = vpow.pop %v5783
    %v5785 = vmul.f32 %v5782, 1.442695
    %v5786 = vpow.pop %v5785
    %v5787 = vadd.f32 %v5784, 1.0
    %v5788 = vadd.f32 %v5786, 1.0
    %v5789 = vrcp.pop %v5787
    %v5790 = vmul.f32 1.0, %v5789
    %v5791 = vrcp.pop %v5788
    %v5792 = vmul.f32 1.0, %v5791
    %5793 = vrot.lane.b32.xlu0 %v5775, 96
    %v5794 = vpop.permute.xlu0 %5793
    %5795 = vrot.lane.b32.xlu0 %v5776, 96
    %v5796 = vpop.permute.xlu0 %5795
    %v5799 = vmul.f32 %v5790, %v5794
    %v5800 = vmul.f32 %v5792, %v5796
    %5803 = vrot.lane.b32.xlu0 %v5799, 32
    %v5804 = vpop.permute.xlu0 %5803
    %5805 = vrot.lane.b32.xlu0 %v5800, 32
    %v5806 = vpop.permute.xlu0 %5805
    %v5809 = vadd.f32 %v3496, %v5804
    %v5810 = vadd.f32 %v3499, %v5806
    %v5811 = vtanh.pop %v5809
    %v5812 = vtanh.pop %v5810
    %v5813 = vsub.f32 1.0, %v5790
    %v5814 = vsub.f32 1.0, %v5792
    %5817 = vrot.lane.b32.xlu0 %v5811, 112
    %v5818 = vpop.permute.xlu0 %5817
    %5819 = vrot.lane.b32.xlu0 %v5812, 112
    %v5820 = vpop.permute.xlu0 %5819
    %v5823 = vmul.f32 %v5813, %v5818
    %v5824 = vmul.f32 %v5814, %v5820
    %v5826 = vrot.slane %v5700, 6
    %v5827 = vrot.slane %v5700, 7
    %5828 = vrot.lane.b32.xlu0 %v5826, 16
    %v5829 = vpop.permute.xlu0 %5828
    %5830 = vrot.lane.b32.xlu0 %v5827, 16
    %v5831 = vpop.permute.xlu0 %5830
    %v5834 = vmul.f32 %v5790, %v5829
    %v5835 = vmul.f32 %v5792, %v5831
    %v5836 = vadd.f32 %v5823, %v5834
    %v5837 = vadd.f32 %v5824, %v5835
    %v5839 = vrot.slane %v5770, 7
    %v5842 = vadd.f32 %v5406, %v5839
    %v5843 = vadd.f32 %v5407, %v5770
    %v5844 = vxor.u32 %v5842, 2147483648
    %v5845 = vxor.u32 %v5843, 2147483648
    %v5846 = vmul.f32 %v5844, 1.442695
    %v5847 = vpow.pop %v5846
    %v5848 = vmul.f32 %v5845, 1.442695
    %v5849 = vpow.pop %v5848
    %v5850 = vadd.f32 %v5847, 1.0
    %v5851 = vadd.f32 %v5849, 1.0
    %v5852 = vrcp.pop %v5850
    %v5853 = vmul.f32 1.0, %v5852
    %v5854 = vrcp.pop %v5851
    %v5855 = vmul.f32 1.0, %v5854
    %5856 = vrot.lane.b32.xlu0 %v5839, 96
    %v5857 = vpop.permute.xlu0 %5856
    %5858 = vrot.lane.b32.xlu0 %v5770, 96
    %v5859 = vpop.permute.xlu0 %5858
    %v5862 = vmul.f32 %v5853, %v5857
    %v5863 = vmul.f32 %v5855, %v5859
    %5866 = vrot.lane.b32.xlu0 %v5862, 32
    %v5867 = vpop.permute.xlu0 %5866
    %5868 = vrot.lane.b32.xlu0 %v5863, 32
    %v5869 = vpop.permute.xlu0 %5868
    %v5872 = vadd.f32 %v5406, %v5867
    %v5873 = vadd.f32 %v5407, %v5869
    %v5874 = vtanh.pop %v5872
    %v5875 = vtanh.pop %v5873
    %v5876 = vsub.f32 1.0, %v5853
    %v5877 = vsub.f32 1.0, %v5855
    %5880 = vrot.lane.b32.xlu0 %v5874, 112
    %v5881 = vpop.permute.xlu0 %5880
    %5882 = vrot.lane.b32.xlu0 %v5875, 112
    %v5883 = vpop.permute.xlu0 %5882
    %v5886 = vmul.f32 %v5876, %v5881
    %v5887 = vmul.f32 %v5877, %v5883
    %v5888 = vrot.slane %v5715, 7
    %5889 = vrot.lane.b32.xlu0 %v5888, 16
    %v5890 = vpop.permute.xlu0 %5889
    %v5892 = vmul.f32 %v5853, %v5890
    %v5893 = vmul.f32 %v5855, %v5726
    %v5894 = vadd.f32 %v5886, %v5892
    %v5895 = vadd.f32 %v5887, %v5893
    %v5898 = vlaneseq
    %v5899 = vshrl.u32 %v5898, 7
    %v5900 = vsub.s32 2, %v5899
    %v5901 = vrot.slane %v5836, %v5900
    %v5902 = vlaneseq
    %v5903 = vshrl.u32 %v5902, 7
    %v5904 = vsub.s32 2, %v5903
    %v5905 = vrot.slane %v5837, %v5904
    %v5906 = vsel %vm3719, %v5905, %v5901
    %5907 = vrot.lane.b32.xlu0 %v5906, 112
    %v5908 = vpop.permute.xlu0 %5907
    %v5910 = vsel %vm3952, %v5908, %v5700
    %v5913 = vlaneseq
    %v5914 = vshrl.u32 %v5913, 7
    %v5915 = vsub.s32 1, %v5914
    %v5916 = vrot.slane %v5894, %v5915
    %v5917 = vlaneseq
    %v5918 = vshrl.u32 %v5917, 7
    %v5919 = vsub.s32 1, %v5918
    %v5920 = vrot.slane %v5895, %v5919
    %v5921 = vsel %vm3719, %v5920, %v5916
    %5922 = vrot.lane.b32.xlu0 %v5921, 112
    %v5923 = vpop.permute.xlu0 %5922
    %v5925 = vsel %vm3932, %v5923, %v5715
    %v5926 = vsel %vm3952, %v5908, 0.0
    %v5927 = vsel %vm3745, %v5926, 0.0
    %s5928 = scalar_lea.vmem [#allocation2], 20
    %5929 = vst [vmem:[%s5928] sm:$0x3] %v5927
    %v5930 = vsel %vm3932, %v5923, 0.0
    %v5931 = vsel %vm3745, %v5930, 0.0
    %s5932 = scalar_lea.vmem [#allocation2], 26
    %5933 = vst [vmem:[%s5932] sm:$0x3] %v5931
    %5935 = vrot.lane.b32.xlu0 %v5925, 16
    %v5936 = vpop.permute.xlu0 %5935
    %v5938 = vsel %vm3745, %v5910, %v5936
    %v5939 = vpack.c.bf16 %v5938, %v5938
    %v5941 = vsel %vm3546, %v5939, 0
    %5943 = vmatprep.subr.bf16.mxu0 %v3539
    %5944 = vmatpush1.bf16.msra.mxu0 %v3538
    %5945 = vmatprep.subr.bf16.mxu0 %v3541
    %5946 = vmatpush1.bf16.msra.mxu0 %v3540
    %5947 = vmatprep.subr.bf16.mxu0 0
    %5948 = vmatpush1.bf16.msra.mxu0 0
    %5949 = vmatprep.subr.bf16.mxu0 0
    %5950 = vmatpush1.bf16.msra.mxu0 0
    %5951 = vmatprep.subr.bf16.mxu0 0
    %5952 = vmatpush1.bf16.msra.mxu0 0
    %5953 = vmatprep.subr.bf16.mxu0 0
    %5954 = vmatpush1.bf16.msra.mxu0 0
    %5955 = vmatprep.subr.bf16.mxu0 0
    %5956 = vmatpush1.bf16.msra.mxu0 0
    %5957 = vmatprep.subr.bf16.mxu0 0
    %5958 = vmatpush1.bf16.msra.mxu0 0
    %5959 = vmatprep.subr.bf16.mxu0 0
    %5960 = vmatpush1.bf16.msra.mxu0 0
    %5961 = vmatprep.subr.bf16.mxu0 0
    %5962 = vmatpush1.bf16.msra.mxu0 0
    %5963 = vmatprep.subr.bf16.mxu0 0
    %5964 = vmatpush1.bf16.msra.mxu0 0
    %5965 = vmatprep.subr.bf16.mxu0 0
    %5966 = vmatpush1.bf16.msra.mxu0 0
    %5967 = vmatprep.subr.bf16.mxu0 0
    %5968 = vmatpush1.bf16.msra.mxu0 0
    %5969 = vmatprep.subr.bf16.mxu0 0
    %5970 = vmatpush1.bf16.msra.mxu0 0
    %5971 = vmatprep.subr.bf16.mxu0 0
    %5972 = vmatpush1.bf16.msra.mxu0 0
    %5973 = vmatprep.subr.bf16.mxu0 0
    %5974 = vmatpush1.bf16.msra.mxu0 0
    %5975 = vmatprep.mubr.bf16.mxu0 0
    %5976 = vmatmul.mubr.bf16.gmra.mrb[0].mxu0 %v5941
    %v5977 = vpop.f32.mrb[0].mxu0
    %v5978 = vadd.f32 %v3519, %v5977
    %v5979 = vpop.f32.mrb[0].mxu0
    %v5980 = vadd.f32 %v3523, %v5979
    %v5981 = vpop.f32.mrb[0].mxu0
    %v5982 = vpop.f32.mrb[0].mxu0
    %5983 = vdwg.mxu0
    %v5985 = vrot.slane %v5978, 5
    %v5986 = vrot.slane %v5978, 6
    %v5989 = vadd.f32 %v3496, %v5985
    %v5990 = vadd.f32 %v3499, %v5986
    %v5991 = vxor.u32 %v5989, 2147483648
    %v5992 = vxor.u32 %v5990, 2147483648
    %v5993 = vmul.f32 %v5991, 1.442695
    %v5994 = vpow.pop %v5993
    %v5995 = vmul.f32 %v5992, 1.442695
    %v5996 = vpow.pop %v5995
    %v5997 = vadd.f32 %v5994, 1.0
    %v5998 = vadd.f32 %v5996, 1.0
    %v5999 = vrcp.pop %v5997
    %v6000 = vmul.f32 1.0, %v5999
    %v6001 = vrcp.pop %v5998
    %v6002 = vmul.f32 1.0, %v6001
    %6003 = vrot.lane.b32.xlu0 %v5985, 96
    %v6004 = vpop.permute.xlu0 %6003
    %6005 = vrot.lane.b32.xlu0 %v5986, 96
    %v6006 = vpop.permute.xlu0 %6005
    %v6009 = vmul.f32 %v6000, %v6004
    %v6010 = vmul.f32 %v6002, %v6006
    %6013 = vrot.lane.b32.xlu0 %v6009, 32
    %v6014 = vpop.permute.xlu0 %6013
    %6015 = vrot.lane.b32.xlu0 %v6010, 32
    %v6016 = vpop.permute.xlu0 %6015
    %v6019 = vadd.f32 %v3496, %v6014
    %v6020 = vadd.f32 %v3499, %v6016
    %v6021 = vtanh.pop %v6019
    %v6022 = vtanh.pop %v6020
    %v6023 = vsub.f32 1.0, %v6000
    %v6024 = vsub.f32 1.0, %v6002
    %6027 = vrot.lane.b32.xlu0 %v6021, 112
    %v6028 = vpop.permute.xlu0 %6027
    %6029 = vrot.lane.b32.xlu0 %v6022, 112
    %v6030 = vpop.permute.xlu0 %6029
    %v6033 = vmul.f32 %v6023, %v6028
    %v6034 = vmul.f32 %v6024, %v6030
    %v6036 = vrot.slane %v5910, 5
    %v6037 = vrot.slane %v5910, 6
    %6038 = vrot.lane.b32.xlu0 %v6036, 16
    %v6039 = vpop.permute.xlu0 %6038
    %6040 = vrot.lane.b32.xlu0 %v6037, 16
    %v6041 = vpop.permute.xlu0 %6040
    %v6044 = vmul.f32 %v6000, %v6039
    %v6045 = vmul.f32 %v6002, %v6041
    %v6046 = vadd.f32 %v6033, %v6044
    %v6047 = vadd.f32 %v6034, %v6045
    %v6049 = vrot.slane %v5980, 1
    %v6052 = vadd.f32 %v5406, %v5980
    %v6053 = vadd.f32 %v5407, %v6049
    %v6054 = vxor.u32 %v6052, 2147483648
    %v6055 = vxor.u32 %v6053, 2147483648
    %v6056 = vmul.f32 %v6054, 1.442695
    %v6057 = vpow.pop %v6056
    %v6058 = vmul.f32 %v6055, 1.442695
    %v6059 = vpow.pop %v6058
    %v6060 = vadd.f32 %v6057, 1.0
    %v6061 = vadd.f32 %v6059, 1.0
    %v6062 = vrcp.pop %v6060
    %v6063 = vmul.f32 1.0, %v6062
    %v6064 = vrcp.pop %v6061
    %v6065 = vmul.f32 1.0, %v6064
    %6066 = vrot.lane.b32.xlu0 %v5980, 96
    %v6067 = vpop.permute.xlu0 %6066
    %6068 = vrot.lane.b32.xlu0 %v6049, 96
    %v6069 = vpop.permute.xlu0 %6068
    %v6072 = vmul.f32 %v6063, %v6067
    %v6073 = vmul.f32 %v6065, %v6069
    %6076 = vrot.lane.b32.xlu0 %v6072, 32
    %v6077 = vpop.permute.xlu0 %6076
    %6078 = vrot.lane.b32.xlu0 %v6073, 32
    %v6079 = vpop.permute.xlu0 %6078
    %v6082 = vadd.f32 %v5406, %v6077
    %v6083 = vadd.f32 %v5407, %v6079
    %v6084 = vtanh.pop %v6082
    %v6085 = vtanh.pop %v6083
    %v6086 = vsub.f32 1.0, %v6063
    %v6087 = vsub.f32 1.0, %v6065
    %6090 = vrot.lane.b32.xlu0 %v6084, 112
    %v6091 = vpop.permute.xlu0 %6090
    %6092 = vrot.lane.b32.xlu0 %v6085, 112
    %v6093 = vpop.permute.xlu0 %6092
    %v6096 = vmul.f32 %v6086, %v6091
    %v6097 = vmul.f32 %v6087, %v6093
    %v6098 = vrot.slane %v5925, 1
    %6099 = vrot.lane.b32.xlu0 %v6098, 16
    %v6100 = vpop.permute.xlu0 %6099
    %v6102 = vmul.f32 %v6063, %v5936
    %v6103 = vmul.f32 %v6065, %v6100
    %v6104 = vadd.f32 %v6096, %v6102
    %v6105 = vadd.f32 %v6097, %v6103
    %v6108 = vlaneseq
    %v6109 = vshrl.u32 %v6108, 7
    %v6110 = vsub.s32 3, %v6109
    %v6111 = vrot.slane %v6046, %v6110
    %v6112 = vlaneseq
    %v6113 = vshrl.u32 %v6112, 7
    %v6114 = vsub.s32 3, %v6113
    %v6115 = vrot.slane %v6047, %v6114
    %v6116 = vsel %vm3719, %v6115, %v6111
    %6117 = vrot.lane.b32.xlu0 %v6116, 112
    %v6118 = vpop.permute.xlu0 %6117
    %v6120 = vsel %vm3729, %v6118, 0.0
    %v6121 = vsel %vm3745, %v6120, 0.0
    %s6122 = scalar_lea.vmem [#allocation2], 22
    %6123 = vst [vmem:[%s6122] sm:$0x3] %v6121
    %v6126 = vlaneseq
    %v6127 = vshrl.u32 %v6126, 7
    %v6128 = vsub.s32 0, %v6127
    %v6129 = vrot.slane %v6104, %v6128
    %v6130 = vlaneseq
    %v6131 = vshrl.u32 %v6130, 7
    %v6132 = vsub.s32 0, %v6131
    %v6133 = vrot.slane %v6105, %v6132
    %v6134 = vsel %vm3719, %v6133, %v6129
    %6135 = vrot.lane.b32.xlu0 %v6134, 112
    %v6136 = vpop.permute.xlu0 %6135
    %v6138 = vsel %vm3708, %v6136, 0.0
    %v6139 = vsel %vm3745, %v6138, 0.0
    %s6140 = scalar_lea.vmem [#allocation2], 24
    %6141 = vst [vmem:[%s6140] sm:$0x3] %v6139
    %v6142 = vld [vmem:[#allocation2] sm:$0x3]
    %v6143 = vld [vmem:[#allocation2 + $0x2] sm:$0x3]
    %v6144 = vld [vmem:[#allocation2 + $0x4] sm:$0x3]
    %v6145 = vld [vmem:[#allocation2 + $0x6] sm:$0x3]
    %v6146 = vld [vmem:[#allocation2 + $0x8] sm:$0x3]
    %v6147 = vld [vmem:[#allocation2 + $0xa] sm:$0x3]
    %v6148 = vld [vmem:[#allocation2 + $0xc] sm:$0x3]
    %v6149 = vld [vmem:[#allocation2 + $0xe] sm:$0x3]
    %v6150 = vld [vmem:[#allocation2 + $0x10] sm:$0x3]
    %v6151 = vld [vmem:[#allocation2 + $0x12] sm:$0x3]
    %v6152 = vld [vmem:[#allocation2 + $0x14] sm:$0x3]
    %v6153 = vld [vmem:[#allocation2 + $0x16] sm:$0x3]
    %v6154 = vld [vmem:[%s6140] sm:$0x3]
    %v6155 = vld [vmem:[%s6140 + $0x2] sm:$0x3]
    %v6156 = vld [vmem:[%s6140 + $0x4] sm:$0x3]
    %v6157 = vld [vmem:[%s6140 + $0x6] sm:$0x3]
    %v6158 = vld [vmem:[%s6140 + $0x8] sm:$0x3]
    %v6159 = vld [vmem:[%s6140 + $0xa] sm:$0x3]
    %v6160 = vld [vmem:[%s6140 + $0xc] sm:$0x3]
    %v6161 = vld [vmem:[%s6140 + $0xe] sm:$0x3]
    %v6162 = vld [vmem:[%s6140 + $0x10] sm:$0x3]
    %v6163 = vld [vmem:[%s6140 + $0x12] sm:$0x3]
    %v6164 = vld [vmem:[%s6140 + $0x14] sm:$0x3]
    %v6165 = vld [vmem:[%s6140 + $0x16] sm:$0x3]
    %v6166 = vld [vmem:[%s2] sm:$0x1]
    %v6167 = vlaneseq
    %v6168 = vshrl.u32 %v6167, 7
    %v6169 = vadd.s32 %v6168, 8
    %v6170 = vlaneseq
    %v6171 = vshrl.u32 %v6170, 7
    %v6172 = vsub.s32 0, %v6171
    %v6173 = vrot.slane %v6166, %v6172
    %vm6174 = vcmp.lt.s32.totalorder %v6168, %v6173
    %vm6175 = vcmp.lt.s32.totalorder %v6169, %v6173
    %v6176 = vld [vmem:[%s13] sm:$0x1]
    %v6178 = vlaneseq
    %v6179 = vshrl.u32 %v6178, 7
    %v6180 = vsub.s32 0, %v6179
    %v6181 = vrot.slane %v6176, %v6180
    %v6183 = vmul.f32 %v6142, %v6181
    %v6184 = vmul.f32 %v6143, %v6181
    %v6185 = vmul.f32 %v6144, %v6181
    %v6186 = vmul.f32 %v6145, %v6181
    %v6187 = vmul.f32 %v6146, %v6181
    %v6188 = vmul.f32 %v6147, %v6181
    %v6189 = vmul.f32 %v6148, %v6181
    %v6190 = vmul.f32 %v6149, %v6181
    %v6191 = vmul.f32 %v6150, %v6181
    %v6192 = vmul.f32 %v6151, %v6181
    %v6193 = vmul.f32 %v6152, %v6181
    %v6194 = vmul.f32 %v6153, %v6181
    %vm6195 = vcmask 1041408
    %v6196 = vsel %vm6195, %v6183, 0.0
    %6197 = vadd.xlane.f32.xlu0 %v6196
    %v6198 = vpop.xlane.xlu0 %6197
    %v6199 = vsel %vm6195, %v6184, 0.0
    %6200 = vadd.xlane.f32.xlu0 %v6199
    %v6201 = vpop.xlane.xlu0 %6200
    %v6202 = vsel %vm6195, %v6185, 0.0
    %6203 = vadd.xlane.f32.xlu0 %v6202
    %v6204 = vpop.xlane.xlu0 %6203
    %v6205 = vsel %vm6195, %v6186, 0.0
    %6206 = vadd.xlane.f32.xlu0 %v6205
    %v6207 = vpop.xlane.xlu0 %6206
    %v6208 = vsel %vm6195, %v6187, 0.0
    %6209 = vadd.xlane.f32.xlu0 %v6208
    %v6210 = vpop.xlane.xlu0 %6209
    %v6211 = vsel %vm6195, %v6188, 0.0
    %6212 = vadd.xlane.f32.xlu0 %v6211
    %v6213 = vpop.xlane.xlu0 %6212
    %v6214 = vsel %vm6195, %v6189, 0.0
    %6215 = vadd.xlane.f32.xlu0 %v6214
    %v6216 = vpop.xlane.xlu0 %6215
    %v6217 = vsel %vm6195, %v6190, 0.0
    %6218 = vadd.xlane.f32.xlu0 %v6217
    %v6219 = vpop.xlane.xlu0 %6218
    %v6220 = vsel %vm6195, %v6191, 0.0
    %6221 = vadd.xlane.f32.xlu0 %v6220
    %v6222 = vpop.xlane.xlu0 %6221
    %v6223 = vsel %vm6195, %v6192, 0.0
    %6224 = vadd.xlane.f32.xlu0 %v6223
    %v6225 = vpop.xlane.xlu0 %6224
    %v6226 = vsel %vm6195, %v6193, 0.0
    %6227 = vadd.xlane.f32.xlu0 %v6226
    %v6228 = vpop.xlane.xlu0 %6227
    %v6229 = vsel %vm6195, %v6194, 0.0
    %6230 = vadd.xlane.f32.xlu0 %v6229
    %v6231 = vpop.xlane.xlu0 %6230
    %v6232 = vld [vmem:[%s14] sm:$0x1]
    %v6234 = vlaneseq
    %v6235 = vshrl.u32 %v6234, 7
    %v6236 = vsub.s32 0, %v6235
    %v6237 = vrot.slane %v6232, %v6236
    %v6239 = vmul.f32 %v6154, %v6237
    %v6240 = vmul.f32 %v6155, %v6237
    %v6241 = vmul.f32 %v6156, %v6237
    %v6242 = vmul.f32 %v6157, %v6237
    %v6243 = vmul.f32 %v6158, %v6237
    %v6244 = vmul.f32 %v6159, %v6237
    %v6245 = vmul.f32 %v6160, %v6237
    %v6246 = vmul.f32 %v6161, %v6237
    %v6247 = vmul.f32 %v6162, %v6237
    %v6248 = vmul.f32 %v6163, %v6237
    %v6249 = vmul.f32 %v6164, %v6237
    %v6250 = vmul.f32 %v6165, %v6237
    %v6251 = vsel %vm6195, %v6239, 0.0
    %6252 = vadd.xlane.f32.xlu0 %v6251
    %v6253 = vpop.xlane.xlu0 %6252
    %v6254 = vsel %vm6195, %v6240, 0.0
    %6255 = vadd.xlane.f32.xlu0 %v6254
    %v6256 = vpop.xlane.xlu0 %6255
    %v6257 = vsel %vm6195, %v6241, 0.0
    %6258 = vadd.xlane.f32.xlu0 %v6257
    %v6259 = vpop.xlane.xlu0 %6258
    %v6260 = vsel %vm6195, %v6242, 0.0
    %6261 = vadd.xlane.f32.xlu0 %v6260
    %v6262 = vpop.xlane.xlu0 %6261
    %v6263 = vsel %vm6195, %v6243, 0.0
    %6264 = vadd.xlane.f32.xlu0 %v6263
    %v6265 = vpop.xlane.xlu0 %6264
    %v6266 = vsel %vm6195, %v6244, 0.0
    %6267 = vadd.xlane.f32.xlu0 %v6266
    %v6268 = vpop.xlane.xlu0 %6267
    %v6269 = vsel %vm6195, %v6245, 0.0
    %6270 = vadd.xlane.f32.xlu0 %v6269
    %v6271 = vpop.xlane.xlu0 %6270
    %v6272 = vsel %vm6195, %v6246, 0.0
    %6273 = vadd.xlane.f32.xlu0 %v6272
    %v6274 = vpop.xlane.xlu0 %6273
    %v6275 = vsel %vm6195, %v6247, 0.0
    %6276 = vadd.xlane.f32.xlu0 %v6275
    %v6277 = vpop.xlane.xlu0 %6276
    %v6278 = vsel %vm6195, %v6248, 0.0
    %6279 = vadd.xlane.f32.xlu0 %v6278
    %v6280 = vpop.xlane.xlu0 %6279
    %v6281 = vsel %vm6195, %v6249, 0.0
    %6282 = vadd.xlane.f32.xlu0 %v6281
    %v6283 = vpop.xlane.xlu0 %6282
    %v6284 = vsel %vm6195, %v6250, 0.0
    %6285 = vadd.xlane.f32.xlu0 %v6284
    %v6286 = vpop.xlane.xlu0 %6285
    %v6287 = vadd.f32 %v6198, %v6253
    %v6288 = vadd.f32 %v6201, %v6256
    %v6289 = vadd.f32 %v6204, %v6259
    %v6290 = vadd.f32 %v6207, %v6262
    %v6291 = vadd.f32 %v6210, %v6265
    %v6292 = vadd.f32 %v6213, %v6268
    %v6293 = vadd.f32 %v6216, %v6271
    %v6294 = vadd.f32 %v6219, %v6274
    %v6295 = vadd.f32 %v6222, %v6277
    %v6296 = vadd.f32 %v6225, %v6280
    %v6297 = vadd.f32 %v6228, %v6283
    %v6298 = vadd.f32 %v6231, %v6286
    %v6299 = vld [vmem:[#allocation3] sm:$0x1]
    %v6301 = vlaneseq
    %v6302 = vshrl.u32 %v6301, 7
    %v6303 = vsub.s32 0, %v6302
    %v6304 = vrot.slane %v6299, %v6303
    %6305 = vset.pattern.permute.xlu0 0
    %6306 = vperm.xlu0 %6305, %v6304
    %v6307 = vpop.permute.xlu0 %6306
    %v6309 = vadd.f32 %v6287, %v6307
    %v6310 = vadd.f32 %v6288, %v6307
    %v6311 = vadd.f32 %v6289, %v6307
    %v6312 = vadd.f32 %v6290, %v6307
    %v6313 = vadd.f32 %v6291, %v6307
    %v6314 = vadd.f32 %v6292, %v6307
    %v6315 = vadd.f32 %v6293, %v6307
    %v6316 = vadd.f32 %v6294, %v6307
    %v6317 = vadd.f32 %v6295, %v6307
    %v6318 = vadd.f32 %v6296, %v6307
    %v6319 = vadd.f32 %v6297, %v6307
    %v6320 = vadd.f32 %v6298, %v6307
    %v6333 = vlaneseq
    %v6334 = vand.u32 %v6333, 127
    %v6335 = vlaneseq
    %v6336 = vshrl.u32 %v6335, 7
    %v6337 = vsub.s32 %v6334, %v6336
    %v6338 = vrot.slane %v6309, %v6337
    %v6339 = vlaneseq
    %v6340 = vshrl.u32 %v6339, 7
    %v6341 = vsub.s32 %v6334, %v6340
    %v6342 = vrot.slane %v6310, %v6341
    %v6343 = vlaneseq
    %v6344 = vshrl.u32 %v6343, 7
    %v6345 = vsub.s32 %v6334, %v6344
    %v6346 = vrot.slane %v6311, %v6345
    %v6347 = vlaneseq
    %v6348 = vshrl.u32 %v6347, 7
    %v6349 = vsub.s32 %v6334, %v6348
    %v6350 = vrot.slane %v6312, %v6349
    %v6351 = vlaneseq
    %v6352 = vshrl.u32 %v6351, 7
    %v6353 = vsub.s32 %v6334, %v6352
    %v6354 = vrot.slane %v6313, %v6353
    %v6355 = vlaneseq
    %v6356 = vshrl.u32 %v6355, 7
    %v6357 = vsub.s32 %v6334, %v6356
    %v6358 = vrot.slane %v6314, %v6357
    %v6359 = vlaneseq
    %v6360 = vshrl.u32 %v6359, 7
    %v6361 = vsub.s32 %v6334, %v6360
    %v6362 = vrot.slane %v6315, %v6361
    %v6363 = vlaneseq
    %v6364 = vshrl.u32 %v6363, 7
    %v6365 = vsub.s32 %v6334, %v6364
    %v6366 = vrot.slane %v6316, %v6365
    %v6367 = vlaneseq
    %v6368 = vshrl.u32 %v6367, 7
    %v6369 = vsub.s32 %v6334, %v6368
    %v6370 = vrot.slane %v6317, %v6369
    %v6371 = vlaneseq
    %v6372 = vshrl.u32 %v6371, 7
    %v6373 = vsub.s32 %v6334, %v6372
    %v6374 = vrot.slane %v6318, %v6373
    %v6375 = vlaneseq
    %v6376 = vshrl.u32 %v6375, 7
    %v6377 = vsub.s32 %v6334, %v6376
    %v6378 = vrot.slane %v6319, %v6377
    %v6379 = vlaneseq
    %v6380 = vshrl.u32 %v6379, 7
    %v6381 = vsub.s32 %v6334, %v6380
    %v6382 = vrot.slane %v6320, %v6381
    %v6383 = vsel %vm3719, %v6342, %v6338
    %vm6384 = vcmask 1042434
    %v6385 = vsel %vm6384, %v6346, %v6383
    %vm6386 = vcmask 1043459
    %v6387 = vsel %vm6386, %v6350, %v6385
    %vm6388 = vcmask 1044484
    %v6389 = vsel %vm6388, %v6354, %v6387
    %vm6390 = vcmask 1045509
    %v6391 = vsel %vm6390, %v6358, %v6389
    %vm6392 = vcmask 1046534
    %v6393 = vsel %vm6392, %v6362, %v6391
    %vm6394 = vcmask 1047559
    %v6395 = vsel %vm6394, %v6366, %v6393
    %v6396 = vsel %vm3719, %v6374, %v6370
    %v6397 = vsel %vm6384, %v6378, %v6396
    %v6398 = vsel %vm6386, %v6382, %v6397
    %v6401 = vsel %vm6174, %v6395, -1e+30
    %v6402 = vsel %vm6175, %v6398, -1e+30
    %vm6403 = vcmask 15360
    %v6404 = vsel %vm6403, %v6401, -inf
    %vm6405 = vcmask 11264
    %v6406 = vsel %vm6405, %v6402, -inf
    %v6407 = vmax.f32 %v6404, %v6406
    %v6408 = vrot.slane %v6407, 4
    %v6409 = vmax.f32 %v6407, %v6408
    %v6410 = vrot.slane %v6409, 2
    %v6411 = vmax.f32 %v6409, %v6410
    %v6412 = vrot.slane %v6411, 1
    %v6413 = vmax.f32 %v6411, %v6412
    %v6414 = vsub.f32 %v6401, %v6413
    %v6415 = vsub.f32 %v6402, %v6413
    %v6416 = vmul.f32 %v6414, 1.442695
    %v6417 = vpow.pop %v6416
    %v6418 = vmul.f32 %v6415, 1.442695
    %v6419 = vpow.pop %v6418
    %v6420 = vsel %vm6174, %v6417, 0.0
    %v6421 = vsel %vm6175, %v6419, 0.0
    %v6422 = vsel %vm6403, %v6420, 0.0
    %v6423 = vsel %vm6405, %v6421, 0.0
    %v6424 = vadd.f32 %v6422, %v6423
    %v6425 = vrot.slane %v6424, 4
    %v6426 = vadd.f32 %v6424, %v6425
    %v6427 = vrot.slane %v6426, 2
    %v6428 = vadd.f32 %v6426, %v6427
    %v6429 = vrot.slane %v6428, 1
    %v6430 = vadd.f32 %v6428, %v6429
    %v6431 = vmax.f32 %v6430, 1e-30
    %v6432 = vrcp.pop %v6431
    %v6433 = vmul.f32 %v6420, %v6432
    %v6434 = vmul.f32 %v6421, %v6432
    %v6435 = vlaneseq
    %v6436 = vshrl.u32 %v6435, 7
    %v6437 = vsub.s32 0, %v6436
    %v6438 = vrot.slane %v6433, %v6437
    %6440 = vbcast.lane.b32.xlu0 %v6438, 256
    %v6441 = vpop.permute.xlu0 %6440
    %v6442 = vlaneseq
    %v6443 = vshrl.u32 %v6442, 7
    %v6444 = vsub.s32 1, %v6443
    %v6445 = vrot.slane %v6433, %v6444
    %6447 = vbcast.lane.b32.xlu0 %v6445, 256
    %v6448 = vpop.permute.xlu0 %6447
    %v6449 = vlaneseq
    %v6450 = vshrl.u32 %v6449, 7
    %v6451 = vsub.s32 2, %v6450
    %v6452 = vrot.slane %v6433, %v6451
    %6454 = vbcast.lane.b32.xlu0 %v6452, 256
    %v6455 = vpop.permute.xlu0 %6454
    %v6456 = vlaneseq
    %v6457 = vshrl.u32 %v6456, 7
    %v6458 = vsub.s32 3, %v6457
    %v6459 = vrot.slane %v6433, %v6458
    %6461 = vbcast.lane.b32.xlu0 %v6459, 256
    %v6462 = vpop.permute.xlu0 %6461
    %v6463 = vlaneseq
    %v6464 = vshrl.u32 %v6463, 7
    %v6465 = vsub.s32 4, %v6464
    %v6466 = vrot.slane %v6433, %v6465
    %6468 = vbcast.lane.b32.xlu0 %v6466, 256
    %v6469 = vpop.permute.xlu0 %6468
    %v6470 = vlaneseq
    %v6471 = vshrl.u32 %v6470, 7
    %v6472 = vsub.s32 5, %v6471
    %v6473 = vrot.slane %v6433, %v6472
    %6475 = vbcast.lane.b32.xlu0 %v6473, 256
    %v6476 = vpop.permute.xlu0 %6475
    %v6477 = vlaneseq
    %v6478 = vshrl.u32 %v6477, 7
    %v6479 = vsub.s32 6, %v6478
    %v6480 = vrot.slane %v6433, %v6479
    %6482 = vbcast.lane.b32.xlu0 %v6480, 256
    %v6483 = vpop.permute.xlu0 %6482
    %v6484 = vlaneseq
    %v6485 = vshrl.u32 %v6484, 7
    %v6486 = vsub.s32 7, %v6485
    %v6487 = vrot.slane %v6433, %v6486
    %6489 = vbcast.lane.b32.xlu0 %v6487, 256
    %v6490 = vpop.permute.xlu0 %6489
    %v6491 = vlaneseq
    %v6492 = vshrl.u32 %v6491, 7
    %v6493 = vsub.s32 0, %v6492
    %v6494 = vrot.slane %v6434, %v6493
    %6496 = vbcast.lane.b32.xlu0 %v6494, 256
    %v6497 = vpop.permute.xlu0 %6496
    %v6498 = vlaneseq
    %v6499 = vshrl.u32 %v6498, 7
    %v6500 = vsub.s32 1, %v6499
    %v6501 = vrot.slane %v6434, %v6500
    %6503 = vbcast.lane.b32.xlu0 %v6501, 256
    %v6504 = vpop.permute.xlu0 %6503
    %v6505 = vlaneseq
    %v6506 = vshrl.u32 %v6505, 7
    %v6507 = vsub.s32 2, %v6506
    %v6508 = vrot.slane %v6434, %v6507
    %6510 = vbcast.lane.b32.xlu0 %v6508, 256
    %v6511 = vpop.permute.xlu0 %6510
    %v6512 = vlaneseq
    %v6513 = vshrl.u32 %v6512, 7
    %v6514 = vsub.s32 3, %v6513
    %v6515 = vrot.slane %v6434, %v6514
    %6517 = vbcast.lane.b32.xlu0 %v6515, 256
    %v6518 = vpop.permute.xlu0 %6517
    %v6519 = vmul.f32 %v6441, %v6142
    %v6520 = vmul.f32 %v6448, %v6143
    %v6521 = vmul.f32 %v6455, %v6144
    %v6522 = vmul.f32 %v6462, %v6145
    %v6523 = vmul.f32 %v6469, %v6146
    %v6524 = vmul.f32 %v6476, %v6147
    %v6525 = vmul.f32 %v6483, %v6148
    %v6526 = vmul.f32 %v6490, %v6149
    %v6527 = vmul.f32 %v6497, %v6150
    %v6528 = vmul.f32 %v6504, %v6151
    %v6529 = vmul.f32 %v6511, %v6152
    %v6530 = vmul.f32 %v6518, %v6153
    %v6531 = vsel %vm6195, %v6519, 0.0
    %v6532 = vsel %vm6195, %v6520, 0.0
    %v6533 = vadd.f32 %v6531, %v6532
    %v6534 = vsel %vm6195, %v6521, 0.0
    %v6535 = vadd.f32 %v6533, %v6534
    %v6536 = vsel %vm6195, %v6522, 0.0
    %v6537 = vadd.f32 %v6535, %v6536
    %v6538 = vsel %vm6195, %v6523, 0.0
    %v6539 = vadd.f32 %v6537, %v6538
    %v6540 = vsel %vm6195, %v6524, 0.0
    %v6541 = vadd.f32 %v6539, %v6540
    %v6542 = vsel %vm6195, %v6525, 0.0
    %v6543 = vadd.f32 %v6541, %v6542
    %v6544 = vsel %vm6195, %v6526, 0.0
    %v6545 = vadd.f32 %v6543, %v6544
    %v6546 = vsel %vm6195, %v6527, 0.0
    %v6547 = vadd.f32 %v6545, %v6546
    %v6548 = vsel %vm6195, %v6528, 0.0
    %v6549 = vadd.f32 %v6547, %v6548
    %v6550 = vsel %vm6195, %v6529, 0.0
    %v6551 = vadd.f32 %v6549, %v6550
    %v6552 = vsel %vm6195, %v6530, 0.0
    %v6553 = vadd.f32 %v6551, %v6552
    %6554 = vst [vmem:[#allocation10] sm:$0x3] %v6553
    %v6555 = vmul.f32 %v6441, %v6154
    %v6556 = vmul.f32 %v6448, %v6155
    %v6557 = vmul.f32 %v6455, %v6156
    %v6558 = vmul.f32 %v6462, %v6157
    %v6559 = vmul.f32 %v6469, %v6158
    %v6560 = vmul.f32 %v6476, %v6159
    %v6561 = vmul.f32 %v6483, %v6160
    %v6562 = vmul.f32 %v6490, %v6161
    %v6563 = vmul.f32 %v6497, %v6162
    %v6564 = vmul.f32 %v6504, %v6163
    %v6565 = vmul.f32 %v6511, %v6164
    %v6566 = vmul.f32 %v6518, %v6165
    %v6567 = vsel %vm6195, %v6555, 0.0
    %v6568 = vsel %vm6195, %v6556, 0.0
    %v6569 = vadd.f32 %v6567, %v6568
    %v6570 = vsel %vm6195, %v6557, 0.0
    %v6571 = vadd.f32 %v6569, %v6570
    %v6572 = vsel %vm6195, %v6558, 0.0
    %v6573 = vadd.f32 %v6571, %v6572
    %v6574 = vsel %vm6195, %v6559, 0.0
    %v6575 = vadd.f32 %v6573, %v6574
    %v6576 = vsel %vm6195, %v6560, 0.0
    %v6577 = vadd.f32 %v6575, %v6576
    %v6578 = vsel %vm6195, %v6561, 0.0
    %v6579 = vadd.f32 %v6577, %v6578
    %v6580 = vsel %vm6195, %v6562, 0.0
    %v6581 = vadd.f32 %v6579, %v6580
    %v6582 = vsel %vm6195, %v6563, 0.0
    %v6583 = vadd.f32 %v6581, %v6582
    %v6584 = vsel %vm6195, %v6564, 0.0
    %v6585 = vadd.f32 %v6583, %v6584
    %v6586 = vsel %vm6195, %v6565, 0.0
    %v6587 = vadd.f32 %v6585, %v6586
    %v6588 = vsel %vm6195, %v6566, 0.0
    %v6589 = vadd.f32 %v6587, %v6588
    %s6590 = scalar_lea.vmem [#allocation10], 2
    %6591 = vst [vmem:[%s6590] sm:$0x3] %v6589
    // Predicated region
    $region78: #{tpu_custom_call.1} parent=1 // pred_check
      _
    $region79: #{tpu_custom_call.1} parent=1 // pred_check_branch
      %6593 = sbr.rel (0) target = $region81
    $region80: #{tpu_custom_call.1} parent=1 // pred_region
      %s6595 = ssub.s32 64, 64
      %6596 = vsyncadd [#allocation6], %s6595
      %s6597 = sshll.u32 [#allocation10], 4
      %s6598 = int_to_ptr.vmem [resolvable:$true] %s6597
      %6603 = dma.vmem_to_hbm [thread:$0]  %s6598, 64, %s16, [#allocation6], 32, 32, 2
    $region81: #{tpu_custom_call.1} parent=1 // pred_fallthru
      _
    // Predicated region
    $region82: #{tpu_custom_call.1} parent=1 // pred_check
      _
    $region83: #{tpu_custom_call.1} parent=1 // pred_check_branch
      %6605 = sbr.rel (0) target = $region85
    $region84: #{tpu_custom_call.1} parent=1 // pred_region
      %6606 = dma.done [#allocation6], 64
    $region85: #{tpu_custom_call.1} parent=1 // pred_fallthru
      _
    %6607 = vsyncpa [#allocation5], 1
    %6608 = vsyncpa [#allocation8], 1
    %6609 = vsyncpa [#allocation6], 1

</llo_original>
